<compile_context>
chip_gen: v7x
topology: tpu7x:2x2x1
jax: 0.10.0
libtpu: 0.0.40
codegen_flags: <defaults>
</compile_context>

<pallas_src>
import jax
import jax.numpy as jnp
from jax.experimental import pallas as pl
from jax.experimental.pallas import tpu as pltpu

LN_EPS = 1e-5      # torch.nn.LayerNorm default eps
GEN_EPS = 1e-7     # GENConv message eps


def _round_up(v, m):
    return (v + m - 1) // m * m


def _layer_norm(v, gamma, beta):
    mean = jnp.mean(v, axis=-1, keepdims=True)
    c = v - mean
    var = jnp.mean(c * c, axis=-1, keepdims=True)
    return c * jax.lax.rsqrt(var + LN_EPS) * gamma + beta


# ------------------------------ fused DeeperGCN kernel ------------------------------
def _deeper_gcn_kernel(
    # scalar prefetch (SMEM): per-layer temperature t
    t_sref,
    # constant (DMA'd once: constant index_map, single-buffered)
    xin_ref, ein_ref, nodew_ref, nodeb_ref, edgew_ref, edgeb_ref,
    gat_ref, scat_ref,
    # per-layer (pipelined over the layer grid axis)
    w1_ref, b1_ref, mlpg_ref, mlpb_ref, w2_ref, b2_ref, preg_ref, preb_ref,
    # final head (constant)
    fing_ref, finb_ref, linw_ref, linb_ref,
    # output
    out_ref,
    # VMEM scratch resident across the whole grid
    x_acc, ea_acc,
):
    l = pl.program_id(0)
    num_layers = pl.num_programs(0)
    hidden = x_acc.shape[-1]

    # --- grid step 0: node / edge encoders, results parked in VMEM scratch ---
    @pl.when(l == 0)
    def _():
        x_acc[...] = (
            jnp.dot(xin_ref[...], nodew_ref[...], preferred_element_type=jnp.float32)
            + nodeb_ref[...]
        )
        ea_acc[...] = (
            jnp.dot(ein_ref[...], edgew_ref[...], preferred_element_type=jnp.float32)
            + edgeb_ref[...]
        ).astype(ea_acc.dtype)

    x = x_acc[...]
    first = (l == 0).astype(jnp.float32)      # 1.0 on layer 0, else 0.0 (branch-free select)

    # res+ pre-norm: relu(LayerNorm(x)); layer 0 feeds x directly (no pre-norm, no residual)
    h_pre = jnp.maximum(_layer_norm(x, preg_ref[...], preb_ref[...]), 0.0)
    h_in = first * x + (1.0 - first) * h_pre

    # ---------------- GENConv(aggr='softmax', learn_t, 2-layer MLP, layer norm) ----------------
    t = t_sref[l]                                                        # SMEM scalar
    # gather x_j = x[src]: bf16 one-hot matmul, f32 accumulate
    xj = jnp.dot(gat_ref[...], h_in.astype(jnp.bfloat16), preferred_element_type=jnp.float32)
    msg = jnp.maximum(xj + ea_acc[...], 0.0) + GEN_EPS                   # (E, H) f32
    z = t * msg
    # Global per-channel shift: cancels exactly in numer/denom, keeps exp <= 1.
    # TODO(synk): PyG uses a per-destination-node max; a global shift can underflow for dst groups
    #             far below the channel max (precision-only deviation).
    z = z - jnp.max(z, axis=0, keepdims=True)
    e = jnp.exp(z.astype(jnp.bfloat16))                                  # bf16 EUP on v6e/v7x
    # fused scatter: single 256-lane-wide dot against the (N, E) one-hot (denominator | numerator)
    p = jnp.concatenate([e, e * msg.astype(jnp.bfloat16)], axis=-1)      # (E, 2H) bf16
    s = jnp.dot(scat_ref[...], p, preferred_element_type=jnp.float32)    # (N, 2H) f32
    denom = s[:, :hidden]
    numer = s[:, hidden:]
    # +1e-16 matches torch_geometric.utils.softmax; zero in-degree nodes yield agg == 0
    agg = numer * pl.reciprocal(denom + 1e-16, approx=True)
    conv_in = agg + h_in                                                 # add root node feature

    # MLP: Linear(H, 2H) -> LayerNorm(2H) -> ReLU -> Linear(2H, H)   (dropout = identity in eval)
    h1 = (jnp.dot(conv_in.astype(jnp.bfloat16), w1_ref[...],
                  preferred_element_type=jnp.float32) + b1_ref[...])
    h1 = jnp.maximum(_layer_norm(h1, mlpg_ref[...], mlpb_ref[...]), 0.0)
    h2 = (jnp.dot(h1.astype(jnp.bfloat16), w2_ref[...],
                  preferred_element_type=jnp.float32) + b2_ref[...])

    x_new = h2 + (1.0 - first) * x        # layer 0: replace; res+ layers: skip connection
    x_acc[...] = x_new

    # --- last grid step: layers[0].norm -> ReLU -> lin  (lane-dense padded output) ---
    @pl.when(l == num_layers - 1)
    def _():
        y = jnp.maximum(_layer_norm(x_new, fing_ref[...], finb_ref[...]), 0.0)
        out_ref[...] = (
            jnp.dot(y.astype(jnp.bfloat16), linw_ref[...],
                    preferred_element_type=jnp.float32) + linb_ref[...]
        )


# ------------------------------ host-side wrapper ------------------------------
def deeper_gcn_forward(params, x, edge_index, edge_attr):
    n_raw, node_in = x.shape
    e_raw, edge_in = edge_attr.shape
    hidden = params["node_w"].shape[1]
    out_dim = params["lin_w"].shape[1]
    num_layers = params["t"].shape[0]

    n_pad = _round_up(n_raw, 128)      # lane dim of the gather one-hot / MXU contraction K
    e_pad = _round_up(e_raw, 128)      # lane dim of the (pre-transposed) scatter one-hot
    nin_pad = _round_up(node_in, 128)
    ein_pad = _round_up(edge_in, 128)
    out_pad = _round_up(out_dim, 128)

    f32, bf16 = jnp.float32, jnp.bfloat16
    xin = jnp.zeros((n_pad, nin_pad), bf16).at[:n_raw, :node_in].set(x.astype(bf16))
    ein = jnp.zeros((e_pad, ein_pad), bf16).at[:e_raw, :edge_in].set(edge_attr.astype(bf16))
    node_w = jnp.zeros((nin_pad, hidden), bf16).at[:node_in].set(params["node_w"].astype(bf16))
    edge_w = jnp.zeros((ein_pad, hidden), bf16).at[:edge_in].set(params["edge_w"].astype(bf16))
    node_b = params["node_b"].reshape(1, hidden)
    edge_b = params["edge_b"].reshape(1, hidden)
    lin_w = jnp.zeros((hidden, out_pad), bf16).at[:, :out_dim].set(params["lin_w"].astype(bf16))
    lin_b = jnp.zeros((1, out_pad), f32).at[0, :out_dim].set(params["lin_b"])

    # padded edges get index -1 -> all-zero one-hot row/column (no gather source, no scatter target)
    src = jnp.full((e_pad,), -1, jnp.int32).at[:e_raw].set(edge_index[0].astype(jnp.int32))
    dst = jnp.full((e_pad,), -1, jnp.int32).at[:e_raw].set(edge_index[1].astype(jnp.int32))
    gather_oh = jax.nn.one_hot(src, n_pad, dtype=bf16)                  # (E, N): x_j = G @ x
    scatter_oh_t = (dst[None, :] ==
                    jnp.arange(n_pad, dtype=jnp.int32)[:, None]).astype(bf16)   # (N, E), pre-transposed

    w1 = params["w1"].astype(bf16)                                      # (L, H, 2H)
    w2 = params["w2"].astype(bf16)                                      # (L, 2H, H)
    b1 = params["b1"].reshape(num_layers, 1, 2 * hidden)
    mlp_g = params["mlp_ln_g"].reshape(num_layers, 1, 2 * hidden)
    mlp_b = params["mlp_ln_b"].reshape(num_layers, 1, 2 * hidden)
    b2 = params["b2"].reshape(num_layers, 1, hidden)
    pre_g = params["norm_g"].reshape(num_layers, 1, hidden)
    pre_b = params["norm_b"].reshape(num_layers, 1, hidden)
    fin_g = pre_g[0]      # layers[0].norm is reused as the final norm
    fin_b = pre_b[0]

    def const2(shape):
        # Constant-index inputs: single-buffer them (halves one-hot / encoder VMEM on v7x).
        idx = lambda l, ts: (0, 0)
        try:
            return pl.BlockSpec(shape, idx, pipeline_mode=pl.Buffered(1))
        except Exception:
            return pl.BlockSpec(shape, idx)

    def per_layer(rows, cols):
        return pl.BlockSpec((None, rows, cols), lambda l, ts: (l, 0, 0))

    grid_spec = pltpu.PrefetchScalarGridSpec(
        num_scalar_prefetch=1,                 # per-layer temperature t lives in SMEM
        grid=(num_layers,),
        in_specs=[
            const2((n_pad, nin_pad)),          # xin (bf16)
            const2((e_pad, ein_pad)),          # ein (bf16)
            const2((nin_pad, hidden)),         # node_w (bf16)
            const2((1, hidden)),               # node_b
            const2((ein_pad, hidden)),         # edge_w (bf16)
            const2((1, hidden)),               # edge_b
            const2((e_pad, n_pad)),            # gather one-hot (bf16)
            const2((n_pad, e_pad)),            # scatter one-hot, pre-transposed (bf16)
            per_layer(hidden, 2 * hidden),     # w1 (bf16)
            per_layer(1, 2 * hidden),          # b1
            per_layer(1, 2 * hidden),          # MLP LayerNorm gamma
            per_layer(1, 2 * hidden),          # MLP LayerNorm beta
            per_layer(2 * hidden, hidden),     # w2 (bf16)
            per_layer(1, hidden),              # b2
            per_layer(1, hidden),              # res+ pre-norm gamma
            per_layer(1, hidden),              # res+ pre-norm beta
            const2((1, hidden)),               # final norm gamma (layers[0].norm)
            const2((1, hidden)),               # final norm beta
            const2((hidden, out_pad)),         # lin_w (bf16, padded to 128 lanes)
            const2((1, out_pad)),              # lin_b
        ],
        out_specs=pl.BlockSpec((n_pad, out_pad), lambda l, ts: (0, 0)),
        scratch_shapes=[
            pltpu.VMEM((n_pad, hidden), jnp.float32),    # node state x, resident across layers
            pltpu.VMEM((e_pad, hidden), jnp.bfloat16),   # encoded edge features, resident (bf16)
        ],
    )

    out = pl.pallas_call(
        _deeper_gcn_kernel,
        out_shape=jax.ShapeDtypeStruct((n_pad, out_pad), jnp.float32),
        grid_spec=grid_spec,
        compiler_params=pltpu.CompilerParams(
            dimension_semantics=("arbitrary",),          # layer axis carries state -> sequential
            vmem_limit_bytes=48 * 1024 * 1024,           # explicit scoped limit (safe on v5e/v6e/v7x)
        ),
    )(
        params["t"],                                     # scalar prefetch -> SMEM
        xin, ein, node_w, node_b, edge_w, edge_b,
        gather_oh, scatter_oh_t,
        w1, b1, mlp_g, mlp_b, w2, b2, pre_g, pre_b,
        fin_g, fin_b, lin_w, lin_b,
    )
    return out[:n_raw, :out_dim]


# ------------------------------ deterministic parameter init ------------------------------
def _init_linear(key, fan_in, fan_out):
    kw, kb = jax.random.split(key)
    bound = 1.0 / jnp.sqrt(fan_in)
    w = jax.random.uniform(kw, (fan_in, fan_out), jnp.float32, -bound, bound)
    b = jax.random.uniform(kb, (fan_out,), jnp.float32, -bound, bound)
    return w, b


def init_params(key, node_in, edge_in, hidden, out_dim, num_layers):
    keys = jax.random.split(key, 3 + num_layers)
    node_w, node_b = _init_linear(keys[0], node_in, hidden)
    edge_w, edge_b = _init_linear(keys[1], edge_in, hidden)
    lin_w, lin_b = _init_linear(keys[2], hidden, out_dim)
    w1s, b1s, w2s, b2s = [], [], [], []
    for i in range(num_layers):
        k1, k2 = jax.random.split(keys[3 + i])
        w1, b1 = _init_linear(k1, hidden, 2 * hidden)
        w2, b2 = _init_linear(k2, 2 * hidden, hidden)
        w1s.append(w1); b1s.append(b1); w2s.append(w2); b2s.append(b2)
    return {
        "node_w": node_w, "node_b": node_b,
        "edge_w": edge_w, "edge_b": edge_b,
        "lin_w": lin_w, "lin_b": lin_b,
        "t": jnp.ones((num_layers,), jnp.float32),                      # learn_t=True, init 1.0
        "w1": jnp.stack(w1s), "b1": jnp.stack(b1s),
        "mlp_ln_g": jnp.ones((num_layers, 2 * hidden), jnp.float32),
        "mlp_ln_b": jnp.zeros((num_layers, 2 * hidden), jnp.float32),
        "w2": jnp.stack(w2s), "b2": jnp.stack(b2s),
        "norm_g": jnp.ones((num_layers, hidden), jnp.float32),          # DeepGCNLayer LayerNorm
        "norm_b": jnp.zeros((num_layers, hidden), jnp.float32),
    }


if __name__ == "__main__":
    # Small synthetic shapes consistent with the module (ogbn-proteins-like, scaled down).
    N, E = 256, 1024          # nodes, edges
    NODE_IN, EDGE_IN = 8, 8   # data.x.size(-1), data.edge_attr.size(-1)
    HIDDEN = 128              # hidden_channels -> lane-dense (multiple of 128)
    OUT = 112                 # ogbn-proteins has 112 tasks (padded to 128 inside, sliced outside)
    NUM_LAYERS = 4

    root = jax.random.PRNGKey(0)
    kx, ke, ks, kd, kp = jax.random.split(root, 5)

    x = jax.random.normal(kx, (N, NODE_IN), jnp.float32)
    edge_attr = jax.random.normal(ke, (E, EDGE_IN), jnp.float32)
    src = jax.random.randint(ks, (E,), 0, N, jnp.int32)
    dst = jax.random.randint(kd, (E,), 0, N, jnp.int32)
    dst = dst.at[:N].set(jnp.arange(N, dtype=jnp.int32))   # every node has >= 1 incoming edge
    edge_index = jnp.stack([src, dst], axis=0)

    params = init_params(kp, NODE_IN, EDGE_IN, HIDDEN, OUT, NUM_LAYERS)

    fwd = jax.jit(deeper_gcn_forward)
    out = jax.block_until_ready(fwd(params, x, edge_index, edge_attr))

    assert out.shape == (N, OUT) and out.dtype == jnp.float32
    assert bool(jnp.all(jnp.isfinite(out)))
    print("KERNEL_OK")
</pallas_src>

<mosaic_0001>
module attributes {stable_mosaic.version = 11 : i64} {
  func.func @_deeper_gcn_kernel(%arg0: i32, %arg1: memref<4xf32, #tpu.memory_space<smem>>, %arg2: memref<256x128xbf16, #tpu.memory_space<vmem>>, %arg3: memref<1024x128xbf16, #tpu.memory_space<vmem>>, %arg4: memref<128x128xbf16, #tpu.memory_space<vmem>>, %arg5: memref<1x128xf32, #tpu.memory_space<vmem>>, %arg6: memref<128x128xbf16, #tpu.memory_space<vmem>>, %arg7: memref<1x128xf32, #tpu.memory_space<vmem>>, %arg8: memref<1024x256xbf16, #tpu.memory_space<vmem>>, %arg9: memref<256x1024xbf16, #tpu.memory_space<vmem>>, %arg10: memref<1x128x256xbf16, #tpu.memory_space<vmem>>, %arg11: memref<1x1x256xf32, #tpu.memory_space<vmem>>, %arg12: memref<1x1x256xf32, #tpu.memory_space<vmem>>, %arg13: memref<1x1x256xf32, #tpu.memory_space<vmem>>, %arg14: memref<1x256x128xbf16, #tpu.memory_space<vmem>>, %arg15: memref<1x1x128xf32, #tpu.memory_space<vmem>>, %arg16: memref<1x1x128xf32, #tpu.memory_space<vmem>>, %arg17: memref<1x1x128xf32, #tpu.memory_space<vmem>>, %arg18: memref<1x128xf32, #tpu.memory_space<vmem>>, %arg19: memref<1x128xf32, #tpu.memory_space<vmem>>, %arg20: memref<128x128xbf16, #tpu.memory_space<vmem>>, %arg21: memref<1x128xf32, #tpu.memory_space<vmem>>, %arg22: memref<256x128xf32, #tpu.memory_space<vmem>>, %arg23: memref<256x128xf32, #tpu.memory_space<vmem>>, %arg24: memref<1024x128xbf16, #tpu.memory_space<vmem>>) attributes {dimension_semantics = [#tpu.dimension_semantics<arbitrary>], iteration_bounds = array<i64: 4>, scalar_prefetch = 1 : i64, scratch_operands = 2 : i64, tpu.core_type = #tpu.core_type<tc>, window_params = [{pipeline_mode = #tpu.pipeline_mode<synchronous>, transform_indices = @transform_0, window_bounds = array<i64: 256, 128>}, {pipeline_mode = #tpu.pipeline_mode<synchronous>, transform_indices = @transform_1, window_bounds = array<i64: 1024, 128>}, {pipeline_mode = #tpu.pipeline_mode<synchronous>, transform_indices = @transform_2, window_bounds = array<i64: 128, 128>}, {pipeline_mode = #tpu.pipeline_mode<synchronous>, transform_indices = @transform_3, window_bounds = array<i64: 1, 128>}, {pipeline_mode = #tpu.pipeline_mode<synchronous>, transform_indices = @transform_4, window_bounds = array<i64: 128, 128>}, {pipeline_mode = #tpu.pipeline_mode<synchronous>, transform_indices = @transform_5, window_bounds = array<i64: 1, 128>}, {pipeline_mode = #tpu.pipeline_mode<synchronous>, transform_indices = @transform_6, window_bounds = array<i64: 1024, 256>}, {pipeline_mode = #tpu.pipeline_mode<synchronous>, transform_indices = @transform_7, window_bounds = array<i64: 256, 1024>}, {transform_indices = @transform_8, window_bounds = array<i64: 1, 128, 256>}, {transform_indices = @transform_9, window_bounds = array<i64: 1, 1, 256>}, {transform_indices = @transform_10, window_bounds = array<i64: 1, 1, 256>}, {transform_indices = @transform_11, window_bounds = array<i64: 1, 1, 256>}, {transform_indices = @transform_12, window_bounds = array<i64: 1, 256, 128>}, {transform_indices = @transform_13, window_bounds = array<i64: 1, 1, 128>}, {transform_indices = @transform_14, window_bounds = array<i64: 1, 1, 128>}, {transform_indices = @transform_15, window_bounds = array<i64: 1, 1, 128>}, {pipeline_mode = #tpu.pipeline_mode<synchronous>, transform_indices = @transform_16, window_bounds = array<i64: 1, 128>}, {pipeline_mode = #tpu.pipeline_mode<synchronous>, transform_indices = @transform_17, window_bounds = array<i64: 1, 128>}, {pipeline_mode = #tpu.pipeline_mode<synchronous>, transform_indices = @transform_18, window_bounds = array<i64: 128, 128>}, {pipeline_mode = #tpu.pipeline_mode<synchronous>, transform_indices = @transform_19, window_bounds = array<i64: 1, 128>}, {pipeline_mode = #tpu.pipeline_mode<synchronous>, transform_indices = @transform_20, window_bounds = array<i64: 256, 128>}]} {
    %c0_i32 = arith.constant 0 : i32
    %0 = arith.cmpi eq, %arg0, %c0_i32 : i32
    %1 = arith.extui %0 : i1 to i32
    %c0_i32_0 = arith.constant 0 : i32
    %2 = arith.cmpi ne, %1, %c0_i32_0 : i32
    scf.if %2 {
      %c0_57 = arith.constant 0 : index
      %c0_58 = arith.constant 0 : index
      %121 = vector.load %arg2[%c0_57, %c0_58] : memref<256x128xbf16, #tpu.memory_space<vmem>>, vector<256x128xbf16>
      %c0_59 = arith.constant 0 : index
      %c0_60 = arith.constant 0 : index
      %122 = vector.load %arg4[%c0_59, %c0_60] : memref<128x128xbf16, #tpu.memory_space<vmem>>, vector<128x128xbf16>
      %cst_61 = arith.constant dense<0.000000e+00> : vector<256x128xf32>
      %123 = tpu.matmul %121, %122, %cst_61 {dimension_numbers = #tpu.dot_dimension_numbers<[1], [0], [0], [1], [0, 0, 1, 1], [], []>} : vector<256x128xbf16>, vector<128x128xbf16>, vector<256x128xf32> -> vector<256x128xf32>
      %c0_62 = arith.constant 0 : index
      %c0_63 = arith.constant 0 : index
      %124 = vector.load %arg5[%c0_62, %c0_63] : memref<1x128xf32, #tpu.memory_space<vmem>>, vector<1x128xf32>
      %125 = vector.broadcast %124 : vector<1x128xf32> to vector<256x128xf32>
      %126 = arith.addf %123, %125 : vector<256x128xf32>
      %c0_64 = arith.constant 0 : index
      %c0_65 = arith.constant 0 : index
      %127 = vector.load %arg23[%c0_64, %c0_65] : memref<256x128xf32, #tpu.memory_space<vmem>>, vector<256x128xf32>
      tpu.vector_store %arg23[%c0_64, %c0_65], %126 {strides = array<i32>} : memref<256x128xf32, #tpu.memory_space<vmem>>, vector<256x128xf32>,
      %c0_66 = arith.constant 0 : index
      %c0_67 = arith.constant 0 : index
      %128 = vector.load %arg3[%c0_66, %c0_67] : memref<1024x128xbf16, #tpu.memory_space<vmem>>, vector<1024x128xbf16>
      %c0_68 = arith.constant 0 : index
      %c0_69 = arith.constant 0 : index
      %129 = vector.load %arg6[%c0_68, %c0_69] : memref<128x128xbf16, #tpu.memory_space<vmem>>, vector<128x128xbf16>
      %cst_70 = arith.constant dense<0.000000e+00> : vector<1024x128xf32>
      %130 = tpu.matmul %128, %129, %cst_70 {dimension_numbers = #tpu.dot_dimension_numbers<[1], [0], [0], [1], [0, 0, 1, 1], [], []>} : vector<1024x128xbf16>, vector<128x128xbf16>, vector<1024x128xf32> -> vector<1024x128xf32>
      %c0_71 = arith.constant 0 : index
      %c0_72 = arith.constant 0 : index
      %131 = vector.load %arg7[%c0_71, %c0_72] : memref<1x128xf32, #tpu.memory_space<vmem>>, vector<1x128xf32>
      %132 = vector.broadcast %131 : vector<1x128xf32> to vector<1024x128xf32>
      %133 = arith.addf %130, %132 : vector<1024x128xf32>
      %134 = arith.truncf %133 : vector<1024x128xf32> to vector<1024x128xbf16>
      %c0_73 = arith.constant 0 : index
      %c0_74 = arith.constant 0 : index
      %135 = vector.load %arg24[%c0_73, %c0_74] : memref<1024x128xbf16, #tpu.memory_space<vmem>>, vector<1024x128xbf16>
      tpu.vector_store %arg24[%c0_73, %c0_74], %134 {strides = array<i32>} : memref<1024x128xbf16, #tpu.memory_space<vmem>>, vector<1024x128xbf16>,
    } else {
    }
    %c0 = arith.constant 0 : index
    %c0_1 = arith.constant 0 : index
    %3 = vector.load %arg23[%c0, %c0_1] : memref<256x128xf32, #tpu.memory_space<vmem>>, vector<256x128xf32>
    %c0_i32_2 = arith.constant 0 : i32
    %4 = arith.cmpi eq, %arg0, %c0_i32_2 : i32
    %5 = arith.extui %4 : i1 to i32
    %6 = arith.sitofp %5 : i32 to f32
    %c0_3 = arith.constant 0 : index
    %c0_4 = arith.constant 0 : index
    %c0_5 = arith.constant 0 : index
    %7 = vector.load %arg16[%c0_3, %c0_4, %c0_5] : memref<1x1x128xf32, #tpu.memory_space<vmem>>, vector<1x1x128xf32>
    %8 = vector.shape_cast %7 : vector<1x1x128xf32> to vector<1x128xf32>
    %c0_6 = arith.constant 0 : index
    %c0_7 = arith.constant 0 : index
    %c0_8 = arith.constant 0 : index
    %9 = vector.load %arg17[%c0_6, %c0_7, %c0_8] : memref<1x1x128xf32, #tpu.memory_space<vmem>>, vector<1x1x128xf32>
    %10 = vector.shape_cast %9 : vector<1x1x128xf32> to vector<1x128xf32>
    %cst = arith.constant dense<0.000000e+00> : vector<256xf32>
    %11 = vector.multi_reduction <add>, %3, %cst [1] : vector<256x128xf32> to vector<256xf32>
    %12 = vector.shape_cast %11 : vector<256xf32> to vector<256x1xf32>
    %cst_9 = arith.constant 1.280000e+02 : f32
    %13 = vector.broadcast %cst_9 : f32 to vector<256x1xf32>
    %14 = arith.divf %12, %13 : vector<256x1xf32>
    %15 = vector.broadcast %14 : vector<256x1xf32> to vector<256x128xf32>
    %16 = arith.subf %3, %15 : vector<256x128xf32>
    %17 = arith.mulf %16, %16 : vector<256x128xf32>
    %cst_10 = arith.constant dense<0.000000e+00> : vector<256xf32>
    %18 = vector.multi_reduction <add>, %17, %cst_10 [1] : vector<256x128xf32> to vector<256xf32>
    %19 = vector.shape_cast %18 : vector<256xf32> to vector<256x1xf32>
    %cst_11 = arith.constant 1.280000e+02 : f32
    %20 = vector.broadcast %cst_11 : f32 to vector<256x1xf32>
    %21 = arith.divf %19, %20 : vector<256x1xf32>
    %cst_12 = arith.constant 9.99999974E-6 : f32
    %22 = vector.broadcast %cst_12 : f32 to vector<256x1xf32>
    %23 = arith.addf %21, %22 : vector<256x1xf32>
    %24 = math.rsqrt %23 : vector<256x1xf32>
    %25 = vector.broadcast %24 : vector<256x1xf32> to vector<256x128xf32>
    %26 = arith.mulf %16, %25 : vector<256x128xf32>
    %27 = vector.broadcast %8 : vector<1x128xf32> to vector<256x128xf32>
    %28 = arith.mulf %26, %27 : vector<256x128xf32>
    %29 = vector.broadcast %10 : vector<1x128xf32> to vector<256x128xf32>
    %30 = arith.addf %28, %29 : vector<256x128xf32>
    %cst_13 = arith.constant 0.000000e+00 : f32
    %31 = vector.broadcast %cst_13 : f32 to vector<256x128xf32>
    %32 = arith.maximumf %30, %31 : vector<256x128xf32>
    %33 = vector.broadcast %6 : f32 to vector<256x128xf32>
    %34 = arith.mulf %33, %3 : vector<256x128xf32>
    %cst_14 = arith.constant 1.000000e+00 : f32
    %35 = arith.subf %cst_14, %6 : f32
    %36 = vector.broadcast %35 : f32 to vector<256x128xf32>
    %37 = arith.mulf %36, %32 : vector<256x128xf32>
    %38 = arith.addf %34, %37 : vector<256x128xf32>
    %39 = arith.index_cast %arg0 : i32 to index
    %40 = memref.load %arg1[%39] : memref<4xf32, #tpu.memory_space<smem>>
    %c0_15 = arith.constant 0 : index
    %c0_16 = arith.constant 0 : index
    %41 = vector.load %arg8[%c0_15, %c0_16] : memref<1024x256xbf16, #tpu.memory_space<vmem>>, vector<1024x256xbf16>
    %42 = arith.truncf %38 : vector<256x128xf32> to vector<256x128xbf16>
    %cst_17 = arith.constant dense<0.000000e+00> : vector<1024x128xf32>
    %43 = tpu.matmul %41, %42, %cst_17 {dimension_numbers = #tpu.dot_dimension_numbers<[1], [0], [0], [1], [0, 0, 1, 1], [], []>} : vector<1024x256xbf16>, vector<256x128xbf16>, vector<1024x128xf32> -> vector<1024x128xf32>
    %c0_18 = arith.constant 0 : index
    %c0_19 = arith.constant 0 : index
    %44 = vector.load %arg24[%c0_18, %c0_19] : memref<1024x128xbf16, #tpu.memory_space<vmem>>, vector<1024x128xbf16>
    %45 = arith.extf %44 : vector<1024x128xbf16> to vector<1024x128xf32>
    %46 = arith.addf %43, %45 : vector<1024x128xf32>
    %cst_20 = arith.constant 0.000000e+00 : f32
    %47 = vector.broadcast %cst_20 : f32 to vector<1024x128xf32>
    %48 = arith.maximumf %46, %47 : vector<1024x128xf32>
    %cst_21 = arith.constant 1.000000e-07 : f32
    %49 = vector.broadcast %cst_21 : f32 to vector<1024x128xf32>
    %50 = arith.addf %48, %49 : vector<1024x128xf32>
    %51 = vector.broadcast %40 : f32 to vector<1024x128xf32>
    %52 = arith.mulf %51, %50 : vector<1024x128xf32>
    %cst_22 = arith.constant dense<0xFF800000> : vector<128xf32>
    %53 = vector.multi_reduction <maximumf>, %52, %cst_22 [0] : vector<1024x128xf32> to vector<128xf32>
    %54 = vector.shape_cast %53 : vector<128xf32> to vector<1x128xf32>
    %55 = vector.broadcast %54 : vector<1x128xf32> to vector<1024x128xf32>
    %56 = arith.subf %52, %55 : vector<1024x128xf32>
    %57 = arith.truncf %56 : vector<1024x128xf32> to vector<1024x128xbf16>
    %58 = math.exp %57 : vector<1024x128xbf16>
    %59 = arith.truncf %50 : vector<1024x128xf32> to vector<1024x128xbf16>
    %60 = arith.mulf %58, %59 : vector<1024x128xbf16>
    %61 = tpu.concatenate %58, %60 in 1 : vector<1024x128xbf16>, vector<1024x128xbf16> -> vector<1024x256xbf16>
    %c0_23 = arith.constant 0 : index
    %c0_24 = arith.constant 0 : index
    %62 = vector.load %arg9[%c0_23, %c0_24] : memref<256x1024xbf16, #tpu.memory_space<vmem>>, vector<256x1024xbf16>
    %cst_25 = arith.constant dense<0.000000e+00> : vector<256x256xf32>
    %63 = tpu.matmul %62, %61, %cst_25 {dimension_numbers = #tpu.dot_dimension_numbers<[1], [0], [0], [1], [0, 0, 1, 1], [], []>} : vector<256x1024xbf16>, vector<1024x256xbf16>, vector<256x256xf32> -> vector<256x256xf32>
    %64 = vector.extract_strided_slice %63 {offsets = [0, 0], sizes = [256, 128], strides = [1, 1]} : vector<256x256xf32> to vector<256x128xf32>
    %65 = vector.extract_strided_slice %63 {offsets = [0, 128], sizes = [256, 128], strides = [1, 1]} : vector<256x256xf32> to vector<256x128xf32>
    %cst_26 = arith.constant 1.000000e-16 : f32
    %66 = vector.broadcast %cst_26 : f32 to vector<256x128xf32>
    %67 = arith.addf %64, %66 : vector<256x128xf32>
    %68 = tpu.reciprocal %67 {approx = true} : vector<256x128xf32> -> vector<256x128xf32>
    %69 = arith.mulf %65, %68 : vector<256x128xf32>
    %70 = arith.addf %69, %38 : vector<256x128xf32>
    %71 = arith.truncf %70 : vector<256x128xf32> to vector<256x128xbf16>
    %c0_27 = arith.constant 0 : index
    %c0_28 = arith.constant 0 : index
    %c0_29 = arith.constant 0 : index
    %72 = vector.load %arg10[%c0_27, %c0_28, %c0_29] : memref<1x128x256xbf16, #tpu.memory_space<vmem>>, vector<1x128x256xbf16>
    %73 = vector.shape_cast %72 : vector<1x128x256xbf16> to vector<128x256xbf16>
    %cst_30 = arith.constant dense<0.000000e+00> : vector<256x256xf32>
    %74 = tpu.matmul %71, %73, %cst_30 {dimension_numbers = #tpu.dot_dimension_numbers<[1], [0], [0], [1], [0, 0, 1, 1], [], []>} : vector<256x128xbf16>, vector<128x256xbf16>, vector<256x256xf32> -> vector<256x256xf32>
    %c0_31 = arith.constant 0 : index
    %c0_32 = arith.constant 0 : index
    %c0_33 = arith.constant 0 : index
    %75 = vector.load %arg11[%c0_31, %c0_32, %c0_33] : memref<1x1x256xf32, #tpu.memory_space<vmem>>, vector<1x1x256xf32>
    %76 = vector.shape_cast %75 : vector<1x1x256xf32> to vector<1x256xf32>
    %77 = vector.broadcast %76 : vector<1x256xf32> to vector<256x256xf32>
    %78 = arith.addf %74, %77 : vector<256x256xf32>
    %c0_34 = arith.constant 0 : index
    %c0_35 = arith.constant 0 : index
    %c0_36 = arith.constant 0 : index
    %79 = vector.load %arg12[%c0_34, %c0_35, %c0_36] : memref<1x1x256xf32, #tpu.memory_space<vmem>>, vector<1x1x256xf32>
    %80 = vector.shape_cast %79 : vector<1x1x256xf32> to vector<1x256xf32>
    %c0_37 = arith.constant 0 : index
    %c0_38 = arith.constant 0 : index
    %c0_39 = arith.constant 0 : index
    %81 = vector.load %arg13[%c0_37, %c0_38, %c0_39] : memref<1x1x256xf32, #tpu.memory_space<vmem>>, vector<1x1x256xf32>
    %82 = vector.shape_cast %81 : vector<1x1x256xf32> to vector<1x256xf32>
    %cst_40 = arith.constant dense<0.000000e+00> : vector<256xf32>
    %83 = vector.multi_reduction <add>, %78, %cst_40 [1] : vector<256x256xf32> to vector<256xf32>
    %84 = vector.shape_cast %83 : vector<256xf32> to vector<256x1xf32>
    %cst_41 = arith.constant 2.560000e+02 : f32
    %85 = vector.broadcast %cst_41 : f32 to vector<256x1xf32>
    %86 = arith.divf %84, %85 : vector<256x1xf32>
    %87 = vector.broadcast %86 : vector<256x1xf32> to vector<256x256xf32>
    %88 = arith.subf %78, %87 : vector<256x256xf32>
    %89 = arith.mulf %88, %88 : vector<256x256xf32>
    %cst_42 = arith.constant dense<0.000000e+00> : vector<256xf32>
    %90 = vector.multi_reduction <add>, %89, %cst_42 [1] : vector<256x256xf32> to vector<256xf32>
    %91 = vector.shape_cast %90 : vector<256xf32> to vector<256x1xf32>
    %cst_43 = arith.constant 2.560000e+02 : f32
    %92 = vector.broadcast %cst_43 : f32 to vector<256x1xf32>
    %93 = arith.divf %91, %92 : vector<256x1xf32>
    %cst_44 = arith.constant 9.99999974E-6 : f32
    %94 = vector.broadcast %cst_44 : f32 to vector<256x1xf32>
    %95 = arith.addf %93, %94 : vector<256x1xf32>
    %96 = math.rsqrt %95 : vector<256x1xf32>
    %97 = vector.broadcast %96 : vector<256x1xf32> to vector<256x256xf32>
    %98 = arith.mulf %88, %97 : vector<256x256xf32>
    %99 = vector.broadcast %80 : vector<1x256xf32> to vector<256x256xf32>
    %100 = arith.mulf %98, %99 : vector<256x256xf32>
    %101 = vector.broadcast %82 : vector<1x256xf32> to vector<256x256xf32>
    %102 = arith.addf %100, %101 : vector<256x256xf32>
    %cst_45 = arith.constant 0.000000e+00 : f32
    %103 = vector.broadcast %cst_45 : f32 to vector<256x256xf32>
    %104 = arith.maximumf %102, %103 : vector<256x256xf32>
    %105 = arith.truncf %104 : vector<256x256xf32> to vector<256x256xbf16>
    %c0_46 = arith.constant 0 : index
    %c0_47 = arith.constant 0 : index
    %c0_48 = arith.constant 0 : index
    %106 = vector.load %arg14[%c0_46, %c0_47, %c0_48] : memref<1x256x128xbf16, #tpu.memory_space<vmem>>, vector<1x256x128xbf16>
    %107 = vector.shape_cast %106 : vector<1x256x128xbf16> to vector<256x128xbf16>
    %cst_49 = arith.constant dense<0.000000e+00> : vector<256x128xf32>
    %108 = tpu.matmul %105, %107, %cst_49 {dimension_numbers = #tpu.dot_dimension_numbers<[1], [0], [0], [1], [0, 0, 1, 1], [], []>} : vector<256x256xbf16>, vector<256x128xbf16>, vector<256x128xf32> -> vector<256x128xf32>
    %c0_50 = arith.constant 0 : index
    %c0_51 = arith.constant 0 : index
    %c0_52 = arith.constant 0 : index
    %109 = vector.load %arg15[%c0_50, %c0_51, %c0_52] : memref<1x1x128xf32, #tpu.memory_space<vmem>>, vector<1x1x128xf32>
    %110 = vector.shape_cast %109 : vector<1x1x128xf32> to vector<1x128xf32>
    %111 = vector.broadcast %110 : vector<1x128xf32> to vector<256x128xf32>
    %112 = arith.addf %108, %111 : vector<256x128xf32>
    %cst_53 = arith.constant 1.000000e+00 : f32
    %113 = arith.subf %cst_53, %6 : f32
    %114 = vector.broadcast %113 : f32 to vector<256x128xf32>
    %115 = arith.mulf %114, %3 : vector<256x128xf32>
    %116 = arith.addf %112, %115 : vector<256x128xf32>
    %c0_54 = arith.constant 0 : index
    %c0_55 = arith.constant 0 : index
    %117 = vector.load %arg23[%c0_54, %c0_55] : memref<256x128xf32, #tpu.memory_space<vmem>>, vector<256x128xf32>
    tpu.vector_store %arg23[%c0_54, %c0_55], %116 {strides = array<i32>} : memref<256x128xf32, #tpu.memory_space<vmem>>, vector<256x128xf32>,
    %c3_i32 = arith.constant 3 : i32
    %118 = arith.cmpi eq, %arg0, %c3_i32 : i32
    %119 = arith.extui %118 : i1 to i32
    %c0_i32_56 = arith.constant 0 : i32
    %120 = arith.cmpi ne, %119, %c0_i32_56 : i32
    scf.if %120 {
      %c0_57 = arith.constant 0 : index
      %c0_58 = arith.constant 0 : index
      %121 = vector.load %arg18[%c0_57, %c0_58] : memref<1x128xf32, #tpu.memory_space<vmem>>, vector<1x128xf32>
      %c0_59 = arith.constant 0 : index
      %c0_60 = arith.constant 0 : index
      %122 = vector.load %arg19[%c0_59, %c0_60] : memref<1x128xf32, #tpu.memory_space<vmem>>, vector<1x128xf32>
      %cst_61 = arith.constant dense<0.000000e+00> : vector<256xf32>
      %123 = vector.multi_reduction <add>, %116, %cst_61 [1] : vector<256x128xf32> to vector<256xf32>
      %124 = vector.shape_cast %123 : vector<256xf32> to vector<256x1xf32>
      %cst_62 = arith.constant 1.280000e+02 : f32
      %125 = vector.broadcast %cst_62 : f32 to vector<256x1xf32>
      %126 = arith.divf %124, %125 : vector<256x1xf32>
      %127 = vector.broadcast %126 : vector<256x1xf32> to vector<256x128xf32>
      %128 = arith.subf %116, %127 : vector<256x128xf32>
      %129 = arith.mulf %128, %128 : vector<256x128xf32>
      %cst_63 = arith.constant dense<0.000000e+00> : vector<256xf32>
      %130 = vector.multi_reduction <add>, %129, %cst_63 [1] : vector<256x128xf32> to vector<256xf32>
      %131 = vector.shape_cast %130 : vector<256xf32> to vector<256x1xf32>
      %cst_64 = arith.constant 1.280000e+02 : f32
      %132 = vector.broadcast %cst_64 : f32 to vector<256x1xf32>
      %133 = arith.divf %131, %132 : vector<256x1xf32>
      %cst_65 = arith.constant 9.99999974E-6 : f32
      %134 = vector.broadcast %cst_65 : f32 to vector<256x1xf32>
      %135 = arith.addf %133, %134 : vector<256x1xf32>
      %136 = math.rsqrt %135 : vector<256x1xf32>
      %137 = vector.broadcast %136 : vector<256x1xf32> to vector<256x128xf32>
      %138 = arith.mulf %128, %137 : vector<256x128xf32>
      %139 = vector.broadcast %121 : vector<1x128xf32> to vector<256x128xf32>
      %140 = arith.mulf %138, %139 : vector<256x128xf32>
      %141 = vector.broadcast %122 : vector<1x128xf32> to vector<256x128xf32>
      %142 = arith.addf %140, %141 : vector<256x128xf32>
      %cst_66 = arith.constant 0.000000e+00 : f32
      %143 = vector.broadcast %cst_66 : f32 to vector<256x128xf32>
      %144 = arith.maximumf %142, %143 : vector<256x128xf32>
      %145 = arith.truncf %144 : vector<256x128xf32> to vector<256x128xbf16>
      %c0_67 = arith.constant 0 : index
      %c0_68 = arith.constant 0 : index
      %146 = vector.load %arg20[%c0_67, %c0_68] : memref<128x128xbf16, #tpu.memory_space<vmem>>, vector<128x128xbf16>
      %cst_69 = arith.constant dense<0.000000e+00> : vector<256x128xf32>
      %147 = tpu.matmul %145, %146, %cst_69 {dimension_numbers = #tpu.dot_dimension_numbers<[1], [0], [0], [1], [0, 0, 1, 1], [], []>} : vector<256x128xbf16>, vector<128x128xbf16>, vector<256x128xf32> -> vector<256x128xf32>
      %c0_70 = arith.constant 0 : index
      %c0_71 = arith.constant 0 : index
      %148 = vector.load %arg21[%c0_70, %c0_71] : memref<1x128xf32, #tpu.memory_space<vmem>>, vector<1x128xf32>
      %149 = vector.broadcast %148 : vector<1x128xf32> to vector<256x128xf32>
      %150 = arith.addf %147, %149 : vector<256x128xf32>
      %c0_72 = arith.constant 0 : index
      %c0_73 = arith.constant 0 : index
      %151 = vector.load %arg22[%c0_72, %c0_73] : memref<256x128xf32, #tpu.memory_space<vmem>>, vector<256x128xf32>
      tpu.vector_store %arg22[%c0_72, %c0_73], %150 {strides = array<i32>} : memref<256x128xf32, #tpu.memory_space<vmem>>, vector<256x128xf32>,
    } else {
    }
    return
  }
  func.func @transform_0(%arg0: i32, %arg1: memref<4xf32, #tpu.memory_space<smem>>) -> (i32, i32) {
    %c0_i32 = arith.constant 0 : i32
    %c0_i32_0 = arith.constant 0 : i32
    %c0_i32_1 = arith.constant 0 : i32
    return %c0_i32, %c0_i32_0 : i32, i32
  }
  func.func @transform_1(%arg0: i32, %arg1: memref<4xf32, #tpu.memory_space<smem>>) -> (i32, i32) {
    %c0_i32 = arith.constant 0 : i32
    %c0_i32_0 = arith.constant 0 : i32
    %c0_i32_1 = arith.constant 0 : i32
    return %c0_i32, %c0_i32_0 : i32, i32
  }
  func.func @transform_2(%arg0: i32, %arg1: memref<4xf32, #tpu.memory_space<smem>>) -> (i32, i32) {
    %c0_i32 = arith.constant 0 : i32
    %c0_i32_0 = arith.constant 0 : i32
    %c0_i32_1 = arith.constant 0 : i32
    return %c0_i32, %c0_i32_0 : i32, i32
  }
  func.func @transform_3(%arg0: i32, %arg1: memref<4xf32, #tpu.memory_space<smem>>) -> (i32, i32) {
    %c0_i32 = arith.constant 0 : i32
    %c0_i32_0 = arith.constant 0 : i32
    %c0_i32_1 = arith.constant 0 : i32
    return %c0_i32, %c0_i32_0 : i32, i32
  }
  func.func @transform_4(%arg0: i32, %arg1: memref<4xf32, #tpu.memory_space<smem>>) -> (i32, i32) {
    %c0_i32 = arith.constant 0 : i32
    %c0_i32_0 = arith.constant 0 : i32
    %c0_i32_1 = arith.constant 0 : i32
    return %c0_i32, %c0_i32_0 : i32, i32
  }
  func.func @transform_5(%arg0: i32, %arg1: memref<4xf32, #tpu.memory_space<smem>>) -> (i32, i32) {
    %c0_i32 = arith.constant 0 : i32
    %c0_i32_0 = arith.constant 0 : i32
    %c0_i32_1 = arith.constant 0 : i32
    return %c0_i32, %c0_i32_0 : i32, i32
  }
  func.func @transform_6(%arg0: i32, %arg1: memref<4xf32, #tpu.memory_space<smem>>) -> (i32, i32) {
    %c0_i32 = arith.constant 0 : i32
    %c0_i32_0 = arith.constant 0 : i32
    %c0_i32_1 = arith.constant 0 : i32
    return %c0_i32, %c0_i32_0 : i32, i32
  }
  func.func @transform_7(%arg0: i32, %arg1: memref<4xf32, #tpu.memory_space<smem>>) -> (i32, i32) {
    %c0_i32 = arith.constant 0 : i32
    %c0_i32_0 = arith.constant 0 : i32
    %c0_i32_1 = arith.constant 0 : i32
    return %c0_i32, %c0_i32_0 : i32, i32
  }
  func.func @transform_8(%arg0: i32, %arg1: memref<4xf32, #tpu.memory_space<smem>>) -> (i32, i32, i32) {
    %c0_i32 = arith.constant 0 : i32
    %c0_i32_0 = arith.constant 0 : i32
    %c0_i32_1 = arith.constant 0 : i32
    return %arg0, %c0_i32, %c0_i32_0 : i32, i32, i32
  }
  func.func @transform_9(%arg0: i32, %arg1: memref<4xf32, #tpu.memory_space<smem>>) -> (i32, i32, i32) {
    %c0_i32 = arith.constant 0 : i32
    %c0_i32_0 = arith.constant 0 : i32
    %c0_i32_1 = arith.constant 0 : i32
    return %arg0, %c0_i32, %c0_i32_0 : i32, i32, i32
  }
  func.func @transform_10(%arg0: i32, %arg1: memref<4xf32, #tpu.memory_space<smem>>) -> (i32, i32, i32) {
    %c0_i32 = arith.constant 0 : i32
    %c0_i32_0 = arith.constant 0 : i32
    %c0_i32_1 = arith.constant 0 : i32
    return %arg0, %c0_i32, %c0_i32_0 : i32, i32, i32
  }
  func.func @transform_11(%arg0: i32, %arg1: memref<4xf32, #tpu.memory_space<smem>>) -> (i32, i32, i32) {
    %c0_i32 = arith.constant 0 : i32
    %c0_i32_0 = arith.constant 0 : i32
    %c0_i32_1 = arith.constant 0 : i32
    return %arg0, %c0_i32, %c0_i32_0 : i32, i32, i32
  }
  func.func @transform_12(%arg0: i32, %arg1: memref<4xf32, #tpu.memory_space<smem>>) -> (i32, i32, i32) {
    %c0_i32 = arith.constant 0 : i32
    %c0_i32_0 = arith.constant 0 : i32
    %c0_i32_1 = arith.constant 0 : i32
    return %arg0, %c0_i32, %c0_i32_0 : i32, i32, i32
  }
  func.func @transform_13(%arg0: i32, %arg1: memref<4xf32, #tpu.memory_space<smem>>) -> (i32, i32, i32) {
    %c0_i32 = arith.constant 0 : i32
    %c0_i32_0 = arith.constant 0 : i32
    %c0_i32_1 = arith.constant 0 : i32
    return %arg0, %c0_i32, %c0_i32_0 : i32, i32, i32
  }
  func.func @transform_14(%arg0: i32, %arg1: memref<4xf32, #tpu.memory_space<smem>>) -> (i32, i32, i32) {
    %c0_i32 = arith.constant 0 : i32
    %c0_i32_0 = arith.constant 0 : i32
    %c0_i32_1 = arith.constant 0 : i32
    return %arg0, %c0_i32, %c0_i32_0 : i32, i32, i32
  }
  func.func @transform_15(%arg0: i32, %arg1: memref<4xf32, #tpu.memory_space<smem>>) -> (i32, i32, i32) {
    %c0_i32 = arith.constant 0 : i32
    %c0_i32_0 = arith.constant 0 : i32
    %c0_i32_1 = arith.constant 0 : i32
    return %arg0, %c0_i32, %c0_i32_0 : i32, i32, i32
  }
  func.func @transform_16(%arg0: i32, %arg1: memref<4xf32, #tpu.memory_space<smem>>) -> (i32, i32) {
    %c0_i32 = arith.constant 0 : i32
    %c0_i32_0 = arith.constant 0 : i32
    %c0_i32_1 = arith.constant 0 : i32
    return %c0_i32, %c0_i32_0 : i32, i32
  }
  func.func @transform_17(%arg0: i32, %arg1: memref<4xf32, #tpu.memory_space<smem>>) -> (i32, i32) {
    %c0_i32 = arith.constant 0 : i32
    %c0_i32_0 = arith.constant 0 : i32
    %c0_i32_1 = arith.constant 0 : i32
    return %c0_i32, %c0_i32_0 : i32, i32
  }
  func.func @transform_18(%arg0: i32, %arg1: memref<4xf32, #tpu.memory_space<smem>>) -> (i32, i32) {
    %c0_i32 = arith.constant 0 : i32
    %c0_i32_0 = arith.constant 0 : i32
    %c0_i32_1 = arith.constant 0 : i32
    return %c0_i32, %c0_i32_0 : i32, i32
  }
  func.func @transform_19(%arg0: i32, %arg1: memref<4xf32, #tpu.memory_space<smem>>) -> (i32, i32) {
    %c0_i32 = arith.constant 0 : i32
    %c0_i32_0 = arith.constant 0 : i32
    %c0_i32_1 = arith.constant 0 : i32
    return %c0_i32, %c0_i32_0 : i32, i32
  }
  func.func @transform_20(%arg0: i32, %arg1: memref<4xf32, #tpu.memory_space<smem>>) -> (i32, i32) {
    %c0_i32 = arith.constant 0 : i32
    %c0_i32_0 = arith.constant 0 : i32
    %c0_i32_1 = arith.constant 0 : i32
    return %c0_i32, %c0_i32_0 : i32, i32
  }
}

</mosaic_0001>

<llo_original>
// kernel: deeper_gcn_forward.1
$region0: #{deeper_gcn_forward.1}
  #allocation0 [shape = 'u32[]', space=smem, size = 0x4, offset = 0x4, fixed_abs, tag = 'smem constant byte address 0x4 - core index']
  #allocation1 [shape = 'u32[144,128]{1,0:T(1,128)}', space=vmem, size = 0x12000, scoped, tag = 'internal scratch']
  #allocation2 [shape = 'f32[256,128]{1,0:T(8,128)}', space=vmem, size = 0x20000, scoped, tag = 'scratch operand']
  #allocation3 [shape = 'bf16[1024,128]{1,0:T(16,128)(2,1)}', space=vmem, size = 0x40000, scoped, tag = 'scratch operand']
  #allocation4 [shape = 's32[1]{0}', space=sflag, size = 0x4, scoped, tag = 'scoped memory for deeper_gcn_forward.1']
  #allocation5 [shape = 'u8[512]{0}', space=smem, size = 0x200, scoped, tag = 'prefetched SMEM operand 0']
  %s0 = inlined_call_operand.vmem [shape: f32[4], index: 0, kind: input, shape index: {}]
  %s1 = inlined_call_operand.vmem [shape: bf16[256,128], index: 1, kind: input, shape index: {}]
  %s2 = inlined_call_operand.vmem [shape: bf16[1024,128], index: 2, kind: input, shape index: {}]
  %s3 = inlined_call_operand.vmem [shape: bf16[128,128], index: 3, kind: input, shape index: {}]
  %s4 = inlined_call_operand.vmem [shape: f32[1,128], index: 4, kind: input, shape index: {}]
  %s5 = inlined_call_operand.vmem [shape: bf16[128,128], index: 5, kind: input, shape index: {}]
  %s6 = inlined_call_operand.vmem [shape: f32[1,128], index: 6, kind: input, shape index: {}]
  %s7 = inlined_call_operand.vmem [shape: bf16[1024,256], index: 7, kind: input, shape index: {}]
  %s8 = inlined_call_operand.vmem [shape: bf16[256,1024], index: 8, kind: input, shape index: {}]
  %s9 = inlined_call_operand.vmem [shape: bf16[4,128,256], index: 9, kind: input, shape index: {}]
  %s10 = inlined_call_operand.vmem [shape: f32[4,1,256], index: 10, kind: input, shape index: {}]
  %s11 = inlined_call_operand.vmem [shape: f32[4,1,256], index: 11, kind: input, shape index: {}]
  %s12 = inlined_call_operand.vmem [shape: f32[4,1,256], index: 12, kind: input, shape index: {}]
  %s13 = inlined_call_operand.vmem [shape: bf16[4,256,128], index: 13, kind: input, shape index: {}]
  %s14 = inlined_call_operand.vmem [shape: f32[4,1,128], index: 14, kind: input, shape index: {}]
  %s15 = inlined_call_operand.vmem [shape: f32[4,1,128], index: 15, kind: input, shape index: {}]
  %s16 = inlined_call_operand.vmem [shape: f32[4,1,128], index: 16, kind: input, shape index: {}]
  %s17 = inlined_call_operand.vmem [shape: f32[1,128], index: 17, kind: input, shape index: {}]
  %s18 = inlined_call_operand.vmem [shape: f32[1,128], index: 18, kind: input, shape index: {}]
  %s19 = inlined_call_operand.vmem [shape: bf16[128,128], index: 19, kind: input, shape index: {}]
  %s20 = inlined_call_operand.vmem [shape: f32[1,128], index: 20, kind: input, shape index: {}]
  %s21 = inlined_call_operand.vmem [shape: f32[256,128], index: 21, kind: output, shape index: {}]
  %s22 = sld [smem:[#allocation0]]
  $region121: #{deeper_gcn_forward.1} parent=0
    _
  %s24 = ssub.s32 1, %s22
  %s25 = scalar_select 0, %s24, %s22
  %s26 = sshll.u32 %s0, 4
  %s27 = int_to_ptr.vmem [resolvable:$true] %s26
  %29 = dma.vmem_to_smem %s27, 16, [#allocation5], [#allocation4]
  %30 = dma.done [#allocation4], 16
  %31 = sfence
  loop: start=0, step=1, limit=6
  $region2: #{deeper_gcn_forward.1} parent=0 // loop_pre_header
    _
  $region3: #{deeper_gcn_forward.1} parent=0 // loop_header
    %s33 = sphi 0, %s37
    %p34 = scmp.ge.s32.totalorder %s33, 6
    %s41 = sphi 0, %s41
    %s43 = sphi 0, %s41
    %s44 = sphi 0, %s43
    %s58 = sphi 0, %s44
    %s62 = sphi 0, %s62
    %s64 = sphi 0, %s62
    %s65 = sphi 0, %s64
    %s79 = sphi 0, %s65
    %s83 = sphi 0, %s83
    %s85 = sphi 0, %s83
    %s86 = sphi 0, %s85
    %s100 = sphi 0, %s86
    %s104 = sphi 0, %s104
    %s106 = sphi 0, %s104
    %s107 = sphi 0, %s106
    %s121 = sphi 0, %s107
    %s125 = sphi 0, %s125
    %s127 = sphi 0, %s125
    %s128 = sphi 0, %s127
    %s142 = sphi 0, %s128
    %s146 = sphi 0, %s146
    %s148 = sphi 0, %s146
    %s149 = sphi 0, %s148
    %s163 = sphi 0, %s149
    %s167 = sphi 0, %s167
    %s169 = sphi 0, %s167
    %s170 = sphi 0, %s169
    %s184 = sphi 0, %s170
    %s188 = sphi 0, %s188
    %s190 = sphi 0, %s188
    %s191 = sphi 0, %s190
    %s205 = sphi 0, %s191
    %s211 = sphi 0, %s213
    %s214 = sphi 0, %s211
    %s215 = sphi 0, %s214
    %s231 = sphi 0, %s215
    %s237 = sphi 0, %s239
    %s240 = sphi 0, %s237
    %s241 = sphi 0, %s240
    %s257 = sphi 0, %s241
    %s263 = sphi 0, %s265
    %s266 = sphi 0, %s263
    %s267 = sphi 0, %s266
    %s283 = sphi 0, %s267
    %s289 = sphi 0, %s291
    %s292 = sphi 0, %s289
    %s293 = sphi 0, %s292
    %s309 = sphi 0, %s293
    %s315 = sphi 0, %s317
    %s318 = sphi 0, %s315
    %s319 = sphi 0, %s318
    %s335 = sphi 0, %s319
    %s341 = sphi 0, %s343
    %s344 = sphi 0, %s341
    %s345 = sphi 0, %s344
    %s361 = sphi 0, %s345
    %s367 = sphi 0, %s369
    %s370 = sphi 0, %s367
    %s371 = sphi 0, %s370
    %s387 = sphi 0, %s371
    %s393 = sphi 0, %s395
    %s396 = sphi 0, %s393
    %s397 = sphi 0, %s396
    %s413 = sphi 0, %s397
    %s417 = sphi 0, %s417
    %s419 = sphi 0, %s417
    %s420 = sphi 0, %s419
    %s434 = sphi 0, %s420
    %s438 = sphi 0, %s438
    %s440 = sphi 0, %s438
    %s441 = sphi 0, %s440
    %s455 = sphi 0, %s441
    %s459 = sphi 0, %s459
    %s461 = sphi 0, %s459
    %s462 = sphi 0, %s461
    %s476 = sphi 0, %s462
    %s480 = sphi 0, %s480
    %s482 = sphi 0, %s480
    %s483 = sphi 0, %s482
    %s497 = sphi 0, %s483
    %s501 = sphi 0, %s501
    %s503 = sphi 0, %s501
    %s504 = sphi 0, %s503
    %s518 = sphi 0, %s504
  $region4: #{deeper_gcn_forward.1} parent=0 // loop_header_branch
    %36 = sbr.rel (%p34) target = $region8
  $region5: #{deeper_gcn_forward.1} parent=0 // loop_body
    %s38 = ssub.s32 %s33, 1
    %s39 = ssub.s32 %s33, 2
    %s40 = sadd.s32 %s33, 1
    %s42 = sadd.s32 %s41, 1
    %p45 = scmp.eq.s32.totalorder %s33, 3
    %p46 = scmp.ne.s32.totalorder %s41, %s43
    %p47 = scmp.eq.s32.totalorder %s33, 0
    %p48 = por %p46, %p47
    %p49 = scmp.ne.s32.totalorder %s41, %s43
    %p50 = scmp.eq.s32.totalorder %s38, 3
    %p51 = por %p49, %p50
    %p52 = scmp.ne.s32.totalorder %s43, %s44
    %p53 = scmp.eq.s32.totalorder %s38, 0
    %p54 = por %p52, %p53
    %p55 = scmp.ne.s32.totalorder %s43, %s44
    %p56 = scmp.eq.s32.totalorder %s39, 3
    %p57 = por %p55, %p56
    %p59 = scmp.ne.s32.totalorder %s44, %s58
    %p60 = scmp.eq.s32.totalorder %s39, 0
    %p61 = por %p59, %p60
    %s63 = sadd.s32 %s62, 1
    %p66 = scmp.eq.s32.totalorder %s33, 3
    %p67 = scmp.ne.s32.totalorder %s62, %s64
    %p68 = scmp.eq.s32.totalorder %s33, 0
    %p69 = por %p67, %p68
    %p70 = scmp.ne.s32.totalorder %s62, %s64
    %p71 = scmp.eq.s32.totalorder %s38, 3
    %p72 = por %p70, %p71
    %p73 = scmp.ne.s32.totalorder %s64, %s65
    %p74 = scmp.eq.s32.totalorder %s38, 0
    %p75 = por %p73, %p74
    %p76 = scmp.ne.s32.totalorder %s64, %s65
    %p77 = scmp.eq.s32.totalorder %s39, 3
    %p78 = por %p76, %p77
    %p80 = scmp.ne.s32.totalorder %s65, %s79
    %p81 = scmp.eq.s32.totalorder %s39, 0
    %p82 = por %p80, %p81
    %s84 = sadd.s32 %s83, 1
    %p87 = scmp.eq.s32.totalorder %s33, 3
    %p88 = scmp.ne.s32.totalorder %s83, %s85
    %p89 = scmp.eq.s32.totalorder %s33, 0
    %p90 = por %p88, %p89
    %p91 = scmp.ne.s32.totalorder %s83, %s85
    %p92 = scmp.eq.s32.totalorder %s38, 3
    %p93 = por %p91, %p92
    %p94 = scmp.ne.s32.totalorder %s85, %s86
    %p95 = scmp.eq.s32.totalorder %s38, 0
    %p96 = por %p94, %p95
    %p97 = scmp.ne.s32.totalorder %s85, %s86
    %p98 = scmp.eq.s32.totalorder %s39, 3
    %p99 = por %p97, %p98
    %p101 = scmp.ne.s32.totalorder %s86, %s100
    %p102 = scmp.eq.s32.totalorder %s39, 0
    %p103 = por %p101, %p102
    %s105 = sadd.s32 %s104, 1
    %p108 = scmp.eq.s32.totalorder %s33, 3
    %p109 = scmp.ne.s32.totalorder %s104, %s106
    %p110 = scmp.eq.s32.totalorder %s33, 0
    %p111 = por %p109, %p110
    %p112 = scmp.ne.s32.totalorder %s104, %s106
    %p113 = scmp.eq.s32.totalorder %s38, 3
    %p114 = por %p112, %p113
    %p115 = scmp.ne.s32.totalorder %s106, %s107
    %p116 = scmp.eq.s32.totalorder %s38, 0
    %p117 = por %p115, %p116
    %p118 = scmp.ne.s32.totalorder %s106, %s107
    %p119 = scmp.eq.s32.totalorder %s39, 3
    %p120 = por %p118, %p119
    %p122 = scmp.ne.s32.totalorder %s107, %s121
    %p123 = scmp.eq.s32.totalorder %s39, 0
    %p124 = por %p122, %p123
    %s126 = sadd.s32 %s125, 1
    %p129 = scmp.eq.s32.totalorder %s33, 3
    %p130 = scmp.ne.s32.totalorder %s125, %s127
    %p131 = scmp.eq.s32.totalorder %s33, 0
    %p132 = por %p130, %p131
    %p133 = scmp.ne.s32.totalorder %s125, %s127
    %p134 = scmp.eq.s32.totalorder %s38, 3
    %p135 = por %p133, %p134
    %p136 = scmp.ne.s32.totalorder %s127, %s128
    %p137 = scmp.eq.s32.totalorder %s38, 0
    %p138 = por %p136, %p137
    %p139 = scmp.ne.s32.totalorder %s127, %s128
    %p140 = scmp.eq.s32.totalorder %s39, 3
    %p141 = por %p139, %p140
    %p143 = scmp.ne.s32.totalorder %s128, %s142
    %p144 = scmp.eq.s32.totalorder %s39, 0
    %p145 = por %p143, %p144
    %s147 = sadd.s32 %s146, 1
    %p150 = scmp.eq.s32.totalorder %s33, 3
    %p151 = scmp.ne.s32.totalorder %s146, %s148
    %p152 = scmp.eq.s32.totalorder %s33, 0
    %p153 = por %p151, %p152
    %p154 = scmp.ne.s32.totalorder %s146, %s148
    %p155 = scmp.eq.s32.totalorder %s38, 3
    %p156 = por %p154, %p155
    %p157 = scmp.ne.s32.totalorder %s148, %s149
    %p158 = scmp.eq.s32.totalorder %s38, 0
    %p159 = por %p157, %p158
    %p160 = scmp.ne.s32.totalorder %s148, %s149
    %p161 = scmp.eq.s32.totalorder %s39, 3
    %p162 = por %p160, %p161
    %p164 = scmp.ne.s32.totalorder %s149, %s163
    %p165 = scmp.eq.s32.totalorder %s39, 0
    %p166 = por %p164, %p165
    %s168 = sadd.s32 %s167, 1
    %p171 = scmp.eq.s32.totalorder %s33, 3
    %p172 = scmp.ne.s32.totalorder %s167, %s169
    %p173 = scmp.eq.s32.totalorder %s33, 0
    %p174 = por %p172, %p173
    %p175 = scmp.ne.s32.totalorder %s167, %s169
    %p176 = scmp.eq.s32.totalorder %s38, 3
    %p177 = por %p175, %p176
    %p178 = scmp.ne.s32.totalorder %s169, %s170
    %p179 = scmp.eq.s32.totalorder %s38, 0
    %p180 = por %p178, %p179
    %p181 = scmp.ne.s32.totalorder %s169, %s170
    %p182 = scmp.eq.s32.totalorder %s39, 3
    %p183 = por %p181, %p182
    %p185 = scmp.ne.s32.totalorder %s170, %s184
    %p186 = scmp.eq.s32.totalorder %s39, 0
    %p187 = por %p185, %p186
    %s189 = sadd.s32 %s188, 1
    %p192 = scmp.eq.s32.totalorder %s33, 3
    %p193 = scmp.ne.s32.totalorder %s188, %s190
    %p194 = scmp.eq.s32.totalorder %s33, 0
    %p195 = por %p193, %p194
    %p196 = scmp.ne.s32.totalorder %s188, %s190
    %p197 = scmp.eq.s32.totalorder %s38, 3
    %p198 = por %p196, %p197
    %p199 = scmp.ne.s32.totalorder %s190, %s191
    %p200 = scmp.eq.s32.totalorder %s38, 0
    %p201 = por %p199, %p200
    %p202 = scmp.ne.s32.totalorder %s190, %s191
    %p203 = scmp.eq.s32.totalorder %s39, 3
    %p204 = por %p202, %p203
    %p206 = scmp.ne.s32.totalorder %s191, %s205
    %p207 = scmp.eq.s32.totalorder %s39, 0
    %p208 = por %p206, %p207
    %s209 = ssub.s32 %s33, %s40
    %p210 = scmp.eq.s32.totalorder %s209, 0
    %s212 = sadd.s32 %s211, 1
    %s213 = scalar_select %p210, %s211, %s212
    %p216 = pneg %p210
    %p217 = scmp.eq.s32.totalorder %s33, 3
    %p218 = por %p216, %p217
    %p219 = scmp.ne.s32.totalorder %s211, %s214
    %p220 = scmp.eq.s32.totalorder %s33, 0
    %p221 = por %p219, %p220
    %p222 = scmp.ne.s32.totalorder %s211, %s214
    %p223 = scmp.eq.s32.totalorder %s38, 3
    %p224 = por %p222, %p223
    %p225 = scmp.ne.s32.totalorder %s214, %s215
    %p226 = scmp.eq.s32.totalorder %s38, 0
    %p227 = por %p225, %p226
    %p228 = scmp.ne.s32.totalorder %s214, %s215
    %p229 = scmp.eq.s32.totalorder %s39, 3
    %p230 = por %p228, %p229
    %p232 = scmp.ne.s32.totalorder %s215, %s231
    %p233 = scmp.eq.s32.totalorder %s39, 0
    %p234 = por %p232, %p233
    %s235 = ssub.s32 %s33, %s40
    %p236 = scmp.eq.s32.totalorder %s235, 0
    %s238 = sadd.s32 %s237, 1
    %s239 = scalar_select %p236, %s237, %s238
    %p242 = pneg %p236
    %p243 = scmp.eq.s32.totalorder %s33, 3
    %p244 = por %p242, %p243
    %p245 = scmp.ne.s32.totalorder %s237, %s240
    %p246 = scmp.eq.s32.totalorder %s33, 0
    %p247 = por %p245, %p246
    %p248 = scmp.ne.s32.totalorder %s237, %s240
    %p249 = scmp.eq.s32.totalorder %s38, 3
    %p250 = por %p248, %p249
    %p251 = scmp.ne.s32.totalorder %s240, %s241
    %p252 = scmp.eq.s32.totalorder %s38, 0
    %p253 = por %p251, %p252
    %p254 = scmp.ne.s32.totalorder %s240, %s241
    %p255 = scmp.eq.s32.totalorder %s39, 3
    %p256 = por %p254, %p255
    %p258 = scmp.ne.s32.totalorder %s241, %s257
    %p259 = scmp.eq.s32.totalorder %s39, 0
    %p260 = por %p258, %p259
    %s261 = ssub.s32 %s33, %s40
    %p262 = scmp.eq.s32.totalorder %s261, 0
    %s264 = sadd.s32 %s263, 1
    %s265 = scalar_select %p262, %s263, %s264
    %p268 = pneg %p262
    %p269 = scmp.eq.s32.totalorder %s33, 3
    %p270 = por %p268, %p269
    %p271 = scmp.ne.s32.totalorder %s263, %s266
    %p272 = scmp.eq.s32.totalorder %s33, 0
    %p273 = por %p271, %p272
    %p274 = scmp.ne.s32.totalorder %s263, %s266
    %p275 = scmp.eq.s32.totalorder %s38, 3
    %p276 = por %p274, %p275
    %p277 = scmp.ne.s32.totalorder %s266, %s267
    %p278 = scmp.eq.s32.totalorder %s38, 0
    %p279 = por %p277, %p278
    %p280 = scmp.ne.s32.totalorder %s266, %s267
    %p281 = scmp.eq.s32.totalorder %s39, 3
    %p282 = por %p280, %p281
    %p284 = scmp.ne.s32.totalorder %s267, %s283
    %p285 = scmp.eq.s32.totalorder %s39, 0
    %p286 = por %p284, %p285
    %s287 = ssub.s32 %s33, %s40
    %p288 = scmp.eq.s32.totalorder %s287, 0
    %s290 = sadd.s32 %s289, 1
    %s291 = scalar_select %p288, %s289, %s290
    %p294 = pneg %p288
    %p295 = scmp.eq.s32.totalorder %s33, 3
    %p296 = por %p294, %p295
    %p297 = scmp.ne.s32.totalorder %s289, %s292
    %p298 = scmp.eq.s32.totalorder %s33, 0
    %p299 = por %p297, %p298
    %p300 = scmp.ne.s32.totalorder %s289, %s292
    %p301 = scmp.eq.s32.totalorder %s38, 3
    %p302 = por %p300, %p301
    %p303 = scmp.ne.s32.totalorder %s292, %s293
    %p304 = scmp.eq.s32.totalorder %s38, 0
    %p305 = por %p303, %p304
    %p306 = scmp.ne.s32.totalorder %s292, %s293
    %p307 = scmp.eq.s32.totalorder %s39, 3
    %p308 = por %p306, %p307
    %p310 = scmp.ne.s32.totalorder %s293, %s309
    %p311 = scmp.eq.s32.totalorder %s39, 0
    %p312 = por %p310, %p311
    %s313 = ssub.s32 %s33, %s40
    %p314 = scmp.eq.s32.totalorder %s313, 0
    %s316 = sadd.s32 %s315, 1
    %s317 = scalar_select %p314, %s315, %s316
    %p320 = pneg %p314
    %p321 = scmp.eq.s32.totalorder %s33, 3
    %p322 = por %p320, %p321
    %p323 = scmp.ne.s32.totalorder %s315, %s318
    %p324 = scmp.eq.s32.totalorder %s33, 0
    %p325 = por %p323, %p324
    %p326 = scmp.ne.s32.totalorder %s315, %s318
    %p327 = scmp.eq.s32.totalorder %s38, 3
    %p328 = por %p326, %p327
    %p329 = scmp.ne.s32.totalorder %s318, %s319
    %p330 = scmp.eq.s32.totalorder %s38, 0
    %p331 = por %p329, %p330
    %p332 = scmp.ne.s32.totalorder %s318, %s319
    %p333 = scmp.eq.s32.totalorder %s39, 3
    %p334 = por %p332, %p333
    %p336 = scmp.ne.s32.totalorder %s319, %s335
    %p337 = scmp.eq.s32.totalorder %s39, 0
    %p338 = por %p336, %p337
    %s339 = ssub.s32 %s33, %s40
    %p340 = scmp.eq.s32.totalorder %s339, 0
    %s342 = sadd.s32 %s341, 1
    %s343 = scalar_select %p340, %s341, %s342
    %p346 = pneg %p340
    %p347 = scmp.eq.s32.totalorder %s33, 3
    %p348 = por %p346, %p347
    %p349 = scmp.ne.s32.totalorder %s341, %s344
    %p350 = scmp.eq.s32.totalorder %s33, 0
    %p351 = por %p349, %p350
    %p352 = scmp.ne.s32.totalorder %s341, %s344
    %p353 = scmp.eq.s32.totalorder %s38, 3
    %p354 = por %p352, %p353
    %p355 = scmp.ne.s32.totalorder %s344, %s345
    %p356 = scmp.eq.s32.totalorder %s38, 0
    %p357 = por %p355, %p356
    %p358 = scmp.ne.s32.totalorder %s344, %s345
    %p359 = scmp.eq.s32.totalorder %s39, 3
    %p360 = por %p358, %p359
    %p362 = scmp.ne.s32.totalorder %s345, %s361
    %p363 = scmp.eq.s32.totalorder %s39, 0
    %p364 = por %p362, %p363
    %s365 = ssub.s32 %s33, %s40
    %p366 = scmp.eq.s32.totalorder %s365, 0
    %s368 = sadd.s32 %s367, 1
    %s369 = scalar_select %p366, %s367, %s368
    %p372 = pneg %p366
    %p373 = scmp.eq.s32.totalorder %s33, 3
    %p374 = por %p372, %p373
    %p375 = scmp.ne.s32.totalorder %s367, %s370
    %p376 = scmp.eq.s32.totalorder %s33, 0
    %p377 = por %p375, %p376
    %p378 = scmp.ne.s32.totalorder %s367, %s370
    %p379 = scmp.eq.s32.totalorder %s38, 3
    %p380 = por %p378, %p379
    %p381 = scmp.ne.s32.totalorder %s370, %s371
    %p382 = scmp.eq.s32.totalorder %s38, 0
    %p383 = por %p381, %p382
    %p384 = scmp.ne.s32.totalorder %s370, %s371
    %p385 = scmp.eq.s32.totalorder %s39, 3
    %p386 = por %p384, %p385
    %p388 = scmp.ne.s32.totalorder %s371, %s387
    %p389 = scmp.eq.s32.totalorder %s39, 0
    %p390 = por %p388, %p389
    %s391 = ssub.s32 %s33, %s40
    %p392 = scmp.eq.s32.totalorder %s391, 0
    %s394 = sadd.s32 %s393, 1
    %s395 = scalar_select %p392, %s393, %s394
    %p398 = pneg %p392
    %p399 = scmp.eq.s32.totalorder %s33, 3
    %p400 = por %p398, %p399
    %p401 = scmp.ne.s32.totalorder %s393, %s396
    %p402 = scmp.eq.s32.totalorder %s33, 0
    %p403 = por %p401, %p402
    %p404 = scmp.ne.s32.totalorder %s393, %s396
    %p405 = scmp.eq.s32.totalorder %s38, 3
    %p406 = por %p404, %p405
    %p407 = scmp.ne.s32.totalorder %s396, %s397
    %p408 = scmp.eq.s32.totalorder %s38, 0
    %p409 = por %p407, %p408
    %p410 = scmp.ne.s32.totalorder %s396, %s397
    %p411 = scmp.eq.s32.totalorder %s39, 3
    %p412 = por %p410, %p411
    %p414 = scmp.ne.s32.totalorder %s397, %s413
    %p415 = scmp.eq.s32.totalorder %s39, 0
    %p416 = por %p414, %p415
    %s418 = sadd.s32 %s417, 1
    %p421 = scmp.eq.s32.totalorder %s33, 3
    %p422 = scmp.ne.s32.totalorder %s417, %s419
    %p423 = scmp.eq.s32.totalorder %s33, 0
    %p424 = por %p422, %p423
    %p425 = scmp.ne.s32.totalorder %s417, %s419
    %p426 = scmp.eq.s32.totalorder %s38, 3
    %p427 = por %p425, %p426
    %p428 = scmp.ne.s32.totalorder %s419, %s420
    %p429 = scmp.eq.s32.totalorder %s38, 0
    %p430 = por %p428, %p429
    %p431 = scmp.ne.s32.totalorder %s419, %s420
    %p432 = scmp.eq.s32.totalorder %s39, 3
    %p433 = por %p431, %p432
    %p435 = scmp.ne.s32.totalorder %s420, %s434
    %p436 = scmp.eq.s32.totalorder %s39, 0
    %p437 = por %p435, %p436
    %s439 = sadd.s32 %s438, 1
    %p442 = scmp.eq.s32.totalorder %s33, 3
    %p443 = scmp.ne.s32.totalorder %s438, %s440
    %p444 = scmp.eq.s32.totalorder %s33, 0
    %p445 = por %p443, %p444
    %p446 = scmp.ne.s32.totalorder %s438, %s440
    %p447 = scmp.eq.s32.totalorder %s38, 3
    %p448 = por %p446, %p447
    %p449 = scmp.ne.s32.totalorder %s440, %s441
    %p450 = scmp.eq.s32.totalorder %s38, 0
    %p451 = por %p449, %p450
    %p452 = scmp.ne.s32.totalorder %s440, %s441
    %p453 = scmp.eq.s32.totalorder %s39, 3
    %p454 = por %p452, %p453
    %p456 = scmp.ne.s32.totalorder %s441, %s455
    %p457 = scmp.eq.s32.totalorder %s39, 0
    %p458 = por %p456, %p457
    %s460 = sadd.s32 %s459, 1
    %p463 = scmp.eq.s32.totalorder %s33, 3
    %p464 = scmp.ne.s32.totalorder %s459, %s461
    %p465 = scmp.eq.s32.totalorder %s33, 0
    %p466 = por %p464, %p465
    %p467 = scmp.ne.s32.totalorder %s459, %s461
    %p468 = scmp.eq.s32.totalorder %s38, 3
    %p469 = por %p467, %p468
    %p470 = scmp.ne.s32.totalorder %s461, %s462
    %p471 = scmp.eq.s32.totalorder %s38, 0
    %p472 = por %p470, %p471
    %p473 = scmp.ne.s32.totalorder %s461, %s462
    %p474 = scmp.eq.s32.totalorder %s39, 3
    %p475 = por %p473, %p474
    %p477 = scmp.ne.s32.totalorder %s462, %s476
    %p478 = scmp.eq.s32.totalorder %s39, 0
    %p479 = por %p477, %p478
    %s481 = sadd.s32 %s480, 1
    %p484 = scmp.eq.s32.totalorder %s33, 3
    %p485 = scmp.ne.s32.totalorder %s480, %s482
    %p486 = scmp.eq.s32.totalorder %s33, 0
    %p487 = por %p485, %p486
    %p488 = scmp.ne.s32.totalorder %s480, %s482
    %p489 = scmp.eq.s32.totalorder %s38, 3
    %p490 = por %p488, %p489
    %p491 = scmp.ne.s32.totalorder %s482, %s483
    %p492 = scmp.eq.s32.totalorder %s38, 0
    %p493 = por %p491, %p492
    %p494 = scmp.ne.s32.totalorder %s482, %s483
    %p495 = scmp.eq.s32.totalorder %s39, 3
    %p496 = por %p494, %p495
    %p498 = scmp.ne.s32.totalorder %s483, %s497
    %p499 = scmp.eq.s32.totalorder %s39, 0
    %p500 = por %p498, %p499
    %s502 = sadd.s32 %s501, 1
    %p505 = scmp.eq.s32.totalorder %s33, 3
    %p506 = scmp.ne.s32.totalorder %s501, %s503
    %p507 = scmp.eq.s32.totalorder %s33, 0
    %p508 = por %p506, %p507
    %p509 = scmp.ne.s32.totalorder %s501, %s503
    %p510 = scmp.eq.s32.totalorder %s38, 3
    %p511 = por %p509, %p510
    %p512 = scmp.ne.s32.totalorder %s503, %s504
    %p513 = scmp.eq.s32.totalorder %s38, 0
    %p514 = por %p512, %p513
    %p515 = scmp.ne.s32.totalorder %s503, %s504
    %p516 = scmp.eq.s32.totalorder %s39, 3
    %p517 = por %p515, %p516
    %p519 = scmp.ne.s32.totalorder %s504, %s518
    %p520 = scmp.eq.s32.totalorder %s39, 0
    %p521 = por %p519, %p520
    %p522 = scmp.le.s32.totalorder 1, %s33
    %p523 = scmp.lt.s32.totalorder %s33, 5
    %p524 = pnand %p522, %p523
    %p525 = pneg %p524
    // Predicated region
    $region9: #{deeper_gcn_forward.1} parent=5 // pred_check
      _
    $region10: #{deeper_gcn_forward.1} parent=5 // pred_check_branch
      %527 = sbr.rel (%p524) target = $region12
    $region11: #{deeper_gcn_forward.1} parent=5 // pred_region
      %s528 = ssub.s32 %s33, 1
      // Predicated region
      $region13: #{deeper_gcn_forward.1} parent=11 // pred_check
        %p529 = pneg %p54
      $region14: #{deeper_gcn_forward.1} parent=11 // pred_check_branch
        %531 = sbr.rel (%p529) target = $region16
      $region15: #{deeper_gcn_forward.1} parent=11 // pred_region
        _
      $region16: #{deeper_gcn_forward.1} parent=11 // pred_fallthru
        _
      // Predicated region
      $region17: #{deeper_gcn_forward.1} parent=11 // pred_check
        %p532 = pneg %p75
      $region18: #{deeper_gcn_forward.1} parent=11 // pred_check_branch
        %534 = sbr.rel (%p532) target = $region20
      $region19: #{deeper_gcn_forward.1} parent=11 // pred_region
        _
      $region20: #{deeper_gcn_forward.1} parent=11 // pred_fallthru
        _
      // Predicated region
      $region21: #{deeper_gcn_forward.1} parent=11 // pred_check
        %p535 = pneg %p96
      $region22: #{deeper_gcn_forward.1} parent=11 // pred_check_branch
        %537 = sbr.rel (%p535) target = $region24
      $region23: #{deeper_gcn_forward.1} parent=11 // pred_region
        _
      $region24: #{deeper_gcn_forward.1} parent=11 // pred_fallthru
        _
      // Predicated region
      $region25: #{deeper_gcn_forward.1} parent=11 // pred_check
        %p538 = pneg %p117
      $region26: #{deeper_gcn_forward.1} parent=11 // pred_check_branch
        %540 = sbr.rel (%p538) target = $region28
      $region27: #{deeper_gcn_forward.1} parent=11 // pred_region
        _
      $region28: #{deeper_gcn_forward.1} parent=11 // pred_fallthru
        _
      // Predicated region
      $region29: #{deeper_gcn_forward.1} parent=11 // pred_check
        %p541 = pneg %p138
      $region30: #{deeper_gcn_forward.1} parent=11 // pred_check_branch
        %543 = sbr.rel (%p541) target = $region32
      $region31: #{deeper_gcn_forward.1} parent=11 // pred_region
        _
      $region32: #{deeper_gcn_forward.1} parent=11 // pred_fallthru
        _
      // Predicated region
      $region33: #{deeper_gcn_forward.1} parent=11 // pred_check
        %p544 = pneg %p159
      $region34: #{deeper_gcn_forward.1} parent=11 // pred_check_branch
        %546 = sbr.rel (%p544) target = $region36
      $region35: #{deeper_gcn_forward.1} parent=11 // pred_region
        _
      $region36: #{deeper_gcn_forward.1} parent=11 // pred_fallthru
        _
      // Predicated region
      $region37: #{deeper_gcn_forward.1} parent=11 // pred_check
        %p547 = pneg %p180
      $region38: #{deeper_gcn_forward.1} parent=11 // pred_check_branch
        %549 = sbr.rel (%p547) target = $region40
      $region39: #{deeper_gcn_forward.1} parent=11 // pred_region
        _
      $region40: #{deeper_gcn_forward.1} parent=11 // pred_fallthru
        _
      // Predicated region
      $region41: #{deeper_gcn_forward.1} parent=11 // pred_check
        %p550 = pneg %p201
      $region42: #{deeper_gcn_forward.1} parent=11 // pred_check_branch
        %552 = sbr.rel (%p550) target = $region44
      $region43: #{deeper_gcn_forward.1} parent=11 // pred_region
        _
      $region44: #{deeper_gcn_forward.1} parent=11 // pred_fallthru
        _
      // Predicated region
      $region45: #{deeper_gcn_forward.1} parent=11 // pred_check
        %p553 = pneg %p430
      $region46: #{deeper_gcn_forward.1} parent=11 // pred_check_branch
        %555 = sbr.rel (%p553) target = $region48
      $region47: #{deeper_gcn_forward.1} parent=11 // pred_region
        _
      $region48: #{deeper_gcn_forward.1} parent=11 // pred_fallthru
        _
      // Predicated region
      $region49: #{deeper_gcn_forward.1} parent=11 // pred_check
        %p556 = pneg %p451
      $region50: #{deeper_gcn_forward.1} parent=11 // pred_check_branch
        %558 = sbr.rel (%p556) target = $region52
      $region51: #{deeper_gcn_forward.1} parent=11 // pred_region
        _
      $region52: #{deeper_gcn_forward.1} parent=11 // pred_fallthru
        _
      // Predicated region
      $region53: #{deeper_gcn_forward.1} parent=11 // pred_check
        %p559 = pneg %p472
      $region54: #{deeper_gcn_forward.1} parent=11 // pred_check_branch
        %561 = sbr.rel (%p559) target = $region56
      $region55: #{deeper_gcn_forward.1} parent=11 // pred_region
        _
      $region56: #{deeper_gcn_forward.1} parent=11 // pred_fallthru
        _
      // Predicated region
      $region57: #{deeper_gcn_forward.1} parent=11 // pred_check
        %p562 = pneg %p493
      $region58: #{deeper_gcn_forward.1} parent=11 // pred_check_branch
        %564 = sbr.rel (%p562) target = $region60
      $region59: #{deeper_gcn_forward.1} parent=11 // pred_region
        _
      $region60: #{deeper_gcn_forward.1} parent=11 // pred_fallthru
        _
    $region12: #{deeper_gcn_forward.1} parent=5 // pred_fallthru
      _
    %p565 = scmp.lt.s32.totalorder %s33, 4
    // Predicated region
    $region61: #{deeper_gcn_forward.1} parent=5 // pred_check
      %p566 = pneg %p565
    $region62: #{deeper_gcn_forward.1} parent=5 // pred_check_branch
      %568 = sbr.rel (%p566) target = $region64
    $region63: #{deeper_gcn_forward.1} parent=5 // pred_region
      // Predicated region
      $region65: #{deeper_gcn_forward.1} parent=63 // pred_check
        %p569 = pneg %p221
      $region66: #{deeper_gcn_forward.1} parent=63 // pred_check_branch
        %571 = sbr.rel (%p569) target = $region68
      $region67: #{deeper_gcn_forward.1} parent=63 // pred_region
        %p572 = scmp.lt.s32.totalorder %s33, 3
        %s573 = scalar_select %p572, %s33, 3
        %s574 = smul.addr %s573, 32
        %s575 = smul.addr %s574, 4
        %s576 = scalar_lea.vmem %s9, %s575
      $region68: #{deeper_gcn_forward.1} parent=63 // pred_fallthru
        _
      // Predicated region
      $region69: #{deeper_gcn_forward.1} parent=63 // pred_check
        %p577 = pneg %p247
      $region70: #{deeper_gcn_forward.1} parent=63 // pred_check_branch
        %579 = sbr.rel (%p577) target = $region72
      $region71: #{deeper_gcn_forward.1} parent=63 // pred_region
        %p580 = scmp.lt.s32.totalorder %s33, 3
        %s581 = scalar_select %p580, %s33, 3
        %s582 = smul.addr %s581, 2
        %s583 = scalar_lea.vmem %s10, %s582
      $region72: #{deeper_gcn_forward.1} parent=63 // pred_fallthru
        _
      // Predicated region
      $region73: #{deeper_gcn_forward.1} parent=63 // pred_check
        %p584 = pneg %p273
      $region74: #{deeper_gcn_forward.1} parent=63 // pred_check_branch
        %586 = sbr.rel (%p584) target = $region76
      $region75: #{deeper_gcn_forward.1} parent=63 // pred_region
        %p587 = scmp.lt.s32.totalorder %s33, 3
        %s588 = scalar_select %p587, %s33, 3
        %s589 = smul.addr %s588, 2
        %s590 = scalar_lea.vmem %s11, %s589
      $region76: #{deeper_gcn_forward.1} parent=63 // pred_fallthru
        _
      // Predicated region
      $region77: #{deeper_gcn_forward.1} parent=63 // pred_check
        %p591 = pneg %p299
      $region78: #{deeper_gcn_forward.1} parent=63 // pred_check_branch
        %593 = sbr.rel (%p591) target = $region80
      $region79: #{deeper_gcn_forward.1} parent=63 // pred_region
        %p594 = scmp.lt.s32.totalorder %s33, 3
        %s595 = scalar_select %p594, %s33, 3
        %s596 = smul.addr %s595, 2
        %s597 = scalar_lea.vmem %s12, %s596
      $region80: #{deeper_gcn_forward.1} parent=63 // pred_fallthru
        _
      // Predicated region
      $region81: #{deeper_gcn_forward.1} parent=63 // pred_check
        %p598 = pneg %p325
      $region82: #{deeper_gcn_forward.1} parent=63 // pred_check_branch
        %600 = sbr.rel (%p598) target = $region84
      $region83: #{deeper_gcn_forward.1} parent=63 // pred_region
        %p601 = scmp.lt.s32.totalorder %s33, 3
        %s602 = scalar_select %p601, %s33, 3
        %s603 = smul.addr %s602, 32
        %s604 = smul.addr %s603, 4
        %s605 = scalar_lea.vmem %s13, %s604
      $region84: #{deeper_gcn_forward.1} parent=63 // pred_fallthru
        _
      // Predicated region
      $region85: #{deeper_gcn_forward.1} parent=63 // pred_check
        %p606 = pneg %p351
      $region86: #{deeper_gcn_forward.1} parent=63 // pred_check_branch
        %608 = sbr.rel (%p606) target = $region88
      $region87: #{deeper_gcn_forward.1} parent=63 // pred_region
        %p609 = scmp.lt.s32.totalorder %s33, 3
        %s610 = scalar_select %p609, %s33, 3
        %s611 = scalar_lea.vmem %s14, %s610
      $region88: #{deeper_gcn_forward.1} parent=63 // pred_fallthru
        _
      // Predicated region
      $region89: #{deeper_gcn_forward.1} parent=63 // pred_check
        %p612 = pneg %p377
      $region90: #{deeper_gcn_forward.1} parent=63 // pred_check_branch
        %614 = sbr.rel (%p612) target = $region92
      $region91: #{deeper_gcn_forward.1} parent=63 // pred_region
        %p615 = scmp.lt.s32.totalorder %s33, 3
        %s616 = scalar_select %p615, %s33, 3
        %s617 = scalar_lea.vmem %s15, %s616
      $region92: #{deeper_gcn_forward.1} parent=63 // pred_fallthru
        _
      // Predicated region
      $region93: #{deeper_gcn_forward.1} parent=63 // pred_check
        %p618 = pneg %p403
      $region94: #{deeper_gcn_forward.1} parent=63 // pred_check_branch
        %620 = sbr.rel (%p618) target = $region96
      $region95: #{deeper_gcn_forward.1} parent=63 // pred_region
        %p621 = scmp.lt.s32.totalorder %s33, 3
        %s622 = scalar_select %p621, %s33, 3
        %s623 = scalar_lea.vmem %s16, %s622
      $region96: #{deeper_gcn_forward.1} parent=63 // pred_fallthru
        _
    $region64: #{deeper_gcn_forward.1} parent=5 // pred_fallthru
      _
    %p624 = scmp.le.s32.totalorder 1, %s33
    %p625 = scmp.lt.s32.totalorder %s33, 5
    %p626 = pnand %p624, %p625
    %p627 = pneg %p626
    // Predicated region
    $region97: #{deeper_gcn_forward.1} parent=5 // pred_check
      _
    $region98: #{deeper_gcn_forward.1} parent=5 // pred_check_branch
      %629 = sbr.rel (%p626) target = $region100
    $region99: #{deeper_gcn_forward.1} parent=5 // pred_region
      %s630 = ssub.s32 %s33, 1
      %p631 = pneg %p54
      %p632 = pneg %p51
      %p633 = pneg %p75
      %p634 = pneg %p72
      %p635 = pneg %p96
      %p636 = pneg %p93
      %p637 = pneg %p117
      %p638 = pneg %p114
      %p639 = pneg %p138
      %p640 = pneg %p135
      %p641 = pneg %p159
      %p642 = pneg %p156
      %p643 = pneg %p180
      %p644 = pneg %p177
      %p645 = pneg %p201
      %p646 = pneg %p198
      %p647 = scmp.lt.s32.totalorder %s38, 3
      %s648 = scalar_select %p647, %s38, 3
      %s649 = smul.addr %s648, 32
      %s650 = smul.addr %s649, 4
      %s651 = scalar_lea.vmem %s9, %s650
      %p652 = pneg %p227
      %p653 = pneg %p224
      %p654 = scmp.lt.s32.totalorder %s38, 3
      %s655 = scalar_select %p654, %s38, 3
      %s656 = smul.addr %s655, 2
      %s657 = scalar_lea.vmem %s10, %s656
      %p658 = pneg %p253
      %p659 = pneg %p250
      %p660 = scmp.lt.s32.totalorder %s38, 3
      %s661 = scalar_select %p660, %s38, 3
      %s662 = smul.addr %s661, 2
      %s663 = scalar_lea.vmem %s11, %s662
      %p664 = pneg %p279
      %p665 = pneg %p276
      %p666 = scmp.lt.s32.totalorder %s38, 3
      %s667 = scalar_select %p666, %s38, 3
      %s668 = smul.addr %s667, 2
      %s669 = scalar_lea.vmem %s12, %s668
      %p670 = pneg %p305
      %p671 = pneg %p302
      %p672 = scmp.lt.s32.totalorder %s38, 3
      %s673 = scalar_select %p672, %s38, 3
      %s674 = smul.addr %s673, 32
      %s675 = smul.addr %s674, 4
      %s676 = scalar_lea.vmem %s13, %s675
      %p677 = pneg %p331
      %p678 = pneg %p328
      %p679 = scmp.lt.s32.totalorder %s38, 3
      %s680 = scalar_select %p679, %s38, 3
      %s681 = scalar_lea.vmem %s14, %s680
      %p682 = pneg %p357
      %p683 = pneg %p354
      %p684 = scmp.lt.s32.totalorder %s38, 3
      %s685 = scalar_select %p684, %s38, 3
      %s686 = scalar_lea.vmem %s15, %s685
      %p687 = pneg %p383
      %p688 = pneg %p380
      %p689 = scmp.lt.s32.totalorder %s38, 3
      %s690 = scalar_select %p689, %s38, 3
      %s691 = scalar_lea.vmem %s16, %s690
      %p692 = pneg %p409
      %p693 = pneg %p406
      %p694 = pneg %p430
      %p695 = pneg %p427
      %p696 = pneg %p451
      %p697 = pneg %p448
      %p698 = pneg %p472
      %p699 = pneg %p469
      %p700 = pneg %p493
      %p701 = pneg %p490
      %p702 = pneg %p514
      %p703 = pneg %p511
      %p704 = scmp.lt.s32.totalorder %s38, 3
      %s705 = scalar_select %p704, %s38, 3
      %s706 = smul.addr %s705, 32
      %s707 = smul.addr %s706, 4
      %s708 = scalar_lea.vmem %s9, %s707
      %p709 = scmp.lt.s32.totalorder %s38, 3
      %s710 = scalar_select %p709, %s38, 3
      %s711 = smul.addr %s710, 2
      %s712 = scalar_lea.vmem %s10, %s711
      %p713 = scmp.lt.s32.totalorder %s38, 3
      %s714 = scalar_select %p713, %s38, 3
      %s715 = smul.addr %s714, 2
      %s716 = scalar_lea.vmem %s11, %s715
      %p717 = scmp.lt.s32.totalorder %s38, 3
      %s718 = scalar_select %p717, %s38, 3
      %s719 = smul.addr %s718, 2
      %s720 = scalar_lea.vmem %s12, %s719
      %p721 = scmp.lt.s32.totalorder %s38, 3
      %s722 = scalar_select %p721, %s38, 3
      %s723 = smul.addr %s722, 32
      %s724 = smul.addr %s723, 4
      %s725 = scalar_lea.vmem %s13, %s724
      %p726 = scmp.lt.s32.totalorder %s38, 3
      %s727 = scalar_select %p726, %s38, 3
      %s728 = scalar_lea.vmem %s14, %s727
      %p729 = scmp.lt.s32.totalorder %s38, 3
      %s730 = scalar_select %p729, %s38, 3
      %s731 = scalar_lea.vmem %s15, %s730
      %p732 = scmp.lt.s32.totalorder %s38, 3
      %s733 = scalar_select %p732, %s38, 3
      %s734 = scalar_lea.vmem %s16, %s733
      %p736 = scmp.eq.s32.totalorder %s38, 0
      // Predicated region
      $region101: #{deeper_gcn_forward.1} parent=99 // pred_check
        %p737 = pneg %p736
      $region102: #{deeper_gcn_forward.1} parent=99 // pred_check_branch
        %739 = sbr.rel (%p737) target = $region104
      $region103: #{deeper_gcn_forward.1} parent=99 // pred_region
        %v740 = vld [vmem:[%s1] sm:$0xf]
        %v741 = vld [vmem:[%s1 + $0x4] sm:$0xf]
        %v742 = vld [vmem:[%s1 + $0x8] sm:$0xf]
        %v743 = vld [vmem:[%s1 + $0xc] sm:$0xf]
        %v744 = vld [vmem:[%s1 + $0x10] sm:$0xf]
        %v745 = vld [vmem:[%s1 + $0x14] sm:$0xf]
        %v746 = vld [vmem:[%s1 + $0x18] sm:$0xf]
        %v747 = vld [vmem:[%s1 + $0x1c] sm:$0xf]
        %v748 = vld [vmem:[%s1 + $0x20] sm:$0xf]
        %v749 = vld [vmem:[%s1 + $0x24] sm:$0xf]
        %v750 = vld [vmem:[%s1 + $0x28] sm:$0xf]
        %v751 = vld [vmem:[%s1 + $0x2c] sm:$0xf]
        %v752 = vld [vmem:[%s1 + $0x30] sm:$0xf]
        %v753 = vld [vmem:[%s1 + $0x34] sm:$0xf]
        %v754 = vld [vmem:[%s1 + $0x38] sm:$0xf]
        %v755 = vld [vmem:[%s1 + $0x3c] sm:$0xf]
        %v756 = vld [vmem:[%s1 + $0x40] sm:$0xf]
        %v757 = vld [vmem:[%s1 + $0x44] sm:$0xf]
        %v758 = vld [vmem:[%s1 + $0x48] sm:$0xf]
        %v759 = vld [vmem:[%s1 + $0x4c] sm:$0xf]
        %v760 = vld [vmem:[%s1 + $0x50] sm:$0xf]
        %v761 = vld [vmem:[%s1 + $0x54] sm:$0xf]
        %v762 = vld [vmem:[%s1 + $0x58] sm:$0xf]
        %v763 = vld [vmem:[%s1 + $0x5c] sm:$0xf]
        %v764 = vld [vmem:[%s1 + $0x60] sm:$0xf]
        %v765 = vld [vmem:[%s1 + $0x64] sm:$0xf]
        %v766 = vld [vmem:[%s1 + $0x68] sm:$0xf]
        %v767 = vld [vmem:[%s1 + $0x6c] sm:$0xf]
        %v768 = vld [vmem:[%s1 + $0x70] sm:$0xf]
        %v769 = vld [vmem:[%s1 + $0x74] sm:$0xf]
        %v770 = vld [vmem:[%s1 + $0x78] sm:$0xf]
        %v771 = vld [vmem:[%s1 + $0x7c] sm:$0xf]
        %v772 = vld [vmem:[%s3] sm:$0xf]
        %v773 = vld [vmem:[%s3 + $0x4] sm:$0xf]
        %v774 = vld [vmem:[%s3 + $0x8] sm:$0xf]
        %v775 = vld [vmem:[%s3 + $0xc] sm:$0xf]
        %v776 = vld [vmem:[%s3 + $0x10] sm:$0xf]
        %v777 = vld [vmem:[%s3 + $0x14] sm:$0xf]
        %v778 = vld [vmem:[%s3 + $0x18] sm:$0xf]
        %v779 = vld [vmem:[%s3 + $0x1c] sm:$0xf]
        %v780 = vld [vmem:[%s3 + $0x20] sm:$0xf]
        %v781 = vld [vmem:[%s3 + $0x24] sm:$0xf]
        %v782 = vld [vmem:[%s3 + $0x28] sm:$0xf]
        %v783 = vld [vmem:[%s3 + $0x2c] sm:$0xf]
        %v784 = vld [vmem:[%s3 + $0x30] sm:$0xf]
        %v785 = vld [vmem:[%s3 + $0x34] sm:$0xf]
        %v786 = vld [vmem:[%s3 + $0x38] sm:$0xf]
        %v787 = vld [vmem:[%s3 + $0x3c] sm:$0xf]
        %v788 = vld [vmem:[%s4] sm:$0x1]
        %v790 = vlaneseq
        %v791 = vshrl.u32 %v790, 7
        %v792 = vsub.s32 0, %v791
        %v793 = vrot.slane %v788, %v792
        %v827 = vunpack.c.l.b16 %v740
        %v828 = vunpack.c.l.b16 %v741
        %v829 = vunpack.c.l.b16 %v742
        %v830 = vunpack.c.l.b16 %v743
        %v831 = vunpack.c.l.b16 %v744
        %v832 = vunpack.c.l.b16 %v745
        %v833 = vunpack.c.l.b16 %v746
        %v834 = vunpack.c.l.b16 %v747
        %v835 = vunpack.c.l.b16 %v748
        %v836 = vunpack.c.l.b16 %v749
        %v837 = vunpack.c.l.b16 %v750
        %v838 = vunpack.c.l.b16 %v751
        %v839 = vunpack.c.l.b16 %v752
        %v840 = vunpack.c.l.b16 %v753
        %v841 = vunpack.c.l.b16 %v754
        %v842 = vunpack.c.l.b16 %v755
        %v843 = vunpack.c.l.b16 %v756
        %v844 = vunpack.c.l.b16 %v757
        %v845 = vunpack.c.l.b16 %v758
        %v846 = vunpack.c.l.b16 %v759
        %v847 = vunpack.c.l.b16 %v760
        %v848 = vunpack.c.l.b16 %v761
        %v849 = vunpack.c.l.b16 %v762
        %v850 = vunpack.c.l.b16 %v763
        %v851 = vunpack.c.l.b16 %v764
        %v852 = vunpack.c.l.b16 %v765
        %v853 = vunpack.c.l.b16 %v766
        %v854 = vunpack.c.l.b16 %v767
        %v855 = vunpack.c.l.b16 %v768
        %v856 = vunpack.c.l.b16 %v769
        %v857 = vunpack.c.l.b16 %v770
        %v858 = vunpack.c.l.b16 %v771
        %v859 = vpack.c.b16 %v828, %v827
        %v860 = vpack.c.b16 %v830, %v829
        %v861 = vpack.c.b16 %v832, %v831
        %v862 = vpack.c.b16 %v834, %v833
        %v863 = vpack.c.b16 %v836, %v835
        %v864 = vpack.c.b16 %v838, %v837
        %v865 = vpack.c.b16 %v840, %v839
        %v866 = vpack.c.b16 %v842, %v841
        %v867 = vpack.c.b16 %v844, %v843
        %v868 = vpack.c.b16 %v846, %v845
        %v869 = vpack.c.b16 %v848, %v847
        %v870 = vpack.c.b16 %v850, %v849
        %v871 = vpack.c.b16 %v852, %v851
        %v872 = vpack.c.b16 %v854, %v853
        %v873 = vpack.c.b16 %v856, %v855
        %v874 = vpack.c.b16 %v858, %v857
        %v907 = vunpack.c.l.b16 %v772
        %v908 = vunpack.c.l.b16 %v773
        %v909 = vunpack.c.l.b16 %v774
        %v910 = vunpack.c.l.b16 %v775
        %v911 = vunpack.c.l.b16 %v776
        %v912 = vunpack.c.l.b16 %v777
        %v913 = vunpack.c.l.b16 %v778
        %v914 = vunpack.c.l.b16 %v779
        %v915 = vunpack.c.l.b16 %v780
        %v916 = vunpack.c.l.b16 %v781
        %v917 = vunpack.c.l.b16 %v782
        %v918 = vunpack.c.l.b16 %v783
        %v919 = vunpack.c.l.b16 %v784
        %v920 = vunpack.c.l.b16 %v785
        %v921 = vunpack.c.l.b16 %v786
        %v922 = vunpack.c.l.b16 %v787
        %v923 = vpack.c.b16 %v908, %v907
        %v924 = vpack.c.b16 %v910, %v909
        %v925 = vpack.c.b16 %v912, %v911
        %v926 = vpack.c.b16 %v914, %v913
        %v927 = vpack.c.b16 %v916, %v915
        %v928 = vpack.c.b16 %v918, %v917
        %v929 = vpack.c.b16 %v920, %v919
        %v930 = vpack.c.b16 %v922, %v921
        %939 = vmatprep.subr.bf16.mxu0 0
        %940 = vmatpush1.bf16.msra.mxu0 %v923
        %941 = vmatprep.subr.bf16.mxu0 0
        %942 = vmatpush1.bf16.msra.mxu0 %v924
        %943 = vmatprep.subr.bf16.mxu0 0
        %944 = vmatpush1.bf16.msra.mxu0 %v925
        %945 = vmatprep.subr.bf16.mxu0 0
        %946 = vmatpush1.bf16.msra.mxu0 %v926
        %947 = vmatprep.subr.bf16.mxu0 0
        %948 = vmatpush1.bf16.msra.mxu0 %v927
        %949 = vmatprep.subr.bf16.mxu0 0
        %950 = vmatpush1.bf16.msra.mxu0 %v928
        %951 = vmatprep.subr.bf16.mxu0 0
        %952 = vmatpush1.bf16.msra.mxu0 %v929
        %953 = vmatprep.subr.bf16.mxu0 0
        %954 = vmatpush1.bf16.msra.mxu0 %v930
        %955 = vmatprep.subr.bf16.mxu0 0
        %956 = vmatpush1.bf16.msra.mxu0 0
        %957 = vmatprep.subr.bf16.mxu0 0
        %958 = vmatpush1.bf16.msra.mxu0 0
        %959 = vmatprep.subr.bf16.mxu0 0
        %960 = vmatpush1.bf16.msra.mxu0 0
        %961 = vmatprep.subr.bf16.mxu0 0
        %962 = vmatpush1.bf16.msra.mxu0 0
        %963 = vmatprep.subr.bf16.mxu0 0
        %964 = vmatpush1.bf16.msra.mxu0 0
        %965 = vmatprep.subr.bf16.mxu0 0
        %966 = vmatpush1.bf16.msra.mxu0 0
        %967 = vmatprep.subr.bf16.mxu0 0
        %968 = vmatpush1.bf16.msra.mxu0 0
        %969 = vmatprep.subr.bf16.mxu0 0
        %970 = vmatpush1.bf16.msra.mxu0 0
        %971 = vmatprep.mubr.bf16.mxu0 0
        %972 = vmatmul.mubr.bf16.gmra.mrb[0].mxu0 %v859
        %v973 = vpop.f32.mrb[0].mxu0
        %v974 = vadd.f32 %v793, %v973
        %v975 = vpop.f32.mrb[0].mxu0
        %v976 = vpop.f32.mrb[0].mxu0
        %v977 = vadd.f32 %v793, %v976
        %v978 = vpop.f32.mrb[0].mxu0
        %979 = vmatprep.mubr.bf16.mxu0 0
        %980 = vmatmul.mubr.bf16.gmra.mrb[0].mxu0 %v860
        %v981 = vpop.f32.mrb[0].mxu0
        %v982 = vadd.f32 %v793, %v981
        %v983 = vpop.f32.mrb[0].mxu0
        %v984 = vpop.f32.mrb[0].mxu0
        %v985 = vadd.f32 %v793, %v984
        %v986 = vpop.f32.mrb[0].mxu0
        %987 = vmatprep.mubr.bf16.mxu0 0
        %988 = vmatmul.mubr.bf16.gmra.mrb[0].mxu0 %v861
        %v989 = vpop.f32.mrb[0].mxu0
        %v990 = vadd.f32 %v793, %v989
        %v991 = vpop.f32.mrb[0].mxu0
        %v992 = vpop.f32.mrb[0].mxu0
        %v993 = vadd.f32 %v793, %v992
        %v994 = vpop.f32.mrb[0].mxu0
        %995 = vmatprep.mubr.bf16.mxu0 0
        %996 = vmatmul.mubr.bf16.gmra.mrb[0].mxu0 %v862
        %v997 = vpop.f32.mrb[0].mxu0
        %v998 = vadd.f32 %v793, %v997
        %v999 = vpop.f32.mrb[0].mxu0
        %v1000 = vpop.f32.mrb[0].mxu0
        %v1001 = vadd.f32 %v793, %v1000
        %v1002 = vpop.f32.mrb[0].mxu0
        %1003 = vmatprep.mubr.bf16.mxu0 0
        %1004 = vmatmul.mubr.bf16.gmra.mrb[0].mxu0 %v863
        %v1005 = vpop.f32.mrb[0].mxu0
        %v1006 = vadd.f32 %v793, %v1005
        %v1007 = vpop.f32.mrb[0].mxu0
        %v1008 = vpop.f32.mrb[0].mxu0
        %v1009 = vadd.f32 %v793, %v1008
        %v1010 = vpop.f32.mrb[0].mxu0
        %1011 = vmatprep.mubr.bf16.mxu0 0
        %1012 = vmatmul.mubr.bf16.gmra.mrb[0].mxu0 %v864
        %v1013 = vpop.f32.mrb[0].mxu0
        %v1014 = vadd.f32 %v793, %v1013
        %v1015 = vpop.f32.mrb[0].mxu0
        %v1016 = vpop.f32.mrb[0].mxu0
        %v1017 = vadd.f32 %v793, %v1016
        %v1018 = vpop.f32.mrb[0].mxu0
        %1019 = vmatprep.mubr.bf16.mxu0 0
        %1020 = vmatmul.mubr.bf16.gmra.mrb[0].mxu0 %v865
        %v1021 = vpop.f32.mrb[0].mxu0
        %v1022 = vadd.f32 %v793, %v1021
        %v1023 = vpop.f32.mrb[0].mxu0
        %v1024 = vpop.f32.mrb[0].mxu0
        %v1025 = vadd.f32 %v793, %v1024
        %v1026 = vpop.f32.mrb[0].mxu0
        %1027 = vmatprep.mubr.bf16.mxu0 0
        %1028 = vmatmul.mubr.bf16.gmra.mrb[0].mxu0 %v866
        %v1029 = vpop.f32.mrb[0].mxu0
        %v1030 = vadd.f32 %v793, %v1029
        %v1031 = vpop.f32.mrb[0].mxu0
        %v1032 = vpop.f32.mrb[0].mxu0
        %v1033 = vadd.f32 %v793, %v1032
        %v1034 = vpop.f32.mrb[0].mxu0
        %1035 = vmatprep.mubr.bf16.mxu0 0
        %1036 = vmatmul.mubr.bf16.gmra.mrb[0].mxu0 %v867
        %v1037 = vpop.f32.mrb[0].mxu0
        %v1038 = vadd.f32 %v793, %v1037
        %v1039 = vpop.f32.mrb[0].mxu0
        %v1040 = vpop.f32.mrb[0].mxu0
        %v1041 = vadd.f32 %v793, %v1040
        %v1042 = vpop.f32.mrb[0].mxu0
        %1043 = vmatprep.mubr.bf16.mxu0 0
        %1044 = vmatmul.mubr.bf16.gmra.mrb[0].mxu0 %v868
        %v1045 = vpop.f32.mrb[0].mxu0
        %v1046 = vadd.f32 %v793, %v1045
        %v1047 = vpop.f32.mrb[0].mxu0
        %v1048 = vpop.f32.mrb[0].mxu0
        %v1049 = vadd.f32 %v793, %v1048
        %v1050 = vpop.f32.mrb[0].mxu0
        %1051 = vmatprep.mubr.bf16.mxu0 0
        %1052 = vmatmul.mubr.bf16.gmra.mrb[0].mxu0 %v869
        %v1053 = vpop.f32.mrb[0].mxu0
        %v1054 = vadd.f32 %v793, %v1053
        %v1055 = vpop.f32.mrb[0].mxu0
        %v1056 = vpop.f32.mrb[0].mxu0
        %v1057 = vadd.f32 %v793, %v1056
        %v1058 = vpop.f32.mrb[0].mxu0
        %1059 = vmatprep.mubr.bf16.mxu0 0
        %1060 = vmatmul.mubr.bf16.gmra.mrb[0].mxu0 %v870
        %v1061 = vpop.f32.mrb[0].mxu0
        %v1062 = vadd.f32 %v793, %v1061
        %v1063 = vpop.f32.mrb[0].mxu0
        %v1064 = vpop.f32.mrb[0].mxu0
        %v1065 = vadd.f32 %v793, %v1064
        %v1066 = vpop.f32.mrb[0].mxu0
        %1067 = vmatprep.mubr.bf16.mxu0 0
        %1068 = vmatmul.mubr.bf16.gmra.mrb[0].mxu0 %v871
        %v1069 = vpop.f32.mrb[0].mxu0
        %v1070 = vadd.f32 %v793, %v1069
        %v1071 = vpop.f32.mrb[0].mxu0
        %v1072 = vpop.f32.mrb[0].mxu0
        %v1073 = vadd.f32 %v793, %v1072
        %v1074 = vpop.f32.mrb[0].mxu0
        %1075 = vmatprep.mubr.bf16.mxu0 0
        %1076 = vmatmul.mubr.bf16.gmra.mrb[0].mxu0 %v872
        %v1077 = vpop.f32.mrb[0].mxu0
        %v1078 = vadd.f32 %v793, %v1077
        %v1079 = vpop.f32.mrb[0].mxu0
        %v1080 = vpop.f32.mrb[0].mxu0
        %v1081 = vadd.f32 %v793, %v1080
        %v1082 = vpop.f32.mrb[0].mxu0
        %1083 = vmatprep.mubr.bf16.mxu0 0
        %1084 = vmatmul.mubr.bf16.gmra.mrb[0].mxu0 %v873
        %v1085 = vpop.f32.mrb[0].mxu0
        %v1086 = vadd.f32 %v793, %v1085
        %v1087 = vpop.f32.mrb[0].mxu0
        %v1088 = vpop.f32.mrb[0].mxu0
        %v1089 = vadd.f32 %v793, %v1088
        %v1090 = vpop.f32.mrb[0].mxu0
        %1091 = vmatprep.mubr.bf16.mxu0 0
        %1092 = vmatmul.mubr.bf16.gmra.mrb[0].mxu0 %v874
        %v1093 = vpop.f32.mrb[0].mxu0
        %v1094 = vadd.f32 %v793, %v1093
        %v1095 = vpop.f32.mrb[0].mxu0
        %v1096 = vpop.f32.mrb[0].mxu0
        %v1097 = vadd.f32 %v793, %v1096
        %v1098 = vpop.f32.mrb[0].mxu0
        %1099 = vdwg.mxu0
        %1100 = vst [vmem:[#allocation2] sm:$0xff] %v974
        %1101 = vst [vmem:[#allocation2 + $0x8] sm:$0xff] %v977
        %1102 = vst [vmem:[#allocation2 + $0x10] sm:$0xff] %v982
        %1103 = vst [vmem:[#allocation2 + $0x18] sm:$0xff] %v985
        %1104 = vst [vmem:[#allocation2 + $0x20] sm:$0xff] %v990
        %1105 = vst [vmem:[#allocation2 + $0x28] sm:$0xff] %v993
        %1106 = vst [vmem:[#allocation2 + $0x30] sm:$0xff] %v998
        %1107 = vst [vmem:[#allocation2 + $0x38] sm:$0xff] %v1001
        %1108 = vst [vmem:[#allocation2 + $0x40] sm:$0xff] %v1006
        %1109 = vst [vmem:[#allocation2 + $0x48] sm:$0xff] %v1009
        %1110 = vst [vmem:[#allocation2 + $0x50] sm:$0xff] %v1014
        %1111 = vst [vmem:[#allocation2 + $0x58] sm:$0xff] %v1017
        %1112 = vst [vmem:[#allocation2 + $0x60] sm:$0xff] %v1022
        %1113 = vst [vmem:[#allocation2 + $0x68] sm:$0xff] %v1025
        %1114 = vst [vmem:[#allocation2 + $0x70] sm:$0xff] %v1030
        %1115 = vst [vmem:[#allocation2 + $0x78] sm:$0xff] %v1033
        %1116 = vst [vmem:[#allocation2 + $0x80] sm:$0xff] %v1038
        %1117 = vst [vmem:[#allocation2 + $0x88] sm:$0xff] %v1041
        %1118 = vst [vmem:[#allocation2 + $0x90] sm:$0xff] %v1046
        %1119 = vst [vmem:[#allocation2 + $0x98] sm:$0xff] %v1049
        %1120 = vst [vmem:[#allocation2 + $0xa0] sm:$0xff] %v1054
        %1121 = vst [vmem:[#allocation2 + $0xa8] sm:$0xff] %v1057
        %1122 = vst [vmem:[#allocation2 + $0xb0] sm:$0xff] %v1062
        %1123 = vst [vmem:[#allocation2 + $0xb8] sm:$0xff] %v1065
        %1124 = vst [vmem:[#allocation2 + $0xc0] sm:$0xff] %v1070
        %1125 = vst [vmem:[#allocation2 + $0xc8] sm:$0xff] %v1073
        %1126 = vst [vmem:[#allocation2 + $0xd0] sm:$0xff] %v1078
        %1127 = vst [vmem:[#allocation2 + $0xd8] sm:$0xff] %v1081
        %1128 = vst [vmem:[#allocation2 + $0xe0] sm:$0xff] %v1086
        %1129 = vst [vmem:[#allocation2 + $0xe8] sm:$0xff] %v1089
        %1130 = vst [vmem:[#allocation2 + $0xf0] sm:$0xff] %v1094
        %1131 = vst [vmem:[#allocation2 + $0xf8] sm:$0xff] %v1097
        %v1132 = vld [vmem:[%s2] sm:$0xf]
        %v1133 = vld [vmem:[%s2 + $0x4] sm:$0xf]
        %v1134 = vld [vmem:[%s2 + $0x8] sm:$0xf]
        %v1135 = vld [vmem:[%s2 + $0xc] sm:$0xf]
        %v1136 = vld [vmem:[%s2 + $0x10] sm:$0xf]
        %v1137 = vld [vmem:[%s2 + $0x14] sm:$0xf]
        %v1138 = vld [vmem:[%s2 + $0x18] sm:$0xf]
        %v1139 = vld [vmem:[%s2 + $0x1c] sm:$0xf]
        %v1140 = vld [vmem:[%s2 + $0x20] sm:$0xf]
        %v1141 = vld [vmem:[%s2 + $0x24] sm:$0xf]
        %v1142 = vld [vmem:[%s2 + $0x28] sm:$0xf]
        %v1143 = vld [vmem:[%s2 + $0x2c] sm:$0xf]
        %v1144 = vld [vmem:[%s2 + $0x30] sm:$0xf]
        %v1145 = vld [vmem:[%s2 + $0x34] sm:$0xf]
        %v1146 = vld [vmem:[%s2 + $0x38] sm:$0xf]
        %v1147 = vld [vmem:[%s2 + $0x3c] sm:$0xf]
        %v1148 = vld [vmem:[%s2 + $0x40] sm:$0xf]
        %v1149 = vld [vmem:[%s2 + $0x44] sm:$0xf]
        %v1150 = vld [vmem:[%s2 + $0x48] sm:$0xf]
        %v1151 = vld [vmem:[%s2 + $0x4c] sm:$0xf]
        %v1152 = vld [vmem:[%s2 + $0x50] sm:$0xf]
        %v1153 = vld [vmem:[%s2 + $0x54] sm:$0xf]
        %v1154 = vld [vmem:[%s2 + $0x58] sm:$0xf]
        %v1155 = vld [vmem:[%s2 + $0x5c] sm:$0xf]
        %v1156 = vld [vmem:[%s2 + $0x60] sm:$0xf]
        %v1157 = vld [vmem:[%s2 + $0x64] sm:$0xf]
        %v1158 = vld [vmem:[%s2 + $0x68] sm:$0xf]
        %v1159 = vld [vmem:[%s2 + $0x6c] sm:$0xf]
        %v1160 = vld [vmem:[%s2 + $0x70] sm:$0xf]
        %v1161 = vld [vmem:[%s2 + $0x74] sm:$0xf]
        %v1162 = vld [vmem:[%s2 + $0x78] sm:$0xf]
        %v1163 = vld [vmem:[%s2 + $0x7c] sm:$0xf]
        %v1164 = vld [vmem:[%s2 + $0x80] sm:$0xf]
        %v1165 = vld [vmem:[%s2 + $0x84] sm:$0xf]
        %v1166 = vld [vmem:[%s2 + $0x88] sm:$0xf]
        %v1167 = vld [vmem:[%s2 + $0x8c] sm:$0xf]
        %v1168 = vld [vmem:[%s2 + $0x90] sm:$0xf]
        %v1169 = vld [vmem:[%s2 + $0x94] sm:$0xf]
        %v1170 = vld [vmem:[%s2 + $0x98] sm:$0xf]
        %v1171 = vld [vmem:[%s2 + $0x9c] sm:$0xf]
        %v1172 = vld [vmem:[%s2 + $0xa0] sm:$0xf]
        %v1173 = vld [vmem:[%s2 + $0xa4] sm:$0xf]
        %v1174 = vld [vmem:[%s2 + $0xa8] sm:$0xf]
        %v1175 = vld [vmem:[%s2 + $0xac] sm:$0xf]
        %v1176 = vld [vmem:[%s2 + $0xb0] sm:$0xf]
        %v1177 = vld [vmem:[%s2 + $0xb4] sm:$0xf]
        %v1178 = vld [vmem:[%s2 + $0xb8] sm:$0xf]
        %v1179 = vld [vmem:[%s2 + $0xbc] sm:$0xf]
        %v1180 = vld [vmem:[%s2 + $0xc0] sm:$0xf]
        %v1181 = vld [vmem:[%s2 + $0xc4] sm:$0xf]
        %v1182 = vld [vmem:[%s2 + $0xc8] sm:$0xf]
        %v1183 = vld [vmem:[%s2 + $0xcc] sm:$0xf]
        %v1184 = vld [vmem:[%s2 + $0xd0] sm:$0xf]
        %v1185 = vld [vmem:[%s2 + $0xd4] sm:$0xf]
        %v1186 = vld [vmem:[%s2 + $0xd8] sm:$0xf]
        %v1187 = vld [vmem:[%s2 + $0xdc] sm:$0xf]
        %v1188 = vld [vmem:[%s2 + $0xe0] sm:$0xf]
        %v1189 = vld [vmem:[%s2 + $0xe4] sm:$0xf]
        %v1190 = vld [vmem:[%s2 + $0xe8] sm:$0xf]
        %v1191 = vld [vmem:[%s2 + $0xec] sm:$0xf]
        %v1192 = vld [vmem:[%s2 + $0xf0] sm:$0xf]
        %v1193 = vld [vmem:[%s2 + $0xf4] sm:$0xf]
        %v1194 = vld [vmem:[%s2 + $0xf8] sm:$0xf]
        %v1195 = vld [vmem:[%s2 + $0xfc] sm:$0xf]
        %v1196 = vld [vmem:[%s2 + $0x100] sm:$0xf]
        %v1197 = vld [vmem:[%s2 + $0x104] sm:$0xf]
        %v1198 = vld [vmem:[%s2 + $0x108] sm:$0xf]
        %v1199 = vld [vmem:[%s2 + $0x10c] sm:$0xf]
        %v1200 = vld [vmem:[%s2 + $0x110] sm:$0xf]
        %v1201 = vld [vmem:[%s2 + $0x114] sm:$0xf]
        %v1202 = vld [vmem:[%s2 + $0x118] sm:$0xf]
        %v1203 = vld [vmem:[%s2 + $0x11c] sm:$0xf]
        %v1204 = vld [vmem:[%s2 + $0x120] sm:$0xf]
        %v1205 = vld [vmem:[%s2 + $0x124] sm:$0xf]
        %v1206 = vld [vmem:[%s2 + $0x128] sm:$0xf]
        %v1207 = vld [vmem:[%s2 + $0x12c] sm:$0xf]
        %v1208 = vld [vmem:[%s2 + $0x130] sm:$0xf]
        %v1209 = vld [vmem:[%s2 + $0x134] sm:$0xf]
        %v1210 = vld [vmem:[%s2 + $0x138] sm:$0xf]
        %v1211 = vld [vmem:[%s2 + $0x13c] sm:$0xf]
        %v1212 = vld [vmem:[%s2 + $0x140] sm:$0xf]
        %v1213 = vld [vmem:[%s2 + $0x144] sm:$0xf]
        %v1214 = vld [vmem:[%s2 + $0x148] sm:$0xf]
        %v1215 = vld [vmem:[%s2 + $0x14c] sm:$0xf]
        %v1216 = vld [vmem:[%s2 + $0x150] sm:$0xf]
        %v1217 = vld [vmem:[%s2 + $0x154] sm:$0xf]
        %v1218 = vld [vmem:[%s2 + $0x158] sm:$0xf]
        %v1219 = vld [vmem:[%s2 + $0x15c] sm:$0xf]
        %v1220 = vld [vmem:[%s2 + $0x160] sm:$0xf]
        %v1221 = vld [vmem:[%s2 + $0x164] sm:$0xf]
        %v1222 = vld [vmem:[%s2 + $0x168] sm:$0xf]
        %v1223 = vld [vmem:[%s2 + $0x16c] sm:$0xf]
        %v1224 = vld [vmem:[%s2 + $0x170] sm:$0xf]
        %v1225 = vld [vmem:[%s2 + $0x174] sm:$0xf]
        %v1226 = vld [vmem:[%s2 + $0x178] sm:$0xf]
        %v1227 = vld [vmem:[%s2 + $0x17c] sm:$0xf]
        %v1228 = vld [vmem:[%s2 + $0x180] sm:$0xf]
        %v1229 = vld [vmem:[%s2 + $0x184] sm:$0xf]
        %v1230 = vld [vmem:[%s2 + $0x188] sm:$0xf]
        %v1231 = vld [vmem:[%s2 + $0x18c] sm:$0xf]
        %v1232 = vld [vmem:[%s2 + $0x190] sm:$0xf]
        %v1233 = vld [vmem:[%s2 + $0x194] sm:$0xf]
        %v1234 = vld [vmem:[%s2 + $0x198] sm:$0xf]
        %v1235 = vld [vmem:[%s2 + $0x19c] sm:$0xf]
        %v1236 = vld [vmem:[%s2 + $0x1a0] sm:$0xf]
        %v1237 = vld [vmem:[%s2 + $0x1a4] sm:$0xf]
        %v1238 = vld [vmem:[%s2 + $0x1a8] sm:$0xf]
        %v1239 = vld [vmem:[%s2 + $0x1ac] sm:$0xf]
        %v1240 = vld [vmem:[%s2 + $0x1b0] sm:$0xf]
        %v1241 = vld [vmem:[%s2 + $0x1b4] sm:$0xf]
        %v1242 = vld [vmem:[%s2 + $0x1b8] sm:$0xf]
        %v1243 = vld [vmem:[%s2 + $0x1bc] sm:$0xf]
        %v1244 = vld [vmem:[%s2 + $0x1c0] sm:$0xf]
        %v1245 = vld [vmem:[%s2 + $0x1c4] sm:$0xf]
        %v1246 = vld [vmem:[%s2 + $0x1c8] sm:$0xf]
        %v1247 = vld [vmem:[%s2 + $0x1cc] sm:$0xf]
        %v1248 = vld [vmem:[%s2 + $0x1d0] sm:$0xf]
        %v1249 = vld [vmem:[%s2 + $0x1d4] sm:$0xf]
        %v1250 = vld [vmem:[%s2 + $0x1d8] sm:$0xf]
        %v1251 = vld [vmem:[%s2 + $0x1dc] sm:$0xf]
        %v1252 = vld [vmem:[%s2 + $0x1e0] sm:$0xf]
        %v1253 = vld [vmem:[%s2 + $0x1e4] sm:$0xf]
        %v1254 = vld [vmem:[%s2 + $0x1e8] sm:$0xf]
        %v1255 = vld [vmem:[%s2 + $0x1ec] sm:$0xf]
        %v1256 = vld [vmem:[%s2 + $0x1f0] sm:$0xf]
        %v1257 = vld [vmem:[%s2 + $0x1f4] sm:$0xf]
        %v1258 = vld [vmem:[%s2 + $0x1f8] sm:$0xf]
        %v1259 = vld [vmem:[%s2 + $0x1fc] sm:$0xf]
        %v1260 = vld [vmem:[%s5] sm:$0xf]
        %v1261 = vld [vmem:[%s5 + $0x4] sm:$0xf]
        %v1262 = vld [vmem:[%s5 + $0x8] sm:$0xf]
        %v1263 = vld [vmem:[%s5 + $0xc] sm:$0xf]
        %v1264 = vld [vmem:[%s5 + $0x10] sm:$0xf]
        %v1265 = vld [vmem:[%s5 + $0x14] sm:$0xf]
        %v1266 = vld [vmem:[%s5 + $0x18] sm:$0xf]
        %v1267 = vld [vmem:[%s5 + $0x1c] sm:$0xf]
        %v1268 = vld [vmem:[%s5 + $0x20] sm:$0xf]
        %v1269 = vld [vmem:[%s5 + $0x24] sm:$0xf]
        %v1270 = vld [vmem:[%s5 + $0x28] sm:$0xf]
        %v1271 = vld [vmem:[%s5 + $0x2c] sm:$0xf]
        %v1272 = vld [vmem:[%s5 + $0x30] sm:$0xf]
        %v1273 = vld [vmem:[%s5 + $0x34] sm:$0xf]
        %v1274 = vld [vmem:[%s5 + $0x38] sm:$0xf]
        %v1275 = vld [vmem:[%s5 + $0x3c] sm:$0xf]
        %v1276 = vld [vmem:[%s6] sm:$0x1]
        %v1278 = vlaneseq
        %v1279 = vshrl.u32 %v1278, 7
        %v1280 = vsub.s32 0, %v1279
        %v1281 = vrot.slane %v1276, %v1280
        %v1411 = vunpack.c.l.b16 %v1132
        %v1412 = vunpack.c.l.b16 %v1133
        %v1413 = vunpack.c.l.b16 %v1134
        %v1414 = vunpack.c.l.b16 %v1135
        %v1415 = vunpack.c.l.b16 %v1136
        %v1416 = vunpack.c.l.b16 %v1137
        %v1417 = vunpack.c.l.b16 %v1138
        %v1418 = vunpack.c.l.b16 %v1139
        %v1419 = vunpack.c.l.b16 %v1140
        %v1420 = vunpack.c.l.b16 %v1141
        %v1421 = vunpack.c.l.b16 %v1142
        %v1422 = vunpack.c.l.b16 %v1143
        %v1423 = vunpack.c.l.b16 %v1144
        %v1424 = vunpack.c.l.b16 %v1145
        %v1425 = vunpack.c.l.b16 %v1146
        %v1426 = vunpack.c.l.b16 %v1147
        %v1427 = vunpack.c.l.b16 %v1148
        %v1428 = vunpack.c.l.b16 %v1149
        %v1429 = vunpack.c.l.b16 %v1150
        %v1430 = vunpack.c.l.b16 %v1151
        %v1431 = vunpack.c.l.b16 %v1152
        %v1432 = vunpack.c.l.b16 %v1153
        %v1433 = vunpack.c.l.b16 %v1154
        %v1434 = vunpack.c.l.b16 %v1155
        %v1435 = vunpack.c.l.b16 %v1156
        %v1436 = vunpack.c.l.b16 %v1157
        %v1437 = vunpack.c.l.b16 %v1158
        %v1438 = vunpack.c.l.b16 %v1159
        %v1439 = vunpack.c.l.b16 %v1160
        %v1440 = vunpack.c.l.b16 %v1161
        %v1441 = vunpack.c.l.b16 %v1162
        %v1442 = vunpack.c.l.b16 %v1163
        %v1443 = vunpack.c.l.b16 %v1164
        %v1444 = vunpack.c.l.b16 %v1165
        %v1445 = vunpack.c.l.b16 %v1166
        %v1446 = vunpack.c.l.b16 %v1167
        %v1447 = vunpack.c.l.b16 %v1168
        %v1448 = vunpack.c.l.b16 %v1169
        %v1449 = vunpack.c.l.b16 %v1170
        %v1450 = vunpack.c.l.b16 %v1171
        %v1451 = vunpack.c.l.b16 %v1172
        %v1452 = vunpack.c.l.b16 %v1173
        %v1453 = vunpack.c.l.b16 %v1174
        %v1454 = vunpack.c.l.b16 %v1175
        %v1455 = vunpack.c.l.b16 %v1176
        %v1456 = vunpack.c.l.b16 %v1177
        %v1457 = vunpack.c.l.b16 %v1178
        %v1458 = vunpack.c.l.b16 %v1179
        %v1459 = vunpack.c.l.b16 %v1180
        %v1460 = vunpack.c.l.b16 %v1181
        %v1461 = vunpack.c.l.b16 %v1182
        %v1462 = vunpack.c.l.b16 %v1183
        %v1463 = vunpack.c.l.b16 %v1184
        %v1464 = vunpack.c.l.b16 %v1185
        %v1465 = vunpack.c.l.b16 %v1186
        %v1466 = vunpack.c.l.b16 %v1187
        %v1467 = vunpack.c.l.b16 %v1188
        %v1468 = vunpack.c.l.b16 %v1189
        %v1469 = vunpack.c.l.b16 %v1190
        %v1470 = vunpack.c.l.b16 %v1191
        %v1471 = vunpack.c.l.b16 %v1192
        %v1472 = vunpack.c.l.b16 %v1193
        %v1473 = vunpack.c.l.b16 %v1194
        %v1474 = vunpack.c.l.b16 %v1195
        %v1475 = vunpack.c.l.b16 %v1196
        %v1476 = vunpack.c.l.b16 %v1197
        %v1477 = vunpack.c.l.b16 %v1198
        %v1478 = vunpack.c.l.b16 %v1199
        %v1479 = vunpack.c.l.b16 %v1200
        %v1480 = vunpack.c.l.b16 %v1201
        %v1481 = vunpack.c.l.b16 %v1202
        %v1482 = vunpack.c.l.b16 %v1203
        %v1483 = vunpack.c.l.b16 %v1204
        %v1484 = vunpack.c.l.b16 %v1205
        %v1485 = vunpack.c.l.b16 %v1206
        %v1486 = vunpack.c.l.b16 %v1207
        %v1487 = vunpack.c.l.b16 %v1208
        %v1488 = vunpack.c.l.b16 %v1209
        %v1489 = vunpack.c.l.b16 %v1210
        %v1490 = vunpack.c.l.b16 %v1211
        %v1491 = vunpack.c.l.b16 %v1212
        %v1492 = vunpack.c.l.b16 %v1213
        %v1493 = vunpack.c.l.b16 %v1214
        %v1494 = vunpack.c.l.b16 %v1215
        %v1495 = vunpack.c.l.b16 %v1216
        %v1496 = vunpack.c.l.b16 %v1217
        %v1497 = vunpack.c.l.b16 %v1218
        %v1498 = vunpack.c.l.b16 %v1219
        %v1499 = vunpack.c.l.b16 %v1220
        %v1500 = vunpack.c.l.b16 %v1221
        %v1501 = vunpack.c.l.b16 %v1222
        %v1502 = vunpack.c.l.b16 %v1223
        %v1503 = vunpack.c.l.b16 %v1224
        %v1504 = vunpack.c.l.b16 %v1225
        %v1505 = vunpack.c.l.b16 %v1226
        %v1506 = vunpack.c.l.b16 %v1227
        %v1507 = vunpack.c.l.b16 %v1228
        %v1508 = vunpack.c.l.b16 %v1229
        %v1509 = vunpack.c.l.b16 %v1230
        %v1510 = vunpack.c.l.b16 %v1231
        %v1511 = vunpack.c.l.b16 %v1232
        %v1512 = vunpack.c.l.b16 %v1233
        %v1513 = vunpack.c.l.b16 %v1234
        %v1514 = vunpack.c.l.b16 %v1235
        %v1515 = vunpack.c.l.b16 %v1236
        %v1516 = vunpack.c.l.b16 %v1237
        %v1517 = vunpack.c.l.b16 %v1238
        %v1518 = vunpack.c.l.b16 %v1239
        %v1519 = vunpack.c.l.b16 %v1240
        %v1520 = vunpack.c.l.b16 %v1241
        %v1521 = vunpack.c.l.b16 %v1242
        %v1522 = vunpack.c.l.b16 %v1243
        %v1523 = vunpack.c.l.b16 %v1244
        %v1524 = vunpack.c.l.b16 %v1245
        %v1525 = vunpack.c.l.b16 %v1246
        %v1526 = vunpack.c.l.b16 %v1247
        %v1527 = vunpack.c.l.b16 %v1248
        %v1528 = vunpack.c.l.b16 %v1249
        %v1529 = vunpack.c.l.b16 %v1250
        %v1530 = vunpack.c.l.b16 %v1251
        %v1531 = vunpack.c.l.b16 %v1252
        %v1532 = vunpack.c.l.b16 %v1253
        %v1533 = vunpack.c.l.b16 %v1254
        %v1534 = vunpack.c.l.b16 %v1255
        %v1535 = vunpack.c.l.b16 %v1256
        %v1536 = vunpack.c.l.b16 %v1257
        %v1537 = vunpack.c.l.b16 %v1258
        %v1538 = vunpack.c.l.b16 %v1259
        %v1539 = vpack.c.b16 %v1412, %v1411
        %v1540 = vpack.c.b16 %v1414, %v1413
        %v1541 = vpack.c.b16 %v1416, %v1415
        %v1542 = vpack.c.b16 %v1418, %v1417
        %v1543 = vpack.c.b16 %v1420, %v1419
        %v1544 = vpack.c.b16 %v1422, %v1421
        %v1545 = vpack.c.b16 %v1424, %v1423
        %v1546 = vpack.c.b16 %v1426, %v1425
        %v1547 = vpack.c.b16 %v1428, %v1427
        %v1548 = vpack.c.b16 %v1430, %v1429
        %v1549 = vpack.c.b16 %v1432, %v1431
        %v1550 = vpack.c.b16 %v1434, %v1433
        %v1551 = vpack.c.b16 %v1436, %v1435
        %v1552 = vpack.c.b16 %v1438, %v1437
        %v1553 = vpack.c.b16 %v1440, %v1439
        %v1554 = vpack.c.b16 %v1442, %v1441
        %v1555 = vpack.c.b16 %v1444, %v1443
        %v1556 = vpack.c.b16 %v1446, %v1445
        %v1557 = vpack.c.b16 %v1448, %v1447
        %v1558 = vpack.c.b16 %v1450, %v1449
        %v1559 = vpack.c.b16 %v1452, %v1451
        %v1560 = vpack.c.b16 %v1454, %v1453
        %v1561 = vpack.c.b16 %v1456, %v1455
        %v1562 = vpack.c.b16 %v1458, %v1457
        %v1563 = vpack.c.b16 %v1460, %v1459
        %v1564 = vpack.c.b16 %v1462, %v1461
        %v1565 = vpack.c.b16 %v1464, %v1463
        %v1566 = vpack.c.b16 %v1466, %v1465
        %v1567 = vpack.c.b16 %v1468, %v1467
        %v1568 = vpack.c.b16 %v1470, %v1469
        %v1569 = vpack.c.b16 %v1472, %v1471
        %v1570 = vpack.c.b16 %v1474, %v1473
        %v1571 = vpack.c.b16 %v1476, %v1475
        %v1572 = vpack.c.b16 %v1478, %v1477
        %v1573 = vpack.c.b16 %v1480, %v1479
        %v1574 = vpack.c.b16 %v1482, %v1481
        %v1575 = vpack.c.b16 %v1484, %v1483
        %v1576 = vpack.c.b16 %v1486, %v1485
        %v1577 = vpack.c.b16 %v1488, %v1487
        %v1578 = vpack.c.b16 %v1490, %v1489
        %v1579 = vpack.c.b16 %v1492, %v1491
        %v1580 = vpack.c.b16 %v1494, %v1493
        %v1581 = vpack.c.b16 %v1496, %v1495
        %v1582 = vpack.c.b16 %v1498, %v1497
        %v1583 = vpack.c.b16 %v1500, %v1499
        %v1584 = vpack.c.b16 %v1502, %v1501
        %v1585 = vpack.c.b16 %v1504, %v1503
        %v1586 = vpack.c.b16 %v1506, %v1505
        %v1587 = vpack.c.b16 %v1508, %v1507
        %v1588 = vpack.c.b16 %v1510, %v1509
        %v1589 = vpack.c.b16 %v1512, %v1511
        %v1590 = vpack.c.b16 %v1514, %v1513
        %v1591 = vpack.c.b16 %v1516, %v1515
        %v1592 = vpack.c.b16 %v1518, %v1517
        %v1593 = vpack.c.b16 %v1520, %v1519
        %v1594 = vpack.c.b16 %v1522, %v1521
        %v1595 = vpack.c.b16 %v1524, %v1523
        %v1596 = vpack.c.b16 %v1526, %v1525
        %v1597 = vpack.c.b16 %v1528, %v1527
        %v1598 = vpack.c.b16 %v1530, %v1529
        %v1599 = vpack.c.b16 %v1532, %v1531
        %v1600 = vpack.c.b16 %v1534, %v1533
        %v1601 = vpack.c.b16 %v1536, %v1535
        %v1602 = vpack.c.b16 %v1538, %v1537
        %v1683 = vunpack.c.l.b16 %v1260
        %v1684 = vunpack.c.l.b16 %v1261
        %v1685 = vunpack.c.l.b16 %v1262
        %v1686 = vunpack.c.l.b16 %v1263
        %v1687 = vunpack.c.l.b16 %v1264
        %v1688 = vunpack.c.l.b16 %v1265
        %v1689 = vunpack.c.l.b16 %v1266
        %v1690 = vunpack.c.l.b16 %v1267
        %v1691 = vunpack.c.l.b16 %v1268
        %v1692 = vunpack.c.l.b16 %v1269
        %v1693 = vunpack.c.l.b16 %v1270
        %v1694 = vunpack.c.l.b16 %v1271
        %v1695 = vunpack.c.l.b16 %v1272
        %v1696 = vunpack.c.l.b16 %v1273
        %v1697 = vunpack.c.l.b16 %v1274
        %v1698 = vunpack.c.l.b16 %v1275
        %v1699 = vpack.c.b16 %v1684, %v1683
        %v1700 = vpack.c.b16 %v1686, %v1685
        %v1701 = vpack.c.b16 %v1688, %v1687
        %v1702 = vpack.c.b16 %v1690, %v1689
        %v1703 = vpack.c.b16 %v1692, %v1691
        %v1704 = vpack.c.b16 %v1694, %v1693
        %v1705 = vpack.c.b16 %v1696, %v1695
        %v1706 = vpack.c.b16 %v1698, %v1697
        %1715 = vmatprep.subr.bf16.mxu0 0
        %1716 = vmatpush1.bf16.msra.mxu0 %v1699
        %1717 = vmatprep.subr.bf16.mxu0 0
        %1718 = vmatpush1.bf16.msra.mxu0 %v1700
        %1719 = vmatprep.subr.bf16.mxu0 0
        %1720 = vmatpush1.bf16.msra.mxu0 %v1701
        %1721 = vmatprep.subr.bf16.mxu0 0
        %1722 = vmatpush1.bf16.msra.mxu0 %v1702
        %1723 = vmatprep.subr.bf16.mxu0 0
        %1724 = vmatpush1.bf16.msra.mxu0 %v1703
        %1725 = vmatprep.subr.bf16.mxu0 0
        %1726 = vmatpush1.bf16.msra.mxu0 %v1704
        %1727 = vmatprep.subr.bf16.mxu0 0
        %1728 = vmatpush1.bf16.msra.mxu0 %v1705
        %1729 = vmatprep.subr.bf16.mxu0 0
        %1730 = vmatpush1.bf16.msra.mxu0 %v1706
        %1731 = vmatprep.subr.bf16.mxu0 0
        %1732 = vmatpush1.bf16.msra.mxu0 0
        %1733 = vmatprep.subr.bf16.mxu0 0
        %1734 = vmatpush1.bf16.msra.mxu0 0
        %1735 = vmatprep.subr.bf16.mxu0 0
        %1736 = vmatpush1.bf16.msra.mxu0 0
        %1737 = vmatprep.subr.bf16.mxu0 0
        %1738 = vmatpush1.bf16.msra.mxu0 0
        %1739 = vmatprep.subr.bf16.mxu0 0
        %1740 = vmatpush1.bf16.msra.mxu0 0
        %1741 = vmatprep.subr.bf16.mxu0 0
        %1742 = vmatpush1.bf16.msra.mxu0 0
        %1743 = vmatprep.subr.bf16.mxu0 0
        %1744 = vmatpush1.bf16.msra.mxu0 0
        %1745 = vmatprep.subr.bf16.mxu0 0
        %1746 = vmatpush1.bf16.msra.mxu0 0
        %1747 = vmatprep.mubr.bf16.mxu0 0
        %1748 = vmatmul.mubr.bf16.gmra.mrb[0].mxu0 %v1539
        %v1749 = vpop.f32.mrb[0].mxu0
        %v1750 = vadd.f32 %v1281, %v1749
        %v1751 = vpop.f32.mrb[0].mxu0
        %v1752 = vpop.f32.mrb[0].mxu0
        %v1753 = vadd.f32 %v1281, %v1752
        %v1754 = vpop.f32.mrb[0].mxu0
        %1755 = vmatprep.mubr.bf16.mxu0 0
        %1756 = vmatmul.mubr.bf16.gmra.mrb[0].mxu0 %v1540
        %v1757 = vpop.f32.mrb[0].mxu0
        %v1758 = vadd.f32 %v1281, %v1757
        %v1759 = vpop.f32.mrb[0].mxu0
        %v1760 = vpop.f32.mrb[0].mxu0
        %v1761 = vadd.f32 %v1281, %v1760
        %v1762 = vpop.f32.mrb[0].mxu0
        %1763 = vmatprep.mubr.bf16.mxu0 0
        %1764 = vmatmul.mubr.bf16.gmra.mrb[0].mxu0 %v1541
        %v1765 = vpop.f32.mrb[0].mxu0
        %v1766 = vadd.f32 %v1281, %v1765
        %v1767 = vpop.f32.mrb[0].mxu0
        %v1768 = vpop.f32.mrb[0].mxu0
        %v1769 = vadd.f32 %v1281, %v1768
        %v1770 = vpop.f32.mrb[0].mxu0
        %1771 = vmatprep.mubr.bf16.mxu0 0
        %1772 = vmatmul.mubr.bf16.gmra.mrb[0].mxu0 %v1542
        %v1773 = vpop.f32.mrb[0].mxu0
        %v1774 = vadd.f32 %v1281, %v1773
        %v1775 = vpop.f32.mrb[0].mxu0
        %v1776 = vpop.f32.mrb[0].mxu0
        %v1777 = vadd.f32 %v1281, %v1776
        %v1778 = vpop.f32.mrb[0].mxu0
        %1779 = vmatprep.mubr.bf16.mxu0 0
        %1780 = vmatmul.mubr.bf16.gmra.mrb[0].mxu0 %v1543
        %v1781 = vpop.f32.mrb[0].mxu0
        %v1782 = vadd.f32 %v1281, %v1781
        %v1783 = vpop.f32.mrb[0].mxu0
        %v1784 = vpop.f32.mrb[0].mxu0
        %v1785 = vadd.f32 %v1281, %v1784
        %v1786 = vpop.f32.mrb[0].mxu0
        %1787 = vmatprep.mubr.bf16.mxu0 0
        %1788 = vmatmul.mubr.bf16.gmra.mrb[0].mxu0 %v1544
        %v1789 = vpop.f32.mrb[0].mxu0
        %v1790 = vadd.f32 %v1281, %v1789
        %v1791 = vpop.f32.mrb[0].mxu0
        %v1792 = vpop.f32.mrb[0].mxu0
        %v1793 = vadd.f32 %v1281, %v1792
        %v1794 = vpop.f32.mrb[0].mxu0
        %1795 = vmatprep.mubr.bf16.mxu0 0
        %1796 = vmatmul.mubr.bf16.gmra.mrb[0].mxu0 %v1545
        %v1797 = vpop.f32.mrb[0].mxu0
        %v1798 = vadd.f32 %v1281, %v1797
        %v1799 = vpop.f32.mrb[0].mxu0
        %v1800 = vpop.f32.mrb[0].mxu0
        %v1801 = vadd.f32 %v1281, %v1800
        %v1802 = vpop.f32.mrb[0].mxu0
        %1803 = vmatprep.mubr.bf16.mxu0 0
        %1804 = vmatmul.mubr.bf16.gmra.mrb[0].mxu0 %v1546
        %v1805 = vpop.f32.mrb[0].mxu0
        %v1806 = vadd.f32 %v1281, %v1805
        %v1807 = vpop.f32.mrb[0].mxu0
        %v1808 = vpop.f32.mrb[0].mxu0
        %v1809 = vadd.f32 %v1281, %v1808
        %v1810 = vpop.f32.mrb[0].mxu0
        %1811 = vmatprep.mubr.bf16.mxu0 0
        %1812 = vmatmul.mubr.bf16.gmra.mrb[0].mxu0 %v1547
        %v1813 = vpop.f32.mrb[0].mxu0
        %v1814 = vadd.f32 %v1281, %v1813
        %v1815 = vpop.f32.mrb[0].mxu0
        %v1816 = vpop.f32.mrb[0].mxu0
        %v1817 = vadd.f32 %v1281, %v1816
        %v1818 = vpop.f32.mrb[0].mxu0
        %1819 = vmatprep.mubr.bf16.mxu0 0
        %1820 = vmatmul.mubr.bf16.gmra.mrb[0].mxu0 %v1548
        %v1821 = vpop.f32.mrb[0].mxu0
        %v1822 = vadd.f32 %v1281, %v1821
        %v1823 = vpop.f32.mrb[0].mxu0
        %v1824 = vpop.f32.mrb[0].mxu0
        %v1825 = vadd.f32 %v1281, %v1824
        %v1826 = vpop.f32.mrb[0].mxu0
        %1827 = vmatprep.mubr.bf16.mxu0 0
        %1828 = vmatmul.mubr.bf16.gmra.mrb[0].mxu0 %v1549
        %v1829 = vpop.f32.mrb[0].mxu0
        %v1830 = vadd.f32 %v1281, %v1829
        %v1831 = vpop.f32.mrb[0].mxu0
        %v1832 = vpop.f32.mrb[0].mxu0
        %v1833 = vadd.f32 %v1281, %v1832
        %v1834 = vpop.f32.mrb[0].mxu0
        %1835 = vmatprep.mubr.bf16.mxu0 0
        %1836 = vmatmul.mubr.bf16.gmra.mrb[0].mxu0 %v1550
        %v1837 = vpop.f32.mrb[0].mxu0
        %v1838 = vadd.f32 %v1281, %v1837
        %v1839 = vpop.f32.mrb[0].mxu0
        %v1840 = vpop.f32.mrb[0].mxu0
        %v1841 = vadd.f32 %v1281, %v1840
        %v1842 = vpop.f32.mrb[0].mxu0
        %1843 = vmatprep.mubr.bf16.mxu0 0
        %1844 = vmatmul.mubr.bf16.gmra.mrb[0].mxu0 %v1551
        %v1845 = vpop.f32.mrb[0].mxu0
        %v1846 = vadd.f32 %v1281, %v1845
        %v1847 = vpop.f32.mrb[0].mxu0
        %v1848 = vpop.f32.mrb[0].mxu0
        %v1849 = vadd.f32 %v1281, %v1848
        %v1850 = vpop.f32.mrb[0].mxu0
        %1851 = vmatprep.mubr.bf16.mxu0 0
        %1852 = vmatmul.mubr.bf16.gmra.mrb[0].mxu0 %v1552
        %v1853 = vpop.f32.mrb[0].mxu0
        %v1854 = vadd.f32 %v1281, %v1853
        %v1855 = vpop.f32.mrb[0].mxu0
        %v1856 = vpop.f32.mrb[0].mxu0
        %v1857 = vadd.f32 %v1281, %v1856
        %v1858 = vpop.f32.mrb[0].mxu0
        %1859 = vmatprep.mubr.bf16.mxu0 0
        %1860 = vmatmul.mubr.bf16.gmra.mrb[0].mxu0 %v1553
        %v1861 = vpop.f32.mrb[0].mxu0
        %v1862 = vadd.f32 %v1281, %v1861
        %v1863 = vpop.f32.mrb[0].mxu0
        %v1864 = vpop.f32.mrb[0].mxu0
        %v1865 = vadd.f32 %v1281, %v1864
        %v1866 = vpop.f32.mrb[0].mxu0
        %1867 = vmatprep.mubr.bf16.mxu0 0
        %1868 = vmatmul.mubr.bf16.gmra.mrb[0].mxu0 %v1554
        %v1869 = vpop.f32.mrb[0].mxu0
        %v1870 = vadd.f32 %v1281, %v1869
        %v1871 = vpop.f32.mrb[0].mxu0
        %v1872 = vpop.f32.mrb[0].mxu0
        %v1873 = vadd.f32 %v1281, %v1872
        %v1874 = vpop.f32.mrb[0].mxu0
        %1875 = vmatprep.mubr.bf16.mxu0 0
        %1876 = vmatmul.mubr.bf16.gmra.mrb[0].mxu0 %v1555
        %v1877 = vpop.f32.mrb[0].mxu0
        %v1878 = vadd.f32 %v1281, %v1877
        %v1879 = vpop.f32.mrb[0].mxu0
        %v1880 = vpop.f32.mrb[0].mxu0
        %v1881 = vadd.f32 %v1281, %v1880
        %v1882 = vpop.f32.mrb[0].mxu0
        %1883 = vmatprep.mubr.bf16.mxu0 0
        %1884 = vmatmul.mubr.bf16.gmra.mrb[0].mxu0 %v1556
        %v1885 = vpop.f32.mrb[0].mxu0
        %v1886 = vadd.f32 %v1281, %v1885
        %v1887 = vpop.f32.mrb[0].mxu0
        %v1888 = vpop.f32.mrb[0].mxu0
        %v1889 = vadd.f32 %v1281, %v1888
        %v1890 = vpop.f32.mrb[0].mxu0
        %1891 = vmatprep.mubr.bf16.mxu0 0
        %1892 = vmatmul.mubr.bf16.gmra.mrb[0].mxu0 %v1557
        %v1893 = vpop.f32.mrb[0].mxu0
        %v1894 = vadd.f32 %v1281, %v1893
        %v1895 = vpop.f32.mrb[0].mxu0
        %v1896 = vpop.f32.mrb[0].mxu0
        %v1897 = vadd.f32 %v1281, %v1896
        %v1898 = vpop.f32.mrb[0].mxu0
        %1899 = vmatprep.mubr.bf16.mxu0 0
        %1900 = vmatmul.mubr.bf16.gmra.mrb[0].mxu0 %v1558
        %v1901 = vpop.f32.mrb[0].mxu0
        %v1902 = vadd.f32 %v1281, %v1901
        %v1903 = vpop.f32.mrb[0].mxu0
        %v1904 = vpop.f32.mrb[0].mxu0
        %v1905 = vadd.f32 %v1281, %v1904
        %v1906 = vpop.f32.mrb[0].mxu0
        %1907 = vmatprep.mubr.bf16.mxu0 0
        %1908 = vmatmul.mubr.bf16.gmra.mrb[0].mxu0 %v1559
        %v1909 = vpop.f32.mrb[0].mxu0
        %v1910 = vadd.f32 %v1281, %v1909
        %v1911 = vpop.f32.mrb[0].mxu0
        %v1912 = vpop.f32.mrb[0].mxu0
        %v1913 = vadd.f32 %v1281, %v1912
        %v1914 = vpop.f32.mrb[0].mxu0
        %1915 = vmatprep.mubr.bf16.mxu0 0
        %1916 = vmatmul.mubr.bf16.gmra.mrb[0].mxu0 %v1560
        %v1917 = vpop.f32.mrb[0].mxu0
        %v1918 = vadd.f32 %v1281, %v1917
        %v1919 = vpop.f32.mrb[0].mxu0
        %v1920 = vpop.f32.mrb[0].mxu0
        %v1921 = vadd.f32 %v1281, %v1920
        %v1922 = vpop.f32.mrb[0].mxu0
        %1923 = vmatprep.mubr.bf16.mxu0 0
        %1924 = vmatmul.mubr.bf16.gmra.mrb[0].mxu0 %v1561
        %v1925 = vpop.f32.mrb[0].mxu0
        %v1926 = vadd.f32 %v1281, %v1925
        %v1927 = vpop.f32.mrb[0].mxu0
        %v1928 = vpop.f32.mrb[0].mxu0
        %v1929 = vadd.f32 %v1281, %v1928
        %v1930 = vpop.f32.mrb[0].mxu0
        %1931 = vmatprep.mubr.bf16.mxu0 0
        %1932 = vmatmul.mubr.bf16.gmra.mrb[0].mxu0 %v1562
        %v1933 = vpop.f32.mrb[0].mxu0
        %v1934 = vadd.f32 %v1281, %v1933
        %v1935 = vpop.f32.mrb[0].mxu0
        %v1936 = vpop.f32.mrb[0].mxu0
        %v1937 = vadd.f32 %v1281, %v1936
        %v1938 = vpop.f32.mrb[0].mxu0
        %1939 = vmatprep.mubr.bf16.mxu0 0
        %1940 = vmatmul.mubr.bf16.gmra.mrb[0].mxu0 %v1563
        %v1941 = vpop.f32.mrb[0].mxu0
        %v1942 = vadd.f32 %v1281, %v1941
        %v1943 = vpop.f32.mrb[0].mxu0
        %v1944 = vpop.f32.mrb[0].mxu0
        %v1945 = vadd.f32 %v1281, %v1944
        %v1946 = vpop.f32.mrb[0].mxu0
        %1947 = vmatprep.mubr.bf16.mxu0 0
        %1948 = vmatmul.mubr.bf16.gmra.mrb[0].mxu0 %v1564
        %v1949 = vpop.f32.mrb[0].mxu0
        %v1950 = vadd.f32 %v1281, %v1949
        %v1951 = vpop.f32.mrb[0].mxu0
        %v1952 = vpop.f32.mrb[0].mxu0
        %v1953 = vadd.f32 %v1281, %v1952
        %v1954 = vpop.f32.mrb[0].mxu0
        %1955 = vmatprep.mubr.bf16.mxu0 0
        %1956 = vmatmul.mubr.bf16.gmra.mrb[0].mxu0 %v1565
        %v1957 = vpop.f32.mrb[0].mxu0
        %v1958 = vadd.f32 %v1281, %v1957
        %v1959 = vpop.f32.mrb[0].mxu0
        %v1960 = vpop.f32.mrb[0].mxu0
        %v1961 = vadd.f32 %v1281, %v1960
        %v1962 = vpop.f32.mrb[0].mxu0
        %1963 = vmatprep.mubr.bf16.mxu0 0
        %1964 = vmatmul.mubr.bf16.gmra.mrb[0].mxu0 %v1566
        %v1965 = vpop.f32.mrb[0].mxu0
        %v1966 = vadd.f32 %v1281, %v1965
        %v1967 = vpop.f32.mrb[0].mxu0
        %v1968 = vpop.f32.mrb[0].mxu0
        %v1969 = vadd.f32 %v1281, %v1968
        %v1970 = vpop.f32.mrb[0].mxu0
        %1971 = vmatprep.mubr.bf16.mxu0 0
        %1972 = vmatmul.mubr.bf16.gmra.mrb[0].mxu0 %v1567
        %v1973 = vpop.f32.mrb[0].mxu0
        %v1974 = vadd.f32 %v1281, %v1973
        %v1975 = vpop.f32.mrb[0].mxu0
        %v1976 = vpop.f32.mrb[0].mxu0
        %v1977 = vadd.f32 %v1281, %v1976
        %v1978 = vpop.f32.mrb[0].mxu0
        %1979 = vmatprep.mubr.bf16.mxu0 0
        %1980 = vmatmul.mubr.bf16.gmra.mrb[0].mxu0 %v1568
        %v1981 = vpop.f32.mrb[0].mxu0
        %v1982 = vadd.f32 %v1281, %v1981
        %v1983 = vpop.f32.mrb[0].mxu0
        %v1984 = vpop.f32.mrb[0].mxu0
        %v1985 = vadd.f32 %v1281, %v1984
        %v1986 = vpop.f32.mrb[0].mxu0
        %1987 = vmatprep.mubr.bf16.mxu0 0
        %1988 = vmatmul.mubr.bf16.gmra.mrb[0].mxu0 %v1569
        %v1989 = vpop.f32.mrb[0].mxu0
        %v1990 = vadd.f32 %v1281, %v1989
        %v1991 = vpop.f32.mrb[0].mxu0
        %v1992 = vpop.f32.mrb[0].mxu0
        %v1993 = vadd.f32 %v1281, %v1992
        %v1994 = vpop.f32.mrb[0].mxu0
        %1995 = vmatprep.mubr.bf16.mxu0 0
        %1996 = vmatmul.mubr.bf16.gmra.mrb[0].mxu0 %v1570
        %v1997 = vpop.f32.mrb[0].mxu0
        %v1998 = vadd.f32 %v1281, %v1997
        %v1999 = vpop.f32.mrb[0].mxu0
        %v2000 = vpop.f32.mrb[0].mxu0
        %v2001 = vadd.f32 %v1281, %v2000
        %v2002 = vpop.f32.mrb[0].mxu0
        %2003 = vmatprep.mubr.bf16.mxu0 0
        %2004 = vmatmul.mubr.bf16.gmra.mrb[0].mxu0 %v1571
        %v2005 = vpop.f32.mrb[0].mxu0
        %v2006 = vadd.f32 %v1281, %v2005
        %v2007 = vpop.f32.mrb[0].mxu0
        %v2008 = vpop.f32.mrb[0].mxu0
        %v2009 = vadd.f32 %v1281, %v2008
        %v2010 = vpop.f32.mrb[0].mxu0
        %2011 = vmatprep.mubr.bf16.mxu0 0
        %2012 = vmatmul.mubr.bf16.gmra.mrb[0].mxu0 %v1572
        %v2013 = vpop.f32.mrb[0].mxu0
        %v2014 = vadd.f32 %v1281, %v2013
        %v2015 = vpop.f32.mrb[0].mxu0
        %v2016 = vpop.f32.mrb[0].mxu0
        %v2017 = vadd.f32 %v1281, %v2016
        %v2018 = vpop.f32.mrb[0].mxu0
        %2019 = vmatprep.mubr.bf16.mxu0 0
        %2020 = vmatmul.mubr.bf16.gmra.mrb[0].mxu0 %v1573
        %v2021 = vpop.f32.mrb[0].mxu0
        %v2022 = vadd.f32 %v1281, %v2021
        %v2023 = vpop.f32.mrb[0].mxu0
        %v2024 = vpop.f32.mrb[0].mxu0
        %v2025 = vadd.f32 %v1281, %v2024
        %v2026 = vpop.f32.mrb[0].mxu0
        %2027 = vmatprep.mubr.bf16.mxu0 0
        %2028 = vmatmul.mubr.bf16.gmra.mrb[0].mxu0 %v1574
        %v2029 = vpop.f32.mrb[0].mxu0
        %v2030 = vadd.f32 %v1281, %v2029
        %v2031 = vpop.f32.mrb[0].mxu0
        %v2032 = vpop.f32.mrb[0].mxu0
        %v2033 = vadd.f32 %v1281, %v2032
        %v2034 = vpop.f32.mrb[0].mxu0
        %2035 = vmatprep.mubr.bf16.mxu0 0
        %2036 = vmatmul.mubr.bf16.gmra.mrb[0].mxu0 %v1575
        %v2037 = vpop.f32.mrb[0].mxu0
        %v2038 = vadd.f32 %v1281, %v2037
        %v2039 = vpop.f32.mrb[0].mxu0
        %v2040 = vpop.f32.mrb[0].mxu0
        %v2041 = vadd.f32 %v1281, %v2040
        %v2042 = vpop.f32.mrb[0].mxu0
        %2043 = vmatprep.mubr.bf16.mxu0 0
        %2044 = vmatmul.mubr.bf16.gmra.mrb[0].mxu0 %v1576
        %v2045 = vpop.f32.mrb[0].mxu0
        %v2046 = vadd.f32 %v1281, %v2045
        %v2047 = vpop.f32.mrb[0].mxu0
        %v2048 = vpop.f32.mrb[0].mxu0
        %v2049 = vadd.f32 %v1281, %v2048
        %v2050 = vpop.f32.mrb[0].mxu0
        %2051 = vmatprep.mubr.bf16.mxu0 0
        %2052 = vmatmul.mubr.bf16.gmra.mrb[0].mxu0 %v1577
        %v2053 = vpop.f32.mrb[0].mxu0
        %v2054 = vadd.f32 %v1281, %v2053
        %v2055 = vpop.f32.mrb[0].mxu0
        %v2056 = vpop.f32.mrb[0].mxu0
        %v2057 = vadd.f32 %v1281, %v2056
        %v2058 = vpop.f32.mrb[0].mxu0
        %2059 = vmatprep.mubr.bf16.mxu0 0
        %2060 = vmatmul.mubr.bf16.gmra.mrb[0].mxu0 %v1578
        %v2061 = vpop.f32.mrb[0].mxu0
        %v2062 = vadd.f32 %v1281, %v2061
        %v2063 = vpop.f32.mrb[0].mxu0
        %v2064 = vpop.f32.mrb[0].mxu0
        %v2065 = vadd.f32 %v1281, %v2064
        %v2066 = vpop.f32.mrb[0].mxu0
        %2067 = vmatprep.mubr.bf16.mxu0 0
        %2068 = vmatmul.mubr.bf16.gmra.mrb[0].mxu0 %v1579
        %v2069 = vpop.f32.mrb[0].mxu0
        %v2070 = vadd.f32 %v1281, %v2069
        %v2071 = vpop.f32.mrb[0].mxu0
        %v2072 = vpop.f32.mrb[0].mxu0
        %v2073 = vadd.f32 %v1281, %v2072
        %v2074 = vpop.f32.mrb[0].mxu0
        %2075 = vmatprep.mubr.bf16.mxu0 0
        %2076 = vmatmul.mubr.bf16.gmra.mrb[0].mxu0 %v1580
        %v2077 = vpop.f32.mrb[0].mxu0
        %v2078 = vadd.f32 %v1281, %v2077
        %v2079 = vpop.f32.mrb[0].mxu0
        %v2080 = vpop.f32.mrb[0].mxu0
        %v2081 = vadd.f32 %v1281, %v2080
        %v2082 = vpop.f32.mrb[0].mxu0
        %2083 = vmatprep.mubr.bf16.mxu0 0
        %2084 = vmatmul.mubr.bf16.gmra.mrb[0].mxu0 %v1581
        %v2085 = vpop.f32.mrb[0].mxu0
        %v2086 = vadd.f32 %v1281, %v2085
        %v2087 = vpop.f32.mrb[0].mxu0
        %v2088 = vpop.f32.mrb[0].mxu0
        %v2089 = vadd.f32 %v1281, %v2088
        %v2090 = vpop.f32.mrb[0].mxu0
        %2091 = vmatprep.mubr.bf16.mxu0 0
        %2092 = vmatmul.mubr.bf16.gmra.mrb[0].mxu0 %v1582
        %v2093 = vpop.f32.mrb[0].mxu0
        %v2094 = vadd.f32 %v1281, %v2093
        %v2095 = vpop.f32.mrb[0].mxu0
        %v2096 = vpop.f32.mrb[0].mxu0
        %v2097 = vadd.f32 %v1281, %v2096
        %v2098 = vpop.f32.mrb[0].mxu0
        %2099 = vmatprep.mubr.bf16.mxu0 0
        %2100 = vmatmul.mubr.bf16.gmra.mrb[0].mxu0 %v1583
        %v2101 = vpop.f32.mrb[0].mxu0
        %v2102 = vadd.f32 %v1281, %v2101
        %v2103 = vpop.f32.mrb[0].mxu0
        %v2104 = vpop.f32.mrb[0].mxu0
        %v2105 = vadd.f32 %v1281, %v2104
        %v2106 = vpop.f32.mrb[0].mxu0
        %2107 = vmatprep.mubr.bf16.mxu0 0
        %2108 = vmatmul.mubr.bf16.gmra.mrb[0].mxu0 %v1584
        %v2109 = vpop.f32.mrb[0].mxu0
        %v2110 = vadd.f32 %v1281, %v2109
        %v2111 = vpop.f32.mrb[0].mxu0
        %v2112 = vpop.f32.mrb[0].mxu0
        %v2113 = vadd.f32 %v1281, %v2112
        %v2114 = vpop.f32.mrb[0].mxu0
        %2115 = vmatprep.mubr.bf16.mxu0 0
        %2116 = vmatmul.mubr.bf16.gmra.mrb[0].mxu0 %v1585
        %v2117 = vpop.f32.mrb[0].mxu0
        %v2118 = vadd.f32 %v1281, %v2117
        %v2119 = vpop.f32.mrb[0].mxu0
        %v2120 = vpop.f32.mrb[0].mxu0
        %v2121 = vadd.f32 %v1281, %v2120
        %v2122 = vpop.f32.mrb[0].mxu0
        %2123 = vmatprep.mubr.bf16.mxu0 0
        %2124 = vmatmul.mubr.bf16.gmra.mrb[0].mxu0 %v1586
        %v2125 = vpop.f32.mrb[0].mxu0
        %v2126 = vadd.f32 %v1281, %v2125
        %v2127 = vpop.f32.mrb[0].mxu0
        %v2128 = vpop.f32.mrb[0].mxu0
        %v2129 = vadd.f32 %v1281, %v2128
        %v2130 = vpop.f32.mrb[0].mxu0
        %2131 = vmatprep.mubr.bf16.mxu0 0
        %2132 = vmatmul.mubr.bf16.gmra.mrb[0].mxu0 %v1587
        %v2133 = vpop.f32.mrb[0].mxu0
        %v2134 = vadd.f32 %v1281, %v2133
        %v2135 = vpop.f32.mrb[0].mxu0
        %v2136 = vpop.f32.mrb[0].mxu0
        %v2137 = vadd.f32 %v1281, %v2136
        %v2138 = vpop.f32.mrb[0].mxu0
        %2139 = vmatprep.mubr.bf16.mxu0 0
        %2140 = vmatmul.mubr.bf16.gmra.mrb[0].mxu0 %v1588
        %v2141 = vpop.f32.mrb[0].mxu0
        %v2142 = vadd.f32 %v1281, %v2141
        %v2143 = vpop.f32.mrb[0].mxu0
        %v2144 = vpop.f32.mrb[0].mxu0
        %v2145 = vadd.f32 %v1281, %v2144
        %v2146 = vpop.f32.mrb[0].mxu0
        %2147 = vmatprep.mubr.bf16.mxu0 0
        %2148 = vmatmul.mubr.bf16.gmra.mrb[0].mxu0 %v1589
        %v2149 = vpop.f32.mrb[0].mxu0
        %v2150 = vadd.f32 %v1281, %v2149
        %v2151 = vpop.f32.mrb[0].mxu0
        %v2152 = vpop.f32.mrb[0].mxu0
        %v2153 = vadd.f32 %v1281, %v2152
        %v2154 = vpop.f32.mrb[0].mxu0
        %2155 = vmatprep.mubr.bf16.mxu0 0
        %2156 = vmatmul.mubr.bf16.gmra.mrb[0].mxu0 %v1590
        %v2157 = vpop.f32.mrb[0].mxu0
        %v2158 = vadd.f32 %v1281, %v2157
        %v2159 = vpop.f32.mrb[0].mxu0
        %v2160 = vpop.f32.mrb[0].mxu0
        %v2161 = vadd.f32 %v1281, %v2160
        %v2162 = vpop.f32.mrb[0].mxu0
        %2163 = vmatprep.mubr.bf16.mxu0 0
        %2164 = vmatmul.mubr.bf16.gmra.mrb[0].mxu0 %v1591
        %v2165 = vpop.f32.mrb[0].mxu0
        %v2166 = vadd.f32 %v1281, %v2165
        %v2167 = vpop.f32.mrb[0].mxu0
        %v2168 = vpop.f32.mrb[0].mxu0
        %v2169 = vadd.f32 %v1281, %v2168
        %v2170 = vpop.f32.mrb[0].mxu0
        %2171 = vmatprep.mubr.bf16.mxu0 0
        %2172 = vmatmul.mubr.bf16.gmra.mrb[0].mxu0 %v1592
        %v2173 = vpop.f32.mrb[0].mxu0
        %v2174 = vadd.f32 %v1281, %v2173
        %v2175 = vpop.f32.mrb[0].mxu0
        %v2176 = vpop.f32.mrb[0].mxu0
        %v2177 = vadd.f32 %v1281, %v2176
        %v2178 = vpop.f32.mrb[0].mxu0
        %2179 = vmatprep.mubr.bf16.mxu0 0
        %2180 = vmatmul.mubr.bf16.gmra.mrb[0].mxu0 %v1593
        %v2181 = vpop.f32.mrb[0].mxu0
        %v2182 = vadd.f32 %v1281, %v2181
        %v2183 = vpop.f32.mrb[0].mxu0
        %v2184 = vpop.f32.mrb[0].mxu0
        %v2185 = vadd.f32 %v1281, %v2184
        %v2186 = vpop.f32.mrb[0].mxu0
        %2187 = vmatprep.mubr.bf16.mxu0 0
        %2188 = vmatmul.mubr.bf16.gmra.mrb[0].mxu0 %v1594
        %v2189 = vpop.f32.mrb[0].mxu0
        %v2190 = vadd.f32 %v1281, %v2189
        %v2191 = vpop.f32.mrb[0].mxu0
        %v2192 = vpop.f32.mrb[0].mxu0
        %v2193 = vadd.f32 %v1281, %v2192
        %v2194 = vpop.f32.mrb[0].mxu0
        %2195 = vmatprep.mubr.bf16.mxu0 0
        %2196 = vmatmul.mubr.bf16.gmra.mrb[0].mxu0 %v1595
        %v2197 = vpop.f32.mrb[0].mxu0
        %v2198 = vadd.f32 %v1281, %v2197
        %v2199 = vpop.f32.mrb[0].mxu0
        %v2200 = vpop.f32.mrb[0].mxu0
        %v2201 = vadd.f32 %v1281, %v2200
        %v2202 = vpop.f32.mrb[0].mxu0
        %2203 = vmatprep.mubr.bf16.mxu0 0
        %2204 = vmatmul.mubr.bf16.gmra.mrb[0].mxu0 %v1596
        %v2205 = vpop.f32.mrb[0].mxu0
        %v2206 = vadd.f32 %v1281, %v2205
        %v2207 = vpop.f32.mrb[0].mxu0
        %v2208 = vpop.f32.mrb[0].mxu0
        %v2209 = vadd.f32 %v1281, %v2208
        %v2210 = vpop.f32.mrb[0].mxu0
        %2211 = vmatprep.mubr.bf16.mxu0 0
        %2212 = vmatmul.mubr.bf16.gmra.mrb[0].mxu0 %v1597
        %v2213 = vpop.f32.mrb[0].mxu0
        %v2214 = vadd.f32 %v1281, %v2213
        %v2215 = vpop.f32.mrb[0].mxu0
        %v2216 = vpop.f32.mrb[0].mxu0
        %v2217 = vadd.f32 %v1281, %v2216
        %v2218 = vpop.f32.mrb[0].mxu0
        %2219 = vmatprep.mubr.bf16.mxu0 0
        %2220 = vmatmul.mubr.bf16.gmra.mrb[0].mxu0 %v1598
        %v2221 = vpop.f32.mrb[0].mxu0
        %v2222 = vadd.f32 %v1281, %v2221
        %v2223 = vpop.f32.mrb[0].mxu0
        %v2224 = vpop.f32.mrb[0].mxu0
        %v2225 = vadd.f32 %v1281, %v2224
        %v2226 = vpop.f32.mrb[0].mxu0
        %2227 = vmatprep.mubr.bf16.mxu0 0
        %2228 = vmatmul.mubr.bf16.gmra.mrb[0].mxu0 %v1599
        %v2229 = vpop.f32.mrb[0].mxu0
        %v2230 = vadd.f32 %v1281, %v2229
        %v2231 = vpop.f32.mrb[0].mxu0
        %v2232 = vpop.f32.mrb[0].mxu0
        %v2233 = vadd.f32 %v1281, %v2232
        %v2234 = vpop.f32.mrb[0].mxu0
        %2235 = vmatprep.mubr.bf16.mxu0 0
        %2236 = vmatmul.mubr.bf16.gmra.mrb[0].mxu0 %v1600
        %v2237 = vpop.f32.mrb[0].mxu0
        %v2238 = vadd.f32 %v1281, %v2237
        %v2239 = vpop.f32.mrb[0].mxu0
        %v2240 = vpop.f32.mrb[0].mxu0
        %v2241 = vadd.f32 %v1281, %v2240
        %v2242 = vpop.f32.mrb[0].mxu0
        %2243 = vmatprep.mubr.bf16.mxu0 0
        %2244 = vmatmul.mubr.bf16.gmra.mrb[0].mxu0 %v1601
        %v2245 = vpop.f32.mrb[0].mxu0
        %v2246 = vadd.f32 %v1281, %v2245
        %v2247 = vpop.f32.mrb[0].mxu0
        %v2248 = vpop.f32.mrb[0].mxu0
        %v2249 = vadd.f32 %v1281, %v2248
        %v2250 = vpop.f32.mrb[0].mxu0
        %2251 = vmatprep.mubr.bf16.mxu0 0
        %2252 = vmatmul.mubr.bf16.gmra.mrb[0].mxu0 %v1602
        %v2253 = vpop.f32.mrb[0].mxu0
        %v2254 = vadd.f32 %v1281, %v2253
        %v2255 = vpop.f32.mrb[0].mxu0
        %v2256 = vpop.f32.mrb[0].mxu0
        %v2257 = vadd.f32 %v1281, %v2256
        %v2258 = vpop.f32.mrb[0].mxu0
        %2259 = vdwg.mxu0
        %v2260 = vpack.c.bf16 %v1753, %v1750
        %v2261 = vpack.c.bf16 %v1761, %v1758
        %v2262 = vpack.c.bf16 %v1769, %v1766
        %v2263 = vpack.c.bf16 %v1777, %v1774
        %v2264 = vpack.c.bf16 %v1785, %v1782
        %v2265 = vpack.c.bf16 %v1793, %v1790
        %v2266 = vpack.c.bf16 %v1801, %v1798
        %v2267 = vpack.c.bf16 %v1809, %v1806
        %v2268 = vpack.c.bf16 %v1817, %v1814
        %v2269 = vpack.c.bf16 %v1825, %v1822
        %v2270 = vpack.c.bf16 %v1833, %v1830
        %v2271 = vpack.c.bf16 %v1841, %v1838
        %v2272 = vpack.c.bf16 %v1849, %v1846
        %v2273 = vpack.c.bf16 %v1857, %v1854
        %v2274 = vpack.c.bf16 %v1865, %v1862
        %v2275 = vpack.c.bf16 %v1873, %v1870
        %v2276 = vpack.c.bf16 %v1881, %v1878
        %v2277 = vpack.c.bf16 %v1889, %v1886
        %v2278 = vpack.c.bf16 %v1897, %v1894
        %v2279 = vpack.c.bf16 %v1905, %v1902
        %v2280 = vpack.c.bf16 %v1913, %v1910
        %v2281 = vpack.c.bf16 %v1921, %v1918
        %v2282 = vpack.c.bf16 %v1929, %v1926
        %v2283 = vpack.c.bf16 %v1937, %v1934
        %v2284 = vpack.c.bf16 %v1945, %v1942
        %v2285 = vpack.c.bf16 %v1953, %v1950
        %v2286 = vpack.c.bf16 %v1961, %v1958
        %v2287 = vpack.c.bf16 %v1969, %v1966
        %v2288 = vpack.c.bf16 %v1977, %v1974
        %v2289 = vpack.c.bf16 %v1985, %v1982
        %v2290 = vpack.c.bf16 %v1993, %v1990
        %v2291 = vpack.c.bf16 %v2001, %v1998
        %v2292 = vpack.c.bf16 %v2009, %v2006
        %v2293 = vpack.c.bf16 %v2017, %v2014
        %v2294 = vpack.c.bf16 %v2025, %v2022
        %v2295 = vpack.c.bf16 %v2033, %v2030
        %v2296 = vpack.c.bf16 %v2041, %v2038
        %v2297 = vpack.c.bf16 %v2049, %v2046
        %v2298 = vpack.c.bf16 %v2057, %v2054
        %v2299 = vpack.c.bf16 %v2065, %v2062
        %v2300 = vpack.c.bf16 %v2073, %v2070
        %v2301 = vpack.c.bf16 %v2081, %v2078
        %v2302 = vpack.c.bf16 %v2089, %v2086
        %v2303 = vpack.c.bf16 %v2097, %v2094
        %v2304 = vpack.c.bf16 %v2105, %v2102
        %v2305 = vpack.c.bf16 %v2113, %v2110
        %v2306 = vpack.c.bf16 %v2121, %v2118
        %v2307 = vpack.c.bf16 %v2129, %v2126
        %v2308 = vpack.c.bf16 %v2137, %v2134
        %v2309 = vpack.c.bf16 %v2145, %v2142
        %v2310 = vpack.c.bf16 %v2153, %v2150
        %v2311 = vpack.c.bf16 %v2161, %v2158
        %v2312 = vpack.c.bf16 %v2169, %v2166
        %v2313 = vpack.c.bf16 %v2177, %v2174
        %v2314 = vpack.c.bf16 %v2185, %v2182
        %v2315 = vpack.c.bf16 %v2193, %v2190
        %v2316 = vpack.c.bf16 %v2201, %v2198
        %v2317 = vpack.c.bf16 %v2209, %v2206
        %v2318 = vpack.c.bf16 %v2217, %v2214
        %v2319 = vpack.c.bf16 %v2225, %v2222
        %v2320 = vpack.c.bf16 %v2233, %v2230
        %v2321 = vpack.c.bf16 %v2241, %v2238
        %v2322 = vpack.c.bf16 %v2249, %v2246
        %v2323 = vpack.c.bf16 %v2257, %v2254
        %2324 = vst [vmem:[#allocation3] sm:$0xff] %v2260
        %2325 = vst [vmem:[#allocation3 + $0x8] sm:$0xff] %v2261
        %2326 = vst [vmem:[#allocation3 + $0x10] sm:$0xff] %v2262
        %2327 = vst [vmem:[#allocation3 + $0x18] sm:$0xff] %v2263
        %2328 = vst [vmem:[#allocation3 + $0x20] sm:$0xff] %v2264
        %2329 = vst [vmem:[#allocation3 + $0x28] sm:$0xff] %v2265
        %2330 = vst [vmem:[#allocation3 + $0x30] sm:$0xff] %v2266
        %2331 = vst [vmem:[#allocation3 + $0x38] sm:$0xff] %v2267
        %2332 = vst [vmem:[#allocation3 + $0x40] sm:$0xff] %v2268
        %2333 = vst [vmem:[#allocation3 + $0x48] sm:$0xff] %v2269
        %2334 = vst [vmem:[#allocation3 + $0x50] sm:$0xff] %v2270
        %2335 = vst [vmem:[#allocation3 + $0x58] sm:$0xff] %v2271
        %2336 = vst [vmem:[#allocation3 + $0x60] sm:$0xff] %v2272
        %2337 = vst [vmem:[#allocation3 + $0x68] sm:$0xff] %v2273
        %2338 = vst [vmem:[#allocation3 + $0x70] sm:$0xff] %v2274
        %2339 = vst [vmem:[#allocation3 + $0x78] sm:$0xff] %v2275
        %2340 = vst [vmem:[#allocation3 + $0x80] sm:$0xff] %v2276
        %2341 = vst [vmem:[#allocation3 + $0x88] sm:$0xff] %v2277
        %2342 = vst [vmem:[#allocation3 + $0x90] sm:$0xff] %v2278
        %2343 = vst [vmem:[#allocation3 + $0x98] sm:$0xff] %v2279
        %2344 = vst [vmem:[#allocation3 + $0xa0] sm:$0xff] %v2280
        %2345 = vst [vmem:[#allocation3 + $0xa8] sm:$0xff] %v2281
        %2346 = vst [vmem:[#allocation3 + $0xb0] sm:$0xff] %v2282
        %2347 = vst [vmem:[#allocation3 + $0xb8] sm:$0xff] %v2283
        %2348 = vst [vmem:[#allocation3 + $0xc0] sm:$0xff] %v2284
        %2349 = vst [vmem:[#allocation3 + $0xc8] sm:$0xff] %v2285
        %2350 = vst [vmem:[#allocation3 + $0xd0] sm:$0xff] %v2286
        %2351 = vst [vmem:[#allocation3 + $0xd8] sm:$0xff] %v2287
        %2352 = vst [vmem:[#allocation3 + $0xe0] sm:$0xff] %v2288
        %2353 = vst [vmem:[#allocation3 + $0xe8] sm:$0xff] %v2289
        %2354 = vst [vmem:[#allocation3 + $0xf0] sm:$0xff] %v2290
        %2355 = vst [vmem:[#allocation3 + $0xf8] sm:$0xff] %v2291
        %2356 = vst [vmem:[#allocation3 + $0x100] sm:$0xff] %v2292
        %2357 = vst [vmem:[#allocation3 + $0x108] sm:$0xff] %v2293
        %2358 = vst [vmem:[#allocation3 + $0x110] sm:$0xff] %v2294
        %2359 = vst [vmem:[#allocation3 + $0x118] sm:$0xff] %v2295
        %2360 = vst [vmem:[#allocation3 + $0x120] sm:$0xff] %v2296
        %2361 = vst [vmem:[#allocation3 + $0x128] sm:$0xff] %v2297
        %2362 = vst [vmem:[#allocation3 + $0x130] sm:$0xff] %v2298
        %2363 = vst [vmem:[#allocation3 + $0x138] sm:$0xff] %v2299
        %2364 = vst [vmem:[#allocation3 + $0x140] sm:$0xff] %v2300
        %2365 = vst [vmem:[#allocation3 + $0x148] sm:$0xff] %v2301
        %2366 = vst [vmem:[#allocation3 + $0x150] sm:$0xff] %v2302
        %2367 = vst [vmem:[#allocation3 + $0x158] sm:$0xff] %v2303
        %2368 = vst [vmem:[#allocation3 + $0x160] sm:$0xff] %v2304
        %2369 = vst [vmem:[#allocation3 + $0x168] sm:$0xff] %v2305
        %2370 = vst [vmem:[#allocation3 + $0x170] sm:$0xff] %v2306
        %2371 = vst [vmem:[#allocation3 + $0x178] sm:$0xff] %v2307
        %2372 = vst [vmem:[#allocation3 + $0x180] sm:$0xff] %v2308
        %2373 = vst [vmem:[#allocation3 + $0x188] sm:$0xff] %v2309
        %2374 = vst [vmem:[#allocation3 + $0x190] sm:$0xff] %v2310
        %2375 = vst [vmem:[#allocation3 + $0x198] sm:$0xff] %v2311
        %2376 = vst [vmem:[#allocation3 + $0x1a0] sm:$0xff] %v2312
        %2377 = vst [vmem:[#allocation3 + $0x1a8] sm:$0xff] %v2313
        %2378 = vst [vmem:[#allocation3 + $0x1b0] sm:$0xff] %v2314
        %2379 = vst [vmem:[#allocation3 + $0x1b8] sm:$0xff] %v2315
        %2380 = vst [vmem:[#allocation3 + $0x1c0] sm:$0xff] %v2316
        %2381 = vst [vmem:[#allocation3 + $0x1c8] sm:$0xff] %v2317
        %2382 = vst [vmem:[#allocation3 + $0x1d0] sm:$0xff] %v2318
        %2383 = vst [vmem:[#allocation3 + $0x1d8] sm:$0xff] %v2319
        %2384 = vst [vmem:[#allocation3 + $0x1e0] sm:$0xff] %v2320
        %2385 = vst [vmem:[#allocation3 + $0x1e8] sm:$0xff] %v2321
        %2386 = vst [vmem:[#allocation3 + $0x1f0] sm:$0xff] %v2322
        %2387 = vst [vmem:[#allocation3 + $0x1f8] sm:$0xff] %v2323
      $region104: #{deeper_gcn_forward.1} parent=99 // pred_fallthru
        _
      %v2388 = vld [vmem:[#allocation2] sm:$0xff]
      %v2389 = vld [vmem:[#allocation2 + $0x8] sm:$0xff]
      %v2390 = vld [vmem:[#allocation2 + $0x10] sm:$0xff]
      %v2391 = vld [vmem:[#allocation2 + $0x18] sm:$0xff]
      %v2392 = vld [vmem:[#allocation2 + $0x20] sm:$0xff]
      %v2393 = vld [vmem:[#allocation2 + $0x28] sm:$0xff]
      %v2394 = vld [vmem:[#allocation2 + $0x30] sm:$0xff]
      %v2395 = vld [vmem:[#allocation2 + $0x38] sm:$0xff]
      %v2396 = vld [vmem:[#allocation2 + $0x40] sm:$0xff]
      %v2397 = vld [vmem:[#allocation2 + $0x48] sm:$0xff]
      %v2398 = vld [vmem:[#allocation2 + $0x50] sm:$0xff]
      %v2399 = vld [vmem:[#allocation2 + $0x58] sm:$0xff]
      %v2400 = vld [vmem:[#allocation2 + $0x60] sm:$0xff]
      %v2401 = vld [vmem:[#allocation2 + $0x68] sm:$0xff]
      %v2402 = vld [vmem:[#allocation2 + $0x70] sm:$0xff]
      %v2403 = vld [vmem:[#allocation2 + $0x78] sm:$0xff]
      %v2404 = vld [vmem:[#allocation2 + $0x80] sm:$0xff]
      %v2405 = vld [vmem:[#allocation2 + $0x88] sm:$0xff]
      %v2406 = vld [vmem:[#allocation2 + $0x90] sm:$0xff]
      %v2407 = vld [vmem:[#allocation2 + $0x98] sm:$0xff]
      %v2408 = vld [vmem:[#allocation2 + $0xa0] sm:$0xff]
      %v2409 = vld [vmem:[#allocation2 + $0xa8] sm:$0xff]
      %v2410 = vld [vmem:[#allocation2 + $0xb0] sm:$0xff]
      %v2411 = vld [vmem:[#allocation2 + $0xb8] sm:$0xff]
      %v2412 = vld [vmem:[#allocation2 + $0xc0] sm:$0xff]
      %v2413 = vld [vmem:[#allocation2 + $0xc8] sm:$0xff]
      %v2414 = vld [vmem:[#allocation2 + $0xd0] sm:$0xff]
      %v2415 = vld [vmem:[#allocation2 + $0xd8] sm:$0xff]
      %v2416 = vld [vmem:[#allocation2 + $0xe0] sm:$0xff]
      %v2417 = vld [vmem:[#allocation2 + $0xe8] sm:$0xff]
      %v2418 = vld [vmem:[#allocation2 + $0xf0] sm:$0xff]
      %v2419 = vld [vmem:[#allocation2 + $0xf8] sm:$0xff]
      %s2420 = scalar_select %p736, 1, 0
      %s2421 = scvt.s32.f32 %s2420
      %v2422 = vld [vmem:[%s731] sm:$0x1]
      %v2423 = vld [vmem:[%s734] sm:$0x1]
      %2424 = vadd.xlane.f32.xlu0 %v2388
      %v2425 = vpop.xlane.xlu0 %2424
      %2426 = vadd.xlane.f32.xlu0 %v2389
      %v2427 = vpop.xlane.xlu0 %2426
      %2428 = vadd.xlane.f32.xlu0 %v2390
      %v2429 = vpop.xlane.xlu0 %2428
      %2430 = vadd.xlane.f32.xlu0 %v2391
      %v2431 = vpop.xlane.xlu0 %2430
      %2432 = vadd.xlane.f32.xlu0 %v2392
      %v2433 = vpop.xlane.xlu0 %2432
      %2434 = vadd.xlane.f32.xlu0 %v2393
      %v2435 = vpop.xlane.xlu0 %2434
      %2436 = vadd.xlane.f32.xlu0 %v2394
      %v2437 = vpop.xlane.xlu0 %2436
      %2438 = vadd.xlane.f32.xlu0 %v2395
      %v2439 = vpop.xlane.xlu0 %2438
      %2440 = vadd.xlane.f32.xlu0 %v2396
      %v2441 = vpop.xlane.xlu0 %2440
      %2442 = vadd.xlane.f32.xlu0 %v2397
      %v2443 = vpop.xlane.xlu0 %2442
      %2444 = vadd.xlane.f32.xlu0 %v2398
      %v2445 = vpop.xlane.xlu0 %2444
      %2446 = vadd.xlane.f32.xlu0 %v2399
      %v2447 = vpop.xlane.xlu0 %2446
      %2448 = vadd.xlane.f32.xlu0 %v2400
      %v2449 = vpop.xlane.xlu0 %2448
      %2450 = vadd.xlane.f32.xlu0 %v2401
      %v2451 = vpop.xlane.xlu0 %2450
      %2452 = vadd.xlane.f32.xlu0 %v2402
      %v2453 = vpop.xlane.xlu0 %2452
      %2454 = vadd.xlane.f32.xlu0 %v2403
      %v2455 = vpop.xlane.xlu0 %2454
      %2456 = vadd.xlane.f32.xlu0 %v2404
      %v2457 = vpop.xlane.xlu0 %2456
      %2458 = vadd.xlane.f32.xlu0 %v2405
      %v2459 = vpop.xlane.xlu0 %2458
      %2460 = vadd.xlane.f32.xlu0 %v2406
      %v2461 = vpop.xlane.xlu0 %2460
      %2462 = vadd.xlane.f32.xlu0 %v2407
      %v2463 = vpop.xlane.xlu0 %2462
      %2464 = vadd.xlane.f32.xlu0 %v2408
      %v2465 = vpop.xlane.xlu0 %2464
      %2466 = vadd.xlane.f32.xlu0 %v2409
      %v2467 = vpop.xlane.xlu0 %2466
      %2468 = vadd.xlane.f32.xlu0 %v2410
      %v2469 = vpop.xlane.xlu0 %2468
      %2470 = vadd.xlane.f32.xlu0 %v2411
      %v2471 = vpop.xlane.xlu0 %2470
      %2472 = vadd.xlane.f32.xlu0 %v2412
      %v2473 = vpop.xlane.xlu0 %2472
      %2474 = vadd.xlane.f32.xlu0 %v2413
      %v2475 = vpop.xlane.xlu0 %2474
      %2476 = vadd.xlane.f32.xlu0 %v2414
      %v2477 = vpop.xlane.xlu0 %2476
      %2478 = vadd.xlane.f32.xlu0 %v2415
      %v2479 = vpop.xlane.xlu0 %2478
      %2480 = vadd.xlane.f32.xlu0 %v2416
      %v2481 = vpop.xlane.xlu0 %2480
      %2482 = vadd.xlane.f32.xlu0 %v2417
      %v2483 = vpop.xlane.xlu0 %2482
      %2484 = vadd.xlane.f32.xlu0 %v2418
      %v2485 = vpop.xlane.xlu0 %2484
      %2486 = vadd.xlane.f32.xlu0 %v2419
      %v2487 = vpop.xlane.xlu0 %2486
      %v2488 = vrcp.pop 128.0
      %v2489 = vmul.f32 %v2425, %v2488
      %v2490 = vmul.f32 %v2427, %v2488
      %v2491 = vmul.f32 %v2429, %v2488
      %v2492 = vmul.f32 %v2431, %v2488
      %v2493 = vmul.f32 %v2433, %v2488
      %v2494 = vmul.f32 %v2435, %v2488
      %v2495 = vmul.f32 %v2437, %v2488
      %v2496 = vmul.f32 %v2439, %v2488
      %v2497 = vmul.f32 %v2441, %v2488
      %v2498 = vmul.f32 %v2443, %v2488
      %v2499 = vmul.f32 %v2445, %v2488
      %v2500 = vmul.f32 %v2447, %v2488
      %v2501 = vmul.f32 %v2449, %v2488
      %v2502 = vmul.f32 %v2451, %v2488
      %v2503 = vmul.f32 %v2453, %v2488
      %v2504 = vmul.f32 %v2455, %v2488
      %v2505 = vmul.f32 %v2457, %v2488
      %v2506 = vmul.f32 %v2459, %v2488
      %v2507 = vmul.f32 %v2461, %v2488
      %v2508 = vmul.f32 %v2463, %v2488
      %v2509 = vmul.f32 %v2465, %v2488
      %v2510 = vmul.f32 %v2467, %v2488
      %v2511 = vmul.f32 %v2469, %v2488
      %v2512 = vmul.f32 %v2471, %v2488
      %v2513 = vmul.f32 %v2473, %v2488
      %v2514 = vmul.f32 %v2475, %v2488
      %v2515 = vmul.f32 %v2477, %v2488
      %v2516 = vmul.f32 %v2479, %v2488
      %v2517 = vmul.f32 %v2481, %v2488
      %v2518 = vmul.f32 %v2483, %v2488
      %v2519 = vmul.f32 %v2485, %v2488
      %v2520 = vmul.f32 %v2487, %v2488
      %v2521 = vsub.f32 %v2388, %v2489
      %v2522 = vsub.f32 %v2389, %v2490
      %v2523 = vsub.f32 %v2390, %v2491
      %v2524 = vsub.f32 %v2391, %v2492
      %v2525 = vsub.f32 %v2392, %v2493
      %v2526 = vsub.f32 %v2393, %v2494
      %v2527 = vsub.f32 %v2394, %v2495
      %v2528 = vsub.f32 %v2395, %v2496
      %v2529 = vsub.f32 %v2396, %v2497
      %v2530 = vsub.f32 %v2397, %v2498
      %v2531 = vsub.f32 %v2398, %v2499
      %v2532 = vsub.f32 %v2399, %v2500
      %v2533 = vsub.f32 %v2400, %v2501
      %v2534 = vsub.f32 %v2401, %v2502
      %v2535 = vsub.f32 %v2402, %v2503
      %v2536 = vsub.f32 %v2403, %v2504
      %v2537 = vsub.f32 %v2404, %v2505
      %v2538 = vsub.f32 %v2405, %v2506
      %v2539 = vsub.f32 %v2406, %v2507
      %v2540 = vsub.f32 %v2407, %v2508
      %v2541 = vsub.f32 %v2408, %v2509
      %v2542 = vsub.f32 %v2409, %v2510
      %v2543 = vsub.f32 %v2410, %v2511
      %v2544 = vsub.f32 %v2411, %v2512
      %v2545 = vsub.f32 %v2412, %v2513
      %v2546 = vsub.f32 %v2413, %v2514
      %v2547 = vsub.f32 %v2414, %v2515
      %v2548 = vsub.f32 %v2415, %v2516
      %v2549 = vsub.f32 %v2416, %v2517
      %v2550 = vsub.f32 %v2417, %v2518
      %v2551 = vsub.f32 %v2418, %v2519
      %v2552 = vsub.f32 %v2419, %v2520
      %v2553 = vmul.f32 %v2521, %v2521
      %v2554 = vmul.f32 %v2522, %v2522
      %v2555 = vmul.f32 %v2523, %v2523
      %v2556 = vmul.f32 %v2524, %v2524
      %v2557 = vmul.f32 %v2525, %v2525
      %v2558 = vmul.f32 %v2526, %v2526
      %v2559 = vmul.f32 %v2527, %v2527
      %v2560 = vmul.f32 %v2528, %v2528
      %v2561 = vmul.f32 %v2529, %v2529
      %v2562 = vmul.f32 %v2530, %v2530
      %v2563 = vmul.f32 %v2531, %v2531
      %v2564 = vmul.f32 %v2532, %v2532
      %v2565 = vmul.f32 %v2533, %v2533
      %v2566 = vmul.f32 %v2534, %v2534
      %v2567 = vmul.f32 %v2535, %v2535
      %v2568 = vmul.f32 %v2536, %v2536
      %v2569 = vmul.f32 %v2537, %v2537
      %v2570 = vmul.f32 %v2538, %v2538
      %v2571 = vmul.f32 %v2539, %v2539
      %v2572 = vmul.f32 %v2540, %v2540
      %v2573 = vmul.f32 %v2541, %v2541
      %v2574 = vmul.f32 %v2542, %v2542
      %v2575 = vmul.f32 %v2543, %v2543
      %v2576 = vmul.f32 %v2544, %v2544
      %v2577 = vmul.f32 %v2545, %v2545
      %v2578 = vmul.f32 %v2546, %v2546
      %v2579 = vmul.f32 %v2547, %v2547
      %v2580 = vmul.f32 %v2548, %v2548
      %v2581 = vmul.f32 %v2549, %v2549
      %v2582 = vmul.f32 %v2550, %v2550
      %v2583 = vmul.f32 %v2551, %v2551
      %v2584 = vmul.f32 %v2552, %v2552
      %2585 = vadd.xlane.f32.xlu0 %v2553
      %v2586 = vpop.xlane.xlu0 %2585
      %2587 = vadd.xlane.f32.xlu0 %v2554
      %v2588 = vpop.xlane.xlu0 %2587
      %2589 = vadd.xlane.f32.xlu0 %v2555
      %v2590 = vpop.xlane.xlu0 %2589
      %2591 = vadd.xlane.f32.xlu0 %v2556
      %v2592 = vpop.xlane.xlu0 %2591
      %2593 = vadd.xlane.f32.xlu0 %v2557
      %v2594 = vpop.xlane.xlu0 %2593
      %2595 = vadd.xlane.f32.xlu0 %v2558
      %v2596 = vpop.xlane.xlu0 %2595
      %2597 = vadd.xlane.f32.xlu0 %v2559
      %v2598 = vpop.xlane.xlu0 %2597
      %2599 = vadd.xlane.f32.xlu0 %v2560
      %v2600 = vpop.xlane.xlu0 %2599
      %2601 = vadd.xlane.f32.xlu0 %v2561
      %v2602 = vpop.xlane.xlu0 %2601
      %2603 = vadd.xlane.f32.xlu0 %v2562
      %v2604 = vpop.xlane.xlu0 %2603
      %2605 = vadd.xlane.f32.xlu0 %v2563
      %v2606 = vpop.xlane.xlu0 %2605
      %2607 = vadd.xlane.f32.xlu0 %v2564
      %v2608 = vpop.xlane.xlu0 %2607
      %2609 = vadd.xlane.f32.xlu0 %v2565
      %v2610 = vpop.xlane.xlu0 %2609
      %2611 = vadd.xlane.f32.xlu0 %v2566
      %v2612 = vpop.xlane.xlu0 %2611
      %2613 = vadd.xlane.f32.xlu0 %v2567
      %v2614 = vpop.xlane.xlu0 %2613
      %2615 = vadd.xlane.f32.xlu0 %v2568
      %v2616 = vpop.xlane.xlu0 %2615
      %2617 = vadd.xlane.f32.xlu0 %v2569
      %v2618 = vpop.xlane.xlu0 %2617
      %2619 = vadd.xlane.f32.xlu0 %v2570
      %v2620 = vpop.xlane.xlu0 %2619
      %2621 = vadd.xlane.f32.xlu0 %v2571
      %v2622 = vpop.xlane.xlu0 %2621
      %2623 = vadd.xlane.f32.xlu0 %v2572
      %v2624 = vpop.xlane.xlu0 %2623
      %2625 = vadd.xlane.f32.xlu0 %v2573
      %v2626 = vpop.xlane.xlu0 %2625
      %2627 = vadd.xlane.f32.xlu0 %v2574
      %v2628 = vpop.xlane.xlu0 %2627
      %2629 = vadd.xlane.f32.xlu0 %v2575
      %v2630 = vpop.xlane.xlu0 %2629
      %2631 = vadd.xlane.f32.xlu0 %v2576
      %v2632 = vpop.xlane.xlu0 %2631
      %2633 = vadd.xlane.f32.xlu0 %v2577
      %v2634 = vpop.xlane.xlu0 %2633
      %2635 = vadd.xlane.f32.xlu0 %v2578
      %v2636 = vpop.xlane.xlu0 %2635
      %2637 = vadd.xlane.f32.xlu0 %v2579
      %v2638 = vpop.xlane.xlu0 %2637
      %2639 = vadd.xlane.f32.xlu0 %v2580
      %v2640 = vpop.xlane.xlu0 %2639
      %2641 = vadd.xlane.f32.xlu0 %v2581
      %v2642 = vpop.xlane.xlu0 %2641
      %2643 = vadd.xlane.f32.xlu0 %v2582
      %v2644 = vpop.xlane.xlu0 %2643
      %2645 = vadd.xlane.f32.xlu0 %v2583
      %v2646 = vpop.xlane.xlu0 %2645
      %2647 = vadd.xlane.f32.xlu0 %v2584
      %v2648 = vpop.xlane.xlu0 %2647
      %v2649 = vmul.f32 %v2586, %v2488
      %v2650 = vmul.f32 %v2588, %v2488
      %v2651 = vmul.f32 %v2590, %v2488
      %v2652 = vmul.f32 %v2592, %v2488
      %v2653 = vmul.f32 %v2594, %v2488
      %v2654 = vmul.f32 %v2596, %v2488
      %v2655 = vmul.f32 %v2598, %v2488
      %v2656 = vmul.f32 %v2600, %v2488
      %v2657 = vmul.f32 %v2602, %v2488
      %v2658 = vmul.f32 %v2604, %v2488
      %v2659 = vmul.f32 %v2606, %v2488
      %v2660 = vmul.f32 %v2608, %v2488
      %v2661 = vmul.f32 %v2610, %v2488
      %v2662 = vmul.f32 %v2612, %v2488
      %v2663 = vmul.f32 %v2614, %v2488
      %v2664 = vmul.f32 %v2616, %v2488
      %v2665 = vmul.f32 %v2618, %v2488
      %v2666 = vmul.f32 %v2620, %v2488
      %v2667 = vmul.f32 %v2622, %v2488
      %v2668 = vmul.f32 %v2624, %v2488
      %v2669 = vmul.f32 %v2626, %v2488
      %v2670 = vmul.f32 %v2628, %v2488
      %v2671 = vmul.f32 %v2630, %v2488
      %v2672 = vmul.f32 %v2632, %v2488
      %v2673 = vmul.f32 %v2634, %v2488
      %v2674 = vmul.f32 %v2636, %v2488
      %v2675 = vmul.f32 %v2638, %v2488
      %v2676 = vmul.f32 %v2640, %v2488
      %v2677 = vmul.f32 %v2642, %v2488
      %v2678 = vmul.f32 %v2644, %v2488
      %v2679 = vmul.f32 %v2646, %v2488
      %v2680 = vmul.f32 %v2648, %v2488
      %v2681 = vadd.f32 %v2649, 1e-05
      %v2682 = vadd.f32 %v2650, 1e-05
      %v2683 = vadd.f32 %v2651, 1e-05
      %v2684 = vadd.f32 %v2652, 1e-05
      %v2685 = vadd.f32 %v2653, 1e-05
      %v2686 = vadd.f32 %v2654, 1e-05
      %v2687 = vadd.f32 %v2655, 1e-05
      %v2688 = vadd.f32 %v2656, 1e-05
      %v2689 = vadd.f32 %v2657, 1e-05
      %v2690 = vadd.f32 %v2658, 1e-05
      %v2691 = vadd.f32 %v2659, 1e-05
      %v2692 = vadd.f32 %v2660, 1e-05
      %v2693 = vadd.f32 %v2661, 1e-05
      %v2694 = vadd.f32 %v2662, 1e-05
      %v2695 = vadd.f32 %v2663, 1e-05
      %v2696 = vadd.f32 %v2664, 1e-05
      %v2697 = vadd.f32 %v2665, 1e-05
      %v2698 = vadd.f32 %v2666, 1e-05
      %v2699 = vadd.f32 %v2667, 1e-05
      %v2700 = vadd.f32 %v2668, 1e-05
      %v2701 = vadd.f32 %v2669, 1e-05
      %v2702 = vadd.f32 %v2670, 1e-05
      %v2703 = vadd.f32 %v2671, 1e-05
      %v2704 = vadd.f32 %v2672, 1e-05
      %v2705 = vadd.f32 %v2673, 1e-05
      %v2706 = vadd.f32 %v2674, 1e-05
      %v2707 = vadd.f32 %v2675, 1e-05
      %v2708 = vadd.f32 %v2676, 1e-05
      %v2709 = vadd.f32 %v2677, 1e-05
      %v2710 = vadd.f32 %v2678, 1e-05
      %v2711 = vadd.f32 %v2679, 1e-05
      %v2712 = vadd.f32 %v2680, 1e-05
      %v2713 = vrsqrt.pop %v2681
      %v2714 = vrsqrt.pop %v2682
      %v2715 = vrsqrt.pop %v2683
      %v2716 = vrsqrt.pop %v2684
      %v2717 = vrsqrt.pop %v2685
      %v2718 = vrsqrt.pop %v2686
      %v2719 = vrsqrt.pop %v2687
      %v2720 = vrsqrt.pop %v2688
      %v2721 = vrsqrt.pop %v2689
      %v2722 = vrsqrt.pop %v2690
      %v2723 = vrsqrt.pop %v2691
      %v2724 = vrsqrt.pop %v2692
      %v2725 = vrsqrt.pop %v2693
      %v2726 = vrsqrt.pop %v2694
      %v2727 = vrsqrt.pop %v2695
      %v2728 = vrsqrt.pop %v2696
      %v2729 = vrsqrt.pop %v2697
      %v2730 = vrsqrt.pop %v2698
      %v2731 = vrsqrt.pop %v2699
      %v2732 = vrsqrt.pop %v2700
      %v2733 = vrsqrt.pop %v2701
      %v2734 = vrsqrt.pop %v2702
      %v2735 = vrsqrt.pop %v2703
      %v2736 = vrsqrt.pop %v2704
      %v2737 = vrsqrt.pop %v2705
      %v2738 = vrsqrt.pop %v2706
      %v2739 = vrsqrt.pop %v2707
      %v2740 = vrsqrt.pop %v2708
      %v2741 = vrsqrt.pop %v2709
      %v2742 = vrsqrt.pop %v2710
      %v2743 = vrsqrt.pop %v2711
      %v2744 = vrsqrt.pop %v2712
      %v2745 = vmul.f32 %v2521, %v2713
      %v2746 = vmul.f32 %v2522, %v2714
      %v2747 = vmul.f32 %v2523, %v2715
      %v2748 = vmul.f32 %v2524, %v2716
      %v2749 = vmul.f32 %v2525, %v2717
      %v2750 = vmul.f32 %v2526, %v2718
      %v2751 = vmul.f32 %v2527, %v2719
      %v2752 = vmul.f32 %v2528, %v2720
      %v2753 = vmul.f32 %v2529, %v2721
      %v2754 = vmul.f32 %v2530, %v2722
      %v2755 = vmul.f32 %v2531, %v2723
      %v2756 = vmul.f32 %v2532, %v2724
      %v2757 = vmul.f32 %v2533, %v2725
      %v2758 = vmul.f32 %v2534, %v2726
      %v2759 = vmul.f32 %v2535, %v2727
      %v2760 = vmul.f32 %v2536, %v2728
      %v2761 = vmul.f32 %v2537, %v2729
      %v2762 = vmul.f32 %v2538, %v2730
      %v2763 = vmul.f32 %v2539, %v2731
      %v2764 = vmul.f32 %v2540, %v2732
      %v2765 = vmul.f32 %v2541, %v2733
      %v2766 = vmul.f32 %v2542, %v2734
      %v2767 = vmul.f32 %v2543, %v2735
      %v2768 = vmul.f32 %v2544, %v2736
      %v2769 = vmul.f32 %v2545, %v2737
      %v2770 = vmul.f32 %v2546, %v2738
      %v2771 = vmul.f32 %v2547, %v2739
      %v2772 = vmul.f32 %v2548, %v2740
      %v2773 = vmul.f32 %v2549, %v2741
      %v2774 = vmul.f32 %v2550, %v2742
      %v2775 = vmul.f32 %v2551, %v2743
      %v2776 = vmul.f32 %v2552, %v2744
      %v2778 = vlaneseq
      %v2779 = vshrl.u32 %v2778, 7
      %v2780 = vsub.s32 0, %v2779
      %v2781 = vrot.slane %v2422, %v2780
      %v2783 = vmul.f32 %v2745, %v2781
      %v2784 = vmul.f32 %v2746, %v2781
      %v2785 = vmul.f32 %v2747, %v2781
      %v2786 = vmul.f32 %v2748, %v2781
      %v2787 = vmul.f32 %v2749, %v2781
      %v2788 = vmul.f32 %v2750, %v2781
      %v2789 = vmul.f32 %v2751, %v2781
      %v2790 = vmul.f32 %v2752, %v2781
      %v2791 = vmul.f32 %v2753, %v2781
      %v2792 = vmul.f32 %v2754, %v2781
      %v2793 = vmul.f32 %v2755, %v2781
      %v2794 = vmul.f32 %v2756, %v2781
      %v2795 = vmul.f32 %v2757, %v2781
      %v2796 = vmul.f32 %v2758, %v2781
      %v2797 = vmul.f32 %v2759, %v2781
      %v2798 = vmul.f32 %v2760, %v2781
      %v2799 = vmul.f32 %v2761, %v2781
      %v2800 = vmul.f32 %v2762, %v2781
      %v2801 = vmul.f32 %v2763, %v2781
      %v2802 = vmul.f32 %v2764, %v2781
      %v2803 = vmul.f32 %v2765, %v2781
      %v2804 = vmul.f32 %v2766, %v2781
      %v2805 = vmul.f32 %v2767, %v2781
      %v2806 = vmul.f32 %v2768, %v2781
      %v2807 = vmul.f32 %v2769, %v2781
      %v2808 = vmul.f32 %v2770, %v2781
      %v2809 = vmul.f32 %v2771, %v2781
      %v2810 = vmul.f32 %v2772, %v2781
      %v2811 = vmul.f32 %v2773, %v2781
      %v2812 = vmul.f32 %v2774, %v2781
      %v2813 = vmul.f32 %v2775, %v2781
      %v2814 = vmul.f32 %v2776, %v2781
      %v2816 = vlaneseq
      %v2817 = vshrl.u32 %v2816, 7
      %v2818 = vsub.s32 0, %v2817
      %v2819 = vrot.slane %v2423, %v2818
      %v2821 = vadd.f32 %v2783, %v2819
      %v2822 = vadd.f32 %v2784, %v2819
      %v2823 = vadd.f32 %v2785, %v2819
      %v2824 = vadd.f32 %v2786, %v2819
      %v2825 = vadd.f32 %v2787, %v2819
      %v2826 = vadd.f32 %v2788, %v2819
      %v2827 = vadd.f32 %v2789, %v2819
      %v2828 = vadd.f32 %v2790, %v2819
      %v2829 = vadd.f32 %v2791, %v2819
      %v2830 = vadd.f32 %v2792, %v2819
      %v2831 = vadd.f32 %v2793, %v2819
      %v2832 = vadd.f32 %v2794, %v2819
      %v2833 = vadd.f32 %v2795, %v2819
      %v2834 = vadd.f32 %v2796, %v2819
      %v2835 = vadd.f32 %v2797, %v2819
      %v2836 = vadd.f32 %v2798, %v2819
      %v2837 = vadd.f32 %v2799, %v2819
      %v2838 = vadd.f32 %v2800, %v2819
      %v2839 = vadd.f32 %v2801, %v2819
      %v2840 = vadd.f32 %v2802, %v2819
      %v2841 = vadd.f32 %v2803, %v2819
      %v2842 = vadd.f32 %v2804, %v2819
      %v2843 = vadd.f32 %v2805, %v2819
      %v2844 = vadd.f32 %v2806, %v2819
      %v2845 = vadd.f32 %v2807, %v2819
      %v2846 = vadd.f32 %v2808, %v2819
      %v2847 = vadd.f32 %v2809, %v2819
      %v2848 = vadd.f32 %v2810, %v2819
      %v2849 = vadd.f32 %v2811, %v2819
      %v2850 = vadd.f32 %v2812, %v2819
      %v2851 = vadd.f32 %v2813, %v2819
      %v2852 = vadd.f32 %v2814, %v2819
      %v2853 = vmax.f32 %v2821, 0.0
      %v2854 = vmax.f32 %v2822, 0.0
      %v2855 = vmax.f32 %v2823, 0.0
      %v2856 = vmax.f32 %v2824, 0.0
      %v2857 = vmax.f32 %v2825, 0.0
      %v2858 = vmax.f32 %v2826, 0.0
      %v2859 = vmax.f32 %v2827, 0.0
      %v2860 = vmax.f32 %v2828, 0.0
      %v2861 = vmax.f32 %v2829, 0.0
      %v2862 = vmax.f32 %v2830, 0.0
      %v2863 = vmax.f32 %v2831, 0.0
      %v2864 = vmax.f32 %v2832, 0.0
      %v2865 = vmax.f32 %v2833, 0.0
      %v2866 = vmax.f32 %v2834, 0.0
      %v2867 = vmax.f32 %v2835, 0.0
      %v2868 = vmax.f32 %v2836, 0.0
      %v2869 = vmax.f32 %v2837, 0.0
      %v2870 = vmax.f32 %v2838, 0.0
      %v2871 = vmax.f32 %v2839, 0.0
      %v2872 = vmax.f32 %v2840, 0.0
      %v2873 = vmax.f32 %v2841, 0.0
      %v2874 = vmax.f32 %v2842, 0.0
      %v2875 = vmax.f32 %v2843, 0.0
      %v2876 = vmax.f32 %v2844, 0.0
      %v2877 = vmax.f32 %v2845, 0.0
      %v2878 = vmax.f32 %v2846, 0.0
      %v2879 = vmax.f32 %v2847, 0.0
      %v2880 = vmax.f32 %v2848, 0.0
      %v2881 = vmax.f32 %v2849, 0.0
      %v2882 = vmax.f32 %v2850, 0.0
      %v2883 = vmax.f32 %v2851, 0.0
      %v2884 = vmax.f32 %v2852, 0.0
      %v2885 = vstv %s2421
      %v2886 = vmul.f32 %v2885, %v2388
      %v2887 = vmul.f32 %v2885, %v2389
      %v2888 = vmul.f32 %v2885, %v2390
      %v2889 = vmul.f32 %v2885, %v2391
      %v2890 = vmul.f32 %v2885, %v2392
      %v2891 = vmul.f32 %v2885, %v2393
      %v2892 = vmul.f32 %v2885, %v2394
      %v2893 = vmul.f32 %v2885, %v2395
      %v2894 = vmul.f32 %v2885, %v2396
      %v2895 = vmul.f32 %v2885, %v2397
      %v2896 = vmul.f32 %v2885, %v2398
      %v2897 = vmul.f32 %v2885, %v2399
      %v2898 = vmul.f32 %v2885, %v2400
      %v2899 = vmul.f32 %v2885, %v2401
      %v2900 = vmul.f32 %v2885, %v2402
      %v2901 = vmul.f32 %v2885, %v2403
      %v2902 = vmul.f32 %v2885, %v2404
      %v2903 = vmul.f32 %v2885, %v2405
      %v2904 = vmul.f32 %v2885, %v2406
      %v2905 = vmul.f32 %v2885, %v2407
      %v2906 = vmul.f32 %v2885, %v2408
      %v2907 = vmul.f32 %v2885, %v2409
      %v2908 = vmul.f32 %v2885, %v2410
      %v2909 = vmul.f32 %v2885, %v2411
      %v2910 = vmul.f32 %v2885, %v2412
      %v2911 = vmul.f32 %v2885, %v2413
      %v2912 = vmul.f32 %v2885, %v2414
      %v2913 = vmul.f32 %v2885, %v2415
      %v2914 = vmul.f32 %v2885, %v2416
      %v2915 = vmul.f32 %v2885, %v2417
      %v2916 = vmul.f32 %v2885, %v2418
      %v2917 = vmul.f32 %v2885, %v2419
      %s2918 = ssub.f32 1.0, %s2421
      %v2919 = vstv %s2918
      %v2920 = vmul.f32 %v2919, %v2853
      %v2921 = vmul.f32 %v2919, %v2854
      %v2922 = vmul.f32 %v2919, %v2855
      %v2923 = vmul.f32 %v2919, %v2856
      %v2924 = vmul.f32 %v2919, %v2857
      %v2925 = vmul.f32 %v2919, %v2858
      %v2926 = vmul.f32 %v2919, %v2859
      %v2927 = vmul.f32 %v2919, %v2860
      %v2928 = vmul.f32 %v2919, %v2861
      %v2929 = vmul.f32 %v2919, %v2862
      %v2930 = vmul.f32 %v2919, %v2863
      %v2931 = vmul.f32 %v2919, %v2864
      %v2932 = vmul.f32 %v2919, %v2865
      %v2933 = vmul.f32 %v2919, %v2866
      %v2934 = vmul.f32 %v2919, %v2867
      %v2935 = vmul.f32 %v2919, %v2868
      %v2936 = vmul.f32 %v2919, %v2869
      %v2937 = vmul.f32 %v2919, %v2870
      %v2938 = vmul.f32 %v2919, %v2871
      %v2939 = vmul.f32 %v2919, %v2872
      %v2940 = vmul.f32 %v2919, %v2873
      %v2941 = vmul.f32 %v2919, %v2874
      %v2942 = vmul.f32 %v2919, %v2875
      %v2943 = vmul.f32 %v2919, %v2876
      %v2944 = vmul.f32 %v2919, %v2877
      %v2945 = vmul.f32 %v2919, %v2878
      %v2946 = vmul.f32 %v2919, %v2879
      %v2947 = vmul.f32 %v2919, %v2880
      %v2948 = vmul.f32 %v2919, %v2881
      %v2949 = vmul.f32 %v2919, %v2882
      %v2950 = vmul.f32 %v2919, %v2883
      %v2951 = vmul.f32 %v2919, %v2884
      %v2952 = vadd.f32 %v2886, %v2920
      %v2953 = vadd.f32 %v2887, %v2921
      %v2954 = vadd.f32 %v2888, %v2922
      %v2955 = vadd.f32 %v2889, %v2923
      %v2956 = vadd.f32 %v2890, %v2924
      %v2957 = vadd.f32 %v2891, %v2925
      %v2958 = vadd.f32 %v2892, %v2926
      %v2959 = vadd.f32 %v2893, %v2927
      %v2960 = vadd.f32 %v2894, %v2928
      %v2961 = vadd.f32 %v2895, %v2929
      %v2962 = vadd.f32 %v2896, %v2930
      %v2963 = vadd.f32 %v2897, %v2931
      %v2964 = vadd.f32 %v2898, %v2932
      %v2965 = vadd.f32 %v2899, %v2933
      %v2966 = vadd.f32 %v2900, %v2934
      %v2967 = vadd.f32 %v2901, %v2935
      %v2968 = vadd.f32 %v2902, %v2936
      %v2969 = vadd.f32 %v2903, %v2937
      %v2970 = vadd.f32 %v2904, %v2938
      %v2971 = vadd.f32 %v2905, %v2939
      %v2972 = vadd.f32 %v2906, %v2940
      %v2973 = vadd.f32 %v2907, %v2941
      %v2974 = vadd.f32 %v2908, %v2942
      %v2975 = vadd.f32 %v2909, %v2943
      %v2976 = vadd.f32 %v2910, %v2944
      %v2977 = vadd.f32 %v2911, %v2945
      %v2978 = vadd.f32 %v2912, %v2946
      %v2979 = vadd.f32 %v2913, %v2947
      %v2980 = vadd.f32 %v2914, %v2948
      %v2981 = vadd.f32 %v2915, %v2949
      %v2982 = vadd.f32 %v2916, %v2950
      %v2983 = vadd.f32 %v2917, %v2951
      %s2984 = sld [smem:[#allocation5 + %s38]]
      %v2985 = vld [vmem:[%s7] sm:$0xff]
      %v2986 = vld [vmem:[%s7 + $0x8] sm:$0xff]
      %v2987 = vld [vmem:[%s7 + $0x10] sm:$0xff]
      %v2988 = vld [vmem:[%s7 + $0x18] sm:$0xff]
      %v2989 = vld [vmem:[%s7 + $0x20] sm:$0xff]
      %v2990 = vld [vmem:[%s7 + $0x28] sm:$0xff]
      %v2991 = vld [vmem:[%s7 + $0x30] sm:$0xff]
      %v2992 = vld [vmem:[%s7 + $0x38] sm:$0xff]
      %v2993 = vld [vmem:[%s7 + $0x40] sm:$0xff]
      %v2994 = vld [vmem:[%s7 + $0x48] sm:$0xff]
      %v2995 = vld [vmem:[%s7 + $0x50] sm:$0xff]
      %v2996 = vld [vmem:[%s7 + $0x58] sm:$0xff]
      %v2997 = vld [vmem:[%s7 + $0x60] sm:$0xff]
      %v2998 = vld [vmem:[%s7 + $0x68] sm:$0xff]
      %v2999 = vld [vmem:[%s7 + $0x70] sm:$0xff]
      %v3000 = vld [vmem:[%s7 + $0x78] sm:$0xff]
      %v3001 = vld [vmem:[%s7 + $0x80] sm:$0xff]
      %v3002 = vld [vmem:[%s7 + $0x88] sm:$0xff]
      %v3003 = vld [vmem:[%s7 + $0x90] sm:$0xff]
      %v3004 = vld [vmem:[%s7 + $0x98] sm:$0xff]
      %v3005 = vld [vmem:[%s7 + $0xa0] sm:$0xff]
      %v3006 = vld [vmem:[%s7 + $0xa8] sm:$0xff]
      %v3007 = vld [vmem:[%s7 + $0xb0] sm:$0xff]
      %v3008 = vld [vmem:[%s7 + $0xb8] sm:$0xff]
      %v3009 = vld [vmem:[%s7 + $0xc0] sm:$0xff]
      %v3010 = vld [vmem:[%s7 + $0xc8] sm:$0xff]
      %v3011 = vld [vmem:[%s7 + $0xd0] sm:$0xff]
      %v3012 = vld [vmem:[%s7 + $0xd8] sm:$0xff]
      %v3013 = vld [vmem:[%s7 + $0xe0] sm:$0xff]
      %v3014 = vld [vmem:[%s7 + $0xe8] sm:$0xff]
      %v3015 = vld [vmem:[%s7 + $0xf0] sm:$0xff]
      %v3016 = vld [vmem:[%s7 + $0xf8] sm:$0xff]
      %v3017 = vld [vmem:[%s7 + $0x100] sm:$0xff]
      %v3018 = vld [vmem:[%s7 + $0x108] sm:$0xff]
      %v3019 = vld [vmem:[%s7 + $0x110] sm:$0xff]
      %v3020 = vld [vmem:[%s7 + $0x118] sm:$0xff]
      %v3021 = vld [vmem:[%s7 + $0x120] sm:$0xff]
      %v3022 = vld [vmem:[%s7 + $0x128] sm:$0xff]
      %v3023 = vld [vmem:[%s7 + $0x130] sm:$0xff]
      %v3024 = vld [vmem:[%s7 + $0x138] sm:$0xff]
      %v3025 = vld [vmem:[%s7 + $0x140] sm:$0xff]
      %v3026 = vld [vmem:[%s7 + $0x148] sm:$0xff]
      %v3027 = vld [vmem:[%s7 + $0x150] sm:$0xff]
      %v3028 = vld [vmem:[%s7 + $0x158] sm:$0xff]
      %v3029 = vld [vmem:[%s7 + $0x160] sm:$0xff]
      %v3030 = vld [vmem:[%s7 + $0x168] sm:$0xff]
      %v3031 = vld [vmem:[%s7 + $0x170] sm:$0xff]
      %v3032 = vld [vmem:[%s7 + $0x178] sm:$0xff]
      %v3033 = vld [vmem:[%s7 + $0x180] sm:$0xff]
      %v3034 = vld [vmem:[%s7 + $0x188] sm:$0xff]
      %v3035 = vld [vmem:[%s7 + $0x190] sm:$0xff]
      %v3036 = vld [vmem:[%s7 + $0x198] sm:$0xff]
      %v3037 = vld [vmem:[%s7 + $0x1a0] sm:$0xff]
      %v3038 = vld [vmem:[%s7 + $0x1a8] sm:$0xff]
      %v3039 = vld [vmem:[%s7 + $0x1b0] sm:$0xff]
      %v3040 = vld [vmem:[%s7 + $0x1b8] sm:$0xff]
      %v3041 = vld [vmem:[%s7 + $0x1c0] sm:$0xff]
      %v3042 = vld [vmem:[%s7 + $0x1c8] sm:$0xff]
      %v3043 = vld [vmem:[%s7 + $0x1d0] sm:$0xff]
      %v3044 = vld [vmem:[%s7 + $0x1d8] sm:$0xff]
      %v3045 = vld [vmem:[%s7 + $0x1e0] sm:$0xff]
      %v3046 = vld [vmem:[%s7 + $0x1e8] sm:$0xff]
      %v3047 = vld [vmem:[%s7 + $0x1f0] sm:$0xff]
      %v3048 = vld [vmem:[%s7 + $0x1f8] sm:$0xff]
      %v3049 = vld [vmem:[%s7 + $0x200] sm:$0xff]
      %v3050 = vld [vmem:[%s7 + $0x208] sm:$0xff]
      %v3051 = vld [vmem:[%s7 + $0x210] sm:$0xff]
      %v3052 = vld [vmem:[%s7 + $0x218] sm:$0xff]
      %v3053 = vld [vmem:[%s7 + $0x220] sm:$0xff]
      %v3054 = vld [vmem:[%s7 + $0x228] sm:$0xff]
      %v3055 = vld [vmem:[%s7 + $0x230] sm:$0xff]
      %v3056 = vld [vmem:[%s7 + $0x238] sm:$0xff]
      %v3057 = vld [vmem:[%s7 + $0x240] sm:$0xff]
      %v3058 = vld [vmem:[%s7 + $0x248] sm:$0xff]
      %v3059 = vld [vmem:[%s7 + $0x250] sm:$0xff]
      %v3060 = vld [vmem:[%s7 + $0x258] sm:$0xff]
      %v3061 = vld [vmem:[%s7 + $0x260] sm:$0xff]
      %v3062 = vld [vmem:[%s7 + $0x268] sm:$0xff]
      %v3063 = vld [vmem:[%s7 + $0x270] sm:$0xff]
      %v3064 = vld [vmem:[%s7 + $0x278] sm:$0xff]
      %v3065 = vld [vmem:[%s7 + $0x280] sm:$0xff]
      %v3066 = vld [vmem:[%s7 + $0x288] sm:$0xff]
      %v3067 = vld [vmem:[%s7 + $0x290] sm:$0xff]
      %v3068 = vld [vmem:[%s7 + $0x298] sm:$0xff]
      %v3069 = vld [vmem:[%s7 + $0x2a0] sm:$0xff]
      %v3070 = vld [vmem:[%s7 + $0x2a8] sm:$0xff]
      %v3071 = vld [vmem:[%s7 + $0x2b0] sm:$0xff]
      %v3072 = vld [vmem:[%s7 + $0x2b8] sm:$0xff]
      %v3073 = vld [vmem:[%s7 + $0x2c0] sm:$0xff]
      %v3074 = vld [vmem:[%s7 + $0x2c8] sm:$0xff]
      %v3075 = vld [vmem:[%s7 + $0x2d0] sm:$0xff]
      %v3076 = vld [vmem:[%s7 + $0x2d8] sm:$0xff]
      %v3077 = vld [vmem:[%s7 + $0x2e0] sm:$0xff]
      %v3078 = vld [vmem:[%s7 + $0x2e8] sm:$0xff]
      %v3079 = vld [vmem:[%s7 + $0x2f0] sm:$0xff]
      %v3080 = vld [vmem:[%s7 + $0x2f8] sm:$0xff]
      %v3081 = vld [vmem:[%s7 + $0x300] sm:$0xff]
      %v3082 = vld [vmem:[%s7 + $0x308] sm:$0xff]
      %v3083 = vld [vmem:[%s7 + $0x310] sm:$0xff]
      %v3084 = vld [vmem:[%s7 + $0x318] sm:$0xff]
      %v3085 = vld [vmem:[%s7 + $0x320] sm:$0xff]
      %v3086 = vld [vmem:[%s7 + $0x328] sm:$0xff]
      %v3087 = vld [vmem:[%s7 + $0x330] sm:$0xff]
      %v3088 = vld [vmem:[%s7 + $0x338] sm:$0xff]
      %v3089 = vld [vmem:[%s7 + $0x340] sm:$0xff]
      %v3090 = vld [vmem:[%s7 + $0x348] sm:$0xff]
      %v3091 = vld [vmem:[%s7 + $0x350] sm:$0xff]
      %v3092 = vld [vmem:[%s7 + $0x358] sm:$0xff]
      %v3093 = vld [vmem:[%s7 + $0x360] sm:$0xff]
      %v3094 = vld [vmem:[%s7 + $0x368] sm:$0xff]
      %v3095 = vld [vmem:[%s7 + $0x370] sm:$0xff]
      %v3096 = vld [vmem:[%s7 + $0x378] sm:$0xff]
      %v3097 = vld [vmem:[%s7 + $0x380] sm:$0xff]
      %v3098 = vld [vmem:[%s7 + $0x388] sm:$0xff]
      %v3099 = vld [vmem:[%s7 + $0x390] sm:$0xff]
      %v3100 = vld [vmem:[%s7 + $0x398] sm:$0xff]
      %v3101 = vld [vmem:[%s7 + $0x3a0] sm:$0xff]
      %v3102 = vld [vmem:[%s7 + $0x3a8] sm:$0xff]
      %v3103 = vld [vmem:[%s7 + $0x3b0] sm:$0xff]
      %v3104 = vld [vmem:[%s7 + $0x3b8] sm:$0xff]
      %v3105 = vld [vmem:[%s7 + $0x3c0] sm:$0xff]
      %v3106 = vld [vmem:[%s7 + $0x3c8] sm:$0xff]
      %v3107 = vld [vmem:[%s7 + $0x3d0] sm:$0xff]
      %v3108 = vld [vmem:[%s7 + $0x3d8] sm:$0xff]
      %v3109 = vld [vmem:[%s7 + $0x3e0] sm:$0xff]
      %v3110 = vld [vmem:[%s7 + $0x3e8] sm:$0xff]
      %v3111 = vld [vmem:[%s7 + $0x3f0] sm:$0xff]
      %v3112 = vld [vmem:[%s7 + $0x3f8] sm:$0xff]
      %v3113 = vpack.c.bf16 %v2953, %v2952
      %v3114 = vpack.c.bf16 %v2955, %v2954
      %v3115 = vpack.c.bf16 %v2957, %v2956
      %v3116 = vpack.c.bf16 %v2959, %v2958
      %v3117 = vpack.c.bf16 %v2961, %v2960
      %v3118 = vpack.c.bf16 %v2963, %v2962
      %v3119 = vpack.c.bf16 %v2965, %v2964
      %v3120 = vpack.c.bf16 %v2967, %v2966
      %v3121 = vpack.c.bf16 %v2969, %v2968
      %v3122 = vpack.c.bf16 %v2971, %v2970
      %v3123 = vpack.c.bf16 %v2973, %v2972
      %v3124 = vpack.c.bf16 %v2975, %v2974
      %v3125 = vpack.c.bf16 %v2977, %v2976
      %v3126 = vpack.c.bf16 %v2979, %v2978
      %v3127 = vpack.c.bf16 %v2981, %v2980
      %v3128 = vpack.c.bf16 %v2983, %v2982
      %v3129 = vld [vmem:[#allocation3] sm:$0xff]
      %v3130 = vld [vmem:[#allocation3 + $0x8] sm:$0xff]
      %v3131 = vld [vmem:[#allocation3 + $0x10] sm:$0xff]
      %v3132 = vld [vmem:[#allocation3 + $0x18] sm:$0xff]
      %v3133 = vld [vmem:[#allocation3 + $0x20] sm:$0xff]
      %v3134 = vld [vmem:[#allocation3 + $0x28] sm:$0xff]
      %v3135 = vld [vmem:[#allocation3 + $0x30] sm:$0xff]
      %v3136 = vld [vmem:[#allocation3 + $0x38] sm:$0xff]
      %v3137 = vld [vmem:[#allocation3 + $0x40] sm:$0xff]
      %v3138 = vld [vmem:[#allocation3 + $0x48] sm:$0xff]
      %v3139 = vld [vmem:[#allocation3 + $0x50] sm:$0xff]
      %v3140 = vld [vmem:[#allocation3 + $0x58] sm:$0xff]
      %v3141 = vld [vmem:[#allocation3 + $0x60] sm:$0xff]
      %v3142 = vld [vmem:[#allocation3 + $0x68] sm:$0xff]
      %v3143 = vld [vmem:[#allocation3 + $0x70] sm:$0xff]
      %v3144 = vld [vmem:[#allocation3 + $0x78] sm:$0xff]
      %v3145 = vld [vmem:[#allocation3 + $0x80] sm:$0xff]
      %v3146 = vld [vmem:[#allocation3 + $0x88] sm:$0xff]
      %v3147 = vld [vmem:[#allocation3 + $0x90] sm:$0xff]
      %v3148 = vld [vmem:[#allocation3 + $0x98] sm:$0xff]
      %v3149 = vld [vmem:[#allocation3 + $0xa0] sm:$0xff]
      %v3150 = vld [vmem:[#allocation3 + $0xa8] sm:$0xff]
      %v3151 = vld [vmem:[#allocation3 + $0xb0] sm:$0xff]
      %v3152 = vld [vmem:[#allocation3 + $0xb8] sm:$0xff]
      %v3153 = vld [vmem:[#allocation3 + $0xc0] sm:$0xff]
      %v3154 = vld [vmem:[#allocation3 + $0xc8] sm:$0xff]
      %v3155 = vld [vmem:[#allocation3 + $0xd0] sm:$0xff]
      %v3156 = vld [vmem:[#allocation3 + $0xd8] sm:$0xff]
      %v3157 = vld [vmem:[#allocation3 + $0xe0] sm:$0xff]
      %v3158 = vld [vmem:[#allocation3 + $0xe8] sm:$0xff]
      %v3159 = vld [vmem:[#allocation3 + $0xf0] sm:$0xff]
      %v3160 = vld [vmem:[#allocation3 + $0xf8] sm:$0xff]
      %v3161 = vld [vmem:[#allocation3 + $0x100] sm:$0xff]
      %v3162 = vld [vmem:[#allocation3 + $0x108] sm:$0xff]
      %v3163 = vld [vmem:[#allocation3 + $0x110] sm:$0xff]
      %v3164 = vld [vmem:[#allocation3 + $0x118] sm:$0xff]
      %v3165 = vld [vmem:[#allocation3 + $0x120] sm:$0xff]
      %v3166 = vld [vmem:[#allocation3 + $0x128] sm:$0xff]
      %v3167 = vld [vmem:[#allocation3 + $0x130] sm:$0xff]
      %v3168 = vld [vmem:[#allocation3 + $0x138] sm:$0xff]
      %v3169 = vld [vmem:[#allocation3 + $0x140] sm:$0xff]
      %v3170 = vld [vmem:[#allocation3 + $0x148] sm:$0xff]
      %v3171 = vld [vmem:[#allocation3 + $0x150] sm:$0xff]
      %v3172 = vld [vmem:[#allocation3 + $0x158] sm:$0xff]
      %v3173 = vld [vmem:[#allocation3 + $0x160] sm:$0xff]
      %v3174 = vld [vmem:[#allocation3 + $0x168] sm:$0xff]
      %v3175 = vld [vmem:[#allocation3 + $0x170] sm:$0xff]
      %v3176 = vld [vmem:[#allocation3 + $0x178] sm:$0xff]
      %v3177 = vld [vmem:[#allocation3 + $0x180] sm:$0xff]
      %v3178 = vld [vmem:[#allocation3 + $0x188] sm:$0xff]
      %v3179 = vld [vmem:[#allocation3 + $0x190] sm:$0xff]
      %v3180 = vld [vmem:[#allocation3 + $0x198] sm:$0xff]
      %v3181 = vld [vmem:[#allocation3 + $0x1a0] sm:$0xff]
      %v3182 = vld [vmem:[#allocation3 + $0x1a8] sm:$0xff]
      %v3183 = vld [vmem:[#allocation3 + $0x1b0] sm:$0xff]
      %v3184 = vld [vmem:[#allocation3 + $0x1b8] sm:$0xff]
      %v3185 = vld [vmem:[#allocation3 + $0x1c0] sm:$0xff]
      %v3186 = vld [vmem:[#allocation3 + $0x1c8] sm:$0xff]
      %v3187 = vld [vmem:[#allocation3 + $0x1d0] sm:$0xff]
      %v3188 = vld [vmem:[#allocation3 + $0x1d8] sm:$0xff]
      %v3189 = vld [vmem:[#allocation3 + $0x1e0] sm:$0xff]
      %v3190 = vld [vmem:[#allocation3 + $0x1e8] sm:$0xff]
      %v3191 = vld [vmem:[#allocation3 + $0x1f0] sm:$0xff]
      %v3192 = vld [vmem:[#allocation3 + $0x1f8] sm:$0xff]
      %v3193 = vunpack.c.l.bf16 %v3129
      %v3194 = vunpack.c.h.bf16 %v3129
      %v3195 = vunpack.c.l.bf16 %v3130
      %v3196 = vunpack.c.h.bf16 %v3130
      %v3197 = vunpack.c.l.bf16 %v3131
      %v3198 = vunpack.c.h.bf16 %v3131
      %v3199 = vunpack.c.l.bf16 %v3132
      %v3200 = vunpack.c.h.bf16 %v3132
      %v3201 = vunpack.c.l.bf16 %v3133
      %v3202 = vunpack.c.h.bf16 %v3133
      %v3203 = vunpack.c.l.bf16 %v3134
      %v3204 = vunpack.c.h.bf16 %v3134
      %v3205 = vunpack.c.l.bf16 %v3135
      %v3206 = vunpack.c.h.bf16 %v3135
      %v3207 = vunpack.c.l.bf16 %v3136
      %v3208 = vunpack.c.h.bf16 %v3136
      %v3209 = vunpack.c.l.bf16 %v3137
      %v3210 = vunpack.c.h.bf16 %v3137
      %v3211 = vunpack.c.l.bf16 %v3138
      %v3212 = vunpack.c.h.bf16 %v3138
      %v3213 = vunpack.c.l.bf16 %v3139
      %v3214 = vunpack.c.h.bf16 %v3139
      %v3215 = vunpack.c.l.bf16 %v3140
      %v3216 = vunpack.c.h.bf16 %v3140
      %v3217 = vunpack.c.l.bf16 %v3141
      %v3218 = vunpack.c.h.bf16 %v3141
      %v3219 = vunpack.c.l.bf16 %v3142
      %v3220 = vunpack.c.h.bf16 %v3142
      %v3221 = vunpack.c.l.bf16 %v3143
      %v3222 = vunpack.c.h.bf16 %v3143
      %v3223 = vunpack.c.l.bf16 %v3144
      %v3224 = vunpack.c.h.bf16 %v3144
      %v3225 = vunpack.c.l.bf16 %v3145
      %v3226 = vunpack.c.h.bf16 %v3145
      %v3227 = vunpack.c.l.bf16 %v3146
      %v3228 = vunpack.c.h.bf16 %v3146
      %v3229 = vunpack.c.l.bf16 %v3147
      %v3230 = vunpack.c.h.bf16 %v3147
      %v3231 = vunpack.c.l.bf16 %v3148
      %v3232 = vunpack.c.h.bf16 %v3148
      %v3233 = vunpack.c.l.bf16 %v3149
      %v3234 = vunpack.c.h.bf16 %v3149
      %v3235 = vunpack.c.l.bf16 %v3150
      %v3236 = vunpack.c.h.bf16 %v3150
      %v3237 = vunpack.c.l.bf16 %v3151
      %v3238 = vunpack.c.h.bf16 %v3151
      %v3239 = vunpack.c.l.bf16 %v3152
      %v3240 = vunpack.c.h.bf16 %v3152
      %v3241 = vunpack.c.l.bf16 %v3153
      %v3242 = vunpack.c.h.bf16 %v3153
      %v3243 = vunpack.c.l.bf16 %v3154
      %v3244 = vunpack.c.h.bf16 %v3154
      %v3245 = vunpack.c.l.bf16 %v3155
      %v3246 = vunpack.c.h.bf16 %v3155
      %v3247 = vunpack.c.l.bf16 %v3156
      %v3248 = vunpack.c.h.bf16 %v3156
      %v3249 = vunpack.c.l.bf16 %v3157
      %v3250 = vunpack.c.h.bf16 %v3157
      %v3251 = vunpack.c.l.bf16 %v3158
      %v3252 = vunpack.c.h.bf16 %v3158
      %v3253 = vunpack.c.l.bf16 %v3159
      %v3254 = vunpack.c.h.bf16 %v3159
      %v3255 = vunpack.c.l.bf16 %v3160
      %v3256 = vunpack.c.h.bf16 %v3160
      %v3257 = vunpack.c.l.bf16 %v3161
      %v3258 = vunpack.c.h.bf16 %v3161
      %v3259 = vunpack.c.l.bf16 %v3162
      %v3260 = vunpack.c.h.bf16 %v3162
      %v3261 = vunpack.c.l.bf16 %v3163
      %v3262 = vunpack.c.h.bf16 %v3163
      %v3263 = vunpack.c.l.bf16 %v3164
      %v3264 = vunpack.c.h.bf16 %v3164
      %v3265 = vunpack.c.l.bf16 %v3165
      %v3266 = vunpack.c.h.bf16 %v3165
      %v3267 = vunpack.c.l.bf16 %v3166
      %v3268 = vunpack.c.h.bf16 %v3166
      %v3269 = vunpack.c.l.bf16 %v3167
      %v3270 = vunpack.c.h.bf16 %v3167
      %v3271 = vunpack.c.l.bf16 %v3168
      %v3272 = vunpack.c.h.bf16 %v3168
      %v3273 = vunpack.c.l.bf16 %v3169
      %v3274 = vunpack.c.h.bf16 %v3169
      %v3275 = vunpack.c.l.bf16 %v3170
      %v3276 = vunpack.c.h.bf16 %v3170
      %v3277 = vunpack.c.l.bf16 %v3171
      %v3278 = vunpack.c.h.bf16 %v3171
      %v3279 = vunpack.c.l.bf16 %v3172
      %v3280 = vunpack.c.h.bf16 %v3172
      %v3281 = vunpack.c.l.bf16 %v3173
      %v3282 = vunpack.c.h.bf16 %v3173
      %v3283 = vunpack.c.l.bf16 %v3174
      %v3284 = vunpack.c.h.bf16 %v3174
      %v3285 = vunpack.c.l.bf16 %v3175
      %v3286 = vunpack.c.h.bf16 %v3175
      %v3287 = vunpack.c.l.bf16 %v3176
      %v3288 = vunpack.c.h.bf16 %v3176
      %v3289 = vunpack.c.l.bf16 %v3177
      %v3290 = vunpack.c.h.bf16 %v3177
      %v3291 = vunpack.c.l.bf16 %v3178
      %v3292 = vunpack.c.h.bf16 %v3178
      %v3293 = vunpack.c.l.bf16 %v3179
      %v3294 = vunpack.c.h.bf16 %v3179
      %v3295 = vunpack.c.l.bf16 %v3180
      %v3296 = vunpack.c.h.bf16 %v3180
      %v3297 = vunpack.c.l.bf16 %v3181
      %v3298 = vunpack.c.h.bf16 %v3181
      %v3299 = vunpack.c.l.bf16 %v3182
      %v3300 = vunpack.c.h.bf16 %v3182
      %v3301 = vunpack.c.l.bf16 %v3183
      %v3302 = vunpack.c.h.bf16 %v3183
      %v3303 = vunpack.c.l.bf16 %v3184
      %v3304 = vunpack.c.h.bf16 %v3184
      %v3305 = vunpack.c.l.bf16 %v3185
      %v3306 = vunpack.c.h.bf16 %v3185
      %v3307 = vunpack.c.l.bf16 %v3186
      %v3308 = vunpack.c.h.bf16 %v3186
      %v3309 = vunpack.c.l.bf16 %v3187
      %v3310 = vunpack.c.h.bf16 %v3187
      %v3311 = vunpack.c.l.bf16 %v3188
      %v3312 = vunpack.c.h.bf16 %v3188
      %v3313 = vunpack.c.l.bf16 %v3189
      %v3314 = vunpack.c.h.bf16 %v3189
      %v3315 = vunpack.c.l.bf16 %v3190
      %v3316 = vunpack.c.h.bf16 %v3190
      %v3317 = vunpack.c.l.bf16 %v3191
      %v3318 = vunpack.c.h.bf16 %v3191
      %v3319 = vunpack.c.l.bf16 %v3192
      %v3320 = vunpack.c.h.bf16 %v3192
      %v3449 = vunpack.c.l.b16 %v2985
      %v3450 = vunpack.c.h.b16 %v2985
      %v3451 = vunpack.c.l.b16 %v2986
      %v3452 = vunpack.c.h.b16 %v2986
      %v3453 = vunpack.c.l.b16 %v2987
      %v3454 = vunpack.c.h.b16 %v2987
      %v3455 = vunpack.c.l.b16 %v2988
      %v3456 = vunpack.c.h.b16 %v2988
      %v3457 = vunpack.c.l.b16 %v2989
      %v3458 = vunpack.c.h.b16 %v2989
      %v3459 = vunpack.c.l.b16 %v2990
      %v3460 = vunpack.c.h.b16 %v2990
      %v3461 = vunpack.c.l.b16 %v2991
      %v3462 = vunpack.c.h.b16 %v2991
      %v3463 = vunpack.c.l.b16 %v2992
      %v3464 = vunpack.c.h.b16 %v2992
      %v3465 = vunpack.c.l.b16 %v2993
      %v3466 = vunpack.c.h.b16 %v2993
      %v3467 = vunpack.c.l.b16 %v2994
      %v3468 = vunpack.c.h.b16 %v2994
      %v3469 = vunpack.c.l.b16 %v2995
      %v3470 = vunpack.c.h.b16 %v2995
      %v3471 = vunpack.c.l.b16 %v2996
      %v3472 = vunpack.c.h.b16 %v2996
      %v3473 = vunpack.c.l.b16 %v2997
      %v3474 = vunpack.c.h.b16 %v2997
      %v3475 = vunpack.c.l.b16 %v2998
      %v3476 = vunpack.c.h.b16 %v2998
      %v3477 = vunpack.c.l.b16 %v2999
      %v3478 = vunpack.c.h.b16 %v2999
      %v3479 = vunpack.c.l.b16 %v3000
      %v3480 = vunpack.c.h.b16 %v3000
      %v3481 = vunpack.c.l.b16 %v3001
      %v3482 = vunpack.c.h.b16 %v3001
      %v3483 = vunpack.c.l.b16 %v3002
      %v3484 = vunpack.c.h.b16 %v3002
      %v3485 = vunpack.c.l.b16 %v3003
      %v3486 = vunpack.c.h.b16 %v3003
      %v3487 = vunpack.c.l.b16 %v3004
      %v3488 = vunpack.c.h.b16 %v3004
      %v3489 = vunpack.c.l.b16 %v3005
      %v3490 = vunpack.c.h.b16 %v3005
      %v3491 = vunpack.c.l.b16 %v3006
      %v3492 = vunpack.c.h.b16 %v3006
      %v3493 = vunpack.c.l.b16 %v3007
      %v3494 = vunpack.c.h.b16 %v3007
      %v3495 = vunpack.c.l.b16 %v3008
      %v3496 = vunpack.c.h.b16 %v3008
      %v3497 = vunpack.c.l.b16 %v3009
      %v3498 = vunpack.c.h.b16 %v3009
      %v3499 = vunpack.c.l.b16 %v3010
      %v3500 = vunpack.c.h.b16 %v3010
      %v3501 = vunpack.c.l.b16 %v3011
      %v3502 = vunpack.c.h.b16 %v3011
      %v3503 = vunpack.c.l.b16 %v3012
      %v3504 = vunpack.c.h.b16 %v3012
      %v3505 = vunpack.c.l.b16 %v3013
      %v3506 = vunpack.c.h.b16 %v3013
      %v3507 = vunpack.c.l.b16 %v3014
      %v3508 = vunpack.c.h.b16 %v3014
      %v3509 = vunpack.c.l.b16 %v3015
      %v3510 = vunpack.c.h.b16 %v3015
      %v3511 = vunpack.c.l.b16 %v3016
      %v3512 = vunpack.c.h.b16 %v3016
      %v3513 = vunpack.c.l.b16 %v3017
      %v3514 = vunpack.c.h.b16 %v3017
      %v3515 = vunpack.c.l.b16 %v3018
      %v3516 = vunpack.c.h.b16 %v3018
      %v3517 = vunpack.c.l.b16 %v3019
      %v3518 = vunpack.c.h.b16 %v3019
      %v3519 = vunpack.c.l.b16 %v3020
      %v3520 = vunpack.c.h.b16 %v3020
      %v3521 = vunpack.c.l.b16 %v3021
      %v3522 = vunpack.c.h.b16 %v3021
      %v3523 = vunpack.c.l.b16 %v3022
      %v3524 = vunpack.c.h.b16 %v3022
      %v3525 = vunpack.c.l.b16 %v3023
      %v3526 = vunpack.c.h.b16 %v3023
      %v3527 = vunpack.c.l.b16 %v3024
      %v3528 = vunpack.c.h.b16 %v3024
      %v3529 = vunpack.c.l.b16 %v3025
      %v3530 = vunpack.c.h.b16 %v3025
      %v3531 = vunpack.c.l.b16 %v3026
      %v3532 = vunpack.c.h.b16 %v3026
      %v3533 = vunpack.c.l.b16 %v3027
      %v3534 = vunpack.c.h.b16 %v3027
      %v3535 = vunpack.c.l.b16 %v3028
      %v3536 = vunpack.c.h.b16 %v3028
      %v3537 = vunpack.c.l.b16 %v3029
      %v3538 = vunpack.c.h.b16 %v3029
      %v3539 = vunpack.c.l.b16 %v3030
      %v3540 = vunpack.c.h.b16 %v3030
      %v3541 = vunpack.c.l.b16 %v3031
      %v3542 = vunpack.c.h.b16 %v3031
      %v3543 = vunpack.c.l.b16 %v3032
      %v3544 = vunpack.c.h.b16 %v3032
      %v3545 = vunpack.c.l.b16 %v3033
      %v3546 = vunpack.c.h.b16 %v3033
      %v3547 = vunpack.c.l.b16 %v3034
      %v3548 = vunpack.c.h.b16 %v3034
      %v3549 = vunpack.c.l.b16 %v3035
      %v3550 = vunpack.c.h.b16 %v3035
      %v3551 = vunpack.c.l.b16 %v3036
      %v3552 = vunpack.c.h.b16 %v3036
      %v3553 = vunpack.c.l.b16 %v3037
      %v3554 = vunpack.c.h.b16 %v3037
      %v3555 = vunpack.c.l.b16 %v3038
      %v3556 = vunpack.c.h.b16 %v3038
      %v3557 = vunpack.c.l.b16 %v3039
      %v3558 = vunpack.c.h.b16 %v3039
      %v3559 = vunpack.c.l.b16 %v3040
      %v3560 = vunpack.c.h.b16 %v3040
      %v3561 = vunpack.c.l.b16 %v3041
      %v3562 = vunpack.c.h.b16 %v3041
      %v3563 = vunpack.c.l.b16 %v3042
      %v3564 = vunpack.c.h.b16 %v3042
      %v3565 = vunpack.c.l.b16 %v3043
      %v3566 = vunpack.c.h.b16 %v3043
      %v3567 = vunpack.c.l.b16 %v3044
      %v3568 = vunpack.c.h.b16 %v3044
      %v3569 = vunpack.c.l.b16 %v3045
      %v3570 = vunpack.c.h.b16 %v3045
      %v3571 = vunpack.c.l.b16 %v3046
      %v3572 = vunpack.c.h.b16 %v3046
      %v3573 = vunpack.c.l.b16 %v3047
      %v3574 = vunpack.c.h.b16 %v3047
      %v3575 = vunpack.c.l.b16 %v3048
      %v3576 = vunpack.c.h.b16 %v3048
      %v3577 = vunpack.c.l.b16 %v3049
      %v3578 = vunpack.c.h.b16 %v3049
      %v3579 = vunpack.c.l.b16 %v3050
      %v3580 = vunpack.c.h.b16 %v3050
      %v3581 = vunpack.c.l.b16 %v3051
      %v3582 = vunpack.c.h.b16 %v3051
      %v3583 = vunpack.c.l.b16 %v3052
      %v3584 = vunpack.c.h.b16 %v3052
      %v3585 = vunpack.c.l.b16 %v3053
      %v3586 = vunpack.c.h.b16 %v3053
      %v3587 = vunpack.c.l.b16 %v3054
      %v3588 = vunpack.c.h.b16 %v3054
      %v3589 = vunpack.c.l.b16 %v3055
      %v3590 = vunpack.c.h.b16 %v3055
      %v3591 = vunpack.c.l.b16 %v3056
      %v3592 = vunpack.c.h.b16 %v3056
      %v3593 = vunpack.c.l.b16 %v3057
      %v3594 = vunpack.c.h.b16 %v3057
      %v3595 = vunpack.c.l.b16 %v3058
      %v3596 = vunpack.c.h.b16 %v3058
      %v3597 = vunpack.c.l.b16 %v3059
      %v3598 = vunpack.c.h.b16 %v3059
      %v3599 = vunpack.c.l.b16 %v3060
      %v3600 = vunpack.c.h.b16 %v3060
      %v3601 = vunpack.c.l.b16 %v3061
      %v3602 = vunpack.c.h.b16 %v3061
      %v3603 = vunpack.c.l.b16 %v3062
      %v3604 = vunpack.c.h.b16 %v3062
      %v3605 = vunpack.c.l.b16 %v3063
      %v3606 = vunpack.c.h.b16 %v3063
      %v3607 = vunpack.c.l.b16 %v3064
      %v3608 = vunpack.c.h.b16 %v3064
      %v3609 = vunpack.c.l.b16 %v3065
      %v3610 = vunpack.c.h.b16 %v3065
      %v3611 = vunpack.c.l.b16 %v3066
      %v3612 = vunpack.c.h.b16 %v3066
      %v3613 = vunpack.c.l.b16 %v3067
      %v3614 = vunpack.c.h.b16 %v3067
      %v3615 = vunpack.c.l.b16 %v3068
      %v3616 = vunpack.c.h.b16 %v3068
      %v3617 = vunpack.c.l.b16 %v3069
      %v3618 = vunpack.c.h.b16 %v3069
      %v3619 = vunpack.c.l.b16 %v3070
      %v3620 = vunpack.c.h.b16 %v3070
      %v3621 = vunpack.c.l.b16 %v3071
      %v3622 = vunpack.c.h.b16 %v3071
      %v3623 = vunpack.c.l.b16 %v3072
      %v3624 = vunpack.c.h.b16 %v3072
      %v3625 = vunpack.c.l.b16 %v3073
      %v3626 = vunpack.c.h.b16 %v3073
      %v3627 = vunpack.c.l.b16 %v3074
      %v3628 = vunpack.c.h.b16 %v3074
      %v3629 = vunpack.c.l.b16 %v3075
      %v3630 = vunpack.c.h.b16 %v3075
      %v3631 = vunpack.c.l.b16 %v3076
      %v3632 = vunpack.c.h.b16 %v3076
      %v3633 = vunpack.c.l.b16 %v3077
      %v3634 = vunpack.c.h.b16 %v3077
      %v3635 = vunpack.c.l.b16 %v3078
      %v3636 = vunpack.c.h.b16 %v3078
      %v3637 = vunpack.c.l.b16 %v3079
      %v3638 = vunpack.c.h.b16 %v3079
      %v3639 = vunpack.c.l.b16 %v3080
      %v3640 = vunpack.c.h.b16 %v3080
      %v3641 = vunpack.c.l.b16 %v3081
      %v3642 = vunpack.c.h.b16 %v3081
      %v3643 = vunpack.c.l.b16 %v3082
      %v3644 = vunpack.c.h.b16 %v3082
      %v3645 = vunpack.c.l.b16 %v3083
      %v3646 = vunpack.c.h.b16 %v3083
      %v3647 = vunpack.c.l.b16 %v3084
      %v3648 = vunpack.c.h.b16 %v3084
      %v3649 = vunpack.c.l.b16 %v3085
      %v3650 = vunpack.c.h.b16 %v3085
      %v3651 = vunpack.c.l.b16 %v3086
      %v3652 = vunpack.c.h.b16 %v3086
      %v3653 = vunpack.c.l.b16 %v3087
      %v3654 = vunpack.c.h.b16 %v3087
      %v3655 = vunpack.c.l.b16 %v3088
      %v3656 = vunpack.c.h.b16 %v3088
      %v3657 = vunpack.c.l.b16 %v3089
      %v3658 = vunpack.c.h.b16 %v3089
      %v3659 = vunpack.c.l.b16 %v3090
      %v3660 = vunpack.c.h.b16 %v3090
      %v3661 = vunpack.c.l.b16 %v3091
      %v3662 = vunpack.c.h.b16 %v3091
      %v3663 = vunpack.c.l.b16 %v3092
      %v3664 = vunpack.c.h.b16 %v3092
      %v3665 = vunpack.c.l.b16 %v3093
      %v3666 = vunpack.c.h.b16 %v3093
      %v3667 = vunpack.c.l.b16 %v3094
      %v3668 = vunpack.c.h.b16 %v3094
      %v3669 = vunpack.c.l.b16 %v3095
      %v3670 = vunpack.c.h.b16 %v3095
      %v3671 = vunpack.c.l.b16 %v3096
      %v3672 = vunpack.c.h.b16 %v3096
      %v3673 = vunpack.c.l.b16 %v3097
      %v3674 = vunpack.c.h.b16 %v3097
      %v3675 = vunpack.c.l.b16 %v3098
      %v3676 = vunpack.c.h.b16 %v3098
      %v3677 = vunpack.c.l.b16 %v3099
      %v3678 = vunpack.c.h.b16 %v3099
      %v3679 = vunpack.c.l.b16 %v3100
      %v3680 = vunpack.c.h.b16 %v3100
      %v3681 = vunpack.c.l.b16 %v3101
      %v3682 = vunpack.c.h.b16 %v3101
      %v3683 = vunpack.c.l.b16 %v3102
      %v3684 = vunpack.c.h.b16 %v3102
      %v3685 = vunpack.c.l.b16 %v3103
      %v3686 = vunpack.c.h.b16 %v3103
      %v3687 = vunpack.c.l.b16 %v3104
      %v3688 = vunpack.c.h.b16 %v3104
      %v3689 = vunpack.c.l.b16 %v3105
      %v3690 = vunpack.c.h.b16 %v3105
      %v3691 = vunpack.c.l.b16 %v3106
      %v3692 = vunpack.c.h.b16 %v3106
      %v3693 = vunpack.c.l.b16 %v3107
      %v3694 = vunpack.c.h.b16 %v3107
      %v3695 = vunpack.c.l.b16 %v3108
      %v3696 = vunpack.c.h.b16 %v3108
      %v3697 = vunpack.c.l.b16 %v3109
      %v3698 = vunpack.c.h.b16 %v3109
      %v3699 = vunpack.c.l.b16 %v3110
      %v3700 = vunpack.c.h.b16 %v3110
      %v3701 = vunpack.c.l.b16 %v3111
      %v3702 = vunpack.c.h.b16 %v3111
      %v3703 = vunpack.c.l.b16 %v3112
      %v3704 = vunpack.c.h.b16 %v3112
      %v3705 = vpack.c.b16 %v3451, %v3449
      %v3706 = vpack.c.b16 %v3452, %v3450
      %v3707 = vpack.c.b16 %v3455, %v3453
      %v3708 = vpack.c.b16 %v3456, %v3454
      %v3709 = vpack.c.b16 %v3459, %v3457
      %v3710 = vpack.c.b16 %v3460, %v3458
      %v3711 = vpack.c.b16 %v3463, %v3461
      %v3712 = vpack.c.b16 %v3464, %v3462
      %v3713 = vpack.c.b16 %v3467, %v3465
      %v3714 = vpack.c.b16 %v3468, %v3466
      %v3715 = vpack.c.b16 %v3471, %v3469
      %v3716 = vpack.c.b16 %v3472, %v3470
      %v3717 = vpack.c.b16 %v3475, %v3473
      %v3718 = vpack.c.b16 %v3476, %v3474
      %v3719 = vpack.c.b16 %v3479, %v3477
      %v3720 = vpack.c.b16 %v3480, %v3478
      %v3721 = vpack.c.b16 %v3483, %v3481
      %v3722 = vpack.c.b16 %v3484, %v3482
      %v3723 = vpack.c.b16 %v3487, %v3485
      %v3724 = vpack.c.b16 %v3488, %v3486
      %v3725 = vpack.c.b16 %v3491, %v3489
      %v3726 = vpack.c.b16 %v3492, %v3490
      %v3727 = vpack.c.b16 %v3495, %v3493
      %v3728 = vpack.c.b16 %v3496, %v3494
      %v3729 = vpack.c.b16 %v3499, %v3497
      %v3730 = vpack.c.b16 %v3500, %v3498
      %v3731 = vpack.c.b16 %v3503, %v3501
      %v3732 = vpack.c.b16 %v3504, %v3502
      %v3733 = vpack.c.b16 %v3507, %v3505
      %v3734 = vpack.c.b16 %v3508, %v3506
      %v3735 = vpack.c.b16 %v3511, %v3509
      %v3736 = vpack.c.b16 %v3512, %v3510
      %v3737 = vpack.c.b16 %v3515, %v3513
      %v3738 = vpack.c.b16 %v3516, %v3514
      %v3739 = vpack.c.b16 %v3519, %v3517
      %v3740 = vpack.c.b16 %v3520, %v3518
      %v3741 = vpack.c.b16 %v3523, %v3521
      %v3742 = vpack.c.b16 %v3524, %v3522
      %v3743 = vpack.c.b16 %v3527, %v3525
      %v3744 = vpack.c.b16 %v3528, %v3526
      %v3745 = vpack.c.b16 %v3531, %v3529
      %v3746 = vpack.c.b16 %v3532, %v3530
      %v3747 = vpack.c.b16 %v3535, %v3533
      %v3748 = vpack.c.b16 %v3536, %v3534
      %v3749 = vpack.c.b16 %v3539, %v3537
      %v3750 = vpack.c.b16 %v3540, %v3538
      %v3751 = vpack.c.b16 %v3543, %v3541
      %v3752 = vpack.c.b16 %v3544, %v3542
      %v3753 = vpack.c.b16 %v3547, %v3545
      %v3754 = vpack.c.b16 %v3548, %v3546
      %v3755 = vpack.c.b16 %v3551, %v3549
      %v3756 = vpack.c.b16 %v3552, %v3550
      %v3757 = vpack.c.b16 %v3555, %v3553
      %v3758 = vpack.c.b16 %v3556, %v3554
      %v3759 = vpack.c.b16 %v3559, %v3557
      %v3760 = vpack.c.b16 %v3560, %v3558
      %v3761 = vpack.c.b16 %v3563, %v3561
      %v3762 = vpack.c.b16 %v3564, %v3562
      %v3763 = vpack.c.b16 %v3567, %v3565
      %v3764 = vpack.c.b16 %v3568, %v3566
      %v3765 = vpack.c.b16 %v3571, %v3569
      %v3766 = vpack.c.b16 %v3572, %v3570
      %v3767 = vpack.c.b16 %v3575, %v3573
      %v3768 = vpack.c.b16 %v3576, %v3574
      %v3769 = vpack.c.b16 %v3579, %v3577
      %v3770 = vpack.c.b16 %v3580, %v3578
      %v3771 = vpack.c.b16 %v3583, %v3581
      %v3772 = vpack.c.b16 %v3584, %v3582
      %v3773 = vpack.c.b16 %v3587, %v3585
      %v3774 = vpack.c.b16 %v3588, %v3586
      %v3775 = vpack.c.b16 %v3591, %v3589
      %v3776 = vpack.c.b16 %v3592, %v3590
      %v3777 = vpack.c.b16 %v3595, %v3593
      %v3778 = vpack.c.b16 %v3596, %v3594
      %v3779 = vpack.c.b16 %v3599, %v3597
      %v3780 = vpack.c.b16 %v3600, %v3598
      %v3781 = vpack.c.b16 %v3603, %v3601
      %v3782 = vpack.c.b16 %v3604, %v3602
      %v3783 = vpack.c.b16 %v3607, %v3605
      %v3784 = vpack.c.b16 %v3608, %v3606
      %v3785 = vpack.c.b16 %v3611, %v3609
      %v3786 = vpack.c.b16 %v3612, %v3610
      %v3787 = vpack.c.b16 %v3615, %v3613
      %v3788 = vpack.c.b16 %v3616, %v3614
      %v3789 = vpack.c.b16 %v3619, %v3617
      %v3790 = vpack.c.b16 %v3620, %v3618
      %v3791 = vpack.c.b16 %v3623, %v3621
      %v3792 = vpack.c.b16 %v3624, %v3622
      %v3793 = vpack.c.b16 %v3627, %v3625
      %v3794 = vpack.c.b16 %v3628, %v3626
      %v3795 = vpack.c.b16 %v3631, %v3629
      %v3796 = vpack.c.b16 %v3632, %v3630
      %v3797 = vpack.c.b16 %v3635, %v3633
      %v3798 = vpack.c.b16 %v3636, %v3634
      %v3799 = vpack.c.b16 %v3639, %v3637
      %v3800 = vpack.c.b16 %v3640, %v3638
      %v3801 = vpack.c.b16 %v3643, %v3641
      %v3802 = vpack.c.b16 %v3644, %v3642
      %v3803 = vpack.c.b16 %v3647, %v3645
      %v3804 = vpack.c.b16 %v3648, %v3646
      %v3805 = vpack.c.b16 %v3651, %v3649
      %v3806 = vpack.c.b16 %v3652, %v3650
      %v3807 = vpack.c.b16 %v3655, %v3653
      %v3808 = vpack.c.b16 %v3656, %v3654
      %v3809 = vpack.c.b16 %v3659, %v3657
      %v3810 = vpack.c.b16 %v3660, %v3658
      %v3811 = vpack.c.b16 %v3663, %v3661
      %v3812 = vpack.c.b16 %v3664, %v3662
      %v3813 = vpack.c.b16 %v3667, %v3665
      %v3814 = vpack.c.b16 %v3668, %v3666
      %v3815 = vpack.c.b16 %v3671, %v3669
      %v3816 = vpack.c.b16 %v3672, %v3670
      %v3817 = vpack.c.b16 %v3675, %v3673
      %v3818 = vpack.c.b16 %v3676, %v3674
      %v3819 = vpack.c.b16 %v3679, %v3677
      %v3820 = vpack.c.b16 %v3680, %v3678
      %v3821 = vpack.c.b16 %v3683, %v3681
      %v3822 = vpack.c.b16 %v3684, %v3682
      %v3823 = vpack.c.b16 %v3687, %v3685
      %v3824 = vpack.c.b16 %v3688, %v3686
      %v3825 = vpack.c.b16 %v3691, %v3689
      %v3826 = vpack.c.b16 %v3692, %v3690
      %v3827 = vpack.c.b16 %v3695, %v3693
      %v3828 = vpack.c.b16 %v3696, %v3694
      %v3829 = vpack.c.b16 %v3699, %v3697
      %v3830 = vpack.c.b16 %v3700, %v3698
      %v3831 = vpack.c.b16 %v3703, %v3701
      %v3832 = vpack.c.b16 %v3704, %v3702
      %3961 = vmatprep.subr.bf16.mxu0 0
      %3962 = vmatpush1.bf16.msra.mxu0 %v3113
      %3963 = vmatprep.subr.bf16.mxu0 0
      %3964 = vmatpush1.bf16.msra.mxu0 %v3114
      %3965 = vmatprep.subr.bf16.mxu0 0
      %3966 = vmatpush1.bf16.msra.mxu0 %v3115
      %3967 = vmatprep.subr.bf16.mxu0 0
      %3968 = vmatpush1.bf16.msra.mxu0 %v3116
      %3969 = vmatprep.subr.bf16.mxu0 0
      %3970 = vmatpush1.bf16.msra.mxu0 %v3117
      %3971 = vmatprep.subr.bf16.mxu0 0
      %3972 = vmatpush1.bf16.msra.mxu0 %v3118
      %3973 = vmatprep.subr.bf16.mxu0 0
      %3974 = vmatpush1.bf16.msra.mxu0 %v3119
      %3975 = vmatprep.subr.bf16.mxu0 0
      %3976 = vmatpush1.bf16.msra.mxu0 %v3120
      %3977 = vmatprep.subr.bf16.mxu0 0
      %3978 = vmatpush1.bf16.msra.mxu0 %v3121
      %3979 = vmatprep.subr.bf16.mxu0 0
      %3980 = vmatpush1.bf16.msra.mxu0 %v3122
      %3981 = vmatprep.subr.bf16.mxu0 0
      %3982 = vmatpush1.bf16.msra.mxu0 %v3123
      %3983 = vmatprep.subr.bf16.mxu0 0
      %3984 = vmatpush1.bf16.msra.mxu0 %v3124
      %3985 = vmatprep.subr.bf16.mxu0 0
      %3986 = vmatpush1.bf16.msra.mxu0 %v3125
      %3987 = vmatprep.subr.bf16.mxu0 0
      %3988 = vmatpush1.bf16.msra.mxu0 %v3126
      %3989 = vmatprep.subr.bf16.mxu0 0
      %3990 = vmatpush1.bf16.msra.mxu0 %v3127
      %3991 = vmatprep.subr.bf16.mxu0 0
      %3992 = vmatpush1.bf16.msra.mxu0 %v3128
      %3993 = vmatprep.mubr.bf16.mxu0 %v3706
      %3994 = vmatmul.mubr.bf16.gmra.mrb[0].mxu0 %v3705
      %v3995 = vpop.f32.mrb[0].mxu0
      %v3996 = vadd.f32 %v3193, %v3995
      %v3997 = vpop.f32.mrb[0].mxu0
      %v3998 = vpop.f32.mrb[0].mxu0
      %v3999 = vadd.f32 %v3194, %v3998
      %v4000 = vpop.f32.mrb[0].mxu0
      %4001 = vmatprep.mubr.bf16.mxu0 %v3708
      %4002 = vmatmul.mubr.bf16.gmra.mrb[0].mxu0 %v3707
      %v4003 = vpop.f32.mrb[0].mxu0
      %v4004 = vadd.f32 %v3195, %v4003
      %v4005 = vpop.f32.mrb[0].mxu0
      %v4006 = vpop.f32.mrb[0].mxu0
      %v4007 = vadd.f32 %v3196, %v4006
      %v4008 = vpop.f32.mrb[0].mxu0
      %4009 = vmatprep.mubr.bf16.mxu0 %v3710
      %4010 = vmatmul.mubr.bf16.gmra.mrb[0].mxu0 %v3709
      %v4011 = vpop.f32.mrb[0].mxu0
      %v4012 = vadd.f32 %v3197, %v4011
      %v4013 = vpop.f32.mrb[0].mxu0
      %v4014 = vpop.f32.mrb[0].mxu0
      %v4015 = vadd.f32 %v3198, %v4014
      %v4016 = vpop.f32.mrb[0].mxu0
      %4017 = vmatprep.mubr.bf16.mxu0 %v3712
      %4018 = vmatmul.mubr.bf16.gmra.mrb[0].mxu0 %v3711
      %v4019 = vpop.f32.mrb[0].mxu0
      %v4020 = vadd.f32 %v3199, %v4019
      %v4021 = vpop.f32.mrb[0].mxu0
      %v4022 = vpop.f32.mrb[0].mxu0
      %v4023 = vadd.f32 %v3200, %v4022
      %v4024 = vpop.f32.mrb[0].mxu0
      %4025 = vmatprep.mubr.bf16.mxu0 %v3714
      %4026 = vmatmul.mubr.bf16.gmra.mrb[0].mxu0 %v3713
      %v4027 = vpop.f32.mrb[0].mxu0
      %v4028 = vadd.f32 %v3201, %v4027
      %v4029 = vpop.f32.mrb[0].mxu0
      %v4030 = vpop.f32.mrb[0].mxu0
      %v4031 = vadd.f32 %v3202, %v4030
      %v4032 = vpop.f32.mrb[0].mxu0
      %4033 = vmatprep.mubr.bf16.mxu0 %v3716
      %4034 = vmatmul.mubr.bf16.gmra.mrb[0].mxu0 %v3715
      %v4035 = vpop.f32.mrb[0].mxu0
      %v4036 = vadd.f32 %v3203, %v4035
      %v4037 = vpop.f32.mrb[0].mxu0
      %v4038 = vpop.f32.mrb[0].mxu0
      %v4039 = vadd.f32 %v3204, %v4038
      %v4040 = vpop.f32.mrb[0].mxu0
      %4041 = vmatprep.mubr.bf16.mxu0 %v3718
      %4042 = vmatmul.mubr.bf16.gmra.mrb[0].mxu0 %v3717
      %v4043 = vpop.f32.mrb[0].mxu0
      %v4044 = vadd.f32 %v3205, %v4043
      %v4045 = vpop.f32.mrb[0].mxu0
      %v4046 = vpop.f32.mrb[0].mxu0
      %v4047 = vadd.f32 %v3206, %v4046
      %v4048 = vpop.f32.mrb[0].mxu0
      %4049 = vmatprep.mubr.bf16.mxu0 %v3720
      %4050 = vmatmul.mubr.bf16.gmra.mrb[0].mxu0 %v3719
      %v4051 = vpop.f32.mrb[0].mxu0
      %v4052 = vadd.f32 %v3207, %v4051
      %v4053 = vpop.f32.mrb[0].mxu0
      %v4054 = vpop.f32.mrb[0].mxu0
      %v4055 = vadd.f32 %v3208, %v4054
      %v4056 = vpop.f32.mrb[0].mxu0
      %4057 = vmatprep.mubr.bf16.mxu0 %v3722
      %4058 = vmatmul.mubr.bf16.gmra.mrb[0].mxu0 %v3721
      %v4059 = vpop.f32.mrb[0].mxu0
      %v4060 = vadd.f32 %v3209, %v4059
      %v4061 = vpop.f32.mrb[0].mxu0
      %v4062 = vpop.f32.mrb[0].mxu0
      %v4063 = vadd.f32 %v3210, %v4062
      %v4064 = vpop.f32.mrb[0].mxu0
      %4065 = vmatprep.mubr.bf16.mxu0 %v3724
      %4066 = vmatmul.mubr.bf16.gmra.mrb[0].mxu0 %v3723
      %v4067 = vpop.f32.mrb[0].mxu0
      %v4068 = vadd.f32 %v3211, %v4067
      %v4069 = vpop.f32.mrb[0].mxu0
      %v4070 = vpop.f32.mrb[0].mxu0
      %v4071 = vadd.f32 %v3212, %v4070
      %v4072 = vpop.f32.mrb[0].mxu0
      %4073 = vmatprep.mubr.bf16.mxu0 %v3726
      %4074 = vmatmul.mubr.bf16.gmra.mrb[0].mxu0 %v3725
      %v4075 = vpop.f32.mrb[0].mxu0
      %v4076 = vadd.f32 %v3213, %v4075
      %v4077 = vpop.f32.mrb[0].mxu0
      %v4078 = vpop.f32.mrb[0].mxu0
      %v4079 = vadd.f32 %v3214, %v4078
      %v4080 = vpop.f32.mrb[0].mxu0
      %4081 = vmatprep.mubr.bf16.mxu0 %v3728
      %4082 = vmatmul.mubr.bf16.gmra.mrb[0].mxu0 %v3727
      %v4083 = vpop.f32.mrb[0].mxu0
      %v4084 = vadd.f32 %v3215, %v4083
      %v4085 = vpop.f32.mrb[0].mxu0
      %v4086 = vpop.f32.mrb[0].mxu0
      %v4087 = vadd.f32 %v3216, %v4086
      %v4088 = vpop.f32.mrb[0].mxu0
      %4089 = vmatprep.mubr.bf16.mxu0 %v3730
      %4090 = vmatmul.mubr.bf16.gmra.mrb[0].mxu0 %v3729
      %v4091 = vpop.f32.mrb[0].mxu0
      %v4092 = vadd.f32 %v3217, %v4091
      %v4093 = vpop.f32.mrb[0].mxu0
      %v4094 = vpop.f32.mrb[0].mxu0
      %v4095 = vadd.f32 %v3218, %v4094
      %v4096 = vpop.f32.mrb[0].mxu0
      %4097 = vmatprep.mubr.bf16.mxu0 %v3732
      %4098 = vmatmul.mubr.bf16.gmra.mrb[0].mxu0 %v3731
      %v4099 = vpop.f32.mrb[0].mxu0
      %v4100 = vadd.f32 %v3219, %v4099
      %v4101 = vpop.f32.mrb[0].mxu0
      %v4102 = vpop.f32.mrb[0].mxu0
      %v4103 = vadd.f32 %v3220, %v4102
      %v4104 = vpop.f32.mrb[0].mxu0
      %4105 = vmatprep.mubr.bf16.mxu0 %v3734
      %4106 = vmatmul.mubr.bf16.gmra.mrb[0].mxu0 %v3733
      %v4107 = vpop.f32.mrb[0].mxu0
      %v4108 = vadd.f32 %v3221, %v4107
      %v4109 = vpop.f32.mrb[0].mxu0
      %v4110 = vpop.f32.mrb[0].mxu0
      %v4111 = vadd.f32 %v3222, %v4110
      %v4112 = vpop.f32.mrb[0].mxu0
      %4113 = vmatprep.mubr.bf16.mxu0 %v3736
      %4114 = vmatmul.mubr.bf16.gmra.mrb[0].mxu0 %v3735
      %v4115 = vpop.f32.mrb[0].mxu0
      %v4116 = vadd.f32 %v3223, %v4115
      %v4117 = vpop.f32.mrb[0].mxu0
      %v4118 = vpop.f32.mrb[0].mxu0
      %v4119 = vadd.f32 %v3224, %v4118
      %v4120 = vpop.f32.mrb[0].mxu0
      %4121 = vmatprep.mubr.bf16.mxu0 %v3738
      %4122 = vmatmul.mubr.bf16.gmra.mrb[0].mxu0 %v3737
      %v4123 = vpop.f32.mrb[0].mxu0
      %v4124 = vadd.f32 %v3225, %v4123
      %v4125 = vpop.f32.mrb[0].mxu0
      %v4126 = vpop.f32.mrb[0].mxu0
      %v4127 = vadd.f32 %v3226, %v4126
      %v4128 = vpop.f32.mrb[0].mxu0
      %4129 = vmatprep.mubr.bf16.mxu0 %v3740
      %4130 = vmatmul.mubr.bf16.gmra.mrb[0].mxu0 %v3739
      %v4131 = vpop.f32.mrb[0].mxu0
      %v4132 = vadd.f32 %v3227, %v4131
      %v4133 = vpop.f32.mrb[0].mxu0
      %v4134 = vpop.f32.mrb[0].mxu0
      %v4135 = vadd.f32 %v3228, %v4134
      %v4136 = vpop.f32.mrb[0].mxu0
      %4137 = vmatprep.mubr.bf16.mxu0 %v3742
      %4138 = vmatmul.mubr.bf16.gmra.mrb[0].mxu0 %v3741
      %v4139 = vpop.f32.mrb[0].mxu0
      %v4140 = vadd.f32 %v3229, %v4139
      %v4141 = vpop.f32.mrb[0].mxu0
      %v4142 = vpop.f32.mrb[0].mxu0
      %v4143 = vadd.f32 %v3230, %v4142
      %v4144 = vpop.f32.mrb[0].mxu0
      %4145 = vmatprep.mubr.bf16.mxu0 %v3744
      %4146 = vmatmul.mubr.bf16.gmra.mrb[0].mxu0 %v3743
      %v4147 = vpop.f32.mrb[0].mxu0
      %v4148 = vadd.f32 %v3231, %v4147
      %v4149 = vpop.f32.mrb[0].mxu0
      %v4150 = vpop.f32.mrb[0].mxu0
      %v4151 = vadd.f32 %v3232, %v4150
      %v4152 = vpop.f32.mrb[0].mxu0
      %4153 = vmatprep.mubr.bf16.mxu0 %v3746
      %4154 = vmatmul.mubr.bf16.gmra.mrb[0].mxu0 %v3745
      %v4155 = vpop.f32.mrb[0].mxu0
      %v4156 = vadd.f32 %v3233, %v4155
      %v4157 = vpop.f32.mrb[0].mxu0
      %v4158 = vpop.f32.mrb[0].mxu0
      %v4159 = vadd.f32 %v3234, %v4158
      %v4160 = vpop.f32.mrb[0].mxu0
      %4161 = vmatprep.mubr.bf16.mxu0 %v3748
      %4162 = vmatmul.mubr.bf16.gmra.mrb[0].mxu0 %v3747
      %v4163 = vpop.f32.mrb[0].mxu0
      %v4164 = vadd.f32 %v3235, %v4163
      %v4165 = vpop.f32.mrb[0].mxu0
      %v4166 = vpop.f32.mrb[0].mxu0
      %v4167 = vadd.f32 %v3236, %v4166
      %v4168 = vpop.f32.mrb[0].mxu0
      %4169 = vmatprep.mubr.bf16.mxu0 %v3750
      %4170 = vmatmul.mubr.bf16.gmra.mrb[0].mxu0 %v3749
      %v4171 = vpop.f32.mrb[0].mxu0
      %v4172 = vadd.f32 %v3237, %v4171
      %v4173 = vpop.f32.mrb[0].mxu0
      %v4174 = vpop.f32.mrb[0].mxu0
      %v4175 = vadd.f32 %v3238, %v4174
      %v4176 = vpop.f32.mrb[0].mxu0
      %4177 = vmatprep.mubr.bf16.mxu0 %v3752
      %4178 = vmatmul.mubr.bf16.gmra.mrb[0].mxu0 %v3751
      %v4179 = vpop.f32.mrb[0].mxu0
      %v4180 = vadd.f32 %v3239, %v4179
      %v4181 = vpop.f32.mrb[0].mxu0
      %v4182 = vpop.f32.mrb[0].mxu0
      %v4183 = vadd.f32 %v3240, %v4182
      %v4184 = vpop.f32.mrb[0].mxu0
      %4185 = vmatprep.mubr.bf16.mxu0 %v3754
      %4186 = vmatmul.mubr.bf16.gmra.mrb[0].mxu0 %v3753
      %v4187 = vpop.f32.mrb[0].mxu0
      %v4188 = vadd.f32 %v3241, %v4187
      %v4189 = vpop.f32.mrb[0].mxu0
      %v4190 = vpop.f32.mrb[0].mxu0
      %v4191 = vadd.f32 %v3242, %v4190
      %v4192 = vpop.f32.mrb[0].mxu0
      %4193 = vmatprep.mubr.bf16.mxu0 %v3756
      %4194 = vmatmul.mubr.bf16.gmra.mrb[0].mxu0 %v3755
      %v4195 = vpop.f32.mrb[0].mxu0
      %v4196 = vadd.f32 %v3243, %v4195
      %v4197 = vpop.f32.mrb[0].mxu0
      %v4198 = vpop.f32.mrb[0].mxu0
      %v4199 = vadd.f32 %v3244, %v4198
      %v4200 = vpop.f32.mrb[0].mxu0
      %4201 = vmatprep.mubr.bf16.mxu0 %v3758
      %4202 = vmatmul.mubr.bf16.gmra.mrb[0].mxu0 %v3757
      %v4203 = vpop.f32.mrb[0].mxu0
      %v4204 = vadd.f32 %v3245, %v4203
      %v4205 = vpop.f32.mrb[0].mxu0
      %v4206 = vpop.f32.mrb[0].mxu0
      %v4207 = vadd.f32 %v3246, %v4206
      %v4208 = vpop.f32.mrb[0].mxu0
      %4209 = vmatprep.mubr.bf16.mxu0 %v3760
      %4210 = vmatmul.mubr.bf16.gmra.mrb[0].mxu0 %v3759
      %v4211 = vpop.f32.mrb[0].mxu0
      %v4212 = vadd.f32 %v3247, %v4211
      %v4213 = vpop.f32.mrb[0].mxu0
      %v4214 = vpop.f32.mrb[0].mxu0
      %v4215 = vadd.f32 %v3248, %v4214
      %v4216 = vpop.f32.mrb[0].mxu0
      %4217 = vmatprep.mubr.bf16.mxu0 %v3762
      %4218 = vmatmul.mubr.bf16.gmra.mrb[0].mxu0 %v3761
      %v4219 = vpop.f32.mrb[0].mxu0
      %v4220 = vadd.f32 %v3249, %v4219
      %v4221 = vpop.f32.mrb[0].mxu0
      %v4222 = vpop.f32.mrb[0].mxu0
      %v4223 = vadd.f32 %v3250, %v4222
      %v4224 = vpop.f32.mrb[0].mxu0
      %4225 = vmatprep.mubr.bf16.mxu0 %v3764
      %4226 = vmatmul.mubr.bf16.gmra.mrb[0].mxu0 %v3763
      %v4227 = vpop.f32.mrb[0].mxu0
      %v4228 = vadd.f32 %v3251, %v4227
      %v4229 = vpop.f32.mrb[0].mxu0
      %v4230 = vpop.f32.mrb[0].mxu0
      %v4231 = vadd.f32 %v3252, %v4230
      %v4232 = vpop.f32.mrb[0].mxu0
      %4233 = vmatprep.mubr.bf16.mxu0 %v3766
      %4234 = vmatmul.mubr.bf16.gmra.mrb[0].mxu0 %v3765
      %v4235 = vpop.f32.mrb[0].mxu0
      %v4236 = vadd.f32 %v3253, %v4235
      %v4237 = vpop.f32.mrb[0].mxu0
      %v4238 = vpop.f32.mrb[0].mxu0
      %v4239 = vadd.f32 %v3254, %v4238
      %v4240 = vpop.f32.mrb[0].mxu0
      %4241 = vmatprep.mubr.bf16.mxu0 %v3768
      %4242 = vmatmul.mubr.bf16.gmra.mrb[0].mxu0 %v3767
      %v4243 = vpop.f32.mrb[0].mxu0
      %v4244 = vadd.f32 %v3255, %v4243
      %v4245 = vpop.f32.mrb[0].mxu0
      %v4246 = vpop.f32.mrb[0].mxu0
      %v4247 = vadd.f32 %v3256, %v4246
      %v4248 = vpop.f32.mrb[0].mxu0
      %4249 = vmatprep.mubr.bf16.mxu0 %v3770
      %4250 = vmatmul.mubr.bf16.gmra.mrb[0].mxu0 %v3769
      %v4251 = vpop.f32.mrb[0].mxu0
      %v4252 = vadd.f32 %v3257, %v4251
      %v4253 = vpop.f32.mrb[0].mxu0
      %v4254 = vpop.f32.mrb[0].mxu0
      %v4255 = vadd.f32 %v3258, %v4254
      %v4256 = vpop.f32.mrb[0].mxu0
      %4257 = vmatprep.mubr.bf16.mxu0 %v3772
      %4258 = vmatmul.mubr.bf16.gmra.mrb[0].mxu0 %v3771
      %v4259 = vpop.f32.mrb[0].mxu0
      %v4260 = vadd.f32 %v3259, %v4259
      %v4261 = vpop.f32.mrb[0].mxu0
      %v4262 = vpop.f32.mrb[0].mxu0
      %v4263 = vadd.f32 %v3260, %v4262
      %v4264 = vpop.f32.mrb[0].mxu0
      %4265 = vmatprep.mubr.bf16.mxu0 %v3774
      %4266 = vmatmul.mubr.bf16.gmra.mrb[0].mxu0 %v3773
      %v4267 = vpop.f32.mrb[0].mxu0
      %v4268 = vadd.f32 %v3261, %v4267
      %v4269 = vpop.f32.mrb[0].mxu0
      %v4270 = vpop.f32.mrb[0].mxu0
      %v4271 = vadd.f32 %v3262, %v4270
      %v4272 = vpop.f32.mrb[0].mxu0
      %4273 = vmatprep.mubr.bf16.mxu0 %v3776
      %4274 = vmatmul.mubr.bf16.gmra.mrb[0].mxu0 %v3775
      %v4275 = vpop.f32.mrb[0].mxu0
      %v4276 = vadd.f32 %v3263, %v4275
      %v4277 = vpop.f32.mrb[0].mxu0
      %v4278 = vpop.f32.mrb[0].mxu0
      %v4279 = vadd.f32 %v3264, %v4278
      %v4280 = vpop.f32.mrb[0].mxu0
      %4281 = vmatprep.mubr.bf16.mxu0 %v3778
      %4282 = vmatmul.mubr.bf16.gmra.mrb[0].mxu0 %v3777
      %v4283 = vpop.f32.mrb[0].mxu0
      %v4284 = vadd.f32 %v3265, %v4283
      %v4285 = vpop.f32.mrb[0].mxu0
      %v4286 = vpop.f32.mrb[0].mxu0
      %v4287 = vadd.f32 %v3266, %v4286
      %v4288 = vpop.f32.mrb[0].mxu0
      %4289 = vmatprep.mubr.bf16.mxu0 %v3780
      %4290 = vmatmul.mubr.bf16.gmra.mrb[0].mxu0 %v3779
      %v4291 = vpop.f32.mrb[0].mxu0
      %v4292 = vadd.f32 %v3267, %v4291
      %v4293 = vpop.f32.mrb[0].mxu0
      %v4294 = vpop.f32.mrb[0].mxu0
      %v4295 = vadd.f32 %v3268, %v4294
      %v4296 = vpop.f32.mrb[0].mxu0
      %4297 = vmatprep.mubr.bf16.mxu0 %v3782
      %4298 = vmatmul.mubr.bf16.gmra.mrb[0].mxu0 %v3781
      %v4299 = vpop.f32.mrb[0].mxu0
      %v4300 = vadd.f32 %v3269, %v4299
      %v4301 = vpop.f32.mrb[0].mxu0
      %v4302 = vpop.f32.mrb[0].mxu0
      %v4303 = vadd.f32 %v3270, %v4302
      %v4304 = vpop.f32.mrb[0].mxu0
      %4305 = vmatprep.mubr.bf16.mxu0 %v3784
      %4306 = vmatmul.mubr.bf16.gmra.mrb[0].mxu0 %v3783
      %v4307 = vpop.f32.mrb[0].mxu0
      %v4308 = vadd.f32 %v3271, %v4307
      %v4309 = vpop.f32.mrb[0].mxu0
      %v4310 = vpop.f32.mrb[0].mxu0
      %v4311 = vadd.f32 %v3272, %v4310
      %v4312 = vpop.f32.mrb[0].mxu0
      %4313 = vmatprep.mubr.bf16.mxu0 %v3786
      %4314 = vmatmul.mubr.bf16.gmra.mrb[0].mxu0 %v3785
      %v4315 = vpop.f32.mrb[0].mxu0
      %v4316 = vadd.f32 %v3273, %v4315
      %v4317 = vpop.f32.mrb[0].mxu0
      %v4318 = vpop.f32.mrb[0].mxu0
      %v4319 = vadd.f32 %v3274, %v4318
      %v4320 = vpop.f32.mrb[0].mxu0
      %4321 = vmatprep.mubr.bf16.mxu0 %v3788
      %4322 = vmatmul.mubr.bf16.gmra.mrb[0].mxu0 %v3787
      %v4323 = vpop.f32.mrb[0].mxu0
      %v4324 = vadd.f32 %v3275, %v4323
      %v4325 = vpop.f32.mrb[0].mxu0
      %v4326 = vpop.f32.mrb[0].mxu0
      %v4327 = vadd.f32 %v3276, %v4326
      %v4328 = vpop.f32.mrb[0].mxu0
      %4329 = vmatprep.mubr.bf16.mxu0 %v3790
      %4330 = vmatmul.mubr.bf16.gmra.mrb[0].mxu0 %v3789
      %v4331 = vpop.f32.mrb[0].mxu0
      %v4332 = vadd.f32 %v3277, %v4331
      %v4333 = vpop.f32.mrb[0].mxu0
      %v4334 = vpop.f32.mrb[0].mxu0
      %v4335 = vadd.f32 %v3278, %v4334
      %v4336 = vpop.f32.mrb[0].mxu0
      %4337 = vmatprep.mubr.bf16.mxu0 %v3792
      %4338 = vmatmul.mubr.bf16.gmra.mrb[0].mxu0 %v3791
      %v4339 = vpop.f32.mrb[0].mxu0
      %v4340 = vadd.f32 %v3279, %v4339
      %v4341 = vpop.f32.mrb[0].mxu0
      %v4342 = vpop.f32.mrb[0].mxu0
      %v4343 = vadd.f32 %v3280, %v4342
      %v4344 = vpop.f32.mrb[0].mxu0
      %4345 = vmatprep.mubr.bf16.mxu0 %v3794
      %4346 = vmatmul.mubr.bf16.gmra.mrb[0].mxu0 %v3793
      %v4347 = vpop.f32.mrb[0].mxu0
      %v4348 = vadd.f32 %v3281, %v4347
      %v4349 = vpop.f32.mrb[0].mxu0
      %v4350 = vpop.f32.mrb[0].mxu0
      %v4351 = vadd.f32 %v3282, %v4350
      %v4352 = vpop.f32.mrb[0].mxu0
      %4353 = vmatprep.mubr.bf16.mxu0 %v3796
      %4354 = vmatmul.mubr.bf16.gmra.mrb[0].mxu0 %v3795
      %v4355 = vpop.f32.mrb[0].mxu0
      %v4356 = vadd.f32 %v3283, %v4355
      %v4357 = vpop.f32.mrb[0].mxu0
      %v4358 = vpop.f32.mrb[0].mxu0
      %v4359 = vadd.f32 %v3284, %v4358
      %v4360 = vpop.f32.mrb[0].mxu0
      %4361 = vmatprep.mubr.bf16.mxu0 %v3798
      %4362 = vmatmul.mubr.bf16.gmra.mrb[0].mxu0 %v3797
      %v4363 = vpop.f32.mrb[0].mxu0
      %v4364 = vadd.f32 %v3285, %v4363
      %v4365 = vpop.f32.mrb[0].mxu0
      %v4366 = vpop.f32.mrb[0].mxu0
      %v4367 = vadd.f32 %v3286, %v4366
      %v4368 = vpop.f32.mrb[0].mxu0
      %4369 = vmatprep.mubr.bf16.mxu0 %v3800
      %4370 = vmatmul.mubr.bf16.gmra.mrb[0].mxu0 %v3799
      %v4371 = vpop.f32.mrb[0].mxu0
      %v4372 = vadd.f32 %v3287, %v4371
      %v4373 = vpop.f32.mrb[0].mxu0
      %v4374 = vpop.f32.mrb[0].mxu0
      %v4375 = vadd.f32 %v3288, %v4374
      %v4376 = vpop.f32.mrb[0].mxu0
      %4377 = vmatprep.mubr.bf16.mxu0 %v3802
      %4378 = vmatmul.mubr.bf16.gmra.mrb[0].mxu0 %v3801
      %v4379 = vpop.f32.mrb[0].mxu0
      %v4380 = vadd.f32 %v3289, %v4379
      %v4381 = vpop.f32.mrb[0].mxu0
      %v4382 = vpop.f32.mrb[0].mxu0
      %v4383 = vadd.f32 %v3290, %v4382
      %v4384 = vpop.f32.mrb[0].mxu0
      %4385 = vmatprep.mubr.bf16.mxu0 %v3804
      %4386 = vmatmul.mubr.bf16.gmra.mrb[0].mxu0 %v3803
      %v4387 = vpop.f32.mrb[0].mxu0
      %v4388 = vadd.f32 %v3291, %v4387
      %v4389 = vpop.f32.mrb[0].mxu0
      %v4390 = vpop.f32.mrb[0].mxu0
      %v4391 = vadd.f32 %v3292, %v4390
      %v4392 = vpop.f32.mrb[0].mxu0
      %4393 = vmatprep.mubr.bf16.mxu0 %v3806
      %4394 = vmatmul.mubr.bf16.gmra.mrb[0].mxu0 %v3805
      %v4395 = vpop.f32.mrb[0].mxu0
      %v4396 = vadd.f32 %v3293, %v4395
      %v4397 = vpop.f32.mrb[0].mxu0
      %v4398 = vpop.f32.mrb[0].mxu0
      %v4399 = vadd.f32 %v3294, %v4398
      %v4400 = vpop.f32.mrb[0].mxu0
      %4401 = vmatprep.mubr.bf16.mxu0 %v3808
      %4402 = vmatmul.mubr.bf16.gmra.mrb[0].mxu0 %v3807
      %v4403 = vpop.f32.mrb[0].mxu0
      %v4404 = vadd.f32 %v3295, %v4403
      %v4405 = vpop.f32.mrb[0].mxu0
      %v4406 = vpop.f32.mrb[0].mxu0
      %v4407 = vadd.f32 %v3296, %v4406
      %v4408 = vpop.f32.mrb[0].mxu0
      %4409 = vmatprep.mubr.bf16.mxu0 %v3810
      %4410 = vmatmul.mubr.bf16.gmra.mrb[0].mxu0 %v3809
      %v4411 = vpop.f32.mrb[0].mxu0
      %v4412 = vadd.f32 %v3297, %v4411
      %v4413 = vpop.f32.mrb[0].mxu0
      %v4414 = vpop.f32.mrb[0].mxu0
      %v4415 = vadd.f32 %v3298, %v4414
      %v4416 = vpop.f32.mrb[0].mxu0
      %4417 = vmatprep.mubr.bf16.mxu0 %v3812
      %4418 = vmatmul.mubr.bf16.gmra.mrb[0].mxu0 %v3811
      %v4419 = vpop.f32.mrb[0].mxu0
      %v4420 = vadd.f32 %v3299, %v4419
      %v4421 = vpop.f32.mrb[0].mxu0
      %v4422 = vpop.f32.mrb[0].mxu0
      %v4423 = vadd.f32 %v3300, %v4422
      %v4424 = vpop.f32.mrb[0].mxu0
      %4425 = vmatprep.mubr.bf16.mxu0 %v3814
      %4426 = vmatmul.mubr.bf16.gmra.mrb[0].mxu0 %v3813
      %v4427 = vpop.f32.mrb[0].mxu0
      %v4428 = vadd.f32 %v3301, %v4427
      %v4429 = vpop.f32.mrb[0].mxu0
      %v4430 = vpop.f32.mrb[0].mxu0
      %v4431 = vadd.f32 %v3302, %v4430
      %v4432 = vpop.f32.mrb[0].mxu0
      %4433 = vmatprep.mubr.bf16.mxu0 %v3816
      %4434 = vmatmul.mubr.bf16.gmra.mrb[0].mxu0 %v3815
      %v4435 = vpop.f32.mrb[0].mxu0
      %v4436 = vadd.f32 %v3303, %v4435
      %v4437 = vpop.f32.mrb[0].mxu0
      %v4438 = vpop.f32.mrb[0].mxu0
      %v4439 = vadd.f32 %v3304, %v4438
      %v4440 = vpop.f32.mrb[0].mxu0
      %4441 = vmatprep.mubr.bf16.mxu0 %v3818
      %4442 = vmatmul.mubr.bf16.gmra.mrb[0].mxu0 %v3817
      %v4443 = vpop.f32.mrb[0].mxu0
      %v4444 = vadd.f32 %v3305, %v4443
      %v4445 = vpop.f32.mrb[0].mxu0
      %v4446 = vpop.f32.mrb[0].mxu0
      %v4447 = vadd.f32 %v3306, %v4446
      %v4448 = vpop.f32.mrb[0].mxu0
      %4449 = vmatprep.mubr.bf16.mxu0 %v3820
      %4450 = vmatmul.mubr.bf16.gmra.mrb[0].mxu0 %v3819
      %v4451 = vpop.f32.mrb[0].mxu0
      %v4452 = vadd.f32 %v3307, %v4451
      %v4453 = vpop.f32.mrb[0].mxu0
      %v4454 = vpop.f32.mrb[0].mxu0
      %v4455 = vadd.f32 %v3308, %v4454
      %v4456 = vpop.f32.mrb[0].mxu0
      %4457 = vmatprep.mubr.bf16.mxu0 %v3822
      %4458 = vmatmul.mubr.bf16.gmra.mrb[0].mxu0 %v3821
      %v4459 = vpop.f32.mrb[0].mxu0
      %v4460 = vadd.f32 %v3309, %v4459
      %v4461 = vpop.f32.mrb[0].mxu0
      %v4462 = vpop.f32.mrb[0].mxu0
      %v4463 = vadd.f32 %v3310, %v4462
      %v4464 = vpop.f32.mrb[0].mxu0
      %4465 = vmatprep.mubr.bf16.mxu0 %v3824
      %4466 = vmatmul.mubr.bf16.gmra.mrb[0].mxu0 %v3823
      %v4467 = vpop.f32.mrb[0].mxu0
      %v4468 = vadd.f32 %v3311, %v4467
      %v4469 = vpop.f32.mrb[0].mxu0
      %v4470 = vpop.f32.mrb[0].mxu0
      %v4471 = vadd.f32 %v3312, %v4470
      %v4472 = vpop.f32.mrb[0].mxu0
      %4473 = vmatprep.mubr.bf16.mxu0 %v3826
      %4474 = vmatmul.mubr.bf16.gmra.mrb[0].mxu0 %v3825
      %v4475 = vpop.f32.mrb[0].mxu0
      %v4476 = vadd.f32 %v3313, %v4475
      %v4477 = vpop.f32.mrb[0].mxu0
      %v4478 = vpop.f32.mrb[0].mxu0
      %v4479 = vadd.f32 %v3314, %v4478
      %v4480 = vpop.f32.mrb[0].mxu0
      %4481 = vmatprep.mubr.bf16.mxu0 %v3828
      %4482 = vmatmul.mubr.bf16.gmra.mrb[0].mxu0 %v3827
      %v4483 = vpop.f32.mrb[0].mxu0
      %v4484 = vadd.f32 %v3315, %v4483
      %v4485 = vpop.f32.mrb[0].mxu0
      %v4486 = vpop.f32.mrb[0].mxu0
      %v4487 = vadd.f32 %v3316, %v4486
      %v4488 = vpop.f32.mrb[0].mxu0
      %4489 = vmatprep.mubr.bf16.mxu0 %v3830
      %4490 = vmatmul.mubr.bf16.gmra.mrb[0].mxu0 %v3829
      %v4491 = vpop.f32.mrb[0].mxu0
      %v4492 = vadd.f32 %v3317, %v4491
      %v4493 = vpop.f32.mrb[0].mxu0
      %v4494 = vpop.f32.mrb[0].mxu0
      %v4495 = vadd.f32 %v3318, %v4494
      %v4496 = vpop.f32.mrb[0].mxu0
      %4497 = vmatprep.mubr.bf16.mxu0 %v3832
      %4498 = vmatmul.mubr.bf16.gmra.mrb[0].mxu0 %v3831
      %v4499 = vpop.f32.mrb[0].mxu0
      %v4500 = vadd.f32 %v3319, %v4499
      %v4501 = vpop.f32.mrb[0].mxu0
      %v4502 = vpop.f32.mrb[0].mxu0
      %v4503 = vadd.f32 %v3320, %v4502
      %v4504 = vpop.f32.mrb[0].mxu0
      %4505 = vdwg.mxu0
      %v4506 = vmax.f32 %v3996, 0.0
      %v4507 = vmax.f32 %v3999, 0.0
      %v4508 = vmax.f32 %v4004, 0.0
      %v4509 = vmax.f32 %v4007, 0.0
      %v4510 = vmax.f32 %v4012, 0.0
      %v4511 = vmax.f32 %v4015, 0.0
      %v4512 = vmax.f32 %v4020, 0.0
      %v4513 = vmax.f32 %v4023, 0.0
      %v4514 = vmax.f32 %v4028, 0.0
      %v4515 = vmax.f32 %v4031, 0.0
      %v4516 = vmax.f32 %v4036, 0.0
      %v4517 = vmax.f32 %v4039, 0.0
      %v4518 = vmax.f32 %v4044, 0.0
      %v4519 = vmax.f32 %v4047, 0.0
      %v4520 = vmax.f32 %v4052, 0.0
      %v4521 = vmax.f32 %v4055, 0.0
      %v4522 = vmax.f32 %v4060, 0.0
      %v4523 = vmax.f32 %v4063, 0.0
      %v4524 = vmax.f32 %v4068, 0.0
      %v4525 = vmax.f32 %v4071, 0.0
      %v4526 = vmax.f32 %v4076, 0.0
      %v4527 = vmax.f32 %v4079, 0.0
      %v4528 = vmax.f32 %v4084, 0.0
      %v4529 = vmax.f32 %v4087, 0.0
      %v4530 = vmax.f32 %v4092, 0.0
      %v4531 = vmax.f32 %v4095, 0.0
      %v4532 = vmax.f32 %v4100, 0.0
      %v4533 = vmax.f32 %v4103, 0.0
      %v4534 = vmax.f32 %v4108, 0.0
      %v4535 = vmax.f32 %v4111, 0.0
      %v4536 = vmax.f32 %v4116, 0.0
      %v4537 = vmax.f32 %v4119, 0.0
      %v4538 = vmax.f32 %v4124, 0.0
      %v4539 = vmax.f32 %v4127, 0.0
      %v4540 = vmax.f32 %v4132, 0.0
      %v4541 = vmax.f32 %v4135, 0.0
      %v4542 = vmax.f32 %v4140, 0.0
      %v4543 = vmax.f32 %v4143, 0.0
      %v4544 = vmax.f32 %v4148, 0.0
      %v4545 = vmax.f32 %v4151, 0.0
      %v4546 = vmax.f32 %v4156, 0.0
      %v4547 = vmax.f32 %v4159, 0.0
      %v4548 = vmax.f32 %v4164, 0.0
      %v4549 = vmax.f32 %v4167, 0.0
      %v4550 = vmax.f32 %v4172, 0.0
      %v4551 = vmax.f32 %v4175, 0.0
      %v4552 = vmax.f32 %v4180, 0.0
      %v4553 = vmax.f32 %v4183, 0.0
      %v4554 = vmax.f32 %v4188, 0.0
      %v4555 = vmax.f32 %v4191, 0.0
      %v4556 = vmax.f32 %v4196, 0.0
      %v4557 = vmax.f32 %v4199, 0.0
      %v4558 = vmax.f32 %v4204, 0.0
      %v4559 = vmax.f32 %v4207, 0.0
      %v4560 = vmax.f32 %v4212, 0.0
      %v4561 = vmax.f32 %v4215, 0.0
      %v4562 = vmax.f32 %v4220, 0.0
      %v4563 = vmax.f32 %v4223, 0.0
      %v4564 = vmax.f32 %v4228, 0.0
      %v4565 = vmax.f32 %v4231, 0.0
      %v4566 = vmax.f32 %v4236, 0.0
      %v4567 = vmax.f32 %v4239, 0.0
      %v4568 = vmax.f32 %v4244, 0.0
      %v4569 = vmax.f32 %v4247, 0.0
      %v4570 = vmax.f32 %v4252, 0.0
      %v4571 = vmax.f32 %v4255, 0.0
      %v4572 = vmax.f32 %v4260, 0.0
      %v4573 = vmax.f32 %v4263, 0.0
      %v4574 = vmax.f32 %v4268, 0.0
      %v4575 = vmax.f32 %v4271, 0.0
      %v4576 = vmax.f32 %v4276, 0.0
      %v4577 = vmax.f32 %v4279, 0.0
      %v4578 = vmax.f32 %v4284, 0.0
      %v4579 = vmax.f32 %v4287, 0.0
      %v4580 = vmax.f32 %v4292, 0.0
      %v4581 = vmax.f32 %v4295, 0.0
      %v4582 = vmax.f32 %v4300, 0.0
      %v4583 = vmax.f32 %v4303, 0.0
      %v4584 = vmax.f32 %v4308, 0.0
      %v4585 = vmax.f32 %v4311, 0.0
      %v4586 = vmax.f32 %v4316, 0.0
      %v4587 = vmax.f32 %v4319, 0.0
      %v4588 = vmax.f32 %v4324, 0.0
      %v4589 = vmax.f32 %v4327, 0.0
      %v4590 = vmax.f32 %v4332, 0.0
      %v4591 = vmax.f32 %v4335, 0.0
      %v4592 = vmax.f32 %v4340, 0.0
      %v4593 = vmax.f32 %v4343, 0.0
      %v4594 = vmax.f32 %v4348, 0.0
      %v4595 = vmax.f32 %v4351, 0.0
      %v4596 = vmax.f32 %v4356, 0.0
      %v4597 = vmax.f32 %v4359, 0.0
      %v4598 = vmax.f32 %v4364, 0.0
      %v4599 = vmax.f32 %v4367, 0.0
      %v4600 = vmax.f32 %v4372, 0.0
      %v4601 = vmax.f32 %v4375, 0.0
      %v4602 = vmax.f32 %v4380, 0.0
      %v4603 = vmax.f32 %v4383, 0.0
      %v4604 = vmax.f32 %v4388, 0.0
      %v4605 = vmax.f32 %v4391, 0.0
      %v4606 = vmax.f32 %v4396, 0.0
      %v4607 = vmax.f32 %v4399, 0.0
      %v4608 = vmax.f32 %v4404, 0.0
      %v4609 = vmax.f32 %v4407, 0.0
      %v4610 = vmax.f32 %v4412, 0.0
      %v4611 = vmax.f32 %v4415, 0.0
      %v4612 = vmax.f32 %v4420, 0.0
      %v4613 = vmax.f32 %v4423, 0.0
      %v4614 = vmax.f32 %v4428, 0.0
      %v4615 = vmax.f32 %v4431, 0.0
      %v4616 = vmax.f32 %v4436, 0.0
      %v4617 = vmax.f32 %v4439, 0.0
      %v4618 = vmax.f32 %v4444, 0.0
      %v4619 = vmax.f32 %v4447, 0.0
      %v4620 = vmax.f32 %v4452, 0.0
      %v4621 = vmax.f32 %v4455, 0.0
      %v4622 = vmax.f32 %v4460, 0.0
      %v4623 = vmax.f32 %v4463, 0.0
      %v4624 = vmax.f32 %v4468, 0.0
      %v4625 = vmax.f32 %v4471, 0.0
      %v4626 = vmax.f32 %v4476, 0.0
      %v4627 = vmax.f32 %v4479, 0.0
      %v4628 = vmax.f32 %v4484, 0.0
      %v4629 = vmax.f32 %v4487, 0.0
      %v4630 = vmax.f32 %v4492, 0.0
      %v4631 = vmax.f32 %v4495, 0.0
      %v4632 = vmax.f32 %v4500, 0.0
      %v4633 = vmax.f32 %v4503, 0.0
      %v4634 = vadd.f32 %v4506, 1e-07
      %v4635 = vadd.f32 %v4507, 1e-07
      %v4636 = vadd.f32 %v4508, 1e-07
      %v4637 = vadd.f32 %v4509, 1e-07
      %v4638 = vadd.f32 %v4510, 1e-07
      %v4639 = vadd.f32 %v4511, 1e-07
      %v4640 = vadd.f32 %v4512, 1e-07
      %v4641 = vadd.f32 %v4513, 1e-07
      %v4642 = vadd.f32 %v4514, 1e-07
      %v4643 = vadd.f32 %v4515, 1e-07
      %v4644 = vadd.f32 %v4516, 1e-07
      %v4645 = vadd.f32 %v4517, 1e-07
      %v4646 = vadd.f32 %v4518, 1e-07
      %v4647 = vadd.f32 %v4519, 1e-07
      %v4648 = vadd.f32 %v4520, 1e-07
      %v4649 = vadd.f32 %v4521, 1e-07
      %v4650 = vadd.f32 %v4522, 1e-07
      %v4651 = vadd.f32 %v4523, 1e-07
      %v4652 = vadd.f32 %v4524, 1e-07
      %v4653 = vadd.f32 %v4525, 1e-07
      %v4654 = vadd.f32 %v4526, 1e-07
      %v4655 = vadd.f32 %v4527, 1e-07
      %v4656 = vadd.f32 %v4528, 1e-07
      %v4657 = vadd.f32 %v4529, 1e-07
      %v4658 = vadd.f32 %v4530, 1e-07
      %v4659 = vadd.f32 %v4531, 1e-07
      %v4660 = vadd.f32 %v4532, 1e-07
      %v4661 = vadd.f32 %v4533, 1e-07
      %v4662 = vadd.f32 %v4534, 1e-07
      %v4663 = vadd.f32 %v4535, 1e-07
      %v4664 = vadd.f32 %v4536, 1e-07
      %v4665 = vadd.f32 %v4537, 1e-07
      %v4666 = vadd.f32 %v4538, 1e-07
      %v4667 = vadd.f32 %v4539, 1e-07
      %v4668 = vadd.f32 %v4540, 1e-07
      %v4669 = vadd.f32 %v4541, 1e-07
      %v4670 = vadd.f32 %v4542, 1e-07
      %v4671 = vadd.f32 %v4543, 1e-07
      %v4672 = vadd.f32 %v4544, 1e-07
      %v4673 = vadd.f32 %v4545, 1e-07
      %v4674 = vadd.f32 %v4546, 1e-07
      %v4675 = vadd.f32 %v4547, 1e-07
      %v4676 = vadd.f32 %v4548, 1e-07
      %v4677 = vadd.f32 %v4549, 1e-07
      %v4678 = vadd.f32 %v4550, 1e-07
      %v4679 = vadd.f32 %v4551, 1e-07
      %v4680 = vadd.f32 %v4552, 1e-07
      %v4681 = vadd.f32 %v4553, 1e-07
      %v4682 = vadd.f32 %v4554, 1e-07
      %v4683 = vadd.f32 %v4555, 1e-07
      %v4684 = vadd.f32 %v4556, 1e-07
      %v4685 = vadd.f32 %v4557, 1e-07
      %v4686 = vadd.f32 %v4558, 1e-07
      %v4687 = vadd.f32 %v4559, 1e-07
      %v4688 = vadd.f32 %v4560, 1e-07
      %v4689 = vadd.f32 %v4561, 1e-07
      %v4690 = vadd.f32 %v4562, 1e-07
      %v4691 = vadd.f32 %v4563, 1e-07
      %v4692 = vadd.f32 %v4564, 1e-07
      %v4693 = vadd.f32 %v4565, 1e-07
      %v4694 = vadd.f32 %v4566, 1e-07
      %v4695 = vadd.f32 %v4567, 1e-07
      %v4696 = vadd.f32 %v4568, 1e-07
      %v4697 = vadd.f32 %v4569, 1e-07
      %v4698 = vadd.f32 %v4570, 1e-07
      %v4699 = vadd.f32 %v4571, 1e-07
      %v4700 = vadd.f32 %v4572, 1e-07
      %v4701 = vadd.f32 %v4573, 1e-07
      %v4702 = vadd.f32 %v4574, 1e-07
      %v4703 = vadd.f32 %v4575, 1e-07
      %v4704 = vadd.f32 %v4576, 1e-07
      %v4705 = vadd.f32 %v4577, 1e-07
      %v4706 = vadd.f32 %v4578, 1e-07
      %v4707 = vadd.f32 %v4579, 1e-07
      %v4708 = vadd.f32 %v4580, 1e-07
      %v4709 = vadd.f32 %v4581, 1e-07
      %v4710 = vadd.f32 %v4582, 1e-07
      %v4711 = vadd.f32 %v4583, 1e-07
      %v4712 = vadd.f32 %v4584, 1e-07
      %v4713 = vadd.f32 %v4585, 1e-07
      %v4714 = vadd.f32 %v4586, 1e-07
      %v4715 = vadd.f32 %v4587, 1e-07
      %v4716 = vadd.f32 %v4588, 1e-07
      %v4717 = vadd.f32 %v4589, 1e-07
      %v4718 = vadd.f32 %v4590, 1e-07
      %v4719 = vadd.f32 %v4591, 1e-07
      %v4720 = vadd.f32 %v4592, 1e-07
      %v4721 = vadd.f32 %v4593, 1e-07
      %v4722 = vadd.f32 %v4594, 1e-07
      %v4723 = vadd.f32 %v4595, 1e-07
      %v4724 = vadd.f32 %v4596, 1e-07
      %v4725 = vadd.f32 %v4597, 1e-07
      %v4726 = vadd.f32 %v4598, 1e-07
      %v4727 = vadd.f32 %v4599, 1e-07
      %v4728 = vadd.f32 %v4600, 1e-07
      %v4729 = vadd.f32 %v4601, 1e-07
      %v4730 = vadd.f32 %v4602, 1e-07
      %v4731 = vadd.f32 %v4603, 1e-07
      %v4732 = vadd.f32 %v4604, 1e-07
      %v4733 = vadd.f32 %v4605, 1e-07
      %v4734 = vadd.f32 %v4606, 1e-07
      %v4735 = vadd.f32 %v4607, 1e-07
      %v4736 = vadd.f32 %v4608, 1e-07
      %v4737 = vadd.f32 %v4609, 1e-07
      %v4738 = vadd.f32 %v4610, 1e-07
      %v4739 = vadd.f32 %v4611, 1e-07
      %v4740 = vadd.f32 %v4612, 1e-07
      %v4741 = vadd.f32 %v4613, 1e-07
      %v4742 = vadd.f32 %v4614, 1e-07
      %v4743 = vadd.f32 %v4615, 1e-07
      %v4744 = vadd.f32 %v4616, 1e-07
      %v4745 = vadd.f32 %v4617, 1e-07
      %v4746 = vadd.f32 %v4618, 1e-07
      %v4747 = vadd.f32 %v4619, 1e-07
      %v4748 = vadd.f32 %v4620, 1e-07
      %v4749 = vadd.f32 %v4621, 1e-07
      %v4750 = vadd.f32 %v4622, 1e-07
      %v4751 = vadd.f32 %v4623, 1e-07
      %v4752 = vadd.f32 %v4624, 1e-07
      %v4753 = vadd.f32 %v4625, 1e-07
      %v4754 = vadd.f32 %v4626, 1e-07
      %v4755 = vadd.f32 %v4627, 1e-07
      %v4756 = vadd.f32 %v4628, 1e-07
      %v4757 = vadd.f32 %v4629, 1e-07
      %v4758 = vadd.f32 %v4630, 1e-07
      %v4759 = vadd.f32 %v4631, 1e-07
      %v4760 = vadd.f32 %v4632, 1e-07
      %v4761 = vadd.f32 %v4633, 1e-07
      %v4762 = vstv %s2984
      %v4763 = vmul.f32 %v4762, %v4634
      %v4764 = vmul.f32 %v4762, %v4635
      %v4765 = vmul.f32 %v4762, %v4636
      %v4766 = vmul.f32 %v4762, %v4637
      %v4767 = vmul.f32 %v4762, %v4638
      %v4768 = vmul.f32 %v4762, %v4639
      %v4769 = vmul.f32 %v4762, %v4640
      %v4770 = vmul.f32 %v4762, %v4641
      %v4771 = vmul.f32 %v4762, %v4642
      %v4772 = vmul.f32 %v4762, %v4643
      %v4773 = vmul.f32 %v4762, %v4644
      %v4774 = vmul.f32 %v4762, %v4645
      %v4775 = vmul.f32 %v4762, %v4646
      %v4776 = vmul.f32 %v4762, %v4647
      %v4777 = vmul.f32 %v4762, %v4648
      %v4778 = vmul.f32 %v4762, %v4649
      %v4779 = vmul.f32 %v4762, %v4650
      %v4780 = vmul.f32 %v4762, %v4651
      %v4781 = vmul.f32 %v4762, %v4652
      %v4782 = vmul.f32 %v4762, %v4653
      %v4783 = vmul.f32 %v4762, %v4654
      %v4784 = vmul.f32 %v4762, %v4655
      %v4785 = vmul.f32 %v4762, %v4656
      %v4786 = vmul.f32 %v4762, %v4657
      %v4787 = vmul.f32 %v4762, %v4658
      %v4788 = vmul.f32 %v4762, %v4659
      %v4789 = vmul.f32 %v4762, %v4660
      %v4790 = vmul.f32 %v4762, %v4661
      %v4791 = vmul.f32 %v4762, %v4662
      %v4792 = vmul.f32 %v4762, %v4663
      %v4793 = vmul.f32 %v4762, %v4664
      %v4794 = vmul.f32 %v4762, %v4665
      %v4795 = vmul.f32 %v4762, %v4666
      %v4796 = vmul.f32 %v4762, %v4667
      %v4797 = vmul.f32 %v4762, %v4668
      %v4798 = vmul.f32 %v4762, %v4669
      %v4799 = vmul.f32 %v4762, %v4670
      %v4800 = vmul.f32 %v4762, %v4671
      %v4801 = vmul.f32 %v4762, %v4672
      %v4802 = vmul.f32 %v4762, %v4673
      %v4803 = vmul.f32 %v4762, %v4674
      %v4804 = vmul.f32 %v4762, %v4675
      %v4805 = vmul.f32 %v4762, %v4676
      %v4806 = vmul.f32 %v4762, %v4677
      %v4807 = vmul.f32 %v4762, %v4678
      %v4808 = vmul.f32 %v4762, %v4679
      %v4809 = vmul.f32 %v4762, %v4680
      %v4810 = vmul.f32 %v4762, %v4681
      %v4811 = vmul.f32 %v4762, %v4682
      %v4812 = vmul.f32 %v4762, %v4683
      %v4813 = vmul.f32 %v4762, %v4684
      %v4814 = vmul.f32 %v4762, %v4685
      %v4815 = vmul.f32 %v4762, %v4686
      %v4816 = vmul.f32 %v4762, %v4687
      %v4817 = vmul.f32 %v4762, %v4688
      %v4818 = vmul.f32 %v4762, %v4689
      %v4819 = vmul.f32 %v4762, %v4690
      %v4820 = vmul.f32 %v4762, %v4691
      %v4821 = vmul.f32 %v4762, %v4692
      %v4822 = vmul.f32 %v4762, %v4693
      %v4823 = vmul.f32 %v4762, %v4694
      %v4824 = vmul.f32 %v4762, %v4695
      %v4825 = vmul.f32 %v4762, %v4696
      %v4826 = vmul.f32 %v4762, %v4697
      %v4827 = vmul.f32 %v4762, %v4698
      %v4828 = vmul.f32 %v4762, %v4699
      %v4829 = vmul.f32 %v4762, %v4700
      %v4830 = vmul.f32 %v4762, %v4701
      %v4831 = vmul.f32 %v4762, %v4702
      %v4832 = vmul.f32 %v4762, %v4703
      %v4833 = vmul.f32 %v4762, %v4704
      %v4834 = vmul.f32 %v4762, %v4705
      %v4835 = vmul.f32 %v4762, %v4706
      %v4836 = vmul.f32 %v4762, %v4707
      %v4837 = vmul.f32 %v4762, %v4708
      %v4838 = vmul.f32 %v4762, %v4709
      %v4839 = vmul.f32 %v4762, %v4710
      %v4840 = vmul.f32 %v4762, %v4711
      %v4841 = vmul.f32 %v4762, %v4712
      %v4842 = vmul.f32 %v4762, %v4713
      %v4843 = vmul.f32 %v4762, %v4714
      %v4844 = vmul.f32 %v4762, %v4715
      %v4845 = vmul.f32 %v4762, %v4716
      %v4846 = vmul.f32 %v4762, %v4717
      %v4847 = vmul.f32 %v4762, %v4718
      %v4848 = vmul.f32 %v4762, %v4719
      %v4849 = vmul.f32 %v4762, %v4720
      %v4850 = vmul.f32 %v4762, %v4721
      %v4851 = vmul.f32 %v4762, %v4722
      %v4852 = vmul.f32 %v4762, %v4723
      %v4853 = vmul.f32 %v4762, %v4724
      %v4854 = vmul.f32 %v4762, %v4725
      %v4855 = vmul.f32 %v4762, %v4726
      %v4856 = vmul.f32 %v4762, %v4727
      %v4857 = vmul.f32 %v4762, %v4728
      %v4858 = vmul.f32 %v4762, %v4729
      %v4859 = vmul.f32 %v4762, %v4730
      %v4860 = vmul.f32 %v4762, %v4731
      %v4861 = vmul.f32 %v4762, %v4732
      %v4862 = vmul.f32 %v4762, %v4733
      %v4863 = vmul.f32 %v4762, %v4734
      %v4864 = vmul.f32 %v4762, %v4735
      %v4865 = vmul.f32 %v4762, %v4736
      %v4866 = vmul.f32 %v4762, %v4737
      %v4867 = vmul.f32 %v4762, %v4738
      %v4868 = vmul.f32 %v4762, %v4739
      %v4869 = vmul.f32 %v4762, %v4740
      %v4870 = vmul.f32 %v4762, %v4741
      %v4871 = vmul.f32 %v4762, %v4742
      %v4872 = vmul.f32 %v4762, %v4743
      %v4873 = vmul.f32 %v4762, %v4744
      %v4874 = vmul.f32 %v4762, %v4745
      %v4875 = vmul.f32 %v4762, %v4746
      %v4876 = vmul.f32 %v4762, %v4747
      %v4877 = vmul.f32 %v4762, %v4748
      %v4878 = vmul.f32 %v4762, %v4749
      %v4879 = vmul.f32 %v4762, %v4750
      %v4880 = vmul.f32 %v4762, %v4751
      %v4881 = vmul.f32 %v4762, %v4752
      %v4882 = vmul.f32 %v4762, %v4753
      %v4883 = vmul.f32 %v4762, %v4754
      %v4884 = vmul.f32 %v4762, %v4755
      %v4885 = vmul.f32 %v4762, %v4756
      %v4886 = vmul.f32 %v4762, %v4757
      %v4887 = vmul.f32 %v4762, %v4758
      %v4888 = vmul.f32 %v4762, %v4759
      %v4889 = vmul.f32 %v4762, %v4760
      %v4890 = vmul.f32 %v4762, %v4761
      %v4891 = vmax.f32 %v4763, %v4767
      %v4892 = vmax.f32 %v4764, %v4768
      %v4893 = vmax.f32 %v4765, %v4769
      %v4894 = vmax.f32 %v4766, %v4770
      %v4895 = vmax.f32 %v4891, %v4771
      %v4896 = vmax.f32 %v4892, %v4772
      %v4897 = vmax.f32 %v4893, %v4773
      %v4898 = vmax.f32 %v4894, %v4774
      %v4899 = vmax.f32 %v4895, %v4775
      %v4900 = vmax.f32 %v4896, %v4776
      %v4901 = vmax.f32 %v4897, %v4777
      %v4902 = vmax.f32 %v4898, %v4778
      %v4903 = vmax.f32 %v4899, %v4779
      %v4904 = vmax.f32 %v4900, %v4780
      %v4905 = vmax.f32 %v4901, %v4781
      %v4906 = vmax.f32 %v4902, %v4782
      %v4907 = vmax.f32 %v4903, %v4783
      %v4908 = vmax.f32 %v4904, %v4784
      %v4909 = vmax.f32 %v4905, %v4785
      %v4910 = vmax.f32 %v4906, %v4786
      %v4911 = vmax.f32 %v4907, %v4787
      %v4912 = vmax.f32 %v4908, %v4788
      %v4913 = vmax.f32 %v4909, %v4789
      %v4914 = vmax.f32 %v4910, %v4790
      %v4915 = vmax.f32 %v4911, %v4791
      %v4916 = vmax.f32 %v4912, %v4792
      %v4917 = vmax.f32 %v4913, %v4793
      %v4918 = vmax.f32 %v4914, %v4794
      %v4919 = vmax.f32 %v4915, %v4795
      %v4920 = vmax.f32 %v4916, %v4796
      %v4921 = vmax.f32 %v4917, %v4797
      %v4922 = vmax.f32 %v4918, %v4798
      %v4923 = vmax.f32 %v4919, %v4799
      %v4924 = vmax.f32 %v4920, %v4800
      %v4925 = vmax.f32 %v4921, %v4801
      %v4926 = vmax.f32 %v4922, %v4802
      %v4927 = vmax.f32 %v4923, %v4803
      %v4928 = vmax.f32 %v4924, %v4804
      %v4929 = vmax.f32 %v4925, %v4805
      %v4930 = vmax.f32 %v4926, %v4806
      %v4931 = vmax.f32 %v4927, %v4807
      %v4932 = vmax.f32 %v4928, %v4808
      %v4933 = vmax.f32 %v4929, %v4809
      %v4934 = vmax.f32 %v4930, %v4810
      %v4935 = vmax.f32 %v4931, %v4811
      %v4936 = vmax.f32 %v4932, %v4812
      %v4937 = vmax.f32 %v4933, %v4813
      %v4938 = vmax.f32 %v4934, %v4814
      %v4939 = vmax.f32 %v4935, %v4815
      %v4940 = vmax.f32 %v4936, %v4816
      %v4941 = vmax.f32 %v4937, %v4817
      %v4942 = vmax.f32 %v4938, %v4818
      %v4943 = vmax.f32 %v4939, %v4819
      %v4944 = vmax.f32 %v4940, %v4820
      %v4945 = vmax.f32 %v4941, %v4821
      %v4946 = vmax.f32 %v4942, %v4822
      %v4947 = vmax.f32 %v4943, %v4823
      %v4948 = vmax.f32 %v4944, %v4824
      %v4949 = vmax.f32 %v4945, %v4825
      %v4950 = vmax.f32 %v4946, %v4826
      %v4951 = vmax.f32 %v4947, %v4827
      %v4952 = vmax.f32 %v4948, %v4828
      %v4953 = vmax.f32 %v4949, %v4829
      %v4954 = vmax.f32 %v4950, %v4830
      %v4955 = vmax.f32 %v4951, %v4831
      %v4956 = vmax.f32 %v4952, %v4832
      %v4957 = vmax.f32 %v4953, %v4833
      %v4958 = vmax.f32 %v4954, %v4834
      %v4959 = vmax.f32 %v4955, %v4835
      %v4960 = vmax.f32 %v4956, %v4836
      %v4961 = vmax.f32 %v4957, %v4837
      %v4962 = vmax.f32 %v4958, %v4838
      %v4963 = vmax.f32 %v4959, %v4839
      %v4964 = vmax.f32 %v4960, %v4840
      %v4965 = vmax.f32 %v4961, %v4841
      %v4966 = vmax.f32 %v4962, %v4842
      %v4967 = vmax.f32 %v4963, %v4843
      %v4968 = vmax.f32 %v4964, %v4844
      %v4969 = vmax.f32 %v4965, %v4845
      %v4970 = vmax.f32 %v4966, %v4846
      %v4971 = vmax.f32 %v4967, %v4847
      %v4972 = vmax.f32 %v4968, %v4848
      %v4973 = vmax.f32 %v4969, %v4849
      %v4974 = vmax.f32 %v4970, %v4850
      %v4975 = vmax.f32 %v4971, %v4851
      %v4976 = vmax.f32 %v4972, %v4852
      %v4977 = vmax.f32 %v4973, %v4853
      %v4978 = vmax.f32 %v4974, %v4854
      %v4979 = vmax.f32 %v4975, %v4855
      %v4980 = vmax.f32 %v4976, %v4856
      %v4981 = vmax.f32 %v4977, %v4857
      %v4982 = vmax.f32 %v4978, %v4858
      %v4983 = vmax.f32 %v4979, %v4859
      %v4984 = vmax.f32 %v4980, %v4860
      %v4985 = vmax.f32 %v4981, %v4861
      %v4986 = vmax.f32 %v4982, %v4862
      %v4987 = vmax.f32 %v4983, %v4863
      %v4988 = vmax.f32 %v4984, %v4864
      %v4989 = vmax.f32 %v4985, %v4865
      %v4990 = vmax.f32 %v4986, %v4866
      %v4991 = vmax.f32 %v4987, %v4867
      %v4992 = vmax.f32 %v4988, %v4868
      %v4993 = vmax.f32 %v4989, %v4869
      %v4994 = vmax.f32 %v4990, %v4870
      %v4995 = vmax.f32 %v4991, %v4871
      %v4996 = vmax.f32 %v4992, %v4872
      %v4997 = vmax.f32 %v4993, %v4873
      %v4998 = vmax.f32 %v4994, %v4874
      %v4999 = vmax.f32 %v4995, %v4875
      %v5000 = vmax.f32 %v4996, %v4876
      %v5001 = vmax.f32 %v4997, %v4877
      %v5002 = vmax.f32 %v4998, %v4878
      %v5003 = vmax.f32 %v4999, %v4879
      %v5004 = vmax.f32 %v5000, %v4880
      %v5005 = vmax.f32 %v5001, %v4881
      %v5006 = vmax.f32 %v5002, %v4882
      %v5007 = vmax.f32 %v5003, %v4883
      %v5008 = vmax.f32 %v5004, %v4884
      %v5009 = vmax.f32 %v5005, %v4885
      %v5010 = vmax.f32 %v5006, %v4886
      %v5011 = vmax.f32 %v5007, %v4887
      %v5012 = vmax.f32 %v5008, %v4888
      %v5013 = vmax.f32 %v5009, %v4889
      %v5014 = vmax.f32 %v5010, %v4890
      %v5015 = vmax.f32 %v5011, %v5012
      %v5016 = vmax.f32 %v5013, %v5014
      %v5017 = vmax.f32 %v5015, %v5016
      %v5018 = vrot.slane %v5017, 4
      %v5019 = vmax.f32 %v5017, %v5018
      %v5020 = vrot.slane %v5019, 2
      %v5021 = vmax.f32 %v5019, %v5020
      %v5022 = vrot.slane %v5021, 1
      %v5023 = vmax.f32 %v5021, %v5022
      %v5024 = vsub.f32 %v4763, %v5023
      %v5025 = vsub.f32 %v4764, %v5023
      %v5026 = vsub.f32 %v4765, %v5023
      %v5027 = vsub.f32 %v4766, %v5023
      %v5028 = vsub.f32 %v4767, %v5023
      %v5029 = vsub.f32 %v4768, %v5023
      %v5030 = vsub.f32 %v4769, %v5023
      %v5031 = vsub.f32 %v4770, %v5023
      %v5032 = vsub.f32 %v4771, %v5023
      %v5033 = vsub.f32 %v4772, %v5023
      %v5034 = vsub.f32 %v4773, %v5023
      %v5035 = vsub.f32 %v4774, %v5023
      %v5036 = vsub.f32 %v4775, %v5023
      %v5037 = vsub.f32 %v4776, %v5023
      %v5038 = vsub.f32 %v4777, %v5023
      %v5039 = vsub.f32 %v4778, %v5023
      %v5040 = vsub.f32 %v4779, %v5023
      %v5041 = vsub.f32 %v4780, %v5023
      %v5042 = vsub.f32 %v4781, %v5023
      %v5043 = vsub.f32 %v4782, %v5023
      %v5044 = vsub.f32 %v4783, %v5023
      %v5045 = vsub.f32 %v4784, %v5023
      %v5046 = vsub.f32 %v4785, %v5023
      %v5047 = vsub.f32 %v4786, %v5023
      %v5048 = vsub.f32 %v4787, %v5023
      %v5049 = vsub.f32 %v4788, %v5023
      %v5050 = vsub.f32 %v4789, %v5023
      %v5051 = vsub.f32 %v4790, %v5023
      %v5052 = vsub.f32 %v4791, %v5023
      %v5053 = vsub.f32 %v4792, %v5023
      %v5054 = vsub.f32 %v4793, %v5023
      %v5055 = vsub.f32 %v4794, %v5023
      %v5056 = vsub.f32 %v4795, %v5023
      %v5057 = vsub.f32 %v4796, %v5023
      %v5058 = vsub.f32 %v4797, %v5023
      %v5059 = vsub.f32 %v4798, %v5023
      %v5060 = vsub.f32 %v4799, %v5023
      %v5061 = vsub.f32 %v4800, %v5023
      %v5062 = vsub.f32 %v4801, %v5023
      %v5063 = vsub.f32 %v4802, %v5023
      %v5064 = vsub.f32 %v4803, %v5023
      %v5065 = vsub.f32 %v4804, %v5023
      %v5066 = vsub.f32 %v4805, %v5023
      %v5067 = vsub.f32 %v4806, %v5023
      %v5068 = vsub.f32 %v4807, %v5023
      %v5069 = vsub.f32 %v4808, %v5023
      %v5070 = vsub.f32 %v4809, %v5023
      %v5071 = vsub.f32 %v4810, %v5023
      %v5072 = vsub.f32 %v4811, %v5023
      %v5073 = vsub.f32 %v4812, %v5023
      %v5074 = vsub.f32 %v4813, %v5023
      %v5075 = vsub.f32 %v4814, %v5023
      %v5076 = vsub.f32 %v4815, %v5023
      %v5077 = vsub.f32 %v4816, %v5023
      %v5078 = vsub.f32 %v4817, %v5023
      %v5079 = vsub.f32 %v4818, %v5023
      %v5080 = vsub.f32 %v4819, %v5023
      %v5081 = vsub.f32 %v4820, %v5023
      %v5082 = vsub.f32 %v4821, %v5023
      %v5083 = vsub.f32 %v4822, %v5023
      %v5084 = vsub.f32 %v4823, %v5023
      %v5085 = vsub.f32 %v4824, %v5023
      %v5086 = vsub.f32 %v4825, %v5023
      %v5087 = vsub.f32 %v4826, %v5023
      %v5088 = vsub.f32 %v4827, %v5023
      %v5089 = vsub.f32 %v4828, %v5023
      %v5090 = vsub.f32 %v4829, %v5023
      %v5091 = vsub.f32 %v4830, %v5023
      %v5092 = vsub.f32 %v4831, %v5023
      %v5093 = vsub.f32 %v4832, %v5023
      %v5094 = vsub.f32 %v4833, %v5023
      %v5095 = vsub.f32 %v4834, %v5023
      %v5096 = vsub.f32 %v4835, %v5023
      %v5097 = vsub.f32 %v4836, %v5023
      %v5098 = vsub.f32 %v4837, %v5023
      %v5099 = vsub.f32 %v4838, %v5023
      %v5100 = vsub.f32 %v4839, %v5023
      %v5101 = vsub.f32 %v4840, %v5023
      %v5102 = vsub.f32 %v4841, %v5023
      %v5103 = vsub.f32 %v4842, %v5023
      %v5104 = vsub.f32 %v4843, %v5023
      %v5105 = vsub.f32 %v4844, %v5023
      %v5106 = vsub.f32 %v4845, %v5023
      %v5107 = vsub.f32 %v4846, %v5023
      %v5108 = vsub.f32 %v4847, %v5023
      %v5109 = vsub.f32 %v4848, %v5023
      %v5110 = vsub.f32 %v4849, %v5023
      %v5111 = vsub.f32 %v4850, %v5023
      %v5112 = vsub.f32 %v4851, %v5023
      %v5113 = vsub.f32 %v4852, %v5023
      %v5114 = vsub.f32 %v4853, %v5023
      %v5115 = vsub.f32 %v4854, %v5023
      %v5116 = vsub.f32 %v4855, %v5023
      %v5117 = vsub.f32 %v4856, %v5023
      %v5118 = vsub.f32 %v4857, %v5023
      %v5119 = vsub.f32 %v4858, %v5023
      %v5120 = vsub.f32 %v4859, %v5023
      %v5121 = vsub.f32 %v4860, %v5023
      %v5122 = vsub.f32 %v4861, %v5023
      %v5123 = vsub.f32 %v4862, %v5023
      %v5124 = vsub.f32 %v4863, %v5023
      %v5125 = vsub.f32 %v4864, %v5023
      %v5126 = vsub.f32 %v4865, %v5023
      %v5127 = vsub.f32 %v4866, %v5023
      %v5128 = vsub.f32 %v4867, %v5023
      %v5129 = vsub.f32 %v4868, %v5023
      %v5130 = vsub.f32 %v4869, %v5023
      %v5131 = vsub.f32 %v4870, %v5023
      %v5132 = vsub.f32 %v4871, %v5023
      %v5133 = vsub.f32 %v4872, %v5023
      %v5134 = vsub.f32 %v4873, %v5023
      %v5135 = vsub.f32 %v4874, %v5023
      %v5136 = vsub.f32 %v4875, %v5023
      %v5137 = vsub.f32 %v4876, %v5023
      %v5138 = vsub.f32 %v4877, %v5023
      %v5139 = vsub.f32 %v4878, %v5023
      %v5140 = vsub.f32 %v4879, %v5023
      %v5141 = vsub.f32 %v4880, %v5023
      %v5142 = vsub.f32 %v4881, %v5023
      %v5143 = vsub.f32 %v4882, %v5023
      %v5144 = vsub.f32 %v4883, %v5023
      %v5145 = vsub.f32 %v4884, %v5023
      %v5146 = vsub.f32 %v4885, %v5023
      %v5147 = vsub.f32 %v4886, %v5023
      %v5148 = vsub.f32 %v4887, %v5023
      %v5149 = vsub.f32 %v4888, %v5023
      %v5150 = vsub.f32 %v4889, %v5023
      %v5151 = vsub.f32 %v4890, %v5023
      %v5152 = vpack.c.bf16 %v5025, %v5024
      %v5153 = vpack.c.bf16 %v5027, %v5026
      %v5154 = vpack.c.bf16 %v5029, %v5028
      %v5155 = vpack.c.bf16 %v5031, %v5030
      %v5156 = vpack.c.bf16 %v5033, %v5032
      %v5157 = vpack.c.bf16 %v5035, %v5034
      %v5158 = vpack.c.bf16 %v5037, %v5036
      %v5159 = vpack.c.bf16 %v5039, %v5038
      %v5160 = vpack.c.bf16 %v5041, %v5040
      %v5161 = vpack.c.bf16 %v5043, %v5042
      %v5162 = vpack.c.bf16 %v5045, %v5044
      %v5163 = vpack.c.bf16 %v5047, %v5046
      %v5164 = vpack.c.bf16 %v5049, %v5048
      %v5165 = vpack.c.bf16 %v5051, %v5050
      %v5166 = vpack.c.bf16 %v5053, %v5052
      %v5167 = vpack.c.bf16 %v5055, %v5054
      %v5168 = vpack.c.bf16 %v5057, %v5056
      %v5169 = vpack.c.bf16 %v5059, %v5058
      %v5170 = vpack.c.bf16 %v5061, %v5060
      %v5171 = vpack.c.bf16 %v5063, %v5062
      %v5172 = vpack.c.bf16 %v5065, %v5064
      %v5173 = vpack.c.bf16 %v5067, %v5066
      %v5174 = vpack.c.bf16 %v5069, %v5068
      %v5175 = vpack.c.bf16 %v5071, %v5070
      %v5176 = vpack.c.bf16 %v5073, %v5072
      %v5177 = vpack.c.bf16 %v5075, %v5074
      %v5178 = vpack.c.bf16 %v5077, %v5076
      %v5179 = vpack.c.bf16 %v5079, %v5078
      %v5180 = vpack.c.bf16 %v5081, %v5080
      %v5181 = vpack.c.bf16 %v5083, %v5082
      %v5182 = vpack.c.bf16 %v5085, %v5084
      %v5183 = vpack.c.bf16 %v5087, %v5086
      %v5184 = vpack.c.bf16 %v5089, %v5088
      %v5185 = vpack.c.bf16 %v5091, %v5090
      %v5186 = vpack.c.bf16 %v5093, %v5092
      %v5187 = vpack.c.bf16 %v5095, %v5094
      %v5188 = vpack.c.bf16 %v5097, %v5096
      %v5189 = vpack.c.bf16 %v5099, %v5098
      %v5190 = vpack.c.bf16 %v5101, %v5100
      %v5191 = vpack.c.bf16 %v5103, %v5102
      %v5192 = vpack.c.bf16 %v5105, %v5104
      %v5193 = vpack.c.bf16 %v5107, %v5106
      %v5194 = vpack.c.bf16 %v5109, %v5108
      %v5195 = vpack.c.bf16 %v5111, %v5110
      %v5196 = vpack.c.bf16 %v5113, %v5112
      %v5197 = vpack.c.bf16 %v5115, %v5114
      %v5198 = vpack.c.bf16 %v5117, %v5116
      %v5199 = vpack.c.bf16 %v5119, %v5118
      %v5200 = vpack.c.bf16 %v5121, %v5120
      %v5201 = vpack.c.bf16 %v5123, %v5122
      %v5202 = vpack.c.bf16 %v5125, %v5124
      %v5203 = vpack.c.bf16 %v5127, %v5126
      %v5204 = vpack.c.bf16 %v5129, %v5128
      %v5205 = vpack.c.bf16 %v5131, %v5130
      %v5206 = vpack.c.bf16 %v5133, %v5132
      %v5207 = vpack.c.bf16 %v5135, %v5134
      %v5208 = vpack.c.bf16 %v5137, %v5136
      %v5209 = vpack.c.bf16 %v5139, %v5138
      %v5210 = vpack.c.bf16 %v5141, %v5140
      %v5211 = vpack.c.bf16 %v5143, %v5142
      %v5212 = vpack.c.bf16 %v5145, %v5144
      %v5213 = vpack.c.bf16 %v5147, %v5146
      %v5214 = vpack.c.bf16 %v5149, %v5148
      %v5215 = vpack.c.bf16 %v5151, %v5150
      %v5217 = vmul.bf16 %v5152, 1069105081
      %v5218 = vpow.bf16.pop %v5217
      %v5220 = vmul.bf16 %v5153, 1069105081
      %v5221 = vpow.bf16.pop %v5220
      %v5223 = vmul.bf16 %v5154, 1069105081
      %v5224 = vpow.bf16.pop %v5223
      %v5226 = vmul.bf16 %v5155, 1069105081
      %v5227 = vpow.bf16.pop %v5226
      %v5229 = vmul.bf16 %v5156, 1069105081
      %v5230 = vpow.bf16.pop %v5229
      %v5232 = vmul.bf16 %v5157, 1069105081
      %v5233 = vpow.bf16.pop %v5232
      %v5235 = vmul.bf16 %v5158, 1069105081
      %v5236 = vpow.bf16.pop %v5235
      %v5238 = vmul.bf16 %v5159, 1069105081
      %v5239 = vpow.bf16.pop %v5238
      %v5241 = vmul.bf16 %v5160, 1069105081
      %v5242 = vpow.bf16.pop %v5241
      %v5244 = vmul.bf16 %v5161, 1069105081
      %v5245 = vpow.bf16.pop %v5244
      %v5247 = vmul.bf16 %v5162, 1069105081
      %v5248 = vpow.bf16.pop %v5247
      %v5250 = vmul.bf16 %v5163, 1069105081
      %v5251 = vpow.bf16.pop %v5250
      %v5253 = vmul.bf16 %v5164, 1069105081
      %v5254 = vpow.bf16.pop %v5253
      %v5256 = vmul.bf16 %v5165, 1069105081
      %v5257 = vpow.bf16.pop %v5256
      %v5259 = vmul.bf16 %v5166, 1069105081
      %v5260 = vpow.bf16.pop %v5259
      %v5262 = vmul.bf16 %v5167, 1069105081
      %v5263 = vpow.bf16.pop %v5262
      %v5265 = vmul.bf16 %v5168, 1069105081
      %v5266 = vpow.bf16.pop %v5265
      %v5268 = vmul.bf16 %v5169, 1069105081
      %v5269 = vpow.bf16.pop %v5268
      %v5271 = vmul.bf16 %v5170, 1069105081
      %v5272 = vpow.bf16.pop %v5271
      %v5274 = vmul.bf16 %v5171, 1069105081
      %v5275 = vpow.bf16.pop %v5274
      %v5277 = vmul.bf16 %v5172, 1069105081
      %v5278 = vpow.bf16.pop %v5277
      %v5280 = vmul.bf16 %v5173, 1069105081
      %v5281 = vpow.bf16.pop %v5280
      %v5283 = vmul.bf16 %v5174, 1069105081
      %v5284 = vpow.bf16.pop %v5283
      %v5286 = vmul.bf16 %v5175, 1069105081
      %v5287 = vpow.bf16.pop %v5286
      %v5289 = vmul.bf16 %v5176, 1069105081
      %v5290 = vpow.bf16.pop %v5289
      %v5292 = vmul.bf16 %v5177, 1069105081
      %v5293 = vpow.bf16.pop %v5292
      %v5295 = vmul.bf16 %v5178, 1069105081
      %v5296 = vpow.bf16.pop %v5295
      %v5298 = vmul.bf16 %v5179, 1069105081
      %v5299 = vpow.bf16.pop %v5298
      %v5301 = vmul.bf16 %v5180, 1069105081
      %v5302 = vpow.bf16.pop %v5301
      %v5304 = vmul.bf16 %v5181, 1069105081
      %v5305 = vpow.bf16.pop %v5304
      %v5307 = vmul.bf16 %v5182, 1069105081
      %v5308 = vpow.bf16.pop %v5307
      %v5310 = vmul.bf16 %v5183, 1069105081
      %v5311 = vpow.bf16.pop %v5310
      %v5313 = vmul.bf16 %v5184, 1069105081
      %v5314 = vpow.bf16.pop %v5313
      %v5316 = vmul.bf16 %v5185, 1069105081
      %v5317 = vpow.bf16.pop %v5316
      %v5319 = vmul.bf16 %v5186, 1069105081
      %v5320 = vpow.bf16.pop %v5319
      %v5322 = vmul.bf16 %v5187, 1069105081
      %v5323 = vpow.bf16.pop %v5322
      %v5325 = vmul.bf16 %v5188, 1069105081
      %v5326 = vpow.bf16.pop %v5325
      %v5328 = vmul.bf16 %v5189, 1069105081
      %v5329 = vpow.bf16.pop %v5328
      %v5331 = vmul.bf16 %v5190, 1069105081
      %v5332 = vpow.bf16.pop %v5331
      %v5334 = vmul.bf16 %v5191, 1069105081
      %v5335 = vpow.bf16.pop %v5334
      %v5337 = vmul.bf16 %v5192, 1069105081
      %v5338 = vpow.bf16.pop %v5337
      %v5340 = vmul.bf16 %v5193, 1069105081
      %v5341 = vpow.bf16.pop %v5340
      %v5343 = vmul.bf16 %v5194, 1069105081
      %v5344 = vpow.bf16.pop %v5343
      %v5346 = vmul.bf16 %v5195, 1069105081
      %v5347 = vpow.bf16.pop %v5346
      %v5349 = vmul.bf16 %v5196, 1069105081
      %v5350 = vpow.bf16.pop %v5349
      %v5352 = vmul.bf16 %v5197, 1069105081
      %v5353 = vpow.bf16.pop %v5352
      %v5355 = vmul.bf16 %v5198, 1069105081
      %v5356 = vpow.bf16.pop %v5355
      %v5358 = vmul.bf16 %v5199, 1069105081
      %v5359 = vpow.bf16.pop %v5358
      %v5361 = vmul.bf16 %v5200, 1069105081
      %v5362 = vpow.bf16.pop %v5361
      %v5364 = vmul.bf16 %v5201, 1069105081
      %v5365 = vpow.bf16.pop %v5364
      %v5367 = vmul.bf16 %v5202, 1069105081
      %v5368 = vpow.bf16.pop %v5367
      %v5370 = vmul.bf16 %v5203, 1069105081
      %v5371 = vpow.bf16.pop %v5370
      %v5373 = vmul.bf16 %v5204, 1069105081
      %v5374 = vpow.bf16.pop %v5373
      %v5376 = vmul.bf16 %v5205, 1069105081
      %v5377 = vpow.bf16.pop %v5376
      %v5379 = vmul.bf16 %v5206, 1069105081
      %v5380 = vpow.bf16.pop %v5379
      %v5382 = vmul.bf16 %v5207, 1069105081
      %v5383 = vpow.bf16.pop %v5382
      %v5385 = vmul.bf16 %v5208, 1069105081
      %v5386 = vpow.bf16.pop %v5385
      %v5388 = vmul.bf16 %v5209, 1069105081
      %v5389 = vpow.bf16.pop %v5388
      %v5391 = vmul.bf16 %v5210, 1069105081
      %v5392 = vpow.bf16.pop %v5391
      %v5394 = vmul.bf16 %v5211, 1069105081
      %v5395 = vpow.bf16.pop %v5394
      %v5397 = vmul.bf16 %v5212, 1069105081
      %v5398 = vpow.bf16.pop %v5397
      %v5400 = vmul.bf16 %v5213, 1069105081
      %v5401 = vpow.bf16.pop %v5400
      %v5403 = vmul.bf16 %v5214, 1069105081
      %v5404 = vpow.bf16.pop %v5403
      %v5406 = vmul.bf16 %v5215, 1069105081
      %v5407 = vpow.bf16.pop %v5406
      %v5408 = vpack.c.bf16 %v4635, %v4634
      %v5409 = vpack.c.bf16 %v4637, %v4636
      %v5410 = vpack.c.bf16 %v4639, %v4638
      %v5411 = vpack.c.bf16 %v4641, %v4640
      %v5412 = vpack.c.bf16 %v4643, %v4642
      %v5413 = vpack.c.bf16 %v4645, %v4644
      %v5414 = vpack.c.bf16 %v4647, %v4646
      %v5415 = vpack.c.bf16 %v4649, %v4648
      %v5416 = vpack.c.bf16 %v4651, %v4650
      %v5417 = vpack.c.bf16 %v4653, %v4652
      %v5418 = vpack.c.bf16 %v4655, %v4654
      %v5419 = vpack.c.bf16 %v4657, %v4656
      %v5420 = vpack.c.bf16 %v4659, %v4658
      %v5421 = vpack.c.bf16 %v4661, %v4660
      %v5422 = vpack.c.bf16 %v4663, %v4662
      %v5423 = vpack.c.bf16 %v4665, %v4664
      %v5424 = vpack.c.bf16 %v4667, %v4666
      %v5425 = vpack.c.bf16 %v4669, %v4668
      %v5426 = vpack.c.bf16 %v4671, %v4670
      %v5427 = vpack.c.bf16 %v4673, %v4672
      %v5428 = vpack.c.bf16 %v4675, %v4674
      %v5429 = vpack.c.bf16 %v4677, %v4676
      %v5430 = vpack.c.bf16 %v4679, %v4678
      %v5431 = vpack.c.bf16 %v4681, %v4680
      %v5432 = vpack.c.bf16 %v4683, %v4682
      %v5433 = vpack.c.bf16 %v4685, %v4684
      %v5434 = vpack.c.bf16 %v4687, %v4686
      %v5435 = vpack.c.bf16 %v4689, %v4688
      %v5436 = vpack.c.bf16 %v4691, %v4690
      %v5437 = vpack.c.bf16 %v4693, %v4692
      %v5438 = vpack.c.bf16 %v4695, %v4694
      %v5439 = vpack.c.bf16 %v4697, %v4696
      %v5440 = vpack.c.bf16 %v4699, %v4698
      %v5441 = vpack.c.bf16 %v4701, %v4700
      %v5442 = vpack.c.bf16 %v4703, %v4702
      %v5443 = vpack.c.bf16 %v4705, %v4704
      %v5444 = vpack.c.bf16 %v4707, %v4706
      %v5445 = vpack.c.bf16 %v4709, %v4708
      %v5446 = vpack.c.bf16 %v4711, %v4710
      %v5447 = vpack.c.bf16 %v4713, %v4712
      %v5448 = vpack.c.bf16 %v4715, %v4714
      %v5449 = vpack.c.bf16 %v4717, %v4716
      %v5450 = vpack.c.bf16 %v4719, %v4718
      %v5451 = vpack.c.bf16 %v4721, %v4720
      %v5452 = vpack.c.bf16 %v4723, %v4722
      %v5453 = vpack.c.bf16 %v4725, %v4724
      %v5454 = vpack.c.bf16 %v4727, %v4726
      %v5455 = vpack.c.bf16 %v4729, %v4728
      %v5456 = vpack.c.bf16 %v4731, %v4730
      %v5457 = vpack.c.bf16 %v4733, %v4732
      %v5458 = vpack.c.bf16 %v4735, %v4734
      %v5459 = vpack.c.bf16 %v4737, %v4736
      %v5460 = vpack.c.bf16 %v4739, %v4738
      %v5461 = vpack.c.bf16 %v4741, %v4740
      %v5462 = vpack.c.bf16 %v4743, %v4742
      %v5463 = vpack.c.bf16 %v4745, %v4744
      %v5464 = vpack.c.bf16 %v4747, %v4746
      %v5465 = vpack.c.bf16 %v4749, %v4748
      %v5466 = vpack.c.bf16 %v4751, %v4750
      %v5467 = vpack.c.bf16 %v4753, %v4752
      %v5468 = vpack.c.bf16 %v4755, %v4754
      %v5469 = vpack.c.bf16 %v4757, %v4756
      %v5470 = vpack.c.bf16 %v4759, %v4758
      %v5471 = vpack.c.bf16 %v4761, %v4760
      %v5472 = vmul.bf16 %v5218, %v5408
      %v5473 = vmul.bf16 %v5221, %v5409
      %v5474 = vmul.bf16 %v5224, %v5410
      %v5475 = vmul.bf16 %v5227, %v5411
      %v5476 = vmul.bf16 %v5230, %v5412
      %v5477 = vmul.bf16 %v5233, %v5413
      %v5478 = vmul.bf16 %v5236, %v5414
      %v5479 = vmul.bf16 %v5239, %v5415
      %v5480 = vmul.bf16 %v5242, %v5416
      %v5481 = vmul.bf16 %v5245, %v5417
      %v5482 = vmul.bf16 %v5248, %v5418
      %v5483 = vmul.bf16 %v5251, %v5419
      %v5484 = vmul.bf16 %v5254, %v5420
      %v5485 = vmul.bf16 %v5257, %v5421
      %v5486 = vmul.bf16 %v5260, %v5422
      %v5487 = vmul.bf16 %v5263, %v5423
      %v5488 = vmul.bf16 %v5266, %v5424
      %v5489 = vmul.bf16 %v5269, %v5425
      %v5490 = vmul.bf16 %v5272, %v5426
      %v5491 = vmul.bf16 %v5275, %v5427
      %v5492 = vmul.bf16 %v5278, %v5428
      %v5493 = vmul.bf16 %v5281, %v5429
      %v5494 = vmul.bf16 %v5284, %v5430
      %v5495 = vmul.bf16 %v5287, %v5431
      %v5496 = vmul.bf16 %v5290, %v5432
      %v5497 = vmul.bf16 %v5293, %v5433
      %v5498 = vmul.bf16 %v5296, %v5434
      %v5499 = vmul.bf16 %v5299, %v5435
      %v5500 = vmul.bf16 %v5302, %v5436
      %v5501 = vmul.bf16 %v5305, %v5437
      %v5502 = vmul.bf16 %v5308, %v5438
      %v5503 = vmul.bf16 %v5311, %v5439
      %v5504 = vmul.bf16 %v5314, %v5440
      %v5505 = vmul.bf16 %v5317, %v5441
      %v5506 = vmul.bf16 %v5320, %v5442
      %v5507 = vmul.bf16 %v5323, %v5443
      %v5508 = vmul.bf16 %v5326, %v5444
      %v5509 = vmul.bf16 %v5329, %v5445
      %v5510 = vmul.bf16 %v5332, %v5446
      %v5511 = vmul.bf16 %v5335, %v5447
      %v5512 = vmul.bf16 %v5338, %v5448
      %v5513 = vmul.bf16 %v5341, %v5449
      %v5514 = vmul.bf16 %v5344, %v5450
      %v5515 = vmul.bf16 %v5347, %v5451
      %v5516 = vmul.bf16 %v5350, %v5452
      %v5517 = vmul.bf16 %v5353, %v5453
      %v5518 = vmul.bf16 %v5356, %v5454
      %v5519 = vmul.bf16 %v5359, %v5455
      %v5520 = vmul.bf16 %v5362, %v5456
      %v5521 = vmul.bf16 %v5365, %v5457
      %v5522 = vmul.bf16 %v5368, %v5458
      %v5523 = vmul.bf16 %v5371, %v5459
      %v5524 = vmul.bf16 %v5374, %v5460
      %v5525 = vmul.bf16 %v5377, %v5461
      %v5526 = vmul.bf16 %v5380, %v5462
      %v5527 = vmul.bf16 %v5383, %v5463
      %v5528 = vmul.bf16 %v5386, %v5464
      %v5529 = vmul.bf16 %v5389, %v5465
      %v5530 = vmul.bf16 %v5392, %v5466
      %v5531 = vmul.bf16 %v5395, %v5467
      %v5532 = vmul.bf16 %v5398, %v5468
      %v5533 = vmul.bf16 %v5401, %v5469
      %v5534 = vmul.bf16 %v5404, %v5470
      %v5535 = vmul.bf16 %v5407, %v5471
      %v5536 = vld [vmem:[%s8] sm:$0xff]
      %v5537 = vld [vmem:[%s8 + $0x8] sm:$0xff]
      %v5538 = vld [vmem:[%s8 + $0x10] sm:$0xff]
      %v5539 = vld [vmem:[%s8 + $0x18] sm:$0xff]
      %v5540 = vld [vmem:[%s8 + $0x20] sm:$0xff]
      %v5541 = vld [vmem:[%s8 + $0x28] sm:$0xff]
      %v5542 = vld [vmem:[%s8 + $0x30] sm:$0xff]
      %v5543 = vld [vmem:[%s8 + $0x38] sm:$0xff]
      %v5544 = vld [vmem:[%s8 + $0x40] sm:$0xff]
      %v5545 = vld [vmem:[%s8 + $0x48] sm:$0xff]
      %v5546 = vld [vmem:[%s8 + $0x50] sm:$0xff]
      %v5547 = vld [vmem:[%s8 + $0x58] sm:$0xff]
      %v5548 = vld [vmem:[%s8 + $0x60] sm:$0xff]
      %v5549 = vld [vmem:[%s8 + $0x68] sm:$0xff]
      %v5550 = vld [vmem:[%s8 + $0x70] sm:$0xff]
      %v5551 = vld [vmem:[%s8 + $0x78] sm:$0xff]
      %v5552 = vld [vmem:[%s8 + $0x80] sm:$0xff]
      %v5553 = vld [vmem:[%s8 + $0x88] sm:$0xff]
      %v5554 = vld [vmem:[%s8 + $0x90] sm:$0xff]
      %v5555 = vld [vmem:[%s8 + $0x98] sm:$0xff]
      %v5556 = vld [vmem:[%s8 + $0xa0] sm:$0xff]
      %v5557 = vld [vmem:[%s8 + $0xa8] sm:$0xff]
      %v5558 = vld [vmem:[%s8 + $0xb0] sm:$0xff]
      %v5559 = vld [vmem:[%s8 + $0xb8] sm:$0xff]
      %v5560 = vld [vmem:[%s8 + $0xc0] sm:$0xff]
      %v5561 = vld [vmem:[%s8 + $0xc8] sm:$0xff]
      %v5562 = vld [vmem:[%s8 + $0xd0] sm:$0xff]
      %v5563 = vld [vmem:[%s8 + $0xd8] sm:$0xff]
      %v5564 = vld [vmem:[%s8 + $0xe0] sm:$0xff]
      %v5565 = vld [vmem:[%s8 + $0xe8] sm:$0xff]
      %v5566 = vld [vmem:[%s8 + $0xf0] sm:$0xff]
      %v5567 = vld [vmem:[%s8 + $0xf8] sm:$0xff]
      %v5568 = vld [vmem:[%s8 + $0x100] sm:$0xff]
      %v5569 = vld [vmem:[%s8 + $0x108] sm:$0xff]
      %v5570 = vld [vmem:[%s8 + $0x110] sm:$0xff]
      %v5571 = vld [vmem:[%s8 + $0x118] sm:$0xff]
      %v5572 = vld [vmem:[%s8 + $0x120] sm:$0xff]
      %v5573 = vld [vmem:[%s8 + $0x128] sm:$0xff]
      %v5574 = vld [vmem:[%s8 + $0x130] sm:$0xff]
      %v5575 = vld [vmem:[%s8 + $0x138] sm:$0xff]
      %v5576 = vld [vmem:[%s8 + $0x140] sm:$0xff]
      %v5577 = vld [vmem:[%s8 + $0x148] sm:$0xff]
      %v5578 = vld [vmem:[%s8 + $0x150] sm:$0xff]
      %v5579 = vld [vmem:[%s8 + $0x158] sm:$0xff]
      %v5580 = vld [vmem:[%s8 + $0x160] sm:$0xff]
      %v5581 = vld [vmem:[%s8 + $0x168] sm:$0xff]
      %v5582 = vld [vmem:[%s8 + $0x170] sm:$0xff]
      %v5583 = vld [vmem:[%s8 + $0x178] sm:$0xff]
      %v5584 = vld [vmem:[%s8 + $0x180] sm:$0xff]
      %v5585 = vld [vmem:[%s8 + $0x188] sm:$0xff]
      %v5586 = vld [vmem:[%s8 + $0x190] sm:$0xff]
      %v5587 = vld [vmem:[%s8 + $0x198] sm:$0xff]
      %v5588 = vld [vmem:[%s8 + $0x1a0] sm:$0xff]
      %v5589 = vld [vmem:[%s8 + $0x1a8] sm:$0xff]
      %v5590 = vld [vmem:[%s8 + $0x1b0] sm:$0xff]
      %v5591 = vld [vmem:[%s8 + $0x1b8] sm:$0xff]
      %v5592 = vld [vmem:[%s8 + $0x1c0] sm:$0xff]
      %v5593 = vld [vmem:[%s8 + $0x1c8] sm:$0xff]
      %v5594 = vld [vmem:[%s8 + $0x1d0] sm:$0xff]
      %v5595 = vld [vmem:[%s8 + $0x1d8] sm:$0xff]
      %v5596 = vld [vmem:[%s8 + $0x1e0] sm:$0xff]
      %v5597 = vld [vmem:[%s8 + $0x1e8] sm:$0xff]
      %v5598 = vld [vmem:[%s8 + $0x1f0] sm:$0xff]
      %v5599 = vld [vmem:[%s8 + $0x1f8] sm:$0xff]
      %v5600 = vld [vmem:[%s8 + $0x200] sm:$0xff]
      %v5601 = vld [vmem:[%s8 + $0x208] sm:$0xff]
      %v5602 = vld [vmem:[%s8 + $0x210] sm:$0xff]
      %v5603 = vld [vmem:[%s8 + $0x218] sm:$0xff]
      %v5604 = vld [vmem:[%s8 + $0x220] sm:$0xff]
      %v5605 = vld [vmem:[%s8 + $0x228] sm:$0xff]
      %v5606 = vld [vmem:[%s8 + $0x230] sm:$0xff]
      %v5607 = vld [vmem:[%s8 + $0x238] sm:$0xff]
      %v5608 = vld [vmem:[%s8 + $0x240] sm:$0xff]
      %v5609 = vld [vmem:[%s8 + $0x248] sm:$0xff]
      %v5610 = vld [vmem:[%s8 + $0x250] sm:$0xff]
      %v5611 = vld [vmem:[%s8 + $0x258] sm:$0xff]
      %v5612 = vld [vmem:[%s8 + $0x260] sm:$0xff]
      %v5613 = vld [vmem:[%s8 + $0x268] sm:$0xff]
      %v5614 = vld [vmem:[%s8 + $0x270] sm:$0xff]
      %v5615 = vld [vmem:[%s8 + $0x278] sm:$0xff]
      %v5616 = vld [vmem:[%s8 + $0x280] sm:$0xff]
      %v5617 = vld [vmem:[%s8 + $0x288] sm:$0xff]
      %v5618 = vld [vmem:[%s8 + $0x290] sm:$0xff]
      %v5619 = vld [vmem:[%s8 + $0x298] sm:$0xff]
      %v5620 = vld [vmem:[%s8 + $0x2a0] sm:$0xff]
      %v5621 = vld [vmem:[%s8 + $0x2a8] sm:$0xff]
      %v5622 = vld [vmem:[%s8 + $0x2b0] sm:$0xff]
      %v5623 = vld [vmem:[%s8 + $0x2b8] sm:$0xff]
      %v5624 = vld [vmem:[%s8 + $0x2c0] sm:$0xff]
      %v5625 = vld [vmem:[%s8 + $0x2c8] sm:$0xff]
      %v5626 = vld [vmem:[%s8 + $0x2d0] sm:$0xff]
      %v5627 = vld [vmem:[%s8 + $0x2d8] sm:$0xff]
      %v5628 = vld [vmem:[%s8 + $0x2e0] sm:$0xff]
      %v5629 = vld [vmem:[%s8 + $0x2e8] sm:$0xff]
      %v5630 = vld [vmem:[%s8 + $0x2f0] sm:$0xff]
      %v5631 = vld [vmem:[%s8 + $0x2f8] sm:$0xff]
      %v5632 = vld [vmem:[%s8 + $0x300] sm:$0xff]
      %v5633 = vld [vmem:[%s8 + $0x308] sm:$0xff]
      %v5634 = vld [vmem:[%s8 + $0x310] sm:$0xff]
      %v5635 = vld [vmem:[%s8 + $0x318] sm:$0xff]
      %v5636 = vld [vmem:[%s8 + $0x320] sm:$0xff]
      %v5637 = vld [vmem:[%s8 + $0x328] sm:$0xff]
      %v5638 = vld [vmem:[%s8 + $0x330] sm:$0xff]
      %v5639 = vld [vmem:[%s8 + $0x338] sm:$0xff]
      %v5640 = vld [vmem:[%s8 + $0x340] sm:$0xff]
      %v5641 = vld [vmem:[%s8 + $0x348] sm:$0xff]
      %v5642 = vld [vmem:[%s8 + $0x350] sm:$0xff]
      %v5643 = vld [vmem:[%s8 + $0x358] sm:$0xff]
      %v5644 = vld [vmem:[%s8 + $0x360] sm:$0xff]
      %v5645 = vld [vmem:[%s8 + $0x368] sm:$0xff]
      %v5646 = vld [vmem:[%s8 + $0x370] sm:$0xff]
      %v5647 = vld [vmem:[%s8 + $0x378] sm:$0xff]
      %v5648 = vld [vmem:[%s8 + $0x380] sm:$0xff]
      %v5649 = vld [vmem:[%s8 + $0x388] sm:$0xff]
      %v5650 = vld [vmem:[%s8 + $0x390] sm:$0xff]
      %v5651 = vld [vmem:[%s8 + $0x398] sm:$0xff]
      %v5652 = vld [vmem:[%s8 + $0x3a0] sm:$0xff]
      %v5653 = vld [vmem:[%s8 + $0x3a8] sm:$0xff]
      %v5654 = vld [vmem:[%s8 + $0x3b0] sm:$0xff]
      %v5655 = vld [vmem:[%s8 + $0x3b8] sm:$0xff]
      %v5656 = vld [vmem:[%s8 + $0x3c0] sm:$0xff]
      %v5657 = vld [vmem:[%s8 + $0x3c8] sm:$0xff]
      %v5658 = vld [vmem:[%s8 + $0x3d0] sm:$0xff]
      %v5659 = vld [vmem:[%s8 + $0x3d8] sm:$0xff]
      %v5660 = vld [vmem:[%s8 + $0x3e0] sm:$0xff]
      %v5661 = vld [vmem:[%s8 + $0x3e8] sm:$0xff]
      %v5662 = vld [vmem:[%s8 + $0x3f0] sm:$0xff]
      %v5663 = vld [vmem:[%s8 + $0x3f8] sm:$0xff]
      %v5792 = vunpack.c.l.b16 %v5536
      %v5793 = vunpack.c.h.b16 %v5536
      %v5794 = vunpack.c.l.b16 %v5537
      %v5795 = vunpack.c.h.b16 %v5537
      %v5796 = vunpack.c.l.b16 %v5538
      %v5797 = vunpack.c.h.b16 %v5538
      %v5798 = vunpack.c.l.b16 %v5539
      %v5799 = vunpack.c.h.b16 %v5539
      %v5800 = vunpack.c.l.b16 %v5540
      %v5801 = vunpack.c.h.b16 %v5540
      %v5802 = vunpack.c.l.b16 %v5541
      %v5803 = vunpack.c.h.b16 %v5541
      %v5804 = vunpack.c.l.b16 %v5542
      %v5805 = vunpack.c.h.b16 %v5542
      %v5806 = vunpack.c.l.b16 %v5543
      %v5807 = vunpack.c.h.b16 %v5543
      %v5808 = vunpack.c.l.b16 %v5544
      %v5809 = vunpack.c.h.b16 %v5544
      %v5810 = vunpack.c.l.b16 %v5545
      %v5811 = vunpack.c.h.b16 %v5545
      %v5812 = vunpack.c.l.b16 %v5546
      %v5813 = vunpack.c.h.b16 %v5546
      %v5814 = vunpack.c.l.b16 %v5547
      %v5815 = vunpack.c.h.b16 %v5547
      %v5816 = vunpack.c.l.b16 %v5548
      %v5817 = vunpack.c.h.b16 %v5548
      %v5818 = vunpack.c.l.b16 %v5549
      %v5819 = vunpack.c.h.b16 %v5549
      %v5820 = vunpack.c.l.b16 %v5550
      %v5821 = vunpack.c.h.b16 %v5550
      %v5822 = vunpack.c.l.b16 %v5551
      %v5823 = vunpack.c.h.b16 %v5551
      %v5824 = vunpack.c.l.b16 %v5552
      %v5825 = vunpack.c.h.b16 %v5552
      %v5826 = vunpack.c.l.b16 %v5553
      %v5827 = vunpack.c.h.b16 %v5553
      %v5828 = vunpack.c.l.b16 %v5554
      %v5829 = vunpack.c.h.b16 %v5554
      %v5830 = vunpack.c.l.b16 %v5555
      %v5831 = vunpack.c.h.b16 %v5555
      %v5832 = vunpack.c.l.b16 %v5556
      %v5833 = vunpack.c.h.b16 %v5556
      %v5834 = vunpack.c.l.b16 %v5557
      %v5835 = vunpack.c.h.b16 %v5557
      %v5836 = vunpack.c.l.b16 %v5558
      %v5837 = vunpack.c.h.b16 %v5558
      %v5838 = vunpack.c.l.b16 %v5559
      %v5839 = vunpack.c.h.b16 %v5559
      %v5840 = vunpack.c.l.b16 %v5560
      %v5841 = vunpack.c.h.b16 %v5560
      %v5842 = vunpack.c.l.b16 %v5561
      %v5843 = vunpack.c.h.b16 %v5561
      %v5844 = vunpack.c.l.b16 %v5562
      %v5845 = vunpack.c.h.b16 %v5562
      %v5846 = vunpack.c.l.b16 %v5563
      %v5847 = vunpack.c.h.b16 %v5563
      %v5848 = vunpack.c.l.b16 %v5564
      %v5849 = vunpack.c.h.b16 %v5564
      %v5850 = vunpack.c.l.b16 %v5565
      %v5851 = vunpack.c.h.b16 %v5565
      %v5852 = vunpack.c.l.b16 %v5566
      %v5853 = vunpack.c.h.b16 %v5566
      %v5854 = vunpack.c.l.b16 %v5567
      %v5855 = vunpack.c.h.b16 %v5567
      %v5856 = vunpack.c.l.b16 %v5568
      %v5857 = vunpack.c.h.b16 %v5568
      %v5858 = vunpack.c.l.b16 %v5569
      %v5859 = vunpack.c.h.b16 %v5569
      %v5860 = vunpack.c.l.b16 %v5570
      %v5861 = vunpack.c.h.b16 %v5570
      %v5862 = vunpack.c.l.b16 %v5571
      %v5863 = vunpack.c.h.b16 %v5571
      %v5864 = vunpack.c.l.b16 %v5572
      %v5865 = vunpack.c.h.b16 %v5572
      %v5866 = vunpack.c.l.b16 %v5573
      %v5867 = vunpack.c.h.b16 %v5573
      %v5868 = vunpack.c.l.b16 %v5574
      %v5869 = vunpack.c.h.b16 %v5574
      %v5870 = vunpack.c.l.b16 %v5575
      %v5871 = vunpack.c.h.b16 %v5575
      %v5872 = vunpack.c.l.b16 %v5576
      %v5873 = vunpack.c.h.b16 %v5576
      %v5874 = vunpack.c.l.b16 %v5577
      %v5875 = vunpack.c.h.b16 %v5577
      %v5876 = vunpack.c.l.b16 %v5578
      %v5877 = vunpack.c.h.b16 %v5578
      %v5878 = vunpack.c.l.b16 %v5579
      %v5879 = vunpack.c.h.b16 %v5579
      %v5880 = vunpack.c.l.b16 %v5580
      %v5881 = vunpack.c.h.b16 %v5580
      %v5882 = vunpack.c.l.b16 %v5581
      %v5883 = vunpack.c.h.b16 %v5581
      %v5884 = vunpack.c.l.b16 %v5582
      %v5885 = vunpack.c.h.b16 %v5582
      %v5886 = vunpack.c.l.b16 %v5583
      %v5887 = vunpack.c.h.b16 %v5583
      %v5888 = vunpack.c.l.b16 %v5584
      %v5889 = vunpack.c.h.b16 %v5584
      %v5890 = vunpack.c.l.b16 %v5585
      %v5891 = vunpack.c.h.b16 %v5585
      %v5892 = vunpack.c.l.b16 %v5586
      %v5893 = vunpack.c.h.b16 %v5586
      %v5894 = vunpack.c.l.b16 %v5587
      %v5895 = vunpack.c.h.b16 %v5587
      %v5896 = vunpack.c.l.b16 %v5588
      %v5897 = vunpack.c.h.b16 %v5588
      %v5898 = vunpack.c.l.b16 %v5589
      %v5899 = vunpack.c.h.b16 %v5589
      %v5900 = vunpack.c.l.b16 %v5590
      %v5901 = vunpack.c.h.b16 %v5590
      %v5902 = vunpack.c.l.b16 %v5591
      %v5903 = vunpack.c.h.b16 %v5591
      %v5904 = vunpack.c.l.b16 %v5592
      %v5905 = vunpack.c.h.b16 %v5592
      %v5906 = vunpack.c.l.b16 %v5593
      %v5907 = vunpack.c.h.b16 %v5593
      %v5908 = vunpack.c.l.b16 %v5594
      %v5909 = vunpack.c.h.b16 %v5594
      %v5910 = vunpack.c.l.b16 %v5595
      %v5911 = vunpack.c.h.b16 %v5595
      %v5912 = vunpack.c.l.b16 %v5596
      %v5913 = vunpack.c.h.b16 %v5596
      %v5914 = vunpack.c.l.b16 %v5597
      %v5915 = vunpack.c.h.b16 %v5597
      %v5916 = vunpack.c.l.b16 %v5598
      %v5917 = vunpack.c.h.b16 %v5598
      %v5918 = vunpack.c.l.b16 %v5599
      %v5919 = vunpack.c.h.b16 %v5599
      %v5920 = vunpack.c.l.b16 %v5600
      %v5921 = vunpack.c.h.b16 %v5600
      %v5922 = vunpack.c.l.b16 %v5601
      %v5923 = vunpack.c.h.b16 %v5601
      %v5924 = vunpack.c.l.b16 %v5602
      %v5925 = vunpack.c.h.b16 %v5602
      %v5926 = vunpack.c.l.b16 %v5603
      %v5927 = vunpack.c.h.b16 %v5603
      %v5928 = vunpack.c.l.b16 %v5604
      %v5929 = vunpack.c.h.b16 %v5604
      %v5930 = vunpack.c.l.b16 %v5605
      %v5931 = vunpack.c.h.b16 %v5605
      %v5932 = vunpack.c.l.b16 %v5606
      %v5933 = vunpack.c.h.b16 %v5606
      %v5934 = vunpack.c.l.b16 %v5607
      %v5935 = vunpack.c.h.b16 %v5607
      %v5936 = vunpack.c.l.b16 %v5608
      %v5937 = vunpack.c.h.b16 %v5608
      %v5938 = vunpack.c.l.b16 %v5609
      %v5939 = vunpack.c.h.b16 %v5609
      %v5940 = vunpack.c.l.b16 %v5610
      %v5941 = vunpack.c.h.b16 %v5610
      %v5942 = vunpack.c.l.b16 %v5611
      %v5943 = vunpack.c.h.b16 %v5611
      %v5944 = vunpack.c.l.b16 %v5612
      %v5945 = vunpack.c.h.b16 %v5612
      %v5946 = vunpack.c.l.b16 %v5613
      %v5947 = vunpack.c.h.b16 %v5613
      %v5948 = vunpack.c.l.b16 %v5614
      %v5949 = vunpack.c.h.b16 %v5614
      %v5950 = vunpack.c.l.b16 %v5615
      %v5951 = vunpack.c.h.b16 %v5615
      %v5952 = vunpack.c.l.b16 %v5616
      %v5953 = vunpack.c.h.b16 %v5616
      %v5954 = vunpack.c.l.b16 %v5617
      %v5955 = vunpack.c.h.b16 %v5617
      %v5956 = vunpack.c.l.b16 %v5618
      %v5957 = vunpack.c.h.b16 %v5618
      %v5958 = vunpack.c.l.b16 %v5619
      %v5959 = vunpack.c.h.b16 %v5619
      %v5960 = vunpack.c.l.b16 %v5620
      %v5961 = vunpack.c.h.b16 %v5620
      %v5962 = vunpack.c.l.b16 %v5621
      %v5963 = vunpack.c.h.b16 %v5621
      %v5964 = vunpack.c.l.b16 %v5622
      %v5965 = vunpack.c.h.b16 %v5622
      %v5966 = vunpack.c.l.b16 %v5623
      %v5967 = vunpack.c.h.b16 %v5623
      %v5968 = vunpack.c.l.b16 %v5624
      %v5969 = vunpack.c.h.b16 %v5624
      %v5970 = vunpack.c.l.b16 %v5625
      %v5971 = vunpack.c.h.b16 %v5625
      %v5972 = vunpack.c.l.b16 %v5626
      %v5973 = vunpack.c.h.b16 %v5626
      %v5974 = vunpack.c.l.b16 %v5627
      %v5975 = vunpack.c.h.b16 %v5627
      %v5976 = vunpack.c.l.b16 %v5628
      %v5977 = vunpack.c.h.b16 %v5628
      %v5978 = vunpack.c.l.b16 %v5629
      %v5979 = vunpack.c.h.b16 %v5629
      %v5980 = vunpack.c.l.b16 %v5630
      %v5981 = vunpack.c.h.b16 %v5630
      %v5982 = vunpack.c.l.b16 %v5631
      %v5983 = vunpack.c.h.b16 %v5631
      %v5984 = vunpack.c.l.b16 %v5632
      %v5985 = vunpack.c.h.b16 %v5632
      %v5986 = vunpack.c.l.b16 %v5633
      %v5987 = vunpack.c.h.b16 %v5633
      %v5988 = vunpack.c.l.b16 %v5634
      %v5989 = vunpack.c.h.b16 %v5634
      %v5990 = vunpack.c.l.b16 %v5635
      %v5991 = vunpack.c.h.b16 %v5635
      %v5992 = vunpack.c.l.b16 %v5636
      %v5993 = vunpack.c.h.b16 %v5636
      %v5994 = vunpack.c.l.b16 %v5637
      %v5995 = vunpack.c.h.b16 %v5637
      %v5996 = vunpack.c.l.b16 %v5638
      %v5997 = vunpack.c.h.b16 %v5638
      %v5998 = vunpack.c.l.b16 %v5639
      %v5999 = vunpack.c.h.b16 %v5639
      %v6000 = vunpack.c.l.b16 %v5640
      %v6001 = vunpack.c.h.b16 %v5640
      %v6002 = vunpack.c.l.b16 %v5641
      %v6003 = vunpack.c.h.b16 %v5641
      %v6004 = vunpack.c.l.b16 %v5642
      %v6005 = vunpack.c.h.b16 %v5642
      %v6006 = vunpack.c.l.b16 %v5643
      %v6007 = vunpack.c.h.b16 %v5643
      %v6008 = vunpack.c.l.b16 %v5644
      %v6009 = vunpack.c.h.b16 %v5644
      %v6010 = vunpack.c.l.b16 %v5645
      %v6011 = vunpack.c.h.b16 %v5645
      %v6012 = vunpack.c.l.b16 %v5646
      %v6013 = vunpack.c.h.b16 %v5646
      %v6014 = vunpack.c.l.b16 %v5647
      %v6015 = vunpack.c.h.b16 %v5647
      %v6016 = vunpack.c.l.b16 %v5648
      %v6017 = vunpack.c.h.b16 %v5648
      %v6018 = vunpack.c.l.b16 %v5649
      %v6019 = vunpack.c.h.b16 %v5649
      %v6020 = vunpack.c.l.b16 %v5650
      %v6021 = vunpack.c.h.b16 %v5650
      %v6022 = vunpack.c.l.b16 %v5651
      %v6023 = vunpack.c.h.b16 %v5651
      %v6024 = vunpack.c.l.b16 %v5652
      %v6025 = vunpack.c.h.b16 %v5652
      %v6026 = vunpack.c.l.b16 %v5653
      %v6027 = vunpack.c.h.b16 %v5653
      %v6028 = vunpack.c.l.b16 %v5654
      %v6029 = vunpack.c.h.b16 %v5654
      %v6030 = vunpack.c.l.b16 %v5655
      %v6031 = vunpack.c.h.b16 %v5655
      %v6032 = vunpack.c.l.b16 %v5656
      %v6033 = vunpack.c.h.b16 %v5656
      %v6034 = vunpack.c.l.b16 %v5657
      %v6035 = vunpack.c.h.b16 %v5657
      %v6036 = vunpack.c.l.b16 %v5658
      %v6037 = vunpack.c.h.b16 %v5658
      %v6038 = vunpack.c.l.b16 %v5659
      %v6039 = vunpack.c.h.b16 %v5659
      %v6040 = vunpack.c.l.b16 %v5660
      %v6041 = vunpack.c.h.b16 %v5660
      %v6042 = vunpack.c.l.b16 %v5661
      %v6043 = vunpack.c.h.b16 %v5661
      %v6044 = vunpack.c.l.b16 %v5662
      %v6045 = vunpack.c.h.b16 %v5662
      %v6046 = vunpack.c.l.b16 %v5663
      %v6047 = vunpack.c.h.b16 %v5663
      %v6048 = vpack.c.b16 %v5800, %v5792
      %v6049 = vpack.c.b16 %v5801, %v5793
      %v6050 = vpack.c.b16 %v5802, %v5794
      %v6051 = vpack.c.b16 %v5803, %v5795
      %v6052 = vpack.c.b16 %v5804, %v5796
      %v6053 = vpack.c.b16 %v5805, %v5797
      %v6054 = vpack.c.b16 %v5806, %v5798
      %v6055 = vpack.c.b16 %v5807, %v5799
      %v6056 = vpack.c.b16 %v5816, %v5808
      %v6057 = vpack.c.b16 %v5817, %v5809
      %v6058 = vpack.c.b16 %v5818, %v5810
      %v6059 = vpack.c.b16 %v5819, %v5811
      %v6060 = vpack.c.b16 %v5820, %v5812
      %v6061 = vpack.c.b16 %v5821, %v5813
      %v6062 = vpack.c.b16 %v5822, %v5814
      %v6063 = vpack.c.b16 %v5823, %v5815
      %v6064 = vpack.c.b16 %v5832, %v5824
      %v6065 = vpack.c.b16 %v5833, %v5825
      %v6066 = vpack.c.b16 %v5834, %v5826
      %v6067 = vpack.c.b16 %v5835, %v5827
      %v6068 = vpack.c.b16 %v5836, %v5828
      %v6069 = vpack.c.b16 %v5837, %v5829
      %v6070 = vpack.c.b16 %v5838, %v5830
      %v6071 = vpack.c.b16 %v5839, %v5831
      %v6072 = vpack.c.b16 %v5848, %v5840
      %v6073 = vpack.c.b16 %v5849, %v5841
      %v6074 = vpack.c.b16 %v5850, %v5842
      %v6075 = vpack.c.b16 %v5851, %v5843
      %v6076 = vpack.c.b16 %v5852, %v5844
      %v6077 = vpack.c.b16 %v5853, %v5845
      %v6078 = vpack.c.b16 %v5854, %v5846
      %v6079 = vpack.c.b16 %v5855, %v5847
      %v6080 = vpack.c.b16 %v5864, %v5856
      %v6081 = vpack.c.b16 %v5865, %v5857
      %v6082 = vpack.c.b16 %v5866, %v5858
      %v6083 = vpack.c.b16 %v5867, %v5859
      %v6084 = vpack.c.b16 %v5868, %v5860
      %v6085 = vpack.c.b16 %v5869, %v5861
      %v6086 = vpack.c.b16 %v5870, %v5862
      %v6087 = vpack.c.b16 %v5871, %v5863
      %v6088 = vpack.c.b16 %v5880, %v5872
      %v6089 = vpack.c.b16 %v5881, %v5873
      %v6090 = vpack.c.b16 %v5882, %v5874
      %v6091 = vpack.c.b16 %v5883, %v5875
      %v6092 = vpack.c.b16 %v5884, %v5876
      %v6093 = vpack.c.b16 %v5885, %v5877
      %v6094 = vpack.c.b16 %v5886, %v5878
      %v6095 = vpack.c.b16 %v5887, %v5879
      %v6096 = vpack.c.b16 %v5896, %v5888
      %v6097 = vpack.c.b16 %v5897, %v5889
      %v6098 = vpack.c.b16 %v5898, %v5890
      %v6099 = vpack.c.b16 %v5899, %v5891
      %v6100 = vpack.c.b16 %v5900, %v5892
      %v6101 = vpack.c.b16 %v5901, %v5893
      %v6102 = vpack.c.b16 %v5902, %v5894
      %v6103 = vpack.c.b16 %v5903, %v5895
      %v6104 = vpack.c.b16 %v5912, %v5904
      %v6105 = vpack.c.b16 %v5913, %v5905
      %v6106 = vpack.c.b16 %v5914, %v5906
      %v6107 = vpack.c.b16 %v5915, %v5907
      %v6108 = vpack.c.b16 %v5916, %v5908
      %v6109 = vpack.c.b16 %v5917, %v5909
      %v6110 = vpack.c.b16 %v5918, %v5910
      %v6111 = vpack.c.b16 %v5919, %v5911
      %v6112 = vpack.c.b16 %v5928, %v5920
      %v6113 = vpack.c.b16 %v5929, %v5921
      %v6114 = vpack.c.b16 %v5930, %v5922
      %v6115 = vpack.c.b16 %v5931, %v5923
      %v6116 = vpack.c.b16 %v5932, %v5924
      %v6117 = vpack.c.b16 %v5933, %v5925
      %v6118 = vpack.c.b16 %v5934, %v5926
      %v6119 = vpack.c.b16 %v5935, %v5927
      %v6120 = vpack.c.b16 %v5944, %v5936
      %v6121 = vpack.c.b16 %v5945, %v5937
      %v6122 = vpack.c.b16 %v5946, %v5938
      %v6123 = vpack.c.b16 %v5947, %v5939
      %v6124 = vpack.c.b16 %v5948, %v5940
      %v6125 = vpack.c.b16 %v5949, %v5941
      %v6126 = vpack.c.b16 %v5950, %v5942
      %v6127 = vpack.c.b16 %v5951, %v5943
      %v6128 = vpack.c.b16 %v5960, %v5952
      %v6129 = vpack.c.b16 %v5961, %v5953
      %v6130 = vpack.c.b16 %v5962, %v5954
      %v6131 = vpack.c.b16 %v5963, %v5955
      %v6132 = vpack.c.b16 %v5964, %v5956
      %v6133 = vpack.c.b16 %v5965, %v5957
      %v6134 = vpack.c.b16 %v5966, %v5958
      %v6135 = vpack.c.b16 %v5967, %v5959
      %v6136 = vpack.c.b16 %v5976, %v5968
      %v6137 = vpack.c.b16 %v5977, %v5969
      %v6138 = vpack.c.b16 %v5978, %v5970
      %v6139 = vpack.c.b16 %v5979, %v5971
      %v6140 = vpack.c.b16 %v5980, %v5972
      %v6141 = vpack.c.b16 %v5981, %v5973
      %v6142 = vpack.c.b16 %v5982, %v5974
      %v6143 = vpack.c.b16 %v5983, %v5975
      %v6144 = vpack.c.b16 %v5992, %v5984
      %v6145 = vpack.c.b16 %v5993, %v5985
      %v6146 = vpack.c.b16 %v5994, %v5986
      %v6147 = vpack.c.b16 %v5995, %v5987
      %v6148 = vpack.c.b16 %v5996, %v5988
      %v6149 = vpack.c.b16 %v5997, %v5989
      %v6150 = vpack.c.b16 %v5998, %v5990
      %v6151 = vpack.c.b16 %v5999, %v5991
      %v6152 = vpack.c.b16 %v6008, %v6000
      %v6153 = vpack.c.b16 %v6009, %v6001
      %v6154 = vpack.c.b16 %v6010, %v6002
      %v6155 = vpack.c.b16 %v6011, %v6003
      %v6156 = vpack.c.b16 %v6012, %v6004
      %v6157 = vpack.c.b16 %v6013, %v6005
      %v6158 = vpack.c.b16 %v6014, %v6006
      %v6159 = vpack.c.b16 %v6015, %v6007
      %v6160 = vpack.c.b16 %v6024, %v6016
      %v6161 = vpack.c.b16 %v6025, %v6017
      %v6162 = vpack.c.b16 %v6026, %v6018
      %v6163 = vpack.c.b16 %v6027, %v6019
      %v6164 = vpack.c.b16 %v6028, %v6020
      %v6165 = vpack.c.b16 %v6029, %v6021
      %v6166 = vpack.c.b16 %v6030, %v6022
      %v6167 = vpack.c.b16 %v6031, %v6023
      %v6168 = vpack.c.b16 %v6040, %v6032
      %v6169 = vpack.c.b16 %v6041, %v6033
      %v6170 = vpack.c.b16 %v6042, %v6034
      %v6171 = vpack.c.b16 %v6043, %v6035
      %v6172 = vpack.c.b16 %v6044, %v6036
      %v6173 = vpack.c.b16 %v6045, %v6037
      %v6174 = vpack.c.b16 %v6046, %v6038
      %v6175 = vpack.c.b16 %v6047, %v6039
      %6304 = vmatprep.subr.bf16.mxu0 %v5472
      %6305 = vmatpush1.bf16.msra.mxu0 %v5218
      %6306 = vmatprep.subr.bf16.mxu0 %v5473
      %6307 = vmatpush1.bf16.msra.mxu0 %v5221
      %6308 = vmatprep.subr.bf16.mxu0 %v5474
      %6309 = vmatpush1.bf16.msra.mxu0 %v5224
      %6310 = vmatprep.subr.bf16.mxu0 %v5475
      %6311 = vmatpush1.bf16.msra.mxu0 %v5227
      %6312 = vmatprep.subr.bf16.mxu0 %v5476
      %6313 = vmatpush1.bf16.msra.mxu0 %v5230
      %6314 = vmatprep.subr.bf16.mxu0 %v5477
      %6315 = vmatpush1.bf16.msra.mxu0 %v5233
      %6316 = vmatprep.subr.bf16.mxu0 %v5478
      %6317 = vmatpush1.bf16.msra.mxu0 %v5236
      %6318 = vmatprep.subr.bf16.mxu0 %v5479
      %6319 = vmatpush1.bf16.msra.mxu0 %v5239
      %6320 = vmatprep.subr.bf16.mxu0 %v5480
      %6321 = vmatpush1.bf16.msra.mxu0 %v5242
      %6322 = vmatprep.subr.bf16.mxu0 %v5481
      %6323 = vmatpush1.bf16.msra.mxu0 %v5245
      %6324 = vmatprep.subr.bf16.mxu0 %v5482
      %6325 = vmatpush1.bf16.msra.mxu0 %v5248
      %6326 = vmatprep.subr.bf16.mxu0 %v5483
      %6327 = vmatpush1.bf16.msra.mxu0 %v5251
      %6328 = vmatprep.subr.bf16.mxu0 %v5484
      %6329 = vmatpush1.bf16.msra.mxu0 %v5254
      %6330 = vmatprep.subr.bf16.mxu0 %v5485
      %6331 = vmatpush1.bf16.msra.mxu0 %v5257
      %6332 = vmatprep.subr.bf16.mxu0 %v5486
      %6333 = vmatpush1.bf16.msra.mxu0 %v5260
      %6334 = vmatprep.subr.bf16.mxu0 %v5487
      %6335 = vmatpush1.bf16.msra.mxu0 %v5263
      %6336 = vmatprep.mubr.bf16.mxu0 %v6049
      %6337 = vmatmul.mubr.bf16.gmra.mrb[0].mxu0 %v6048
      %v6338 = vpop.f32.mrb[0].mxu0
      %v6339 = vadd.f32 0.0, %v6338
      %v6340 = vpop.f32.mrb[0].mxu0
      %v6341 = vadd.f32 0.0, %v6340
      %v6342 = vpop.f32.mrb[0].mxu0
      %v6343 = vadd.f32 0.0, %v6342
      %v6344 = vpop.f32.mrb[0].mxu0
      %v6345 = vadd.f32 0.0, %v6344
      %6346 = vmatprep.mubr.bf16.mxu0 %v6057
      %6347 = vmatmul.mubr.bf16.gmra.mrb[0].mxu0 %v6056
      %v6348 = vpop.f32.mrb[0].mxu0
      %v6349 = vadd.f32 0.0, %v6348
      %v6350 = vpop.f32.mrb[0].mxu0
      %v6351 = vadd.f32 0.0, %v6350
      %v6352 = vpop.f32.mrb[0].mxu0
      %v6353 = vadd.f32 0.0, %v6352
      %v6354 = vpop.f32.mrb[0].mxu0
      %v6355 = vadd.f32 0.0, %v6354
      %6356 = vmatprep.mubr.bf16.mxu0 %v6065
      %6357 = vmatmul.mubr.bf16.gmra.mrb[0].mxu0 %v6064
      %v6358 = vpop.f32.mrb[0].mxu0
      %v6359 = vadd.f32 0.0, %v6358
      %v6360 = vpop.f32.mrb[0].mxu0
      %v6361 = vadd.f32 0.0, %v6360
      %v6362 = vpop.f32.mrb[0].mxu0
      %v6363 = vadd.f32 0.0, %v6362
      %v6364 = vpop.f32.mrb[0].mxu0
      %v6365 = vadd.f32 0.0, %v6364
      %6366 = vmatprep.mubr.bf16.mxu0 %v6073
      %6367 = vmatmul.mubr.bf16.gmra.mrb[0].mxu0 %v6072
      %v6368 = vpop.f32.mrb[0].mxu0
      %v6369 = vadd.f32 0.0, %v6368
      %v6370 = vpop.f32.mrb[0].mxu0
      %v6371 = vadd.f32 0.0, %v6370
      %v6372 = vpop.f32.mrb[0].mxu0
      %v6373 = vadd.f32 0.0, %v6372
      %v6374 = vpop.f32.mrb[0].mxu0
      %v6375 = vadd.f32 0.0, %v6374
      %6376 = vmatprep.mubr.bf16.mxu0 %v6081
      %6377 = vmatmul.mubr.bf16.gmra.mrb[0].mxu0 %v6080
      %v6378 = vpop.f32.mrb[0].mxu0
      %v6379 = vadd.f32 0.0, %v6378
      %v6380 = vpop.f32.mrb[0].mxu0
      %v6381 = vadd.f32 0.0, %v6380
      %v6382 = vpop.f32.mrb[0].mxu0
      %v6383 = vadd.f32 0.0, %v6382
      %v6384 = vpop.f32.mrb[0].mxu0
      %v6385 = vadd.f32 0.0, %v6384
      %6386 = vmatprep.mubr.bf16.mxu0 %v6089
      %6387 = vmatmul.mubr.bf16.gmra.mrb[0].mxu0 %v6088
      %v6388 = vpop.f32.mrb[0].mxu0
      %v6389 = vadd.f32 0.0, %v6388
      %v6390 = vpop.f32.mrb[0].mxu0
      %v6391 = vadd.f32 0.0, %v6390
      %v6392 = vpop.f32.mrb[0].mxu0
      %v6393 = vadd.f32 0.0, %v6392
      %v6394 = vpop.f32.mrb[0].mxu0
      %v6395 = vadd.f32 0.0, %v6394
      %6396 = vmatprep.mubr.bf16.mxu0 %v6097
      %6397 = vmatmul.mubr.bf16.gmra.mrb[0].mxu0 %v6096
      %v6398 = vpop.f32.mrb[0].mxu0
      %v6399 = vadd.f32 0.0, %v6398
      %v6400 = vpop.f32.mrb[0].mxu0
      %v6401 = vadd.f32 0.0, %v6400
      %v6402 = vpop.f32.mrb[0].mxu0
      %v6403 = vadd.f32 0.0, %v6402
      %v6404 = vpop.f32.mrb[0].mxu0
      %v6405 = vadd.f32 0.0, %v6404
      %6406 = vmatprep.mubr.bf16.mxu0 %v6105
      %6407 = vmatmul.mubr.bf16.gmra.mrb[0].mxu0 %v6104
      %v6408 = vpop.f32.mrb[0].mxu0
      %v6409 = vadd.f32 0.0, %v6408
      %v6410 = vpop.f32.mrb[0].mxu0
      %v6411 = vadd.f32 0.0, %v6410
      %v6412 = vpop.f32.mrb[0].mxu0
      %v6413 = vadd.f32 0.0, %v6412
      %v6414 = vpop.f32.mrb[0].mxu0
      %v6415 = vadd.f32 0.0, %v6414
      %6416 = vmatprep.mubr.bf16.mxu0 %v6113
      %6417 = vmatmul.mubr.bf16.gmra.mrb[0].mxu0 %v6112
      %v6418 = vpop.f32.mrb[0].mxu0
      %v6419 = vadd.f32 0.0, %v6418
      %v6420 = vpop.f32.mrb[0].mxu0
      %v6421 = vadd.f32 0.0, %v6420
      %v6422 = vpop.f32.mrb[0].mxu0
      %v6423 = vadd.f32 0.0, %v6422
      %v6424 = vpop.f32.mrb[0].mxu0
      %v6425 = vadd.f32 0.0, %v6424
      %6426 = vmatprep.mubr.bf16.mxu0 %v6121
      %6427 = vmatmul.mubr.bf16.gmra.mrb[0].mxu0 %v6120
      %v6428 = vpop.f32.mrb[0].mxu0
      %v6429 = vadd.f32 0.0, %v6428
      %v6430 = vpop.f32.mrb[0].mxu0
      %v6431 = vadd.f32 0.0, %v6430
      %v6432 = vpop.f32.mrb[0].mxu0
      %v6433 = vadd.f32 0.0, %v6432
      %v6434 = vpop.f32.mrb[0].mxu0
      %v6435 = vadd.f32 0.0, %v6434
      %6436 = vmatprep.mubr.bf16.mxu0 %v6129
      %6437 = vmatmul.mubr.bf16.gmra.mrb[0].mxu0 %v6128
      %v6438 = vpop.f32.mrb[0].mxu0
      %v6439 = vadd.f32 0.0, %v6438
      %v6440 = vpop.f32.mrb[0].mxu0
      %v6441 = vadd.f32 0.0, %v6440
      %v6442 = vpop.f32.mrb[0].mxu0
      %v6443 = vadd.f32 0.0, %v6442
      %v6444 = vpop.f32.mrb[0].mxu0
      %v6445 = vadd.f32 0.0, %v6444
      %6446 = vmatprep.mubr.bf16.mxu0 %v6137
      %6447 = vmatmul.mubr.bf16.gmra.mrb[0].mxu0 %v6136
      %v6448 = vpop.f32.mrb[0].mxu0
      %v6449 = vadd.f32 0.0, %v6448
      %v6450 = vpop.f32.mrb[0].mxu0
      %v6451 = vadd.f32 0.0, %v6450
      %v6452 = vpop.f32.mrb[0].mxu0
      %v6453 = vadd.f32 0.0, %v6452
      %v6454 = vpop.f32.mrb[0].mxu0
      %v6455 = vadd.f32 0.0, %v6454
      %6456 = vmatprep.mubr.bf16.mxu0 %v6145
      %6457 = vmatmul.mubr.bf16.gmra.mrb[0].mxu0 %v6144
      %v6458 = vpop.f32.mrb[0].mxu0
      %v6459 = vadd.f32 0.0, %v6458
      %v6460 = vpop.f32.mrb[0].mxu0
      %v6461 = vadd.f32 0.0, %v6460
      %v6462 = vpop.f32.mrb[0].mxu0
      %v6463 = vadd.f32 0.0, %v6462
      %v6464 = vpop.f32.mrb[0].mxu0
      %v6465 = vadd.f32 0.0, %v6464
      %6466 = vmatprep.mubr.bf16.mxu0 %v6153
      %6467 = vmatmul.mubr.bf16.gmra.mrb[0].mxu0 %v6152
      %v6468 = vpop.f32.mrb[0].mxu0
      %v6469 = vadd.f32 0.0, %v6468
      %v6470 = vpop.f32.mrb[0].mxu0
      %v6471 = vadd.f32 0.0, %v6470
      %v6472 = vpop.f32.mrb[0].mxu0
      %v6473 = vadd.f32 0.0, %v6472
      %v6474 = vpop.f32.mrb[0].mxu0
      %v6475 = vadd.f32 0.0, %v6474
      %6476 = vmatprep.mubr.bf16.mxu0 %v6161
      %6477 = vmatmul.mubr.bf16.gmra.mrb[0].mxu0 %v6160
      %v6478 = vpop.f32.mrb[0].mxu0
      %v6479 = vadd.f32 0.0, %v6478
      %v6480 = vpop.f32.mrb[0].mxu0
      %v6481 = vadd.f32 0.0, %v6480
      %v6482 = vpop.f32.mrb[0].mxu0
      %v6483 = vadd.f32 0.0, %v6482
      %v6484 = vpop.f32.mrb[0].mxu0
      %v6485 = vadd.f32 0.0, %v6484
      %6486 = vmatprep.mubr.bf16.mxu0 %v6169
      %6487 = vmatmul.mubr.bf16.gmra.mrb[0].mxu0 %v6168
      %v6488 = vpop.f32.mrb[0].mxu0
      %v6489 = vadd.f32 0.0, %v6488
      %v6490 = vpop.f32.mrb[0].mxu0
      %v6491 = vadd.f32 0.0, %v6490
      %v6492 = vpop.f32.mrb[0].mxu0
      %v6493 = vadd.f32 0.0, %v6492
      %v6494 = vpop.f32.mrb[0].mxu0
      %v6495 = vadd.f32 0.0, %v6494
      %6496 = vdwg.mxu0
      %6497 = vmatprep.subr.bf16.mxu0 %v5488
      %6498 = vmatpush1.bf16.msra.mxu0 %v5266
      %6499 = vmatprep.subr.bf16.mxu0 %v5489
      %6500 = vmatpush1.bf16.msra.mxu0 %v5269
      %6501 = vmatprep.subr.bf16.mxu0 %v5490
      %6502 = vmatpush1.bf16.msra.mxu0 %v5272
      %6503 = vmatprep.subr.bf16.mxu0 %v5491
      %6504 = vmatpush1.bf16.msra.mxu0 %v5275
      %6505 = vmatprep.subr.bf16.mxu0 %v5492
      %6506 = vmatpush1.bf16.msra.mxu0 %v5278
      %6507 = vmatprep.subr.bf16.mxu0 %v5493
      %6508 = vmatpush1.bf16.msra.mxu0 %v5281
      %6509 = vmatprep.subr.bf16.mxu0 %v5494
      %6510 = vmatpush1.bf16.msra.mxu0 %v5284
      %6511 = vmatprep.subr.bf16.mxu0 %v5495
      %6512 = vmatpush1.bf16.msra.mxu0 %v5287
      %6513 = vmatprep.subr.bf16.mxu0 %v5496
      %6514 = vmatpush1.bf16.msra.mxu0 %v5290
      %6515 = vmatprep.subr.bf16.mxu0 %v5497
      %6516 = vmatpush1.bf16.msra.mxu0 %v5293
      %6517 = vmatprep.subr.bf16.mxu0 %v5498
      %6518 = vmatpush1.bf16.msra.mxu0 %v5296
      %6519 = vmatprep.subr.bf16.mxu0 %v5499
      %6520 = vmatpush1.bf16.msra.mxu0 %v5299
      %6521 = vmatprep.subr.bf16.mxu0 %v5500
      %6522 = vmatpush1.bf16.msra.mxu0 %v5302
      %6523 = vmatprep.subr.bf16.mxu0 %v5501
      %6524 = vmatpush1.bf16.msra.mxu0 %v5305
      %6525 = vmatprep.subr.bf16.mxu0 %v5502
      %6526 = vmatpush1.bf16.msra.mxu0 %v5308
      %6527 = vmatprep.subr.bf16.mxu0 %v5503
      %6528 = vmatpush1.bf16.msra.mxu0 %v5311
      %6529 = vmatprep.mubr.bf16.mxu0 %v6051
      %6530 = vmatmul.mubr.bf16.gmra.mrb[0].mxu0 %v6050
      %v6531 = vpop.f32.mrb[0].mxu0
      %v6532 = vadd.f32 %v6339, %v6531
      %v6533 = vpop.f32.mrb[0].mxu0
      %v6534 = vadd.f32 %v6341, %v6533
      %v6535 = vpop.f32.mrb[0].mxu0
      %v6536 = vadd.f32 %v6343, %v6535
      %v6537 = vpop.f32.mrb[0].mxu0
      %v6538 = vadd.f32 %v6345, %v6537
      %6539 = vmatprep.mubr.bf16.mxu0 %v6059
      %6540 = vmatmul.mubr.bf16.gmra.mrb[0].mxu0 %v6058
      %v6541 = vpop.f32.mrb[0].mxu0
      %v6542 = vadd.f32 %v6349, %v6541
      %v6543 = vpop.f32.mrb[0].mxu0
      %v6544 = vadd.f32 %v6351, %v6543
      %v6545 = vpop.f32.mrb[0].mxu0
      %v6546 = vadd.f32 %v6353, %v6545
      %v6547 = vpop.f32.mrb[0].mxu0
      %v6548 = vadd.f32 %v6355, %v6547
      %6549 = vmatprep.mubr.bf16.mxu0 %v6067
      %6550 = vmatmul.mubr.bf16.gmra.mrb[0].mxu0 %v6066
      %v6551 = vpop.f32.mrb[0].mxu0
      %v6552 = vadd.f32 %v6359, %v6551
      %v6553 = vpop.f32.mrb[0].mxu0
      %v6554 = vadd.f32 %v6361, %v6553
      %v6555 = vpop.f32.mrb[0].mxu0
      %v6556 = vadd.f32 %v6363, %v6555
      %v6557 = vpop.f32.mrb[0].mxu0
      %v6558 = vadd.f32 %v6365, %v6557
      %6559 = vmatprep.mubr.bf16.mxu0 %v6075
      %6560 = vmatmul.mubr.bf16.gmra.mrb[0].mxu0 %v6074
      %v6561 = vpop.f32.mrb[0].mxu0
      %v6562 = vadd.f32 %v6369, %v6561
      %v6563 = vpop.f32.mrb[0].mxu0
      %v6564 = vadd.f32 %v6371, %v6563
      %v6565 = vpop.f32.mrb[0].mxu0
      %v6566 = vadd.f32 %v6373, %v6565
      %v6567 = vpop.f32.mrb[0].mxu0
      %v6568 = vadd.f32 %v6375, %v6567
      %6569 = vmatprep.mubr.bf16.mxu0 %v6083
      %6570 = vmatmul.mubr.bf16.gmra.mrb[0].mxu0 %v6082
      %v6571 = vpop.f32.mrb[0].mxu0
      %v6572 = vadd.f32 %v6379, %v6571
      %v6573 = vpop.f32.mrb[0].mxu0
      %v6574 = vadd.f32 %v6381, %v6573
      %v6575 = vpop.f32.mrb[0].mxu0
      %v6576 = vadd.f32 %v6383, %v6575
      %v6577 = vpop.f32.mrb[0].mxu0
      %v6578 = vadd.f32 %v6385, %v6577
      %6579 = vmatprep.mubr.bf16.mxu0 %v6091
      %6580 = vmatmul.mubr.bf16.gmra.mrb[0].mxu0 %v6090
      %v6581 = vpop.f32.mrb[0].mxu0
      %v6582 = vadd.f32 %v6389, %v6581
      %v6583 = vpop.f32.mrb[0].mxu0
      %v6584 = vadd.f32 %v6391, %v6583
      %v6585 = vpop.f32.mrb[0].mxu0
      %v6586 = vadd.f32 %v6393, %v6585
      %v6587 = vpop.f32.mrb[0].mxu0
      %v6588 = vadd.f32 %v6395, %v6587
      %6589 = vmatprep.mubr.bf16.mxu0 %v6099
      %6590 = vmatmul.mubr.bf16.gmra.mrb[0].mxu0 %v6098
      %v6591 = vpop.f32.mrb[0].mxu0
      %v6592 = vadd.f32 %v6399, %v6591
      %v6593 = vpop.f32.mrb[0].mxu0
      %v6594 = vadd.f32 %v6401, %v6593
      %v6595 = vpop.f32.mrb[0].mxu0
      %v6596 = vadd.f32 %v6403, %v6595
      %v6597 = vpop.f32.mrb[0].mxu0
      %v6598 = vadd.f32 %v6405, %v6597
      %6599 = vmatprep.mubr.bf16.mxu0 %v6107
      %6600 = vmatmul.mubr.bf16.gmra.mrb[0].mxu0 %v6106
      %v6601 = vpop.f32.mrb[0].mxu0
      %v6602 = vadd.f32 %v6409, %v6601
      %v6603 = vpop.f32.mrb[0].mxu0
      %v6604 = vadd.f32 %v6411, %v6603
      %v6605 = vpop.f32.mrb[0].mxu0
      %v6606 = vadd.f32 %v6413, %v6605
      %v6607 = vpop.f32.mrb[0].mxu0
      %v6608 = vadd.f32 %v6415, %v6607
      %6609 = vmatprep.mubr.bf16.mxu0 %v6115
      %6610 = vmatmul.mubr.bf16.gmra.mrb[0].mxu0 %v6114
      %v6611 = vpop.f32.mrb[0].mxu0
      %v6612 = vadd.f32 %v6419, %v6611
      %v6613 = vpop.f32.mrb[0].mxu0
      %v6614 = vadd.f32 %v6421, %v6613
      %v6615 = vpop.f32.mrb[0].mxu0
      %v6616 = vadd.f32 %v6423, %v6615
      %v6617 = vpop.f32.mrb[0].mxu0
      %v6618 = vadd.f32 %v6425, %v6617
      %6619 = vmatprep.mubr.bf16.mxu0 %v6123
      %6620 = vmatmul.mubr.bf16.gmra.mrb[0].mxu0 %v6122
      %v6621 = vpop.f32.mrb[0].mxu0
      %v6622 = vadd.f32 %v6429, %v6621
      %v6623 = vpop.f32.mrb[0].mxu0
      %v6624 = vadd.f32 %v6431, %v6623
      %v6625 = vpop.f32.mrb[0].mxu0
      %v6626 = vadd.f32 %v6433, %v6625
      %v6627 = vpop.f32.mrb[0].mxu0
      %v6628 = vadd.f32 %v6435, %v6627
      %6629 = vmatprep.mubr.bf16.mxu0 %v6131
      %6630 = vmatmul.mubr.bf16.gmra.mrb[0].mxu0 %v6130
      %v6631 = vpop.f32.mrb[0].mxu0
      %v6632 = vadd.f32 %v6439, %v6631
      %v6633 = vpop.f32.mrb[0].mxu0
      %v6634 = vadd.f32 %v6441, %v6633
      %v6635 = vpop.f32.mrb[0].mxu0
      %v6636 = vadd.f32 %v6443, %v6635
      %v6637 = vpop.f32.mrb[0].mxu0
      %v6638 = vadd.f32 %v6445, %v6637
      %6639 = vmatprep.mubr.bf16.mxu0 %v6139
      %6640 = vmatmul.mubr.bf16.gmra.mrb[0].mxu0 %v6138
      %v6641 = vpop.f32.mrb[0].mxu0
      %v6642 = vadd.f32 %v6449, %v6641
      %v6643 = vpop.f32.mrb[0].mxu0
      %v6644 = vadd.f32 %v6451, %v6643
      %v6645 = vpop.f32.mrb[0].mxu0
      %v6646 = vadd.f32 %v6453, %v6645
      %v6647 = vpop.f32.mrb[0].mxu0
      %v6648 = vadd.f32 %v6455, %v6647
      %6649 = vmatprep.mubr.bf16.mxu0 %v6147
      %6650 = vmatmul.mubr.bf16.gmra.mrb[0].mxu0 %v6146
      %v6651 = vpop.f32.mrb[0].mxu0
      %v6652 = vadd.f32 %v6459, %v6651
      %v6653 = vpop.f32.mrb[0].mxu0
      %v6654 = vadd.f32 %v6461, %v6653
      %v6655 = vpop.f32.mrb[0].mxu0
      %v6656 = vadd.f32 %v6463, %v6655
      %v6657 = vpop.f32.mrb[0].mxu0
      %v6658 = vadd.f32 %v6465, %v6657
      %6659 = vmatprep.mubr.bf16.mxu0 %v6155
      %6660 = vmatmul.mubr.bf16.gmra.mrb[0].mxu0 %v6154
      %v6661 = vpop.f32.mrb[0].mxu0
      %v6662 = vadd.f32 %v6469, %v6661
      %v6663 = vpop.f32.mrb[0].mxu0
      %v6664 = vadd.f32 %v6471, %v6663
      %v6665 = vpop.f32.mrb[0].mxu0
      %v6666 = vadd.f32 %v6473, %v6665
      %v6667 = vpop.f32.mrb[0].mxu0
      %v6668 = vadd.f32 %v6475, %v6667
      %6669 = vmatprep.mubr.bf16.mxu0 %v6163
      %6670 = vmatmul.mubr.bf16.gmra.mrb[0].mxu0 %v6162
      %v6671 = vpop.f32.mrb[0].mxu0
      %v6672 = vadd.f32 %v6479, %v6671
      %v6673 = vpop.f32.mrb[0].mxu0
      %v6674 = vadd.f32 %v6481, %v6673
      %v6675 = vpop.f32.mrb[0].mxu0
      %v6676 = vadd.f32 %v6483, %v6675
      %v6677 = vpop.f32.mrb[0].mxu0
      %v6678 = vadd.f32 %v6485, %v6677
      %6679 = vmatprep.mubr.bf16.mxu0 %v6171
      %6680 = vmatmul.mubr.bf16.gmra.mrb[0].mxu0 %v6170
      %v6681 = vpop.f32.mrb[0].mxu0
      %v6682 = vadd.f32 %v6489, %v6681
      %v6683 = vpop.f32.mrb[0].mxu0
      %v6684 = vadd.f32 %v6491, %v6683
      %v6685 = vpop.f32.mrb[0].mxu0
      %v6686 = vadd.f32 %v6493, %v6685
      %v6687 = vpop.f32.mrb[0].mxu0
      %v6688 = vadd.f32 %v6495, %v6687
      %6689 = vdwg.mxu0
      %6690 = vmatprep.subr.bf16.mxu0 %v5504
      %6691 = vmatpush1.bf16.msra.mxu0 %v5314
      %6692 = vmatprep.subr.bf16.mxu0 %v5505
      %6693 = vmatpush1.bf16.msra.mxu0 %v5317
      %6694 = vmatprep.subr.bf16.mxu0 %v5506
      %6695 = vmatpush1.bf16.msra.mxu0 %v5320
      %6696 = vmatprep.subr.bf16.mxu0 %v5507
      %6697 = vmatpush1.bf16.msra.mxu0 %v5323
      %6698 = vmatprep.subr.bf16.mxu0 %v5508
      %6699 = vmatpush1.bf16.msra.mxu0 %v5326
      %6700 = vmatprep.subr.bf16.mxu0 %v5509
      %6701 = vmatpush1.bf16.msra.mxu0 %v5329
      %6702 = vmatprep.subr.bf16.mxu0 %v5510
      %6703 = vmatpush1.bf16.msra.mxu0 %v5332
      %6704 = vmatprep.subr.bf16.mxu0 %v5511
      %6705 = vmatpush1.bf16.msra.mxu0 %v5335
      %6706 = vmatprep.subr.bf16.mxu0 %v5512
      %6707 = vmatpush1.bf16.msra.mxu0 %v5338
      %6708 = vmatprep.subr.bf16.mxu0 %v5513
      %6709 = vmatpush1.bf16.msra.mxu0 %v5341
      %6710 = vmatprep.subr.bf16.mxu0 %v5514
      %6711 = vmatpush1.bf16.msra.mxu0 %v5344
      %6712 = vmatprep.subr.bf16.mxu0 %v5515
      %6713 = vmatpush1.bf16.msra.mxu0 %v5347
      %6714 = vmatprep.subr.bf16.mxu0 %v5516
      %6715 = vmatpush1.bf16.msra.mxu0 %v5350
      %6716 = vmatprep.subr.bf16.mxu0 %v5517
      %6717 = vmatpush1.bf16.msra.mxu0 %v5353
      %6718 = vmatprep.subr.bf16.mxu0 %v5518
      %6719 = vmatpush1.bf16.msra.mxu0 %v5356
      %6720 = vmatprep.subr.bf16.mxu0 %v5519
      %6721 = vmatpush1.bf16.msra.mxu0 %v5359
      %6722 = vmatprep.mubr.bf16.mxu0 %v6053
      %6723 = vmatmul.mubr.bf16.gmra.mrb[0].mxu0 %v6052
      %v6724 = vpop.f32.mrb[0].mxu0
      %v6725 = vadd.f32 %v6532, %v6724
      %v6726 = vpop.f32.mrb[0].mxu0
      %v6727 = vadd.f32 %v6534, %v6726
      %v6728 = vpop.f32.mrb[0].mxu0
      %v6729 = vadd.f32 %v6536, %v6728
      %v6730 = vpop.f32.mrb[0].mxu0
      %v6731 = vadd.f32 %v6538, %v6730
      %6732 = vmatprep.mubr.bf16.mxu0 %v6061
      %6733 = vmatmul.mubr.bf16.gmra.mrb[0].mxu0 %v6060
      %v6734 = vpop.f32.mrb[0].mxu0
      %v6735 = vadd.f32 %v6542, %v6734
      %v6736 = vpop.f32.mrb[0].mxu0
      %v6737 = vadd.f32 %v6544, %v6736
      %v6738 = vpop.f32.mrb[0].mxu0
      %v6739 = vadd.f32 %v6546, %v6738
      %v6740 = vpop.f32.mrb[0].mxu0
      %v6741 = vadd.f32 %v6548, %v6740
      %6742 = vmatprep.mubr.bf16.mxu0 %v6069
      %6743 = vmatmul.mubr.bf16.gmra.mrb[0].mxu0 %v6068
      %v6744 = vpop.f32.mrb[0].mxu0
      %v6745 = vadd.f32 %v6552, %v6744
      %v6746 = vpop.f32.mrb[0].mxu0
      %v6747 = vadd.f32 %v6554, %v6746
      %v6748 = vpop.f32.mrb[0].mxu0
      %v6749 = vadd.f32 %v6556, %v6748
      %v6750 = vpop.f32.mrb[0].mxu0
      %v6751 = vadd.f32 %v6558, %v6750
      %6752 = vmatprep.mubr.bf16.mxu0 %v6077
      %6753 = vmatmul.mubr.bf16.gmra.mrb[0].mxu0 %v6076
      %v6754 = vpop.f32.mrb[0].mxu0
      %v6755 = vadd.f32 %v6562, %v6754
      %v6756 = vpop.f32.mrb[0].mxu0
      %v6757 = vadd.f32 %v6564, %v6756
      %v6758 = vpop.f32.mrb[0].mxu0
      %v6759 = vadd.f32 %v6566, %v6758
      %v6760 = vpop.f32.mrb[0].mxu0
      %v6761 = vadd.f32 %v6568, %v6760
      %6762 = vmatprep.mubr.bf16.mxu0 %v6085
      %6763 = vmatmul.mubr.bf16.gmra.mrb[0].mxu0 %v6084
      %v6764 = vpop.f32.mrb[0].mxu0
      %v6765 = vadd.f32 %v6572, %v6764
      %v6766 = vpop.f32.mrb[0].mxu0
      %v6767 = vadd.f32 %v6574, %v6766
      %v6768 = vpop.f32.mrb[0].mxu0
      %v6769 = vadd.f32 %v6576, %v6768
      %v6770 = vpop.f32.mrb[0].mxu0
      %v6771 = vadd.f32 %v6578, %v6770
      %6772 = vmatprep.mubr.bf16.mxu0 %v6093
      %6773 = vmatmul.mubr.bf16.gmra.mrb[0].mxu0 %v6092
      %v6774 = vpop.f32.mrb[0].mxu0
      %v6775 = vadd.f32 %v6582, %v6774
      %v6776 = vpop.f32.mrb[0].mxu0
      %v6777 = vadd.f32 %v6584, %v6776
      %v6778 = vpop.f32.mrb[0].mxu0
      %v6779 = vadd.f32 %v6586, %v6778
      %v6780 = vpop.f32.mrb[0].mxu0
      %v6781 = vadd.f32 %v6588, %v6780
      %6782 = vmatprep.mubr.bf16.mxu0 %v6101
      %6783 = vmatmul.mubr.bf16.gmra.mrb[0].mxu0 %v6100
      %v6784 = vpop.f32.mrb[0].mxu0
      %v6785 = vadd.f32 %v6592, %v6784
      %v6786 = vpop.f32.mrb[0].mxu0
      %v6787 = vadd.f32 %v6594, %v6786
      %v6788 = vpop.f32.mrb[0].mxu0
      %v6789 = vadd.f32 %v6596, %v6788
      %v6790 = vpop.f32.mrb[0].mxu0
      %v6791 = vadd.f32 %v6598, %v6790
      %6792 = vmatprep.mubr.bf16.mxu0 %v6109
      %6793 = vmatmul.mubr.bf16.gmra.mrb[0].mxu0 %v6108
      %v6794 = vpop.f32.mrb[0].mxu0
      %v6795 = vadd.f32 %v6602, %v6794
      %v6796 = vpop.f32.mrb[0].mxu0
      %v6797 = vadd.f32 %v6604, %v6796
      %v6798 = vpop.f32.mrb[0].mxu0
      %v6799 = vadd.f32 %v6606, %v6798
      %v6800 = vpop.f32.mrb[0].mxu0
      %v6801 = vadd.f32 %v6608, %v6800
      %6802 = vmatprep.mubr.bf16.mxu0 %v6117
      %6803 = vmatmul.mubr.bf16.gmra.mrb[0].mxu0 %v6116
      %v6804 = vpop.f32.mrb[0].mxu0
      %v6805 = vadd.f32 %v6612, %v6804
      %v6806 = vpop.f32.mrb[0].mxu0
      %v6807 = vadd.f32 %v6614, %v6806
      %v6808 = vpop.f32.mrb[0].mxu0
      %v6809 = vadd.f32 %v6616, %v6808
      %v6810 = vpop.f32.mrb[0].mxu0
      %v6811 = vadd.f32 %v6618, %v6810
      %6812 = vmatprep.mubr.bf16.mxu0 %v6125
      %6813 = vmatmul.mubr.bf16.gmra.mrb[0].mxu0 %v6124
      %v6814 = vpop.f32.mrb[0].mxu0
      %v6815 = vadd.f32 %v6622, %v6814
      %v6816 = vpop.f32.mrb[0].mxu0
      %v6817 = vadd.f32 %v6624, %v6816
      %v6818 = vpop.f32.mrb[0].mxu0
      %v6819 = vadd.f32 %v6626, %v6818
      %v6820 = vpop.f32.mrb[0].mxu0
      %v6821 = vadd.f32 %v6628, %v6820
      %6822 = vmatprep.mubr.bf16.mxu0 %v6133
      %6823 = vmatmul.mubr.bf16.gmra.mrb[0].mxu0 %v6132
      %v6824 = vpop.f32.mrb[0].mxu0
      %v6825 = vadd.f32 %v6632, %v6824
      %v6826 = vpop.f32.mrb[0].mxu0
      %v6827 = vadd.f32 %v6634, %v6826
      %v6828 = vpop.f32.mrb[0].mxu0
      %v6829 = vadd.f32 %v6636, %v6828
      %v6830 = vpop.f32.mrb[0].mxu0
      %v6831 = vadd.f32 %v6638, %v6830
      %6832 = vmatprep.mubr.bf16.mxu0 %v6141
      %6833 = vmatmul.mubr.bf16.gmra.mrb[0].mxu0 %v6140
      %v6834 = vpop.f32.mrb[0].mxu0
      %v6835 = vadd.f32 %v6642, %v6834
      %v6836 = vpop.f32.mrb[0].mxu0
      %v6837 = vadd.f32 %v6644, %v6836
      %v6838 = vpop.f32.mrb[0].mxu0
      %v6839 = vadd.f32 %v6646, %v6838
      %v6840 = vpop.f32.mrb[0].mxu0
      %v6841 = vadd.f32 %v6648, %v6840
      %6842 = vmatprep.mubr.bf16.mxu0 %v6149
      %6843 = vmatmul.mubr.bf16.gmra.mrb[0].mxu0 %v6148
      %v6844 = vpop.f32.mrb[0].mxu0
      %v6845 = vadd.f32 %v6652, %v6844
      %v6846 = vpop.f32.mrb[0].mxu0
      %v6847 = vadd.f32 %v6654, %v6846
      %v6848 = vpop.f32.mrb[0].mxu0
      %v6849 = vadd.f32 %v6656, %v6848
      %v6850 = vpop.f32.mrb[0].mxu0
      %v6851 = vadd.f32 %v6658, %v6850
      %6852 = vmatprep.mubr.bf16.mxu0 %v6157
      %6853 = vmatmul.mubr.bf16.gmra.mrb[0].mxu0 %v6156
      %v6854 = vpop.f32.mrb[0].mxu0
      %v6855 = vadd.f32 %v6662, %v6854
      %v6856 = vpop.f32.mrb[0].mxu0
      %v6857 = vadd.f32 %v6664, %v6856
      %v6858 = vpop.f32.mrb[0].mxu0
      %v6859 = vadd.f32 %v6666, %v6858
      %v6860 = vpop.f32.mrb[0].mxu0
      %v6861 = vadd.f32 %v6668, %v6860
      %6862 = vmatprep.mubr.bf16.mxu0 %v6165
      %6863 = vmatmul.mubr.bf16.gmra.mrb[0].mxu0 %v6164
      %v6864 = vpop.f32.mrb[0].mxu0
      %v6865 = vadd.f32 %v6672, %v6864
      %v6866 = vpop.f32.mrb[0].mxu0
      %v6867 = vadd.f32 %v6674, %v6866
      %v6868 = vpop.f32.mrb[0].mxu0
      %v6869 = vadd.f32 %v6676, %v6868
      %v6870 = vpop.f32.mrb[0].mxu0
      %v6871 = vadd.f32 %v6678, %v6870
      %6872 = vmatprep.mubr.bf16.mxu0 %v6173
      %6873 = vmatmul.mubr.bf16.gmra.mrb[0].mxu0 %v6172
      %v6874 = vpop.f32.mrb[0].mxu0
      %v6875 = vadd.f32 %v6682, %v6874
      %v6876 = vpop.f32.mrb[0].mxu0
      %v6877 = vadd.f32 %v6684, %v6876
      %v6878 = vpop.f32.mrb[0].mxu0
      %v6879 = vadd.f32 %v6686, %v6878
      %v6880 = vpop.f32.mrb[0].mxu0
      %v6881 = vadd.f32 %v6688, %v6880
      %6882 = vdwg.mxu0
      %6883 = vmatprep.subr.bf16.mxu0 %v5520
      %6884 = vmatpush1.bf16.msra.mxu0 %v5362
      %6885 = vmatprep.subr.bf16.mxu0 %v5521
      %6886 = vmatpush1.bf16.msra.mxu0 %v5365
      %6887 = vmatprep.subr.bf16.mxu0 %v5522
      %6888 = vmatpush1.bf16.msra.mxu0 %v5368
      %6889 = vmatprep.subr.bf16.mxu0 %v5523
      %6890 = vmatpush1.bf16.msra.mxu0 %v5371
      %6891 = vmatprep.subr.bf16.mxu0 %v5524
      %6892 = vmatpush1.bf16.msra.mxu0 %v5374
      %6893 = vmatprep.subr.bf16.mxu0 %v5525
      %6894 = vmatpush1.bf16.msra.mxu0 %v5377
      %6895 = vmatprep.subr.bf16.mxu0 %v5526
      %6896 = vmatpush1.bf16.msra.mxu0 %v5380
      %6897 = vmatprep.subr.bf16.mxu0 %v5527
      %6898 = vmatpush1.bf16.msra.mxu0 %v5383
      %6899 = vmatprep.subr.bf16.mxu0 %v5528
      %6900 = vmatpush1.bf16.msra.mxu0 %v5386
      %6901 = vmatprep.subr.bf16.mxu0 %v5529
      %6902 = vmatpush1.bf16.msra.mxu0 %v5389
      %6903 = vmatprep.subr.bf16.mxu0 %v5530
      %6904 = vmatpush1.bf16.msra.mxu0 %v5392
      %6905 = vmatprep.subr.bf16.mxu0 %v5531
      %6906 = vmatpush1.bf16.msra.mxu0 %v5395
      %6907 = vmatprep.subr.bf16.mxu0 %v5532
      %6908 = vmatpush1.bf16.msra.mxu0 %v5398
      %6909 = vmatprep.subr.bf16.mxu0 %v5533
      %6910 = vmatpush1.bf16.msra.mxu0 %v5401
      %6911 = vmatprep.subr.bf16.mxu0 %v5534
      %6912 = vmatpush1.bf16.msra.mxu0 %v5404
      %6913 = vmatprep.subr.bf16.mxu0 %v5535
      %6914 = vmatpush1.bf16.msra.mxu0 %v5407
      %6915 = vmatprep.mubr.bf16.mxu0 %v6055
      %6916 = vmatmul.mubr.bf16.gmra.mrb[0].mxu0 %v6054
      %v6917 = vpop.f32.mrb[0].mxu0
      %v6918 = vadd.f32 %v6725, %v6917
      %v6919 = vpop.f32.mrb[0].mxu0
      %v6920 = vadd.f32 %v6727, %v6919
      %v6921 = vpop.f32.mrb[0].mxu0
      %v6922 = vadd.f32 %v6729, %v6921
      %v6923 = vpop.f32.mrb[0].mxu0
      %v6924 = vadd.f32 %v6731, %v6923
      %6925 = vmatprep.mubr.bf16.mxu0 %v6063
      %6926 = vmatmul.mubr.bf16.gmra.mrb[0].mxu0 %v6062
      %v6927 = vpop.f32.mrb[0].mxu0
      %v6928 = vadd.f32 %v6735, %v6927
      %v6929 = vpop.f32.mrb[0].mxu0
      %v6930 = vadd.f32 %v6737, %v6929
      %v6931 = vpop.f32.mrb[0].mxu0
      %v6932 = vadd.f32 %v6739, %v6931
      %v6933 = vpop.f32.mrb[0].mxu0
      %v6934 = vadd.f32 %v6741, %v6933
      %6935 = vmatprep.mubr.bf16.mxu0 %v6071
      %6936 = vmatmul.mubr.bf16.gmra.mrb[0].mxu0 %v6070
      %v6937 = vpop.f32.mrb[0].mxu0
      %v6938 = vadd.f32 %v6745, %v6937
      %v6939 = vpop.f32.mrb[0].mxu0
      %v6940 = vadd.f32 %v6747, %v6939
      %v6941 = vpop.f32.mrb[0].mxu0
      %v6942 = vadd.f32 %v6749, %v6941
      %v6943 = vpop.f32.mrb[0].mxu0
      %v6944 = vadd.f32 %v6751, %v6943
      %6945 = vmatprep.mubr.bf16.mxu0 %v6079
      %6946 = vmatmul.mubr.bf16.gmra.mrb[0].mxu0 %v6078
      %v6947 = vpop.f32.mrb[0].mxu0
      %v6948 = vadd.f32 %v6755, %v6947
      %v6949 = vpop.f32.mrb[0].mxu0
      %v6950 = vadd.f32 %v6757, %v6949
      %v6951 = vpop.f32.mrb[0].mxu0
      %v6952 = vadd.f32 %v6759, %v6951
      %v6953 = vpop.f32.mrb[0].mxu0
      %v6954 = vadd.f32 %v6761, %v6953
      %6955 = vmatprep.mubr.bf16.mxu0 %v6087
      %6956 = vmatmul.mubr.bf16.gmra.mrb[0].mxu0 %v6086
      %v6957 = vpop.f32.mrb[0].mxu0
      %v6958 = vadd.f32 %v6765, %v6957
      %v6959 = vpop.f32.mrb[0].mxu0
      %v6960 = vadd.f32 %v6767, %v6959
      %v6961 = vpop.f32.mrb[0].mxu0
      %v6962 = vadd.f32 %v6769, %v6961
      %v6963 = vpop.f32.mrb[0].mxu0
      %v6964 = vadd.f32 %v6771, %v6963
      %6965 = vmatprep.mubr.bf16.mxu0 %v6095
      %6966 = vmatmul.mubr.bf16.gmra.mrb[0].mxu0 %v6094
      %v6967 = vpop.f32.mrb[0].mxu0
      %v6968 = vadd.f32 %v6775, %v6967
      %v6969 = vpop.f32.mrb[0].mxu0
      %v6970 = vadd.f32 %v6777, %v6969
      %v6971 = vpop.f32.mrb[0].mxu0
      %v6972 = vadd.f32 %v6779, %v6971
      %v6973 = vpop.f32.mrb[0].mxu0
      %v6974 = vadd.f32 %v6781, %v6973
      %6975 = vmatprep.mubr.bf16.mxu0 %v6103
      %6976 = vmatmul.mubr.bf16.gmra.mrb[0].mxu0 %v6102
      %v6977 = vpop.f32.mrb[0].mxu0
      %v6978 = vadd.f32 %v6785, %v6977
      %v6979 = vpop.f32.mrb[0].mxu0
      %v6980 = vadd.f32 %v6787, %v6979
      %v6981 = vpop.f32.mrb[0].mxu0
      %v6982 = vadd.f32 %v6789, %v6981
      %v6983 = vpop.f32.mrb[0].mxu0
      %v6984 = vadd.f32 %v6791, %v6983
      %6985 = vmatprep.mubr.bf16.mxu0 %v6111
      %6986 = vmatmul.mubr.bf16.gmra.mrb[0].mxu0 %v6110
      %v6987 = vpop.f32.mrb[0].mxu0
      %v6988 = vadd.f32 %v6795, %v6987
      %v6989 = vpop.f32.mrb[0].mxu0
      %v6990 = vadd.f32 %v6797, %v6989
      %v6991 = vpop.f32.mrb[0].mxu0
      %v6992 = vadd.f32 %v6799, %v6991
      %v6993 = vpop.f32.mrb[0].mxu0
      %v6994 = vadd.f32 %v6801, %v6993
      %6995 = vmatprep.mubr.bf16.mxu0 %v6119
      %6996 = vmatmul.mubr.bf16.gmra.mrb[0].mxu0 %v6118
      %v6997 = vpop.f32.mrb[0].mxu0
      %v6998 = vadd.f32 %v6805, %v6997
      %v6999 = vpop.f32.mrb[0].mxu0
      %v7000 = vadd.f32 %v6807, %v6999
      %v7001 = vpop.f32.mrb[0].mxu0
      %v7002 = vadd.f32 %v6809, %v7001
      %v7003 = vpop.f32.mrb[0].mxu0
      %v7004 = vadd.f32 %v6811, %v7003
      %7005 = vmatprep.mubr.bf16.mxu0 %v6127
      %7006 = vmatmul.mubr.bf16.gmra.mrb[0].mxu0 %v6126
      %v7007 = vpop.f32.mrb[0].mxu0
      %v7008 = vadd.f32 %v6815, %v7007
      %v7009 = vpop.f32.mrb[0].mxu0
      %v7010 = vadd.f32 %v6817, %v7009
      %v7011 = vpop.f32.mrb[0].mxu0
      %v7012 = vadd.f32 %v6819, %v7011
      %v7013 = vpop.f32.mrb[0].mxu0
      %v7014 = vadd.f32 %v6821, %v7013
      %7015 = vmatprep.mubr.bf16.mxu0 %v6135
      %7016 = vmatmul.mubr.bf16.gmra.mrb[0].mxu0 %v6134
      %v7017 = vpop.f32.mrb[0].mxu0
      %v7018 = vadd.f32 %v6825, %v7017
      %v7019 = vpop.f32.mrb[0].mxu0
      %v7020 = vadd.f32 %v6827, %v7019
      %v7021 = vpop.f32.mrb[0].mxu0
      %v7022 = vadd.f32 %v6829, %v7021
      %v7023 = vpop.f32.mrb[0].mxu0
      %v7024 = vadd.f32 %v6831, %v7023
      %7025 = vmatprep.mubr.bf16.mxu0 %v6143
      %7026 = vmatmul.mubr.bf16.gmra.mrb[0].mxu0 %v6142
      %v7027 = vpop.f32.mrb[0].mxu0
      %v7028 = vadd.f32 %v6835, %v7027
      %v7029 = vpop.f32.mrb[0].mxu0
      %v7030 = vadd.f32 %v6837, %v7029
      %v7031 = vpop.f32.mrb[0].mxu0
      %v7032 = vadd.f32 %v6839, %v7031
      %v7033 = vpop.f32.mrb[0].mxu0
      %v7034 = vadd.f32 %v6841, %v7033
      %7035 = vmatprep.mubr.bf16.mxu0 %v6151
      %7036 = vmatmul.mubr.bf16.gmra.mrb[0].mxu0 %v6150
      %v7037 = vpop.f32.mrb[0].mxu0
      %v7038 = vadd.f32 %v6845, %v7037
      %v7039 = vpop.f32.mrb[0].mxu0
      %v7040 = vadd.f32 %v6847, %v7039
      %v7041 = vpop.f32.mrb[0].mxu0
      %v7042 = vadd.f32 %v6849, %v7041
      %v7043 = vpop.f32.mrb[0].mxu0
      %v7044 = vadd.f32 %v6851, %v7043
      %7045 = vmatprep.mubr.bf16.mxu0 %v6159
      %7046 = vmatmul.mubr.bf16.gmra.mrb[0].mxu0 %v6158
      %v7047 = vpop.f32.mrb[0].mxu0
      %v7048 = vadd.f32 %v6855, %v7047
      %v7049 = vpop.f32.mrb[0].mxu0
      %v7050 = vadd.f32 %v6857, %v7049
      %v7051 = vpop.f32.mrb[0].mxu0
      %v7052 = vadd.f32 %v6859, %v7051
      %v7053 = vpop.f32.mrb[0].mxu0
      %v7054 = vadd.f32 %v6861, %v7053
      %7055 = vmatprep.mubr.bf16.mxu0 %v6167
      %7056 = vmatmul.mubr.bf16.gmra.mrb[0].mxu0 %v6166
      %v7057 = vpop.f32.mrb[0].mxu0
      %v7058 = vadd.f32 %v6865, %v7057
      %v7059 = vpop.f32.mrb[0].mxu0
      %v7060 = vadd.f32 %v6867, %v7059
      %v7061 = vpop.f32.mrb[0].mxu0
      %v7062 = vadd.f32 %v6869, %v7061
      %v7063 = vpop.f32.mrb[0].mxu0
      %v7064 = vadd.f32 %v6871, %v7063
      %7065 = vmatprep.mubr.bf16.mxu0 %v6175
      %7066 = vmatmul.mubr.bf16.gmra.mrb[0].mxu0 %v6174
      %v7067 = vpop.f32.mrb[0].mxu0
      %v7068 = vadd.f32 %v6875, %v7067
      %v7069 = vpop.f32.mrb[0].mxu0
      %v7070 = vadd.f32 %v6877, %v7069
      %v7071 = vpop.f32.mrb[0].mxu0
      %v7072 = vadd.f32 %v6879, %v7071
      %v7073 = vpop.f32.mrb[0].mxu0
      %v7074 = vadd.f32 %v6881, %v7073
      %7075 = vdwg.mxu0
      %v7076 = vadd.f32 %v6918, 1e-16
      %v7077 = vadd.f32 %v6922, 1e-16
      %v7078 = vadd.f32 %v6928, 1e-16
      %v7079 = vadd.f32 %v6932, 1e-16
      %v7080 = vadd.f32 %v6938, 1e-16
      %v7081 = vadd.f32 %v6942, 1e-16
      %v7082 = vadd.f32 %v6948, 1e-16
      %v7083 = vadd.f32 %v6952, 1e-16
      %v7084 = vadd.f32 %v6958, 1e-16
      %v7085 = vadd.f32 %v6962, 1e-16
      %v7086 = vadd.f32 %v6968, 1e-16
      %v7087 = vadd.f32 %v6972, 1e-16
      %v7088 = vadd.f32 %v6978, 1e-16
      %v7089 = vadd.f32 %v6982, 1e-16
      %v7090 = vadd.f32 %v6988, 1e-16
      %v7091 = vadd.f32 %v6992, 1e-16
      %v7092 = vadd.f32 %v6998, 1e-16
      %v7093 = vadd.f32 %v7002, 1e-16
      %v7094 = vadd.f32 %v7008, 1e-16
      %v7095 = vadd.f32 %v7012, 1e-16
      %v7096 = vadd.f32 %v7018, 1e-16
      %v7097 = vadd.f32 %v7022, 1e-16
      %v7098 = vadd.f32 %v7028, 1e-16
      %v7099 = vadd.f32 %v7032, 1e-16
      %v7100 = vadd.f32 %v7038, 1e-16
      %v7101 = vadd.f32 %v7042, 1e-16
      %v7102 = vadd.f32 %v7048, 1e-16
      %v7103 = vadd.f32 %v7052, 1e-16
      %v7104 = vadd.f32 %v7058, 1e-16
      %v7105 = vadd.f32 %v7062, 1e-16
      %v7106 = vadd.f32 %v7068, 1e-16
      %v7107 = vadd.f32 %v7072, 1e-16
      %v7108 = vrcp.pop %v7076
      %v7109 = vrcp.pop %v7077
      %v7110 = vrcp.pop %v7078
      %v7111 = vrcp.pop %v7079
      %v7112 = vrcp.pop %v7080
      %v7113 = vrcp.pop %v7081
      %v7114 = vrcp.pop %v7082
      %v7115 = vrcp.pop %v7083
      %v7116 = vrcp.pop %v7084
      %v7117 = vrcp.pop %v7085
      %v7118 = vrcp.pop %v7086
      %v7119 = vrcp.pop %v7087
      %v7120 = vrcp.pop %v7088
      %v7121 = vrcp.pop %v7089
      %v7122 = vrcp.pop %v7090
      %v7123 = vrcp.pop %v7091
      %v7124 = vrcp.pop %v7092
      %v7125 = vrcp.pop %v7093
      %v7126 = vrcp.pop %v7094
      %v7127 = vrcp.pop %v7095
      %v7128 = vrcp.pop %v7096
      %v7129 = vrcp.pop %v7097
      %v7130 = vrcp.pop %v7098
      %v7131 = vrcp.pop %v7099
      %v7132 = vrcp.pop %v7100
      %v7133 = vrcp.pop %v7101
      %v7134 = vrcp.pop %v7102
      %v7135 = vrcp.pop %v7103
      %v7136 = vrcp.pop %v7104
      %v7137 = vrcp.pop %v7105
      %v7138 = vrcp.pop %v7106
      %v7139 = vrcp.pop %v7107
      %v7140 = vmul.f32 %v6920, %v7108
      %v7141 = vmul.f32 %v6924, %v7109
      %v7142 = vmul.f32 %v6930, %v7110
      %v7143 = vmul.f32 %v6934, %v7111
      %v7144 = vmul.f32 %v6940, %v7112
      %v7145 = vmul.f32 %v6944, %v7113
      %v7146 = vmul.f32 %v6950, %v7114
      %v7147 = vmul.f32 %v6954, %v7115
      %v7148 = vmul.f32 %v6960, %v7116
      %v7149 = vmul.f32 %v6964, %v7117
      %v7150 = vmul.f32 %v6970, %v7118
      %v7151 = vmul.f32 %v6974, %v7119
      %v7152 = vmul.f32 %v6980, %v7120
      %v7153 = vmul.f32 %v6984, %v7121
      %v7154 = vmul.f32 %v6990, %v7122
      %v7155 = vmul.f32 %v6994, %v7123
      %v7156 = vmul.f32 %v7000, %v7124
      %v7157 = vmul.f32 %v7004, %v7125
      %v7158 = vmul.f32 %v7010, %v7126
      %v7159 = vmul.f32 %v7014, %v7127
      %v7160 = vmul.f32 %v7020, %v7128
      %v7161 = vmul.f32 %v7024, %v7129
      %v7162 = vmul.f32 %v7030, %v7130
      %v7163 = vmul.f32 %v7034, %v7131
      %v7164 = vmul.f32 %v7040, %v7132
      %v7165 = vmul.f32 %v7044, %v7133
      %v7166 = vmul.f32 %v7050, %v7134
      %v7167 = vmul.f32 %v7054, %v7135
      %v7168 = vmul.f32 %v7060, %v7136
      %v7169 = vmul.f32 %v7064, %v7137
      %v7170 = vmul.f32 %v7070, %v7138
      %v7171 = vmul.f32 %v7074, %v7139
      %v7172 = vadd.f32 %v7140, %v2952
      %v7173 = vadd.f32 %v7141, %v2953
      %v7174 = vadd.f32 %v7142, %v2954
      %v7175 = vadd.f32 %v7143, %v2955
      %v7176 = vadd.f32 %v7144, %v2956
      %v7177 = vadd.f32 %v7145, %v2957
      %v7178 = vadd.f32 %v7146, %v2958
      %v7179 = vadd.f32 %v7147, %v2959
      %v7180 = vadd.f32 %v7148, %v2960
      %v7181 = vadd.f32 %v7149, %v2961
      %v7182 = vadd.f32 %v7150, %v2962
      %v7183 = vadd.f32 %v7151, %v2963
      %v7184 = vadd.f32 %v7152, %v2964
      %v7185 = vadd.f32 %v7153, %v2965
      %v7186 = vadd.f32 %v7154, %v2966
      %v7187 = vadd.f32 %v7155, %v2967
      %v7188 = vadd.f32 %v7156, %v2968
      %v7189 = vadd.f32 %v7157, %v2969
      %v7190 = vadd.f32 %v7158, %v2970
      %v7191 = vadd.f32 %v7159, %v2971
      %v7192 = vadd.f32 %v7160, %v2972
      %v7193 = vadd.f32 %v7161, %v2973
      %v7194 = vadd.f32 %v7162, %v2974
      %v7195 = vadd.f32 %v7163, %v2975
      %v7196 = vadd.f32 %v7164, %v2976
      %v7197 = vadd.f32 %v7165, %v2977
      %v7198 = vadd.f32 %v7166, %v2978
      %v7199 = vadd.f32 %v7167, %v2979
      %v7200 = vadd.f32 %v7168, %v2980
      %v7201 = vadd.f32 %v7169, %v2981
      %v7202 = vadd.f32 %v7170, %v2982
      %v7203 = vadd.f32 %v7171, %v2983
      %v7204 = vpack.c.bf16 %v7173, %v7172
      %v7205 = vpack.c.bf16 %v7175, %v7174
      %v7206 = vpack.c.bf16 %v7177, %v7176
      %v7207 = vpack.c.bf16 %v7179, %v7178
      %v7208 = vpack.c.bf16 %v7181, %v7180
      %v7209 = vpack.c.bf16 %v7183, %v7182
      %v7210 = vpack.c.bf16 %v7185, %v7184
      %v7211 = vpack.c.bf16 %v7187, %v7186
      %v7212 = vpack.c.bf16 %v7189, %v7188
      %v7213 = vpack.c.bf16 %v7191, %v7190
      %v7214 = vpack.c.bf16 %v7193, %v7192
      %v7215 = vpack.c.bf16 %v7195, %v7194
      %v7216 = vpack.c.bf16 %v7197, %v7196
      %v7217 = vpack.c.bf16 %v7199, %v7198
      %v7218 = vpack.c.bf16 %v7201, %v7200
      %v7219 = vpack.c.bf16 %v7203, %v7202
      %v7220 = vld [vmem:[%s708] sm:$0xff]
      %v7221 = vld [vmem:[%s708 + $0x8] sm:$0xff]
      %v7222 = vld [vmem:[%s708 + $0x10] sm:$0xff]
      %v7223 = vld [vmem:[%s708 + $0x18] sm:$0xff]
      %v7224 = vld [vmem:[%s708 + $0x20] sm:$0xff]
      %v7225 = vld [vmem:[%s708 + $0x28] sm:$0xff]
      %v7226 = vld [vmem:[%s708 + $0x30] sm:$0xff]
      %v7227 = vld [vmem:[%s708 + $0x38] sm:$0xff]
      %v7228 = vld [vmem:[%s708 + $0x40] sm:$0xff]
      %v7229 = vld [vmem:[%s708 + $0x48] sm:$0xff]
      %v7230 = vld [vmem:[%s708 + $0x50] sm:$0xff]
      %v7231 = vld [vmem:[%s708 + $0x58] sm:$0xff]
      %v7232 = vld [vmem:[%s708 + $0x60] sm:$0xff]
      %v7233 = vld [vmem:[%s708 + $0x68] sm:$0xff]
      %v7234 = vld [vmem:[%s708 + $0x70] sm:$0xff]
      %v7235 = vld [vmem:[%s708 + $0x78] sm:$0xff]
      %v7236 = vld [vmem:[%s712] sm:$0x3]
      %v7238 = vlaneseq
      %v7239 = vshrl.u32 %v7238, 7
      %v7240 = vsub.s32 0, %v7239
      %v7241 = vrot.slane %v7236, %v7240
      %v7242 = vlaneseq
      %v7243 = vshrl.u32 %v7242, 7
      %v7244 = vsub.s32 1, %v7243
      %v7245 = vrot.slane %v7236, %v7244
      %v7264 = vunpack.c.l.b16 %v7220
      %v7265 = vunpack.c.h.b16 %v7220
      %v7266 = vunpack.c.l.b16 %v7221
      %v7267 = vunpack.c.h.b16 %v7221
      %v7268 = vunpack.c.l.b16 %v7222
      %v7269 = vunpack.c.h.b16 %v7222
      %v7270 = vunpack.c.l.b16 %v7223
      %v7271 = vunpack.c.h.b16 %v7223
      %v7272 = vunpack.c.l.b16 %v7224
      %v7273 = vunpack.c.h.b16 %v7224
      %v7274 = vunpack.c.l.b16 %v7225
      %v7275 = vunpack.c.h.b16 %v7225
      %v7276 = vunpack.c.l.b16 %v7226
      %v7277 = vunpack.c.h.b16 %v7226
      %v7278 = vunpack.c.l.b16 %v7227
      %v7279 = vunpack.c.h.b16 %v7227
      %v7280 = vunpack.c.l.b16 %v7228
      %v7281 = vunpack.c.h.b16 %v7228
      %v7282 = vunpack.c.l.b16 %v7229
      %v7283 = vunpack.c.h.b16 %v7229
      %v7284 = vunpack.c.l.b16 %v7230
      %v7285 = vunpack.c.h.b16 %v7230
      %v7286 = vunpack.c.l.b16 %v7231
      %v7287 = vunpack.c.h.b16 %v7231
      %v7288 = vunpack.c.l.b16 %v7232
      %v7289 = vunpack.c.h.b16 %v7232
      %v7290 = vunpack.c.l.b16 %v7233
      %v7291 = vunpack.c.h.b16 %v7233
      %v7292 = vunpack.c.l.b16 %v7234
      %v7293 = vunpack.c.h.b16 %v7234
      %v7294 = vunpack.c.l.b16 %v7235
      %v7295 = vunpack.c.h.b16 %v7235
      %v7296 = vpack.c.b16 %v7266, %v7264
      %v7297 = vpack.c.b16 %v7267, %v7265
      %v7298 = vpack.c.b16 %v7270, %v7268
      %v7299 = vpack.c.b16 %v7271, %v7269
      %v7300 = vpack.c.b16 %v7274, %v7272
      %v7301 = vpack.c.b16 %v7275, %v7273
      %v7302 = vpack.c.b16 %v7278, %v7276
      %v7303 = vpack.c.b16 %v7279, %v7277
      %v7304 = vpack.c.b16 %v7282, %v7280
      %v7305 = vpack.c.b16 %v7283, %v7281
      %v7306 = vpack.c.b16 %v7286, %v7284
      %v7307 = vpack.c.b16 %v7287, %v7285
      %v7308 = vpack.c.b16 %v7290, %v7288
      %v7309 = vpack.c.b16 %v7291, %v7289
      %v7310 = vpack.c.b16 %v7294, %v7292
      %v7311 = vpack.c.b16 %v7295, %v7293
      %7328 = vmatprep.subr.bf16.mxu0 %v7297
      %7329 = vmatpush1.bf16.msra.mxu0 %v7296
      %7330 = vmatprep.subr.bf16.mxu0 %v7299
      %7331 = vmatpush1.bf16.msra.mxu0 %v7298
      %7332 = vmatprep.subr.bf16.mxu0 %v7301
      %7333 = vmatpush1.bf16.msra.mxu0 %v7300
      %7334 = vmatprep.subr.bf16.mxu0 %v7303
      %7335 = vmatpush1.bf16.msra.mxu0 %v7302
      %7336 = vmatprep.subr.bf16.mxu0 %v7305
      %7337 = vmatpush1.bf16.msra.mxu0 %v7304
      %7338 = vmatprep.subr.bf16.mxu0 %v7307
      %7339 = vmatpush1.bf16.msra.mxu0 %v7306
      %7340 = vmatprep.subr.bf16.mxu0 %v7309
      %7341 = vmatpush1.bf16.msra.mxu0 %v7308
      %7342 = vmatprep.subr.bf16.mxu0 %v7311
      %7343 = vmatpush1.bf16.msra.mxu0 %v7310
      %7344 = vmatprep.subr.bf16.mxu0 0
      %7345 = vmatpush1.bf16.msra.mxu0 0
      %7346 = vmatprep.subr.bf16.mxu0 0
      %7347 = vmatpush1.bf16.msra.mxu0 0
      %7348 = vmatprep.subr.bf16.mxu0 0
      %7349 = vmatpush1.bf16.msra.mxu0 0
      %7350 = vmatprep.subr.bf16.mxu0 0
      %7351 = vmatpush1.bf16.msra.mxu0 0
      %7352 = vmatprep.subr.bf16.mxu0 0
      %7353 = vmatpush1.bf16.msra.mxu0 0
      %7354 = vmatprep.subr.bf16.mxu0 0
      %7355 = vmatpush1.bf16.msra.mxu0 0
      %7356 = vmatprep.subr.bf16.mxu0 0
      %7357 = vmatpush1.bf16.msra.mxu0 0
      %7358 = vmatprep.subr.bf16.mxu0 0
      %7359 = vmatpush1.bf16.msra.mxu0 0
      %7360 = vmatprep.mubr.bf16.mxu0 0
      %7361 = vmatmul.mubr.bf16.gmra.mrb[0].mxu0 %v7204
      %v7362 = vpop.f32.mrb[0].mxu0
      %v7363 = vadd.f32 %v7241, %v7362
      %v7364 = vpop.f32.mrb[0].mxu0
      %v7365 = vadd.f32 %v7245, %v7364
      %v7366 = vpop.f32.mrb[0].mxu0
      %v7367 = vadd.f32 %v7241, %v7366
      %v7368 = vpop.f32.mrb[0].mxu0
      %v7369 = vadd.f32 %v7245, %v7368
      %7370 = vmatprep.mubr.bf16.mxu0 0
      %7371 = vmatmul.mubr.bf16.gmra.mrb[0].mxu0 %v7205
      %v7372 = vpop.f32.mrb[0].mxu0
      %v7373 = vadd.f32 %v7241, %v7372
      %v7374 = vpop.f32.mrb[0].mxu0
      %v7375 = vadd.f32 %v7245, %v7374
      %v7376 = vpop.f32.mrb[0].mxu0
      %v7377 = vadd.f32 %v7241, %v7376
      %v7378 = vpop.f32.mrb[0].mxu0
      %v7379 = vadd.f32 %v7245, %v7378
      %7380 = vmatprep.mubr.bf16.mxu0 0
      %7381 = vmatmul.mubr.bf16.gmra.mrb[0].mxu0 %v7206
      %v7382 = vpop.f32.mrb[0].mxu0
      %v7383 = vadd.f32 %v7241, %v7382
      %v7384 = vpop.f32.mrb[0].mxu0
      %v7385 = vadd.f32 %v7245, %v7384
      %v7386 = vpop.f32.mrb[0].mxu0
      %v7387 = vadd.f32 %v7241, %v7386
      %v7388 = vpop.f32.mrb[0].mxu0
      %v7389 = vadd.f32 %v7245, %v7388
      %7390 = vmatprep.mubr.bf16.mxu0 0
      %7391 = vmatmul.mubr.bf16.gmra.mrb[0].mxu0 %v7207
      %v7392 = vpop.f32.mrb[0].mxu0
      %v7393 = vadd.f32 %v7241, %v7392
      %v7394 = vpop.f32.mrb[0].mxu0
      %v7395 = vadd.f32 %v7245, %v7394
      %v7396 = vpop.f32.mrb[0].mxu0
      %v7397 = vadd.f32 %v7241, %v7396
      %v7398 = vpop.f32.mrb[0].mxu0
      %v7399 = vadd.f32 %v7245, %v7398
      %7400 = vmatprep.mubr.bf16.mxu0 0
      %7401 = vmatmul.mubr.bf16.gmra.mrb[0].mxu0 %v7208
      %v7402 = vpop.f32.mrb[0].mxu0
      %v7403 = vadd.f32 %v7241, %v7402
      %v7404 = vpop.f32.mrb[0].mxu0
      %v7405 = vadd.f32 %v7245, %v7404
      %v7406 = vpop.f32.mrb[0].mxu0
      %v7407 = vadd.f32 %v7241, %v7406
      %v7408 = vpop.f32.mrb[0].mxu0
      %v7409 = vadd.f32 %v7245, %v7408
      %7410 = vmatprep.mubr.bf16.mxu0 0
      %7411 = vmatmul.mubr.bf16.gmra.mrb[0].mxu0 %v7209
      %v7412 = vpop.f32.mrb[0].mxu0
      %v7413 = vadd.f32 %v7241, %v7412
      %v7414 = vpop.f32.mrb[0].mxu0
      %v7415 = vadd.f32 %v7245, %v7414
      %v7416 = vpop.f32.mrb[0].mxu0
      %v7417 = vadd.f32 %v7241, %v7416
      %v7418 = vpop.f32.mrb[0].mxu0
      %v7419 = vadd.f32 %v7245, %v7418
      %7420 = vmatprep.mubr.bf16.mxu0 0
      %7421 = vmatmul.mubr.bf16.gmra.mrb[0].mxu0 %v7210
      %v7422 = vpop.f32.mrb[0].mxu0
      %v7423 = vadd.f32 %v7241, %v7422
      %v7424 = vpop.f32.mrb[0].mxu0
      %v7425 = vadd.f32 %v7245, %v7424
      %v7426 = vpop.f32.mrb[0].mxu0
      %v7427 = vadd.f32 %v7241, %v7426
      %v7428 = vpop.f32.mrb[0].mxu0
      %v7429 = vadd.f32 %v7245, %v7428
      %7430 = vmatprep.mubr.bf16.mxu0 0
      %7431 = vmatmul.mubr.bf16.gmra.mrb[0].mxu0 %v7211
      %v7432 = vpop.f32.mrb[0].mxu0
      %v7433 = vadd.f32 %v7241, %v7432
      %v7434 = vpop.f32.mrb[0].mxu0
      %v7435 = vadd.f32 %v7245, %v7434
      %v7436 = vpop.f32.mrb[0].mxu0
      %v7437 = vadd.f32 %v7241, %v7436
      %v7438 = vpop.f32.mrb[0].mxu0
      %v7439 = vadd.f32 %v7245, %v7438
      %7440 = vmatprep.mubr.bf16.mxu0 0
      %7441 = vmatmul.mubr.bf16.gmra.mrb[0].mxu0 %v7212
      %v7442 = vpop.f32.mrb[0].mxu0
      %v7443 = vadd.f32 %v7241, %v7442
      %v7444 = vpop.f32.mrb[0].mxu0
      %v7445 = vadd.f32 %v7245, %v7444
      %v7446 = vpop.f32.mrb[0].mxu0
      %v7447 = vadd.f32 %v7241, %v7446
      %v7448 = vpop.f32.mrb[0].mxu0
      %v7449 = vadd.f32 %v7245, %v7448
      %7450 = vmatprep.mubr.bf16.mxu0 0
      %7451 = vmatmul.mubr.bf16.gmra.mrb[0].mxu0 %v7213
      %v7452 = vpop.f32.mrb[0].mxu0
      %v7453 = vadd.f32 %v7241, %v7452
      %v7454 = vpop.f32.mrb[0].mxu0
      %v7455 = vadd.f32 %v7245, %v7454
      %v7456 = vpop.f32.mrb[0].mxu0
      %v7457 = vadd.f32 %v7241, %v7456
      %v7458 = vpop.f32.mrb[0].mxu0
      %v7459 = vadd.f32 %v7245, %v7458
      %7460 = vmatprep.mubr.bf16.mxu0 0
      %7461 = vmatmul.mubr.bf16.gmra.mrb[0].mxu0 %v7214
      %v7462 = vpop.f32.mrb[0].mxu0
      %v7463 = vadd.f32 %v7241, %v7462
      %v7464 = vpop.f32.mrb[0].mxu0
      %v7465 = vadd.f32 %v7245, %v7464
      %v7466 = vpop.f32.mrb[0].mxu0
      %v7467 = vadd.f32 %v7241, %v7466
      %v7468 = vpop.f32.mrb[0].mxu0
      %v7469 = vadd.f32 %v7245, %v7468
      %7470 = vmatprep.mubr.bf16.mxu0 0
      %7471 = vmatmul.mubr.bf16.gmra.mrb[0].mxu0 %v7215
      %v7472 = vpop.f32.mrb[0].mxu0
      %v7473 = vadd.f32 %v7241, %v7472
      %v7474 = vpop.f32.mrb[0].mxu0
      %v7475 = vadd.f32 %v7245, %v7474
      %v7476 = vpop.f32.mrb[0].mxu0
      %v7477 = vadd.f32 %v7241, %v7476
      %v7478 = vpop.f32.mrb[0].mxu0
      %v7479 = vadd.f32 %v7245, %v7478
      %7480 = vmatprep.mubr.bf16.mxu0 0
      %7481 = vmatmul.mubr.bf16.gmra.mrb[0].mxu0 %v7216
      %v7482 = vpop.f32.mrb[0].mxu0
      %v7483 = vadd.f32 %v7241, %v7482
      %v7484 = vpop.f32.mrb[0].mxu0
      %v7485 = vadd.f32 %v7245, %v7484
      %v7486 = vpop.f32.mrb[0].mxu0
      %v7487 = vadd.f32 %v7241, %v7486
      %v7488 = vpop.f32.mrb[0].mxu0
      %v7489 = vadd.f32 %v7245, %v7488
      %7490 = vmatprep.mubr.bf16.mxu0 0
      %7491 = vmatmul.mubr.bf16.gmra.mrb[0].mxu0 %v7217
      %v7492 = vpop.f32.mrb[0].mxu0
      %v7493 = vadd.f32 %v7241, %v7492
      %v7494 = vpop.f32.mrb[0].mxu0
      %v7495 = vadd.f32 %v7245, %v7494
      %v7496 = vpop.f32.mrb[0].mxu0
      %v7497 = vadd.f32 %v7241, %v7496
      %v7498 = vpop.f32.mrb[0].mxu0
      %v7499 = vadd.f32 %v7245, %v7498
      %7500 = vmatprep.mubr.bf16.mxu0 0
      %7501 = vmatmul.mubr.bf16.gmra.mrb[0].mxu0 %v7218
      %v7502 = vpop.f32.mrb[0].mxu0
      %v7503 = vadd.f32 %v7241, %v7502
      %v7504 = vpop.f32.mrb[0].mxu0
      %v7505 = vadd.f32 %v7245, %v7504
      %v7506 = vpop.f32.mrb[0].mxu0
      %v7507 = vadd.f32 %v7241, %v7506
      %v7508 = vpop.f32.mrb[0].mxu0
      %v7509 = vadd.f32 %v7245, %v7508
      %7510 = vmatprep.mubr.bf16.mxu0 0
      %7511 = vmatmul.mubr.bf16.gmra.mrb[0].mxu0 %v7219
      %v7512 = vpop.f32.mrb[0].mxu0
      %v7513 = vadd.f32 %v7241, %v7512
      %v7514 = vpop.f32.mrb[0].mxu0
      %v7515 = vadd.f32 %v7245, %v7514
      %v7516 = vpop.f32.mrb[0].mxu0
      %v7517 = vadd.f32 %v7241, %v7516
      %v7518 = vpop.f32.mrb[0].mxu0
      %v7519 = vadd.f32 %v7245, %v7518
      %7520 = vdwg.mxu0
      %v7521 = vld [vmem:[%s716] sm:$0x3]
      %v7522 = vld [vmem:[%s720] sm:$0x3]
      %v7523 = vadd.f32 %v7363, %v7365
      %7524 = vadd.xlane.f32.xlu0 %v7523
      %v7525 = vpop.xlane.xlu0 %7524
      %v7526 = vadd.f32 %v7367, %v7369
      %7527 = vadd.xlane.f32.xlu0 %v7526
      %v7528 = vpop.xlane.xlu0 %7527
      %v7529 = vadd.f32 %v7373, %v7375
      %7530 = vadd.xlane.f32.xlu0 %v7529
      %v7531 = vpop.xlane.xlu0 %7530
      %v7532 = vadd.f32 %v7377, %v7379
      %7533 = vadd.xlane.f32.xlu0 %v7532
      %v7534 = vpop.xlane.xlu0 %7533
      %v7535 = vadd.f32 %v7383, %v7385
      %7536 = vadd.xlane.f32.xlu0 %v7535
      %v7537 = vpop.xlane.xlu0 %7536
      %v7538 = vadd.f32 %v7387, %v7389
      %7539 = vadd.xlane.f32.xlu0 %v7538
      %v7540 = vpop.xlane.xlu0 %7539
      %v7541 = vadd.f32 %v7393, %v7395
      %7542 = vadd.xlane.f32.xlu0 %v7541
      %v7543 = vpop.xlane.xlu0 %7542
      %v7544 = vadd.f32 %v7397, %v7399
      %7545 = vadd.xlane.f32.xlu0 %v7544
      %v7546 = vpop.xlane.xlu0 %7545
      %v7547 = vadd.f32 %v7403, %v7405
      %7548 = vadd.xlane.f32.xlu0 %v7547
      %v7549 = vpop.xlane.xlu0 %7548
      %v7550 = vadd.f32 %v7407, %v7409
      %7551 = vadd.xlane.f32.xlu0 %v7550
      %v7552 = vpop.xlane.xlu0 %7551
      %v7553 = vadd.f32 %v7413, %v7415
      %7554 = vadd.xlane.f32.xlu0 %v7553
      %v7555 = vpop.xlane.xlu0 %7554
      %v7556 = vadd.f32 %v7417, %v7419
      %7557 = vadd.xlane.f32.xlu0 %v7556
      %v7558 = vpop.xlane.xlu0 %7557
      %v7559 = vadd.f32 %v7423, %v7425
      %7560 = vadd.xlane.f32.xlu0 %v7559
      %v7561 = vpop.xlane.xlu0 %7560
      %v7562 = vadd.f32 %v7427, %v7429
      %7563 = vadd.xlane.f32.xlu0 %v7562
      %v7564 = vpop.xlane.xlu0 %7563
      %v7565 = vadd.f32 %v7433, %v7435
      %7566 = vadd.xlane.f32.xlu0 %v7565
      %v7567 = vpop.xlane.xlu0 %7566
      %v7568 = vadd.f32 %v7437, %v7439
      %7569 = vadd.xlane.f32.xlu0 %v7568
      %v7570 = vpop.xlane.xlu0 %7569
      %v7571 = vadd.f32 %v7443, %v7445
      %7572 = vadd.xlane.f32.xlu0 %v7571
      %v7573 = vpop.xlane.xlu0 %7572
      %v7574 = vadd.f32 %v7447, %v7449
      %7575 = vadd.xlane.f32.xlu0 %v7574
      %v7576 = vpop.xlane.xlu0 %7575
      %v7577 = vadd.f32 %v7453, %v7455
      %7578 = vadd.xlane.f32.xlu0 %v7577
      %v7579 = vpop.xlane.xlu0 %7578
      %v7580 = vadd.f32 %v7457, %v7459
      %7581 = vadd.xlane.f32.xlu0 %v7580
      %v7582 = vpop.xlane.xlu0 %7581
      %v7583 = vadd.f32 %v7463, %v7465
      %7584 = vadd.xlane.f32.xlu0 %v7583
      %v7585 = vpop.xlane.xlu0 %7584
      %v7586 = vadd.f32 %v7467, %v7469
      %7587 = vadd.xlane.f32.xlu0 %v7586
      %v7588 = vpop.xlane.xlu0 %7587
      %v7589 = vadd.f32 %v7473, %v7475
      %7590 = vadd.xlane.f32.xlu0 %v7589
      %v7591 = vpop.xlane.xlu0 %7590
      %v7592 = vadd.f32 %v7477, %v7479
      %7593 = vadd.xlane.f32.xlu0 %v7592
      %v7594 = vpop.xlane.xlu0 %7593
      %v7595 = vadd.f32 %v7483, %v7485
      %7596 = vadd.xlane.f32.xlu0 %v7595
      %v7597 = vpop.xlane.xlu0 %7596
      %v7598 = vadd.f32 %v7487, %v7489
      %7599 = vadd.xlane.f32.xlu0 %v7598
      %v7600 = vpop.xlane.xlu0 %7599
      %v7601 = vadd.f32 %v7493, %v7495
      %7602 = vadd.xlane.f32.xlu0 %v7601
      %v7603 = vpop.xlane.xlu0 %7602
      %v7604 = vadd.f32 %v7497, %v7499
      %7605 = vadd.xlane.f32.xlu0 %v7604
      %v7606 = vpop.xlane.xlu0 %7605
      %v7607 = vadd.f32 %v7503, %v7505
      %7608 = vadd.xlane.f32.xlu0 %v7607
      %v7609 = vpop.xlane.xlu0 %7608
      %v7610 = vadd.f32 %v7507, %v7509
      %7611 = vadd.xlane.f32.xlu0 %v7610
      %v7612 = vpop.xlane.xlu0 %7611
      %v7613 = vadd.f32 %v7513, %v7515
      %7614 = vadd.xlane.f32.xlu0 %v7613
      %v7615 = vpop.xlane.xlu0 %7614
      %v7616 = vadd.f32 %v7517, %v7519
      %7617 = vadd.xlane.f32.xlu0 %v7616
      %v7618 = vpop.xlane.xlu0 %7617
      %v7619 = vrcp.pop 256.0
      %v7620 = vmul.f32 %v7525, %v7619
      %v7621 = vmul.f32 %v7528, %v7619
      %v7622 = vmul.f32 %v7531, %v7619
      %v7623 = vmul.f32 %v7534, %v7619
      %v7624 = vmul.f32 %v7537, %v7619
      %v7625 = vmul.f32 %v7540, %v7619
      %v7626 = vmul.f32 %v7543, %v7619
      %v7627 = vmul.f32 %v7546, %v7619
      %v7628 = vmul.f32 %v7549, %v7619
      %v7629 = vmul.f32 %v7552, %v7619
      %v7630 = vmul.f32 %v7555, %v7619
      %v7631 = vmul.f32 %v7558, %v7619
      %v7632 = vmul.f32 %v7561, %v7619
      %v7633 = vmul.f32 %v7564, %v7619
      %v7634 = vmul.f32 %v7567, %v7619
      %v7635 = vmul.f32 %v7570, %v7619
      %v7636 = vmul.f32 %v7573, %v7619
      %v7637 = vmul.f32 %v7576, %v7619
      %v7638 = vmul.f32 %v7579, %v7619
      %v7639 = vmul.f32 %v7582, %v7619
      %v7640 = vmul.f32 %v7585, %v7619
      %v7641 = vmul.f32 %v7588, %v7619
      %v7642 = vmul.f32 %v7591, %v7619
      %v7643 = vmul.f32 %v7594, %v7619
      %v7644 = vmul.f32 %v7597, %v7619
      %v7645 = vmul.f32 %v7600, %v7619
      %v7646 = vmul.f32 %v7603, %v7619
      %v7647 = vmul.f32 %v7606, %v7619
      %v7648 = vmul.f32 %v7609, %v7619
      %v7649 = vmul.f32 %v7612, %v7619
      %v7650 = vmul.f32 %v7615, %v7619
      %v7651 = vmul.f32 %v7618, %v7619
      %v7652 = vsub.f32 %v7363, %v7620
      %v7653 = vsub.f32 %v7365, %v7620
      %v7654 = vsub.f32 %v7367, %v7621
      %v7655 = vsub.f32 %v7369, %v7621
      %v7656 = vsub.f32 %v7373, %v7622
      %v7657 = vsub.f32 %v7375, %v7622
      %v7658 = vsub.f32 %v7377, %v7623
      %v7659 = vsub.f32 %v7379, %v7623
      %v7660 = vsub.f32 %v7383, %v7624
      %v7661 = vsub.f32 %v7385, %v7624
      %v7662 = vsub.f32 %v7387, %v7625
      %v7663 = vsub.f32 %v7389, %v7625
      %v7664 = vsub.f32 %v7393, %v7626
      %v7665 = vsub.f32 %v7395, %v7626
      %v7666 = vsub.f32 %v7397, %v7627
      %v7667 = vsub.f32 %v7399, %v7627
      %v7668 = vsub.f32 %v7403, %v7628
      %v7669 = vsub.f32 %v7405, %v7628
      %v7670 = vsub.f32 %v7407, %v7629
      %v7671 = vsub.f32 %v7409, %v7629
      %v7672 = vsub.f32 %v7413, %v7630
      %v7673 = vsub.f32 %v7415, %v7630
      %v7674 = vsub.f32 %v7417, %v7631
      %v7675 = vsub.f32 %v7419, %v7631
      %v7676 = vsub.f32 %v7423, %v7632
      %v7677 = vsub.f32 %v7425, %v7632
      %v7678 = vsub.f32 %v7427, %v7633
      %v7679 = vsub.f32 %v7429, %v7633
      %v7680 = vsub.f32 %v7433, %v7634
      %v7681 = vsub.f32 %v7435, %v7634
      %v7682 = vsub.f32 %v7437, %v7635
      %v7683 = vsub.f32 %v7439, %v7635
      %v7684 = vsub.f32 %v7443, %v7636
      %v7685 = vsub.f32 %v7445, %v7636
      %v7686 = vsub.f32 %v7447, %v7637
      %v7687 = vsub.f32 %v7449, %v7637
      %v7688 = vsub.f32 %v7453, %v7638
      %v7689 = vsub.f32 %v7455, %v7638
      %v7690 = vsub.f32 %v7457, %v7639
      %v7691 = vsub.f32 %v7459, %v7639
      %v7692 = vsub.f32 %v7463, %v7640
      %v7693 = vsub.f32 %v7465, %v7640
      %v7694 = vsub.f32 %v7467, %v7641
      %v7695 = vsub.f32 %v7469, %v7641
      %v7696 = vsub.f32 %v7473, %v7642
      %v7697 = vsub.f32 %v7475, %v7642
      %v7698 = vsub.f32 %v7477, %v7643
      %v7699 = vsub.f32 %v7479, %v7643
      %v7700 = vsub.f32 %v7483, %v7644
      %v7701 = vsub.f32 %v7485, %v7644
      %v7702 = vsub.f32 %v7487, %v7645
      %v7703 = vsub.f32 %v7489, %v7645
      %v7704 = vsub.f32 %v7493, %v7646
      %v7705 = vsub.f32 %v7495, %v7646
      %v7706 = vsub.f32 %v7497, %v7647
      %v7707 = vsub.f32 %v7499, %v7647
      %v7708 = vsub.f32 %v7503, %v7648
      %v7709 = vsub.f32 %v7505, %v7648
      %v7710 = vsub.f32 %v7507, %v7649
      %v7711 = vsub.f32 %v7509, %v7649
      %v7712 = vsub.f32 %v7513, %v7650
      %v7713 = vsub.f32 %v7515, %v7650
      %v7714 = vsub.f32 %v7517, %v7651
      %v7715 = vsub.f32 %v7519, %v7651
      %v7716 = vmul.f32 %v7652, %v7652
      %v7717 = vmul.f32 %v7653, %v7653
      %v7718 = vmul.f32 %v7654, %v7654
      %v7719 = vmul.f32 %v7655, %v7655
      %v7720 = vmul.f32 %v7656, %v7656
      %v7721 = vmul.f32 %v7657, %v7657
      %v7722 = vmul.f32 %v7658, %v7658
      %v7723 = vmul.f32 %v7659, %v7659
      %v7724 = vmul.f32 %v7660, %v7660
      %v7725 = vmul.f32 %v7661, %v7661
      %v7726 = vmul.f32 %v7662, %v7662
      %v7727 = vmul.f32 %v7663, %v7663
      %v7728 = vmul.f32 %v7664, %v7664
      %v7729 = vmul.f32 %v7665, %v7665
      %v7730 = vmul.f32 %v7666, %v7666
      %v7731 = vmul.f32 %v7667, %v7667
      %v7732 = vmul.f32 %v7668, %v7668
      %v7733 = vmul.f32 %v7669, %v7669
      %v7734 = vmul.f32 %v7670, %v7670
      %v7735 = vmul.f32 %v7671, %v7671
      %v7736 = vmul.f32 %v7672, %v7672
      %v7737 = vmul.f32 %v7673, %v7673
      %v7738 = vmul.f32 %v7674, %v7674
      %v7739 = vmul.f32 %v7675, %v7675
      %v7740 = vmul.f32 %v7676, %v7676
      %v7741 = vmul.f32 %v7677, %v7677
      %v7742 = vmul.f32 %v7678, %v7678
      %v7743 = vmul.f32 %v7679, %v7679
      %v7744 = vmul.f32 %v7680, %v7680
      %v7745 = vmul.f32 %v7681, %v7681
      %v7746 = vmul.f32 %v7682, %v7682
      %v7747 = vmul.f32 %v7683, %v7683
      %v7748 = vmul.f32 %v7684, %v7684
      %v7749 = vmul.f32 %v7685, %v7685
      %v7750 = vmul.f32 %v7686, %v7686
      %v7751 = vmul.f32 %v7687, %v7687
      %v7752 = vmul.f32 %v7688, %v7688
      %v7753 = vmul.f32 %v7689, %v7689
      %v7754 = vmul.f32 %v7690, %v7690
      %v7755 = vmul.f32 %v7691, %v7691
      %v7756 = vmul.f32 %v7692, %v7692
      %v7757 = vmul.f32 %v7693, %v7693
      %v7758 = vmul.f32 %v7694, %v7694
      %v7759 = vmul.f32 %v7695, %v7695
      %v7760 = vmul.f32 %v7696, %v7696
      %v7761 = vmul.f32 %v7697, %v7697
      %v7762 = vmul.f32 %v7698, %v7698
      %v7763 = vmul.f32 %v7699, %v7699
      %v7764 = vmul.f32 %v7700, %v7700
      %v7765 = vmul.f32 %v7701, %v7701
      %v7766 = vmul.f32 %v7702, %v7702
      %v7767 = vmul.f32 %v7703, %v7703
      %v7768 = vmul.f32 %v7704, %v7704
      %v7769 = vmul.f32 %v7705, %v7705
      %v7770 = vmul.f32 %v7706, %v7706
      %v7771 = vmul.f32 %v7707, %v7707
      %v7772 = vmul.f32 %v7708, %v7708
      %v7773 = vmul.f32 %v7709, %v7709
      %v7774 = vmul.f32 %v7710, %v7710
      %v7775 = vmul.f32 %v7711, %v7711
      %v7776 = vmul.f32 %v7712, %v7712
      %v7777 = vmul.f32 %v7713, %v7713
      %v7778 = vmul.f32 %v7714, %v7714
      %v7779 = vmul.f32 %v7715, %v7715
      %v7780 = vadd.f32 %v7716, %v7717
      %7781 = vadd.xlane.f32.xlu0 %v7780
      %v7782 = vpop.xlane.xlu0 %7781
      %v7783 = vadd.f32 %v7718, %v7719
      %7784 = vadd.xlane.f32.xlu0 %v7783
      %v7785 = vpop.xlane.xlu0 %7784
      %v7786 = vadd.f32 %v7720, %v7721
      %7787 = vadd.xlane.f32.xlu0 %v7786
      %v7788 = vpop.xlane.xlu0 %7787
      %v7789 = vadd.f32 %v7722, %v7723
      %7790 = vadd.xlane.f32.xlu0 %v7789
      %v7791 = vpop.xlane.xlu0 %7790
      %v7792 = vadd.f32 %v7724, %v7725
      %7793 = vadd.xlane.f32.xlu0 %v7792
      %v7794 = vpop.xlane.xlu0 %7793
      %v7795 = vadd.f32 %v7726, %v7727
      %7796 = vadd.xlane.f32.xlu0 %v7795
      %v7797 = vpop.xlane.xlu0 %7796
      %v7798 = vadd.f32 %v7728, %v7729
      %7799 = vadd.xlane.f32.xlu0 %v7798
      %v7800 = vpop.xlane.xlu0 %7799
      %v7801 = vadd.f32 %v7730, %v7731
      %7802 = vadd.xlane.f32.xlu0 %v7801
      %v7803 = vpop.xlane.xlu0 %7802
      %v7804 = vadd.f32 %v7732, %v7733
      %7805 = vadd.xlane.f32.xlu0 %v7804
      %v7806 = vpop.xlane.xlu0 %7805
      %v7807 = vadd.f32 %v7734, %v7735
      %7808 = vadd.xlane.f32.xlu0 %v7807
      %v7809 = vpop.xlane.xlu0 %7808
      %v7810 = vadd.f32 %v7736, %v7737
      %7811 = vadd.xlane.f32.xlu0 %v7810
      %v7812 = vpop.xlane.xlu0 %7811
      %v7813 = vadd.f32 %v7738, %v7739
      %7814 = vadd.xlane.f32.xlu0 %v7813
      %v7815 = vpop.xlane.xlu0 %7814
      %v7816 = vadd.f32 %v7740, %v7741
      %7817 = vadd.xlane.f32.xlu0 %v7816
      %v7818 = vpop.xlane.xlu0 %7817
      %v7819 = vadd.f32 %v7742, %v7743
      %7820 = vadd.xlane.f32.xlu0 %v7819
      %v7821 = vpop.xlane.xlu0 %7820
      %v7822 = vadd.f32 %v7744, %v7745
      %7823 = vadd.xlane.f32.xlu0 %v7822
      %v7824 = vpop.xlane.xlu0 %7823
      %v7825 = vadd.f32 %v7746, %v7747
      %7826 = vadd.xlane.f32.xlu0 %v7825
      %v7827 = vpop.xlane.xlu0 %7826
      %v7828 = vadd.f32 %v7748, %v7749
      %7829 = vadd.xlane.f32.xlu0 %v7828
      %v7830 = vpop.xlane.xlu0 %7829
      %v7831 = vadd.f32 %v7750, %v7751
      %7832 = vadd.xlane.f32.xlu0 %v7831
      %v7833 = vpop.xlane.xlu0 %7832
      %v7834 = vadd.f32 %v7752, %v7753
      %7835 = vadd.xlane.f32.xlu0 %v7834
      %v7836 = vpop.xlane.xlu0 %7835
      %v7837 = vadd.f32 %v7754, %v7755
      %7838 = vadd.xlane.f32.xlu0 %v7837
      %v7839 = vpop.xlane.xlu0 %7838
      %v7840 = vadd.f32 %v7756, %v7757
      %7841 = vadd.xlane.f32.xlu0 %v7840
      %v7842 = vpop.xlane.xlu0 %7841
      %v7843 = vadd.f32 %v7758, %v7759
      %7844 = vadd.xlane.f32.xlu0 %v7843
      %v7845 = vpop.xlane.xlu0 %7844
      %v7846 = vadd.f32 %v7760, %v7761
      %7847 = vadd.xlane.f32.xlu0 %v7846
      %v7848 = vpop.xlane.xlu0 %7847
      %v7849 = vadd.f32 %v7762, %v7763
      %7850 = vadd.xlane.f32.xlu0 %v7849
      %v7851 = vpop.xlane.xlu0 %7850
      %v7852 = vadd.f32 %v7764, %v7765
      %7853 = vadd.xlane.f32.xlu0 %v7852
      %v7854 = vpop.xlane.xlu0 %7853
      %v7855 = vadd.f32 %v7766, %v7767
      %7856 = vadd.xlane.f32.xlu0 %v7855
      %v7857 = vpop.xlane.xlu0 %7856
      %v7858 = vadd.f32 %v7768, %v7769
      %7859 = vadd.xlane.f32.xlu0 %v7858
      %v7860 = vpop.xlane.xlu0 %7859
      %v7861 = vadd.f32 %v7770, %v7771
      %7862 = vadd.xlane.f32.xlu0 %v7861
      %v7863 = vpop.xlane.xlu0 %7862
      %v7864 = vadd.f32 %v7772, %v7773
      %7865 = vadd.xlane.f32.xlu0 %v7864
      %v7866 = vpop.xlane.xlu0 %7865
      %v7867 = vadd.f32 %v7774, %v7775
      %7868 = vadd.xlane.f32.xlu0 %v7867
      %v7869 = vpop.xlane.xlu0 %7868
      %v7870 = vadd.f32 %v7776, %v7777
      %7871 = vadd.xlane.f32.xlu0 %v7870
      %v7872 = vpop.xlane.xlu0 %7871
      %v7873 = vadd.f32 %v7778, %v7779
      %7874 = vadd.xlane.f32.xlu0 %v7873
      %v7875 = vpop.xlane.xlu0 %7874
      %v7876 = vmul.f32 %v7782, %v7619
      %v7877 = vmul.f32 %v7785, %v7619
      %v7878 = vmul.f32 %v7788, %v7619
      %v7879 = vmul.f32 %v7791, %v7619
      %v7880 = vmul.f32 %v7794, %v7619
      %v7881 = vmul.f32 %v7797, %v7619
      %v7882 = vmul.f32 %v7800, %v7619
      %v7883 = vmul.f32 %v7803, %v7619
      %v7884 = vmul.f32 %v7806, %v7619
      %v7885 = vmul.f32 %v7809, %v7619
      %v7886 = vmul.f32 %v7812, %v7619
      %v7887 = vmul.f32 %v7815, %v7619
      %v7888 = vmul.f32 %v7818, %v7619
      %v7889 = vmul.f32 %v7821, %v7619
      %v7890 = vmul.f32 %v7824, %v7619
      %v7891 = vmul.f32 %v7827, %v7619
      %v7892 = vmul.f32 %v7830, %v7619
      %v7893 = vmul.f32 %v7833, %v7619
      %v7894 = vmul.f32 %v7836, %v7619
      %v7895 = vmul.f32 %v7839, %v7619
      %v7896 = vmul.f32 %v7842, %v7619
      %v7897 = vmul.f32 %v7845, %v7619
      %v7898 = vmul.f32 %v7848, %v7619
      %v7899 = vmul.f32 %v7851, %v7619
      %v7900 = vmul.f32 %v7854, %v7619
      %v7901 = vmul.f32 %v7857, %v7619
      %v7902 = vmul.f32 %v7860, %v7619
      %v7903 = vmul.f32 %v7863, %v7619
      %v7904 = vmul.f32 %v7866, %v7619
      %v7905 = vmul.f32 %v7869, %v7619
      %v7906 = vmul.f32 %v7872, %v7619
      %v7907 = vmul.f32 %v7875, %v7619
      %v7908 = vadd.f32 %v7876, 1e-05
      %v7909 = vadd.f32 %v7877, 1e-05
      %v7910 = vadd.f32 %v7878, 1e-05
      %v7911 = vadd.f32 %v7879, 1e-05
      %v7912 = vadd.f32 %v7880, 1e-05
      %v7913 = vadd.f32 %v7881, 1e-05
      %v7914 = vadd.f32 %v7882, 1e-05
      %v7915 = vadd.f32 %v7883, 1e-05
      %v7916 = vadd.f32 %v7884, 1e-05
      %v7917 = vadd.f32 %v7885, 1e-05
      %v7918 = vadd.f32 %v7886, 1e-05
      %v7919 = vadd.f32 %v7887, 1e-05
      %v7920 = vadd.f32 %v7888, 1e-05
      %v7921 = vadd.f32 %v7889, 1e-05
      %v7922 = vadd.f32 %v7890, 1e-05
      %v7923 = vadd.f32 %v7891, 1e-05
      %v7924 = vadd.f32 %v7892, 1e-05
      %v7925 = vadd.f32 %v7893, 1e-05
      %v7926 = vadd.f32 %v7894, 1e-05
      %v7927 = vadd.f32 %v7895, 1e-05
      %v7928 = vadd.f32 %v7896, 1e-05
      %v7929 = vadd.f32 %v7897, 1e-05
      %v7930 = vadd.f32 %v7898, 1e-05
      %v7931 = vadd.f32 %v7899, 1e-05
      %v7932 = vadd.f32 %v7900, 1e-05
      %v7933 = vadd.f32 %v7901, 1e-05
      %v7934 = vadd.f32 %v7902, 1e-05
      %v7935 = vadd.f32 %v7903, 1e-05
      %v7936 = vadd.f32 %v7904, 1e-05
      %v7937 = vadd.f32 %v7905, 1e-05
      %v7938 = vadd.f32 %v7906, 1e-05
      %v7939 = vadd.f32 %v7907, 1e-05
      %v7940 = vrsqrt.pop %v7908
      %v7941 = vrsqrt.pop %v7909
      %v7942 = vrsqrt.pop %v7910
      %v7943 = vrsqrt.pop %v7911
      %v7944 = vrsqrt.pop %v7912
      %v7945 = vrsqrt.pop %v7913
      %v7946 = vrsqrt.pop %v7914
      %v7947 = vrsqrt.pop %v7915
      %v7948 = vrsqrt.pop %v7916
      %v7949 = vrsqrt.pop %v7917
      %v7950 = vrsqrt.pop %v7918
      %v7951 = vrsqrt.pop %v7919
      %v7952 = vrsqrt.pop %v7920
      %v7953 = vrsqrt.pop %v7921
      %v7954 = vrsqrt.pop %v7922
      %v7955 = vrsqrt.pop %v7923
      %v7956 = vrsqrt.pop %v7924
      %v7957 = vrsqrt.pop %v7925
      %v7958 = vrsqrt.pop %v7926
      %v7959 = vrsqrt.pop %v7927
      %v7960 = vrsqrt.pop %v7928
      %v7961 = vrsqrt.pop %v7929
      %v7962 = vrsqrt.pop %v7930
      %v7963 = vrsqrt.pop %v7931
      %v7964 = vrsqrt.pop %v7932
      %v7965 = vrsqrt.pop %v7933
      %v7966 = vrsqrt.pop %v7934
      %v7967 = vrsqrt.pop %v7935
      %v7968 = vrsqrt.pop %v7936
      %v7969 = vrsqrt.pop %v7937
      %v7970 = vrsqrt.pop %v7938
      %v7971 = vrsqrt.pop %v7939
      %v7972 = vmul.f32 %v7652, %v7940
      %v7973 = vmul.f32 %v7653, %v7940
      %v7974 = vmul.f32 %v7654, %v7941
      %v7975 = vmul.f32 %v7655, %v7941
      %v7976 = vmul.f32 %v7656, %v7942
      %v7977 = vmul.f32 %v7657, %v7942
      %v7978 = vmul.f32 %v7658, %v7943
      %v7979 = vmul.f32 %v7659, %v7943
      %v7980 = vmul.f32 %v7660, %v7944
      %v7981 = vmul.f32 %v7661, %v7944
      %v7982 = vmul.f32 %v7662, %v7945
      %v7983 = vmul.f32 %v7663, %v7945
      %v7984 = vmul.f32 %v7664, %v7946
      %v7985 = vmul.f32 %v7665, %v7946
      %v7986 = vmul.f32 %v7666, %v7947
      %v7987 = vmul.f32 %v7667, %v7947
      %v7988 = vmul.f32 %v7668, %v7948
      %v7989 = vmul.f32 %v7669, %v7948
      %v7990 = vmul.f32 %v7670, %v7949
      %v7991 = vmul.f32 %v7671, %v7949
      %v7992 = vmul.f32 %v7672, %v7950
      %v7993 = vmul.f32 %v7673, %v7950
      %v7994 = vmul.f32 %v7674, %v7951
      %v7995 = vmul.f32 %v7675, %v7951
      %v7996 = vmul.f32 %v7676, %v7952
      %v7997 = vmul.f32 %v7677, %v7952
      %v7998 = vmul.f32 %v7678, %v7953
      %v7999 = vmul.f32 %v7679, %v7953
      %v8000 = vmul.f32 %v7680, %v7954
      %v8001 = vmul.f32 %v7681, %v7954
      %v8002 = vmul.f32 %v7682, %v7955
      %v8003 = vmul.f32 %v7683, %v7955
      %v8004 = vmul.f32 %v7684, %v7956
      %v8005 = vmul.f32 %v7685, %v7956
      %v8006 = vmul.f32 %v7686, %v7957
      %v8007 = vmul.f32 %v7687, %v7957
      %v8008 = vmul.f32 %v7688, %v7958
      %v8009 = vmul.f32 %v7689, %v7958
      %v8010 = vmul.f32 %v7690, %v7959
      %v8011 = vmul.f32 %v7691, %v7959
      %v8012 = vmul.f32 %v7692, %v7960
      %v8013 = vmul.f32 %v7693, %v7960
      %v8014 = vmul.f32 %v7694, %v7961
      %v8015 = vmul.f32 %v7695, %v7961
      %v8016 = vmul.f32 %v7696, %v7962
      %v8017 = vmul.f32 %v7697, %v7962
      %v8018 = vmul.f32 %v7698, %v7963
      %v8019 = vmul.f32 %v7699, %v7963
      %v8020 = vmul.f32 %v7700, %v7964
      %v8021 = vmul.f32 %v7701, %v7964
      %v8022 = vmul.f32 %v7702, %v7965
      %v8023 = vmul.f32 %v7703, %v7965
      %v8024 = vmul.f32 %v7704, %v7966
      %v8025 = vmul.f32 %v7705, %v7966
      %v8026 = vmul.f32 %v7706, %v7967
      %v8027 = vmul.f32 %v7707, %v7967
      %v8028 = vmul.f32 %v7708, %v7968
      %v8029 = vmul.f32 %v7709, %v7968
      %v8030 = vmul.f32 %v7710, %v7969
      %v8031 = vmul.f32 %v7711, %v7969
      %v8032 = vmul.f32 %v7712, %v7970
      %v8033 = vmul.f32 %v7713, %v7970
      %v8034 = vmul.f32 %v7714, %v7971
      %v8035 = vmul.f32 %v7715, %v7971
      %v8037 = vlaneseq
      %v8038 = vshrl.u32 %v8037, 7
      %v8039 = vsub.s32 0, %v8038
      %v8040 = vrot.slane %v7521, %v8039
      %v8041 = vlaneseq
      %v8042 = vshrl.u32 %v8041, 7
      %v8043 = vsub.s32 1, %v8042
      %v8044 = vrot.slane %v7521, %v8043
      %v8047 = vmul.f32 %v7972, %v8040
      %v8048 = vmul.f32 %v7973, %v8044
      %v8049 = vmul.f32 %v7974, %v8040
      %v8050 = vmul.f32 %v7975, %v8044
      %v8051 = vmul.f32 %v7976, %v8040
      %v8052 = vmul.f32 %v7977, %v8044
      %v8053 = vmul.f32 %v7978, %v8040
      %v8054 = vmul.f32 %v7979, %v8044
      %v8055 = vmul.f32 %v7980, %v8040
      %v8056 = vmul.f32 %v7981, %v8044
      %v8057 = vmul.f32 %v7982, %v8040
      %v8058 = vmul.f32 %v7983, %v8044
      %v8059 = vmul.f32 %v7984, %v8040
      %v8060 = vmul.f32 %v7985, %v8044
      %v8061 = vmul.f32 %v7986, %v8040
      %v8062 = vmul.f32 %v7987, %v8044
      %v8063 = vmul.f32 %v7988, %v8040
      %v8064 = vmul.f32 %v7989, %v8044
      %v8065 = vmul.f32 %v7990, %v8040
      %v8066 = vmul.f32 %v7991, %v8044
      %v8067 = vmul.f32 %v7992, %v8040
      %v8068 = vmul.f32 %v7993, %v8044
      %v8069 = vmul.f32 %v7994, %v8040
      %v8070 = vmul.f32 %v7995, %v8044
      %v8071 = vmul.f32 %v7996, %v8040
      %v8072 = vmul.f32 %v7997, %v8044
      %v8073 = vmul.f32 %v7998, %v8040
      %v8074 = vmul.f32 %v7999, %v8044
      %v8075 = vmul.f32 %v8000, %v8040
      %v8076 = vmul.f32 %v8001, %v8044
      %v8077 = vmul.f32 %v8002, %v8040
      %v8078 = vmul.f32 %v8003, %v8044
      %v8079 = vmul.f32 %v8004, %v8040
      %v8080 = vmul.f32 %v8005, %v8044
      %v8081 = vmul.f32 %v8006, %v8040
      %v8082 = vmul.f32 %v8007, %v8044
      %v8083 = vmul.f32 %v8008, %v8040
      %v8084 = vmul.f32 %v8009, %v8044
      %v8085 = vmul.f32 %v8010, %v8040
      %v8086 = vmul.f32 %v8011, %v8044
      %v8087 = vmul.f32 %v8012, %v8040
      %v8088 = vmul.f32 %v8013, %v8044
      %v8089 = vmul.f32 %v8014, %v8040
      %v8090 = vmul.f32 %v8015, %v8044
      %v8091 = vmul.f32 %v8016, %v8040
      %v8092 = vmul.f32 %v8017, %v8044
      %v8093 = vmul.f32 %v8018, %v8040
      %v8094 = vmul.f32 %v8019, %v8044
      %v8095 = vmul.f32 %v8020, %v8040
      %v8096 = vmul.f32 %v8021, %v8044
      %v8097 = vmul.f32 %v8022, %v8040
      %v8098 = vmul.f32 %v8023, %v8044
      %v8099 = vmul.f32 %v8024, %v8040
      %v8100 = vmul.f32 %v8025, %v8044
      %v8101 = vmul.f32 %v8026, %v8040
      %v8102 = vmul.f32 %v8027, %v8044
      %v8103 = vmul.f32 %v8028, %v8040
      %v8104 = vmul.f32 %v8029, %v8044
      %v8105 = vmul.f32 %v8030, %v8040
      %v8106 = vmul.f32 %v8031, %v8044
      %v8107 = vmul.f32 %v8032, %v8040
      %v8108 = vmul.f32 %v8033, %v8044
      %v8109 = vmul.f32 %v8034, %v8040
      %v8110 = vmul.f32 %v8035, %v8044
      %v8112 = vlaneseq
      %v8113 = vshrl.u32 %v8112, 7
      %v8114 = vsub.s32 0, %v8113
      %v8115 = vrot.slane %v7522, %v8114
      %v8116 = vlaneseq
      %v8117 = vshrl.u32 %v8116, 7
      %v8118 = vsub.s32 1, %v8117
      %v8119 = vrot.slane %v7522, %v8118
      %v8122 = vadd.f32 %v8047, %v8115
      %v8123 = vadd.f32 %v8048, %v8119
      %v8124 = vadd.f32 %v8049, %v8115
      %v8125 = vadd.f32 %v8050, %v8119
      %v8126 = vadd.f32 %v8051, %v8115
      %v8127 = vadd.f32 %v8052, %v8119
      %v8128 = vadd.f32 %v8053, %v8115
      %v8129 = vadd.f32 %v8054, %v8119
      %v8130 = vadd.f32 %v8055, %v8115
      %v8131 = vadd.f32 %v8056, %v8119
      %v8132 = vadd.f32 %v8057, %v8115
      %v8133 = vadd.f32 %v8058, %v8119
      %v8134 = vadd.f32 %v8059, %v8115
      %v8135 = vadd.f32 %v8060, %v8119
      %v8136 = vadd.f32 %v8061, %v8115
      %v8137 = vadd.f32 %v8062, %v8119
      %v8138 = vadd.f32 %v8063, %v8115
      %v8139 = vadd.f32 %v8064, %v8119
      %v8140 = vadd.f32 %v8065, %v8115
      %v8141 = vadd.f32 %v8066, %v8119
      %v8142 = vadd.f32 %v8067, %v8115
      %v8143 = vadd.f32 %v8068, %v8119
      %v8144 = vadd.f32 %v8069, %v8115
      %v8145 = vadd.f32 %v8070, %v8119
      %v8146 = vadd.f32 %v8071, %v8115
      %v8147 = vadd.f32 %v8072, %v8119
      %v8148 = vadd.f32 %v8073, %v8115
      %v8149 = vadd.f32 %v8074, %v8119
      %v8150 = vadd.f32 %v8075, %v8115
      %v8151 = vadd.f32 %v8076, %v8119
      %v8152 = vadd.f32 %v8077, %v8115
      %v8153 = vadd.f32 %v8078, %v8119
      %v8154 = vadd.f32 %v8079, %v8115
      %v8155 = vadd.f32 %v8080, %v8119
      %v8156 = vadd.f32 %v8081, %v8115
      %v8157 = vadd.f32 %v8082, %v8119
      %v8158 = vadd.f32 %v8083, %v8115
      %v8159 = vadd.f32 %v8084, %v8119
      %v8160 = vadd.f32 %v8085, %v8115
      %v8161 = vadd.f32 %v8086, %v8119
      %v8162 = vadd.f32 %v8087, %v8115
      %v8163 = vadd.f32 %v8088, %v8119
      %v8164 = vadd.f32 %v8089, %v8115
      %v8165 = vadd.f32 %v8090, %v8119
      %v8166 = vadd.f32 %v8091, %v8115
      %v8167 = vadd.f32 %v8092, %v8119
      %v8168 = vadd.f32 %v8093, %v8115
      %v8169 = vadd.f32 %v8094, %v8119
      %v8170 = vadd.f32 %v8095, %v8115
      %v8171 = vadd.f32 %v8096, %v8119
      %v8172 = vadd.f32 %v8097, %v8115
      %v8173 = vadd.f32 %v8098, %v8119
      %v8174 = vadd.f32 %v8099, %v8115
      %v8175 = vadd.f32 %v8100, %v8119
      %v8176 = vadd.f32 %v8101, %v8115
      %v8177 = vadd.f32 %v8102, %v8119
      %v8178 = vadd.f32 %v8103, %v8115
      %v8179 = vadd.f32 %v8104, %v8119
      %v8180 = vadd.f32 %v8105, %v8115
      %v8181 = vadd.f32 %v8106, %v8119
      %v8182 = vadd.f32 %v8107, %v8115
      %v8183 = vadd.f32 %v8108, %v8119
      %v8184 = vadd.f32 %v8109, %v8115
      %v8185 = vadd.f32 %v8110, %v8119
      %v8186 = vmax.f32 %v8122, 0.0
      %v8187 = vmax.f32 %v8123, 0.0
      %v8188 = vmax.f32 %v8124, 0.0
      %v8189 = vmax.f32 %v8125, 0.0
      %v8190 = vmax.f32 %v8126, 0.0
      %v8191 = vmax.f32 %v8127, 0.0
      %v8192 = vmax.f32 %v8128, 0.0
      %v8193 = vmax.f32 %v8129, 0.0
      %v8194 = vmax.f32 %v8130, 0.0
      %v8195 = vmax.f32 %v8131, 0.0
      %v8196 = vmax.f32 %v8132, 0.0
      %v8197 = vmax.f32 %v8133, 0.0
      %v8198 = vmax.f32 %v8134, 0.0
      %v8199 = vmax.f32 %v8135, 0.0
      %v8200 = vmax.f32 %v8136, 0.0
      %v8201 = vmax.f32 %v8137, 0.0
      %v8202 = vmax.f32 %v8138, 0.0
      %v8203 = vmax.f32 %v8139, 0.0
      %v8204 = vmax.f32 %v8140, 0.0
      %v8205 = vmax.f32 %v8141, 0.0
      %v8206 = vmax.f32 %v8142, 0.0
      %v8207 = vmax.f32 %v8143, 0.0
      %v8208 = vmax.f32 %v8144, 0.0
      %v8209 = vmax.f32 %v8145, 0.0
      %v8210 = vmax.f32 %v8146, 0.0
      %v8211 = vmax.f32 %v8147, 0.0
      %v8212 = vmax.f32 %v8148, 0.0
      %v8213 = vmax.f32 %v8149, 0.0
      %v8214 = vmax.f32 %v8150, 0.0
      %v8215 = vmax.f32 %v8151, 0.0
      %v8216 = vmax.f32 %v8152, 0.0
      %v8217 = vmax.f32 %v8153, 0.0
      %v8218 = vmax.f32 %v8154, 0.0
      %v8219 = vmax.f32 %v8155, 0.0
      %v8220 = vmax.f32 %v8156, 0.0
      %v8221 = vmax.f32 %v8157, 0.0
      %v8222 = vmax.f32 %v8158, 0.0
      %v8223 = vmax.f32 %v8159, 0.0
      %v8224 = vmax.f32 %v8160, 0.0
      %v8225 = vmax.f32 %v8161, 0.0
      %v8226 = vmax.f32 %v8162, 0.0
      %v8227 = vmax.f32 %v8163, 0.0
      %v8228 = vmax.f32 %v8164, 0.0
      %v8229 = vmax.f32 %v8165, 0.0
      %v8230 = vmax.f32 %v8166, 0.0
      %v8231 = vmax.f32 %v8167, 0.0
      %v8232 = vmax.f32 %v8168, 0.0
      %v8233 = vmax.f32 %v8169, 0.0
      %v8234 = vmax.f32 %v8170, 0.0
      %v8235 = vmax.f32 %v8171, 0.0
      %v8236 = vmax.f32 %v8172, 0.0
      %v8237 = vmax.f32 %v8173, 0.0
      %v8238 = vmax.f32 %v8174, 0.0
      %v8239 = vmax.f32 %v8175, 0.0
      %v8240 = vmax.f32 %v8176, 0.0
      %v8241 = vmax.f32 %v8177, 0.0
      %v8242 = vmax.f32 %v8178, 0.0
      %v8243 = vmax.f32 %v8179, 0.0
      %v8244 = vmax.f32 %v8180, 0.0
      %v8245 = vmax.f32 %v8181, 0.0
      %v8246 = vmax.f32 %v8182, 0.0
      %v8247 = vmax.f32 %v8183, 0.0
      %v8248 = vmax.f32 %v8184, 0.0
      %v8249 = vmax.f32 %v8185, 0.0
      %v8250 = vpack.c.bf16 %v8188, %v8186
      %v8251 = vpack.c.bf16 %v8189, %v8187
      %v8252 = vpack.c.bf16 %v8192, %v8190
      %v8253 = vpack.c.bf16 %v8193, %v8191
      %v8254 = vpack.c.bf16 %v8196, %v8194
      %v8255 = vpack.c.bf16 %v8197, %v8195
      %v8256 = vpack.c.bf16 %v8200, %v8198
      %v8257 = vpack.c.bf16 %v8201, %v8199
      %v8258 = vpack.c.bf16 %v8204, %v8202
      %v8259 = vpack.c.bf16 %v8205, %v8203
      %v8260 = vpack.c.bf16 %v8208, %v8206
      %v8261 = vpack.c.bf16 %v8209, %v8207
      %v8262 = vpack.c.bf16 %v8212, %v8210
      %v8263 = vpack.c.bf16 %v8213, %v8211
      %v8264 = vpack.c.bf16 %v8216, %v8214
      %v8265 = vpack.c.bf16 %v8217, %v8215
      %v8266 = vpack.c.bf16 %v8220, %v8218
      %v8267 = vpack.c.bf16 %v8221, %v8219
      %v8268 = vpack.c.bf16 %v8224, %v8222
      %v8269 = vpack.c.bf16 %v8225, %v8223
      %v8270 = vpack.c.bf16 %v8228, %v8226
      %v8271 = vpack.c.bf16 %v8229, %v8227
      %v8272 = vpack.c.bf16 %v8232, %v8230
      %v8273 = vpack.c.bf16 %v8233, %v8231
      %v8274 = vpack.c.bf16 %v8236, %v8234
      %v8275 = vpack.c.bf16 %v8237, %v8235
      %v8276 = vpack.c.bf16 %v8240, %v8238
      %v8277 = vpack.c.bf16 %v8241, %v8239
      %v8278 = vpack.c.bf16 %v8244, %v8242
      %v8279 = vpack.c.bf16 %v8245, %v8243
      %v8280 = vpack.c.bf16 %v8248, %v8246
      %v8281 = vpack.c.bf16 %v8249, %v8247
      %v8282 = vld [vmem:[%s725] sm:$0xf]
      %v8283 = vld [vmem:[%s725 + $0x4] sm:$0xf]
      %v8284 = vld [vmem:[%s725 + $0x8] sm:$0xf]
      %v8285 = vld [vmem:[%s725 + $0xc] sm:$0xf]
      %v8286 = vld [vmem:[%s725 + $0x10] sm:$0xf]
      %v8287 = vld [vmem:[%s725 + $0x14] sm:$0xf]
      %v8288 = vld [vmem:[%s725 + $0x18] sm:$0xf]
      %v8289 = vld [vmem:[%s725 + $0x1c] sm:$0xf]
      %v8290 = vld [vmem:[%s725 + $0x20] sm:$0xf]
      %v8291 = vld [vmem:[%s725 + $0x24] sm:$0xf]
      %v8292 = vld [vmem:[%s725 + $0x28] sm:$0xf]
      %v8293 = vld [vmem:[%s725 + $0x2c] sm:$0xf]
      %v8294 = vld [vmem:[%s725 + $0x30] sm:$0xf]
      %v8295 = vld [vmem:[%s725 + $0x34] sm:$0xf]
      %v8296 = vld [vmem:[%s725 + $0x38] sm:$0xf]
      %v8297 = vld [vmem:[%s725 + $0x3c] sm:$0xf]
      %v8298 = vld [vmem:[%s725 + $0x40] sm:$0xf]
      %v8299 = vld [vmem:[%s725 + $0x44] sm:$0xf]
      %v8300 = vld [vmem:[%s725 + $0x48] sm:$0xf]
      %v8301 = vld [vmem:[%s725 + $0x4c] sm:$0xf]
      %v8302 = vld [vmem:[%s725 + $0x50] sm:$0xf]
      %v8303 = vld [vmem:[%s725 + $0x54] sm:$0xf]
      %v8304 = vld [vmem:[%s725 + $0x58] sm:$0xf]
      %v8305 = vld [vmem:[%s725 + $0x5c] sm:$0xf]
      %v8306 = vld [vmem:[%s725 + $0x60] sm:$0xf]
      %v8307 = vld [vmem:[%s725 + $0x64] sm:$0xf]
      %v8308 = vld [vmem:[%s725 + $0x68] sm:$0xf]
      %v8309 = vld [vmem:[%s725 + $0x6c] sm:$0xf]
      %v8310 = vld [vmem:[%s725 + $0x70] sm:$0xf]
      %v8311 = vld [vmem:[%s725 + $0x74] sm:$0xf]
      %v8312 = vld [vmem:[%s725 + $0x78] sm:$0xf]
      %v8313 = vld [vmem:[%s725 + $0x7c] sm:$0xf]
      %v8314 = vld [vmem:[%s728] sm:$0x1]
      %v8316 = vlaneseq
      %v8317 = vshrl.u32 %v8316, 7
      %v8318 = vsub.s32 0, %v8317
      %v8319 = vrot.slane %v8314, %v8318
      %v8353 = vunpack.c.l.b16 %v8282
      %v8354 = vunpack.c.l.b16 %v8283
      %v8355 = vunpack.c.l.b16 %v8284
      %v8356 = vunpack.c.l.b16 %v8285
      %v8357 = vunpack.c.l.b16 %v8286
      %v8358 = vunpack.c.l.b16 %v8287
      %v8359 = vunpack.c.l.b16 %v8288
      %v8360 = vunpack.c.l.b16 %v8289
      %v8361 = vunpack.c.l.b16 %v8290
      %v8362 = vunpack.c.l.b16 %v8291
      %v8363 = vunpack.c.l.b16 %v8292
      %v8364 = vunpack.c.l.b16 %v8293
      %v8365 = vunpack.c.l.b16 %v8294
      %v8366 = vunpack.c.l.b16 %v8295
      %v8367 = vunpack.c.l.b16 %v8296
      %v8368 = vunpack.c.l.b16 %v8297
      %v8369 = vunpack.c.l.b16 %v8298
      %v8370 = vunpack.c.l.b16 %v8299
      %v8371 = vunpack.c.l.b16 %v8300
      %v8372 = vunpack.c.l.b16 %v8301
      %v8373 = vunpack.c.l.b16 %v8302
      %v8374 = vunpack.c.l.b16 %v8303
      %v8375 = vunpack.c.l.b16 %v8304
      %v8376 = vunpack.c.l.b16 %v8305
      %v8377 = vunpack.c.l.b16 %v8306
      %v8378 = vunpack.c.l.b16 %v8307
      %v8379 = vunpack.c.l.b16 %v8308
      %v8380 = vunpack.c.l.b16 %v8309
      %v8381 = vunpack.c.l.b16 %v8310
      %v8382 = vunpack.c.l.b16 %v8311
      %v8383 = vunpack.c.l.b16 %v8312
      %v8384 = vunpack.c.l.b16 %v8313
      %v8385 = vpack.c.b16 %v8354, %v8353
      %v8386 = vpack.c.b16 %v8356, %v8355
      %v8387 = vpack.c.b16 %v8358, %v8357
      %v8388 = vpack.c.b16 %v8360, %v8359
      %v8389 = vpack.c.b16 %v8362, %v8361
      %v8390 = vpack.c.b16 %v8364, %v8363
      %v8391 = vpack.c.b16 %v8366, %v8365
      %v8392 = vpack.c.b16 %v8368, %v8367
      %v8393 = vpack.c.b16 %v8370, %v8369
      %v8394 = vpack.c.b16 %v8372, %v8371
      %v8395 = vpack.c.b16 %v8374, %v8373
      %v8396 = vpack.c.b16 %v8376, %v8375
      %v8397 = vpack.c.b16 %v8378, %v8377
      %v8398 = vpack.c.b16 %v8380, %v8379
      %v8399 = vpack.c.b16 %v8382, %v8381
      %v8400 = vpack.c.b16 %v8384, %v8383
      %8417 = vmatprep.subr.bf16.mxu0 0
      %8418 = vmatpush1.bf16.msra.mxu0 %v8385
      %8419 = vmatprep.subr.bf16.mxu0 0
      %8420 = vmatpush1.bf16.msra.mxu0 %v8386
      %8421 = vmatprep.subr.bf16.mxu0 0
      %8422 = vmatpush1.bf16.msra.mxu0 %v8387
      %8423 = vmatprep.subr.bf16.mxu0 0
      %8424 = vmatpush1.bf16.msra.mxu0 %v8388
      %8425 = vmatprep.subr.bf16.mxu0 0
      %8426 = vmatpush1.bf16.msra.mxu0 %v8389
      %8427 = vmatprep.subr.bf16.mxu0 0
      %8428 = vmatpush1.bf16.msra.mxu0 %v8390
      %8429 = vmatprep.subr.bf16.mxu0 0
      %8430 = vmatpush1.bf16.msra.mxu0 %v8391
      %8431 = vmatprep.subr.bf16.mxu0 0
      %8432 = vmatpush1.bf16.msra.mxu0 %v8392
      %8433 = vmatprep.subr.bf16.mxu0 0
      %8434 = vmatpush1.bf16.msra.mxu0 %v8393
      %8435 = vmatprep.subr.bf16.mxu0 0
      %8436 = vmatpush1.bf16.msra.mxu0 %v8394
      %8437 = vmatprep.subr.bf16.mxu0 0
      %8438 = vmatpush1.bf16.msra.mxu0 %v8395
      %8439 = vmatprep.subr.bf16.mxu0 0
      %8440 = vmatpush1.bf16.msra.mxu0 %v8396
      %8441 = vmatprep.subr.bf16.mxu0 0
      %8442 = vmatpush1.bf16.msra.mxu0 %v8397
      %8443 = vmatprep.subr.bf16.mxu0 0
      %8444 = vmatpush1.bf16.msra.mxu0 %v8398
      %8445 = vmatprep.subr.bf16.mxu0 0
      %8446 = vmatpush1.bf16.msra.mxu0 %v8399
      %8447 = vmatprep.subr.bf16.mxu0 0
      %8448 = vmatpush1.bf16.msra.mxu0 %v8400
      %8449 = vmatprep.mubr.bf16.mxu0 %v8251
      %8450 = vmatmul.mubr.bf16.gmra.mrb[0].mxu0 %v8250
      %v8451 = vpop.f32.mrb[0].mxu0
      %v8452 = vadd.f32 %v8319, %v8451
      %v8453 = vpop.f32.mrb[0].mxu0
      %v8454 = vpop.f32.mrb[0].mxu0
      %v8455 = vadd.f32 %v8319, %v8454
      %v8456 = vpop.f32.mrb[0].mxu0
      %8457 = vmatprep.mubr.bf16.mxu0 %v8253
      %8458 = vmatmul.mubr.bf16.gmra.mrb[0].mxu0 %v8252
      %v8459 = vpop.f32.mrb[0].mxu0
      %v8460 = vadd.f32 %v8319, %v8459
      %v8461 = vpop.f32.mrb[0].mxu0
      %v8462 = vpop.f32.mrb[0].mxu0
      %v8463 = vadd.f32 %v8319, %v8462
      %v8464 = vpop.f32.mrb[0].mxu0
      %8465 = vmatprep.mubr.bf16.mxu0 %v8255
      %8466 = vmatmul.mubr.bf16.gmra.mrb[0].mxu0 %v8254
      %v8467 = vpop.f32.mrb[0].mxu0
      %v8468 = vadd.f32 %v8319, %v8467
      %v8469 = vpop.f32.mrb[0].mxu0
      %v8470 = vpop.f32.mrb[0].mxu0
      %v8471 = vadd.f32 %v8319, %v8470
      %v8472 = vpop.f32.mrb[0].mxu0
      %8473 = vmatprep.mubr.bf16.mxu0 %v8257
      %8474 = vmatmul.mubr.bf16.gmra.mrb[0].mxu0 %v8256
      %v8475 = vpop.f32.mrb[0].mxu0
      %v8476 = vadd.f32 %v8319, %v8475
      %v8477 = vpop.f32.mrb[0].mxu0
      %v8478 = vpop.f32.mrb[0].mxu0
      %v8479 = vadd.f32 %v8319, %v8478
      %v8480 = vpop.f32.mrb[0].mxu0
      %8481 = vmatprep.mubr.bf16.mxu0 %v8259
      %8482 = vmatmul.mubr.bf16.gmra.mrb[0].mxu0 %v8258
      %v8483 = vpop.f32.mrb[0].mxu0
      %v8484 = vadd.f32 %v8319, %v8483
      %v8485 = vpop.f32.mrb[0].mxu0
      %v8486 = vpop.f32.mrb[0].mxu0
      %v8487 = vadd.f32 %v8319, %v8486
      %v8488 = vpop.f32.mrb[0].mxu0
      %8489 = vmatprep.mubr.bf16.mxu0 %v8261
      %8490 = vmatmul.mubr.bf16.gmra.mrb[0].mxu0 %v8260
      %v8491 = vpop.f32.mrb[0].mxu0
      %v8492 = vadd.f32 %v8319, %v8491
      %v8493 = vpop.f32.mrb[0].mxu0
      %v8494 = vpop.f32.mrb[0].mxu0
      %v8495 = vadd.f32 %v8319, %v8494
      %v8496 = vpop.f32.mrb[0].mxu0
      %8497 = vmatprep.mubr.bf16.mxu0 %v8263
      %8498 = vmatmul.mubr.bf16.gmra.mrb[0].mxu0 %v8262
      %v8499 = vpop.f32.mrb[0].mxu0
      %v8500 = vadd.f32 %v8319, %v8499
      %v8501 = vpop.f32.mrb[0].mxu0
      %v8502 = vpop.f32.mrb[0].mxu0
      %v8503 = vadd.f32 %v8319, %v8502
      %v8504 = vpop.f32.mrb[0].mxu0
      %8505 = vmatprep.mubr.bf16.mxu0 %v8265
      %8506 = vmatmul.mubr.bf16.gmra.mrb[0].mxu0 %v8264
      %v8507 = vpop.f32.mrb[0].mxu0
      %v8508 = vadd.f32 %v8319, %v8507
      %v8509 = vpop.f32.mrb[0].mxu0
      %v8510 = vpop.f32.mrb[0].mxu0
      %v8511 = vadd.f32 %v8319, %v8510
      %v8512 = vpop.f32.mrb[0].mxu0
      %8513 = vmatprep.mubr.bf16.mxu0 %v8267
      %8514 = vmatmul.mubr.bf16.gmra.mrb[0].mxu0 %v8266
      %v8515 = vpop.f32.mrb[0].mxu0
      %v8516 = vadd.f32 %v8319, %v8515
      %v8517 = vpop.f32.mrb[0].mxu0
      %v8518 = vpop.f32.mrb[0].mxu0
      %v8519 = vadd.f32 %v8319, %v8518
      %v8520 = vpop.f32.mrb[0].mxu0
      %8521 = vmatprep.mubr.bf16.mxu0 %v8269
      %8522 = vmatmul.mubr.bf16.gmra.mrb[0].mxu0 %v8268
      %v8523 = vpop.f32.mrb[0].mxu0
      %v8524 = vadd.f32 %v8319, %v8523
      %v8525 = vpop.f32.mrb[0].mxu0
      %v8526 = vpop.f32.mrb[0].mxu0
      %v8527 = vadd.f32 %v8319, %v8526
      %v8528 = vpop.f32.mrb[0].mxu0
      %8529 = vmatprep.mubr.bf16.mxu0 %v8271
      %8530 = vmatmul.mubr.bf16.gmra.mrb[0].mxu0 %v8270
      %v8531 = vpop.f32.mrb[0].mxu0
      %v8532 = vadd.f32 %v8319, %v8531
      %v8533 = vpop.f32.mrb[0].mxu0
      %v8534 = vpop.f32.mrb[0].mxu0
      %v8535 = vadd.f32 %v8319, %v8534
      %v8536 = vpop.f32.mrb[0].mxu0
      %8537 = vmatprep.mubr.bf16.mxu0 %v8273
      %8538 = vmatmul.mubr.bf16.gmra.mrb[0].mxu0 %v8272
      %v8539 = vpop.f32.mrb[0].mxu0
      %v8540 = vadd.f32 %v8319, %v8539
      %v8541 = vpop.f32.mrb[0].mxu0
      %v8542 = vpop.f32.mrb[0].mxu0
      %v8543 = vadd.f32 %v8319, %v8542
      %v8544 = vpop.f32.mrb[0].mxu0
      %8545 = vmatprep.mubr.bf16.mxu0 %v8275
      %8546 = vmatmul.mubr.bf16.gmra.mrb[0].mxu0 %v8274
      %v8547 = vpop.f32.mrb[0].mxu0
      %v8548 = vadd.f32 %v8319, %v8547
      %v8549 = vpop.f32.mrb[0].mxu0
      %v8550 = vpop.f32.mrb[0].mxu0
      %v8551 = vadd.f32 %v8319, %v8550
      %v8552 = vpop.f32.mrb[0].mxu0
      %8553 = vmatprep.mubr.bf16.mxu0 %v8277
      %8554 = vmatmul.mubr.bf16.gmra.mrb[0].mxu0 %v8276
      %v8555 = vpop.f32.mrb[0].mxu0
      %v8556 = vadd.f32 %v8319, %v8555
      %v8557 = vpop.f32.mrb[0].mxu0
      %v8558 = vpop.f32.mrb[0].mxu0
      %v8559 = vadd.f32 %v8319, %v8558
      %v8560 = vpop.f32.mrb[0].mxu0
      %8561 = vmatprep.mubr.bf16.mxu0 %v8279
      %8562 = vmatmul.mubr.bf16.gmra.mrb[0].mxu0 %v8278
      %v8563 = vpop.f32.mrb[0].mxu0
      %v8564 = vadd.f32 %v8319, %v8563
      %v8565 = vpop.f32.mrb[0].mxu0
      %v8566 = vpop.f32.mrb[0].mxu0
      %v8567 = vadd.f32 %v8319, %v8566
      %v8568 = vpop.f32.mrb[0].mxu0
      %8569 = vmatprep.mubr.bf16.mxu0 %v8281
      %8570 = vmatmul.mubr.bf16.gmra.mrb[0].mxu0 %v8280
      %v8571 = vpop.f32.mrb[0].mxu0
      %v8572 = vadd.f32 %v8319, %v8571
      %v8573 = vpop.f32.mrb[0].mxu0
      %v8574 = vpop.f32.mrb[0].mxu0
      %v8575 = vadd.f32 %v8319, %v8574
      %v8576 = vpop.f32.mrb[0].mxu0
      %8577 = vdwg.mxu0
      %v8578 = vmul.f32 %v2919, %v2388
      %v8579 = vmul.f32 %v2919, %v2389
      %v8580 = vmul.f32 %v2919, %v2390
      %v8581 = vmul.f32 %v2919, %v2391
      %v8582 = vmul.f32 %v2919, %v2392
      %v8583 = vmul.f32 %v2919, %v2393
      %v8584 = vmul.f32 %v2919, %v2394
      %v8585 = vmul.f32 %v2919, %v2395
      %v8586 = vmul.f32 %v2919, %v2396
      %v8587 = vmul.f32 %v2919, %v2397
      %v8588 = vmul.f32 %v2919, %v2398
      %v8589 = vmul.f32 %v2919, %v2399
      %v8590 = vmul.f32 %v2919, %v2400
      %v8591 = vmul.f32 %v2919, %v2401
      %v8592 = vmul.f32 %v2919, %v2402
      %v8593 = vmul.f32 %v2919, %v2403
      %v8594 = vmul.f32 %v2919, %v2404
      %v8595 = vmul.f32 %v2919, %v2405
      %v8596 = vmul.f32 %v2919, %v2406
      %v8597 = vmul.f32 %v2919, %v2407
      %v8598 = vmul.f32 %v2919, %v2408
      %v8599 = vmul.f32 %v2919, %v2409
      %v8600 = vmul.f32 %v2919, %v2410
      %v8601 = vmul.f32 %v2919, %v2411
      %v8602 = vmul.f32 %v2919, %v2412
      %v8603 = vmul.f32 %v2919, %v2413
      %v8604 = vmul.f32 %v2919, %v2414
      %v8605 = vmul.f32 %v2919, %v2415
      %v8606 = vmul.f32 %v2919, %v2416
      %v8607 = vmul.f32 %v2919, %v2417
      %v8608 = vmul.f32 %v2919, %v2418
      %v8609 = vmul.f32 %v2919, %v2419
      %v8610 = vadd.f32 %v8452, %v8578
      %v8611 = vadd.f32 %v8455, %v8579
      %v8612 = vadd.f32 %v8460, %v8580
      %v8613 = vadd.f32 %v8463, %v8581
      %v8614 = vadd.f32 %v8468, %v8582
      %v8615 = vadd.f32 %v8471, %v8583
      %v8616 = vadd.f32 %v8476, %v8584
      %v8617 = vadd.f32 %v8479, %v8585
      %v8618 = vadd.f32 %v8484, %v8586
      %v8619 = vadd.f32 %v8487, %v8587
      %v8620 = vadd.f32 %v8492, %v8588
      %v8621 = vadd.f32 %v8495, %v8589
      %v8622 = vadd.f32 %v8500, %v8590
      %v8623 = vadd.f32 %v8503, %v8591
      %v8624 = vadd.f32 %v8508, %v8592
      %v8625 = vadd.f32 %v8511, %v8593
      %v8626 = vadd.f32 %v8516, %v8594
      %v8627 = vadd.f32 %v8519, %v8595
      %v8628 = vadd.f32 %v8524, %v8596
      %v8629 = vadd.f32 %v8527, %v8597
      %v8630 = vadd.f32 %v8532, %v8598
      %v8631 = vadd.f32 %v8535, %v8599
      %v8632 = vadd.f32 %v8540, %v8600
      %v8633 = vadd.f32 %v8543, %v8601
      %v8634 = vadd.f32 %v8548, %v8602
      %v8635 = vadd.f32 %v8551, %v8603
      %v8636 = vadd.f32 %v8556, %v8604
      %v8637 = vadd.f32 %v8559, %v8605
      %v8638 = vadd.f32 %v8564, %v8606
      %v8639 = vadd.f32 %v8567, %v8607
      %v8640 = vadd.f32 %v8572, %v8608
      %v8641 = vadd.f32 %v8575, %v8609
      %8642 = vst [vmem:[#allocation2] sm:$0xff] %v8610
      %8643 = vst [vmem:[#allocation2 + $0x8] sm:$0xff] %v8611
      %8644 = vst [vmem:[#allocation2 + $0x10] sm:$0xff] %v8612
      %8645 = vst [vmem:[#allocation2 + $0x18] sm:$0xff] %v8613
      %8646 = vst [vmem:[#allocation2 + $0x20] sm:$0xff] %v8614
      %8647 = vst [vmem:[#allocation2 + $0x28] sm:$0xff] %v8615
      %8648 = vst [vmem:[#allocation2 + $0x30] sm:$0xff] %v8616
      %8649 = vst [vmem:[#allocation2 + $0x38] sm:$0xff] %v8617
      %8650 = vst [vmem:[#allocation2 + $0x40] sm:$0xff] %v8618
      %8651 = vst [vmem:[#allocation2 + $0x48] sm:$0xff] %v8619
      %8652 = vst [vmem:[#allocation2 + $0x50] sm:$0xff] %v8620
      %8653 = vst [vmem:[#allocation2 + $0x58] sm:$0xff] %v8621
      %8654 = vst [vmem:[#allocation2 + $0x60] sm:$0xff] %v8622
      %8655 = vst [vmem:[#allocation2 + $0x68] sm:$0xff] %v8623
      %8656 = vst [vmem:[#allocation2 + $0x70] sm:$0xff] %v8624
      %8657 = vst [vmem:[#allocation2 + $0x78] sm:$0xff] %v8625
      %8658 = vst [vmem:[#allocation2 + $0x80] sm:$0xff] %v8626
      %8659 = vst [vmem:[#allocation2 + $0x88] sm:$0xff] %v8627
      %8660 = vst [vmem:[#allocation2 + $0x90] sm:$0xff] %v8628
      %8661 = vst [vmem:[#allocation2 + $0x98] sm:$0xff] %v8629
      %8662 = vst [vmem:[#allocation2 + $0xa0] sm:$0xff] %v8630
      %8663 = vst [vmem:[#allocation2 + $0xa8] sm:$0xff] %v8631
      %8664 = vst [vmem:[#allocation2 + $0xb0] sm:$0xff] %v8632
      %8665 = vst [vmem:[#allocation2 + $0xb8] sm:$0xff] %v8633
      %8666 = vst [vmem:[#allocation2 + $0xc0] sm:$0xff] %v8634
      %8667 = vst [vmem:[#allocation2 + $0xc8] sm:$0xff] %v8635
      %8668 = vst [vmem:[#allocation2 + $0xd0] sm:$0xff] %v8636
      %8669 = vst [vmem:[#allocation2 + $0xd8] sm:$0xff] %v8637
      %8670 = vst [vmem:[#allocation2 + $0xe0] sm:$0xff] %v8638
      %8671 = vst [vmem:[#allocation2 + $0xe8] sm:$0xff] %v8639
      %8672 = vst [vmem:[#allocation2 + $0xf0] sm:$0xff] %v8640
      %8673 = vst [vmem:[#allocation2 + $0xf8] sm:$0xff] %v8641
      %p8674 = scmp.eq.s32.totalorder %s38, 3
      // Predicated region
      $region105: #{deeper_gcn_forward.1} parent=99 // pred_check
        %p8675 = pneg %p8674
      $region106: #{deeper_gcn_forward.1} parent=99 // pred_check_branch
        %8677 = sbr.rel (%p8675) target = $region108
      $region107: #{deeper_gcn_forward.1} parent=99 // pred_region
        %v8678 = vld [vmem:[%s17] sm:$0x1]
        %v8679 = vld [vmem:[%s18] sm:$0x1]
        %8680 = vadd.xlane.f32.xlu0 %v8610
        %v8681 = vpop.xlane.xlu0 %8680
        %8682 = vadd.xlane.f32.xlu0 %v8611
        %v8683 = vpop.xlane.xlu0 %8682
        %8684 = vadd.xlane.f32.xlu0 %v8612
        %v8685 = vpop.xlane.xlu0 %8684
        %8686 = vadd.xlane.f32.xlu0 %v8613
        %v8687 = vpop.xlane.xlu0 %8686
        %8688 = vadd.xlane.f32.xlu0 %v8614
        %v8689 = vpop.xlane.xlu0 %8688
        %8690 = vadd.xlane.f32.xlu0 %v8615
        %v8691 = vpop.xlane.xlu0 %8690
        %8692 = vadd.xlane.f32.xlu0 %v8616
        %v8693 = vpop.xlane.xlu0 %8692
        %8694 = vadd.xlane.f32.xlu0 %v8617
        %v8695 = vpop.xlane.xlu0 %8694
        %8696 = vadd.xlane.f32.xlu0 %v8618
        %v8697 = vpop.xlane.xlu0 %8696
        %8698 = vadd.xlane.f32.xlu0 %v8619
        %v8699 = vpop.xlane.xlu0 %8698
        %8700 = vadd.xlane.f32.xlu0 %v8620
        %v8701 = vpop.xlane.xlu0 %8700
        %8702 = vadd.xlane.f32.xlu0 %v8621
        %v8703 = vpop.xlane.xlu0 %8702
        %8704 = vadd.xlane.f32.xlu0 %v8622
        %v8705 = vpop.xlane.xlu0 %8704
        %8706 = vadd.xlane.f32.xlu0 %v8623
        %v8707 = vpop.xlane.xlu0 %8706
        %8708 = vadd.xlane.f32.xlu0 %v8624
        %v8709 = vpop.xlane.xlu0 %8708
        %8710 = vadd.xlane.f32.xlu0 %v8625
        %v8711 = vpop.xlane.xlu0 %8710
        %8712 = vadd.xlane.f32.xlu0 %v8626
        %v8713 = vpop.xlane.xlu0 %8712
        %8714 = vadd.xlane.f32.xlu0 %v8627
        %v8715 = vpop.xlane.xlu0 %8714
        %8716 = vadd.xlane.f32.xlu0 %v8628
        %v8717 = vpop.xlane.xlu0 %8716
        %8718 = vadd.xlane.f32.xlu0 %v8629
        %v8719 = vpop.xlane.xlu0 %8718
        %8720 = vadd.xlane.f32.xlu0 %v8630
        %v8721 = vpop.xlane.xlu0 %8720
        %8722 = vadd.xlane.f32.xlu0 %v8631
        %v8723 = vpop.xlane.xlu0 %8722
        %8724 = vadd.xlane.f32.xlu0 %v8632
        %v8725 = vpop.xlane.xlu0 %8724
        %8726 = vadd.xlane.f32.xlu0 %v8633
        %v8727 = vpop.xlane.xlu0 %8726
        %8728 = vadd.xlane.f32.xlu0 %v8634
        %v8729 = vpop.xlane.xlu0 %8728
        %8730 = vadd.xlane.f32.xlu0 %v8635
        %v8731 = vpop.xlane.xlu0 %8730
        %8732 = vadd.xlane.f32.xlu0 %v8636
        %v8733 = vpop.xlane.xlu0 %8732
        %8734 = vadd.xlane.f32.xlu0 %v8637
        %v8735 = vpop.xlane.xlu0 %8734
        %8736 = vadd.xlane.f32.xlu0 %v8638
        %v8737 = vpop.xlane.xlu0 %8736
        %8738 = vadd.xlane.f32.xlu0 %v8639
        %v8739 = vpop.xlane.xlu0 %8738
        %8740 = vadd.xlane.f32.xlu0 %v8640
        %v8741 = vpop.xlane.xlu0 %8740
        %8742 = vadd.xlane.f32.xlu0 %v8641
        %v8743 = vpop.xlane.xlu0 %8742
        %v8744 = vmul.f32 %v8681, %v2488
        %v8745 = vmul.f32 %v8683, %v2488
        %v8746 = vmul.f32 %v8685, %v2488
        %v8747 = vmul.f32 %v8687, %v2488
        %v8748 = vmul.f32 %v8689, %v2488
        %v8749 = vmul.f32 %v8691, %v2488
        %v8750 = vmul.f32 %v8693, %v2488
        %v8751 = vmul.f32 %v8695, %v2488
        %v8752 = vmul.f32 %v8697, %v2488
        %v8753 = vmul.f32 %v8699, %v2488
        %v8754 = vmul.f32 %v8701, %v2488
        %v8755 = vmul.f32 %v8703, %v2488
        %v8756 = vmul.f32 %v8705, %v2488
        %v8757 = vmul.f32 %v8707, %v2488
        %v8758 = vmul.f32 %v8709, %v2488
        %v8759 = vmul.f32 %v8711, %v2488
        %v8760 = vmul.f32 %v8713, %v2488
        %v8761 = vmul.f32 %v8715, %v2488
        %v8762 = vmul.f32 %v8717, %v2488
        %v8763 = vmul.f32 %v8719, %v2488
        %v8764 = vmul.f32 %v8721, %v2488
        %v8765 = vmul.f32 %v8723, %v2488
        %v8766 = vmul.f32 %v8725, %v2488
        %v8767 = vmul.f32 %v8727, %v2488
        %v8768 = vmul.f32 %v8729, %v2488
        %v8769 = vmul.f32 %v8731, %v2488
        %v8770 = vmul.f32 %v8733, %v2488
        %v8771 = vmul.f32 %v8735, %v2488
        %v8772 = vmul.f32 %v8737, %v2488
        %v8773 = vmul.f32 %v8739, %v2488
        %v8774 = vmul.f32 %v8741, %v2488
        %v8775 = vmul.f32 %v8743, %v2488
        %v8776 = vsub.f32 %v8610, %v8744
        %v8777 = vsub.f32 %v8611, %v8745
        %v8778 = vsub.f32 %v8612, %v8746
        %v8779 = vsub.f32 %v8613, %v8747
        %v8780 = vsub.f32 %v8614, %v8748
        %v8781 = vsub.f32 %v8615, %v8749
        %v8782 = vsub.f32 %v8616, %v8750
        %v8783 = vsub.f32 %v8617, %v8751
        %v8784 = vsub.f32 %v8618, %v8752
        %v8785 = vsub.f32 %v8619, %v8753
        %v8786 = vsub.f32 %v8620, %v8754
        %v8787 = vsub.f32 %v8621, %v8755
        %v8788 = vsub.f32 %v8622, %v8756
        %v8789 = vsub.f32 %v8623, %v8757
        %v8790 = vsub.f32 %v8624, %v8758
        %v8791 = vsub.f32 %v8625, %v8759
        %v8792 = vsub.f32 %v8626, %v8760
        %v8793 = vsub.f32 %v8627, %v8761
        %v8794 = vsub.f32 %v8628, %v8762
        %v8795 = vsub.f32 %v8629, %v8763
        %v8796 = vsub.f32 %v8630, %v8764
        %v8797 = vsub.f32 %v8631, %v8765
        %v8798 = vsub.f32 %v8632, %v8766
        %v8799 = vsub.f32 %v8633, %v8767
        %v8800 = vsub.f32 %v8634, %v8768
        %v8801 = vsub.f32 %v8635, %v8769
        %v8802 = vsub.f32 %v8636, %v8770
        %v8803 = vsub.f32 %v8637, %v8771
        %v8804 = vsub.f32 %v8638, %v8772
        %v8805 = vsub.f32 %v8639, %v8773
        %v8806 = vsub.f32 %v8640, %v8774
        %v8807 = vsub.f32 %v8641, %v8775
        %v8808 = vmul.f32 %v8776, %v8776
        %v8809 = vmul.f32 %v8777, %v8777
        %v8810 = vmul.f32 %v8778, %v8778
        %v8811 = vmul.f32 %v8779, %v8779
        %v8812 = vmul.f32 %v8780, %v8780
        %v8813 = vmul.f32 %v8781, %v8781
        %v8814 = vmul.f32 %v8782, %v8782
        %v8815 = vmul.f32 %v8783, %v8783
        %v8816 = vmul.f32 %v8784, %v8784
        %v8817 = vmul.f32 %v8785, %v8785
        %v8818 = vmul.f32 %v8786, %v8786
        %v8819 = vmul.f32 %v8787, %v8787
        %v8820 = vmul.f32 %v8788, %v8788
        %v8821 = vmul.f32 %v8789, %v8789
        %v8822 = vmul.f32 %v8790, %v8790
        %v8823 = vmul.f32 %v8791, %v8791
        %v8824 = vmul.f32 %v8792, %v8792
        %v8825 = vmul.f32 %v8793, %v8793
        %v8826 = vmul.f32 %v8794, %v8794
        %v8827 = vmul.f32 %v8795, %v8795
        %v8828 = vmul.f32 %v8796, %v8796
        %v8829 = vmul.f32 %v8797, %v8797
        %v8830 = vmul.f32 %v8798, %v8798
        %v8831 = vmul.f32 %v8799, %v8799
        %v8832 = vmul.f32 %v8800, %v8800
        %v8833 = vmul.f32 %v8801, %v8801
        %v8834 = vmul.f32 %v8802, %v8802
        %v8835 = vmul.f32 %v8803, %v8803
        %v8836 = vmul.f32 %v8804, %v8804
        %v8837 = vmul.f32 %v8805, %v8805
        %v8838 = vmul.f32 %v8806, %v8806
        %v8839 = vmul.f32 %v8807, %v8807
        %8840 = vadd.xlane.f32.xlu0 %v8808
        %v8841 = vpop.xlane.xlu0 %8840
        %8842 = vadd.xlane.f32.xlu0 %v8809
        %v8843 = vpop.xlane.xlu0 %8842
        %8844 = vadd.xlane.f32.xlu0 %v8810
        %v8845 = vpop.xlane.xlu0 %8844
        %8846 = vadd.xlane.f32.xlu0 %v8811
        %v8847 = vpop.xlane.xlu0 %8846
        %8848 = vadd.xlane.f32.xlu0 %v8812
        %v8849 = vpop.xlane.xlu0 %8848
        %8850 = vadd.xlane.f32.xlu0 %v8813
        %v8851 = vpop.xlane.xlu0 %8850
        %8852 = vadd.xlane.f32.xlu0 %v8814
        %v8853 = vpop.xlane.xlu0 %8852
        %8854 = vadd.xlane.f32.xlu0 %v8815
        %v8855 = vpop.xlane.xlu0 %8854
        %8856 = vadd.xlane.f32.xlu0 %v8816
        %v8857 = vpop.xlane.xlu0 %8856
        %8858 = vadd.xlane.f32.xlu0 %v8817
        %v8859 = vpop.xlane.xlu0 %8858
        %8860 = vadd.xlane.f32.xlu0 %v8818
        %v8861 = vpop.xlane.xlu0 %8860
        %8862 = vadd.xlane.f32.xlu0 %v8819
        %v8863 = vpop.xlane.xlu0 %8862
        %8864 = vadd.xlane.f32.xlu0 %v8820
        %v8865 = vpop.xlane.xlu0 %8864
        %8866 = vadd.xlane.f32.xlu0 %v8821
        %v8867 = vpop.xlane.xlu0 %8866
        %8868 = vadd.xlane.f32.xlu0 %v8822
        %v8869 = vpop.xlane.xlu0 %8868
        %8870 = vadd.xlane.f32.xlu0 %v8823
        %v8871 = vpop.xlane.xlu0 %8870
        %8872 = vadd.xlane.f32.xlu0 %v8824
        %v8873 = vpop.xlane.xlu0 %8872
        %8874 = vadd.xlane.f32.xlu0 %v8825
        %v8875 = vpop.xlane.xlu0 %8874
        %8876 = vadd.xlane.f32.xlu0 %v8826
        %v8877 = vpop.xlane.xlu0 %8876
        %8878 = vadd.xlane.f32.xlu0 %v8827
        %v8879 = vpop.xlane.xlu0 %8878
        %8880 = vadd.xlane.f32.xlu0 %v8828
        %v8881 = vpop.xlane.xlu0 %8880
        %8882 = vadd.xlane.f32.xlu0 %v8829
        %v8883 = vpop.xlane.xlu0 %8882
        %8884 = vadd.xlane.f32.xlu0 %v8830
        %v8885 = vpop.xlane.xlu0 %8884
        %8886 = vadd.xlane.f32.xlu0 %v8831
        %v8887 = vpop.xlane.xlu0 %8886
        %8888 = vadd.xlane.f32.xlu0 %v8832
        %v8889 = vpop.xlane.xlu0 %8888
        %8890 = vadd.xlane.f32.xlu0 %v8833
        %v8891 = vpop.xlane.xlu0 %8890
        %8892 = vadd.xlane.f32.xlu0 %v8834
        %v8893 = vpop.xlane.xlu0 %8892
        %8894 = vadd.xlane.f32.xlu0 %v8835
        %v8895 = vpop.xlane.xlu0 %8894
        %8896 = vadd.xlane.f32.xlu0 %v8836
        %v8897 = vpop.xlane.xlu0 %8896
        %8898 = vadd.xlane.f32.xlu0 %v8837
        %v8899 = vpop.xlane.xlu0 %8898
        %8900 = vadd.xlane.f32.xlu0 %v8838
        %v8901 = vpop.xlane.xlu0 %8900
        %8902 = vadd.xlane.f32.xlu0 %v8839
        %v8903 = vpop.xlane.xlu0 %8902
        %v8904 = vmul.f32 %v8841, %v2488
        %v8905 = vmul.f32 %v8843, %v2488
        %v8906 = vmul.f32 %v8845, %v2488
        %v8907 = vmul.f32 %v8847, %v2488
        %v8908 = vmul.f32 %v8849, %v2488
        %v8909 = vmul.f32 %v8851, %v2488
        %v8910 = vmul.f32 %v8853, %v2488
        %v8911 = vmul.f32 %v8855, %v2488
        %v8912 = vmul.f32 %v8857, %v2488
        %v8913 = vmul.f32 %v8859, %v2488
        %v8914 = vmul.f32 %v8861, %v2488
        %v8915 = vmul.f32 %v8863, %v2488
        %v8916 = vmul.f32 %v8865, %v2488
        %v8917 = vmul.f32 %v8867, %v2488
        %v8918 = vmul.f32 %v8869, %v2488
        %v8919 = vmul.f32 %v8871, %v2488
        %v8920 = vmul.f32 %v8873, %v2488
        %v8921 = vmul.f32 %v8875, %v2488
        %v8922 = vmul.f32 %v8877, %v2488
        %v8923 = vmul.f32 %v8879, %v2488
        %v8924 = vmul.f32 %v8881, %v2488
        %v8925 = vmul.f32 %v8883, %v2488
        %v8926 = vmul.f32 %v8885, %v2488
        %v8927 = vmul.f32 %v8887, %v2488
        %v8928 = vmul.f32 %v8889, %v2488
        %v8929 = vmul.f32 %v8891, %v2488
        %v8930 = vmul.f32 %v8893, %v2488
        %v8931 = vmul.f32 %v8895, %v2488
        %v8932 = vmul.f32 %v8897, %v2488
        %v8933 = vmul.f32 %v8899, %v2488
        %v8934 = vmul.f32 %v8901, %v2488
        %v8935 = vmul.f32 %v8903, %v2488
        %v8936 = vadd.f32 %v8904, 1e-05
        %v8937 = vadd.f32 %v8905, 1e-05
        %v8938 = vadd.f32 %v8906, 1e-05
        %v8939 = vadd.f32 %v8907, 1e-05
        %v8940 = vadd.f32 %v8908, 1e-05
        %v8941 = vadd.f32 %v8909, 1e-05
        %v8942 = vadd.f32 %v8910, 1e-05
        %v8943 = vadd.f32 %v8911, 1e-05
        %v8944 = vadd.f32 %v8912, 1e-05
        %v8945 = vadd.f32 %v8913, 1e-05
        %v8946 = vadd.f32 %v8914, 1e-05
        %v8947 = vadd.f32 %v8915, 1e-05
        %v8948 = vadd.f32 %v8916, 1e-05
        %v8949 = vadd.f32 %v8917, 1e-05
        %v8950 = vadd.f32 %v8918, 1e-05
        %v8951 = vadd.f32 %v8919, 1e-05
        %v8952 = vadd.f32 %v8920, 1e-05
        %v8953 = vadd.f32 %v8921, 1e-05
        %v8954 = vadd.f32 %v8922, 1e-05
        %v8955 = vadd.f32 %v8923, 1e-05
        %v8956 = vadd.f32 %v8924, 1e-05
        %v8957 = vadd.f32 %v8925, 1e-05
        %v8958 = vadd.f32 %v8926, 1e-05
        %v8959 = vadd.f32 %v8927, 1e-05
        %v8960 = vadd.f32 %v8928, 1e-05
        %v8961 = vadd.f32 %v8929, 1e-05
        %v8962 = vadd.f32 %v8930, 1e-05
        %v8963 = vadd.f32 %v8931, 1e-05
        %v8964 = vadd.f32 %v8932, 1e-05
        %v8965 = vadd.f32 %v8933, 1e-05
        %v8966 = vadd.f32 %v8934, 1e-05
        %v8967 = vadd.f32 %v8935, 1e-05
        %v8968 = vrsqrt.pop %v8936
        %v8969 = vrsqrt.pop %v8937
        %v8970 = vrsqrt.pop %v8938
        %v8971 = vrsqrt.pop %v8939
        %v8972 = vrsqrt.pop %v8940
        %v8973 = vrsqrt.pop %v8941
        %v8974 = vrsqrt.pop %v8942
        %v8975 = vrsqrt.pop %v8943
        %v8976 = vrsqrt.pop %v8944
        %v8977 = vrsqrt.pop %v8945
        %v8978 = vrsqrt.pop %v8946
        %v8979 = vrsqrt.pop %v8947
        %v8980 = vrsqrt.pop %v8948
        %v8981 = vrsqrt.pop %v8949
        %v8982 = vrsqrt.pop %v8950
        %v8983 = vrsqrt.pop %v8951
        %v8984 = vrsqrt.pop %v8952
        %v8985 = vrsqrt.pop %v8953
        %v8986 = vrsqrt.pop %v8954
        %v8987 = vrsqrt.pop %v8955
        %v8988 = vrsqrt.pop %v8956
        %v8989 = vrsqrt.pop %v8957
        %v8990 = vrsqrt.pop %v8958
        %v8991 = vrsqrt.pop %v8959
        %v8992 = vrsqrt.pop %v8960
        %v8993 = vrsqrt.pop %v8961
        %v8994 = vrsqrt.pop %v8962
        %v8995 = vrsqrt.pop %v8963
        %v8996 = vrsqrt.pop %v8964
        %v8997 = vrsqrt.pop %v8965
        %v8998 = vrsqrt.pop %v8966
        %v8999 = vrsqrt.pop %v8967
        %v9000 = vmul.f32 %v8776, %v8968
        %v9001 = vmul.f32 %v8777, %v8969
        %v9002 = vmul.f32 %v8778, %v8970
        %v9003 = vmul.f32 %v8779, %v8971
        %v9004 = vmul.f32 %v8780, %v8972
        %v9005 = vmul.f32 %v8781, %v8973
        %v9006 = vmul.f32 %v8782, %v8974
        %v9007 = vmul.f32 %v8783, %v8975
        %v9008 = vmul.f32 %v8784, %v8976
        %v9009 = vmul.f32 %v8785, %v8977
        %v9010 = vmul.f32 %v8786, %v8978
        %v9011 = vmul.f32 %v8787, %v8979
        %v9012 = vmul.f32 %v8788, %v8980
        %v9013 = vmul.f32 %v8789, %v8981
        %v9014 = vmul.f32 %v8790, %v8982
        %v9015 = vmul.f32 %v8791, %v8983
        %v9016 = vmul.f32 %v8792, %v8984
        %v9017 = vmul.f32 %v8793, %v8985
        %v9018 = vmul.f32 %v8794, %v8986
        %v9019 = vmul.f32 %v8795, %v8987
        %v9020 = vmul.f32 %v8796, %v8988
        %v9021 = vmul.f32 %v8797, %v8989
        %v9022 = vmul.f32 %v8798, %v8990
        %v9023 = vmul.f32 %v8799, %v8991
        %v9024 = vmul.f32 %v8800, %v8992
        %v9025 = vmul.f32 %v8801, %v8993
        %v9026 = vmul.f32 %v8802, %v8994
        %v9027 = vmul.f32 %v8803, %v8995
        %v9028 = vmul.f32 %v8804, %v8996
        %v9029 = vmul.f32 %v8805, %v8997
        %v9030 = vmul.f32 %v8806, %v8998
        %v9031 = vmul.f32 %v8807, %v8999
        %v9033 = vlaneseq
        %v9034 = vshrl.u32 %v9033, 7
        %v9035 = vsub.s32 0, %v9034
        %v9036 = vrot.slane %v8678, %v9035
        %v9038 = vmul.f32 %v9000, %v9036
        %v9039 = vmul.f32 %v9001, %v9036
        %v9040 = vmul.f32 %v9002, %v9036
        %v9041 = vmul.f32 %v9003, %v9036
        %v9042 = vmul.f32 %v9004, %v9036
        %v9043 = vmul.f32 %v9005, %v9036
        %v9044 = vmul.f32 %v9006, %v9036
        %v9045 = vmul.f32 %v9007, %v9036
        %v9046 = vmul.f32 %v9008, %v9036
        %v9047 = vmul.f32 %v9009, %v9036
        %v9048 = vmul.f32 %v9010, %v9036
        %v9049 = vmul.f32 %v9011, %v9036
        %v9050 = vmul.f32 %v9012, %v9036
        %v9051 = vmul.f32 %v9013, %v9036
        %v9052 = vmul.f32 %v9014, %v9036
        %v9053 = vmul.f32 %v9015, %v9036
        %v9054 = vmul.f32 %v9016, %v9036
        %v9055 = vmul.f32 %v9017, %v9036
        %v9056 = vmul.f32 %v9018, %v9036
        %v9057 = vmul.f32 %v9019, %v9036
        %v9058 = vmul.f32 %v9020, %v9036
        %v9059 = vmul.f32 %v9021, %v9036
        %v9060 = vmul.f32 %v9022, %v9036
        %v9061 = vmul.f32 %v9023, %v9036
        %v9062 = vmul.f32 %v9024, %v9036
        %v9063 = vmul.f32 %v9025, %v9036
        %v9064 = vmul.f32 %v9026, %v9036
        %v9065 = vmul.f32 %v9027, %v9036
        %v9066 = vmul.f32 %v9028, %v9036
        %v9067 = vmul.f32 %v9029, %v9036
        %v9068 = vmul.f32 %v9030, %v9036
        %v9069 = vmul.f32 %v9031, %v9036
        %v9071 = vlaneseq
        %v9072 = vshrl.u32 %v9071, 7
        %v9073 = vsub.s32 0, %v9072
        %v9074 = vrot.slane %v8679, %v9073
        %v9076 = vadd.f32 %v9038, %v9074
        %v9077 = vadd.f32 %v9039, %v9074
        %v9078 = vadd.f32 %v9040, %v9074
        %v9079 = vadd.f32 %v9041, %v9074
        %v9080 = vadd.f32 %v9042, %v9074
        %v9081 = vadd.f32 %v9043, %v9074
        %v9082 = vadd.f32 %v9044, %v9074
        %v9083 = vadd.f32 %v9045, %v9074
        %v9084 = vadd.f32 %v9046, %v9074
        %v9085 = vadd.f32 %v9047, %v9074
        %v9086 = vadd.f32 %v9048, %v9074
        %v9087 = vadd.f32 %v9049, %v9074
        %v9088 = vadd.f32 %v9050, %v9074
        %v9089 = vadd.f32 %v9051, %v9074
        %v9090 = vadd.f32 %v9052, %v9074
        %v9091 = vadd.f32 %v9053, %v9074
        %v9092 = vadd.f32 %v9054, %v9074
        %v9093 = vadd.f32 %v9055, %v9074
        %v9094 = vadd.f32 %v9056, %v9074
        %v9095 = vadd.f32 %v9057, %v9074
        %v9096 = vadd.f32 %v9058, %v9074
        %v9097 = vadd.f32 %v9059, %v9074
        %v9098 = vadd.f32 %v9060, %v9074
        %v9099 = vadd.f32 %v9061, %v9074
        %v9100 = vadd.f32 %v9062, %v9074
        %v9101 = vadd.f32 %v9063, %v9074
        %v9102 = vadd.f32 %v9064, %v9074
        %v9103 = vadd.f32 %v9065, %v9074
        %v9104 = vadd.f32 %v9066, %v9074
        %v9105 = vadd.f32 %v9067, %v9074
        %v9106 = vadd.f32 %v9068, %v9074
        %v9107 = vadd.f32 %v9069, %v9074
        %v9108 = vmax.f32 %v9076, 0.0
        %v9109 = vmax.f32 %v9077, 0.0
        %v9110 = vmax.f32 %v9078, 0.0
        %v9111 = vmax.f32 %v9079, 0.0
        %v9112 = vmax.f32 %v9080, 0.0
        %v9113 = vmax.f32 %v9081, 0.0
        %v9114 = vmax.f32 %v9082, 0.0
        %v9115 = vmax.f32 %v9083, 0.0
        %v9116 = vmax.f32 %v9084, 0.0
        %v9117 = vmax.f32 %v9085, 0.0
        %v9118 = vmax.f32 %v9086, 0.0
        %v9119 = vmax.f32 %v9087, 0.0
        %v9120 = vmax.f32 %v9088, 0.0
        %v9121 = vmax.f32 %v9089, 0.0
        %v9122 = vmax.f32 %v9090, 0.0
        %v9123 = vmax.f32 %v9091, 0.0
        %v9124 = vmax.f32 %v9092, 0.0
        %v9125 = vmax.f32 %v9093, 0.0
        %v9126 = vmax.f32 %v9094, 0.0
        %v9127 = vmax.f32 %v9095, 0.0
        %v9128 = vmax.f32 %v9096, 0.0
        %v9129 = vmax.f32 %v9097, 0.0
        %v9130 = vmax.f32 %v9098, 0.0
        %v9131 = vmax.f32 %v9099, 0.0
        %v9132 = vmax.f32 %v9100, 0.0
        %v9133 = vmax.f32 %v9101, 0.0
        %v9134 = vmax.f32 %v9102, 0.0
        %v9135 = vmax.f32 %v9103, 0.0
        %v9136 = vmax.f32 %v9104, 0.0
        %v9137 = vmax.f32 %v9105, 0.0
        %v9138 = vmax.f32 %v9106, 0.0
        %v9139 = vmax.f32 %v9107, 0.0
        %v9140 = vpack.c.bf16 %v9109, %v9108
        %v9141 = vpack.c.bf16 %v9111, %v9110
        %v9142 = vpack.c.bf16 %v9113, %v9112
        %v9143 = vpack.c.bf16 %v9115, %v9114
        %v9144 = vpack.c.bf16 %v9117, %v9116
        %v9145 = vpack.c.bf16 %v9119, %v9118
        %v9146 = vpack.c.bf16 %v9121, %v9120
        %v9147 = vpack.c.bf16 %v9123, %v9122
        %v9148 = vpack.c.bf16 %v9125, %v9124
        %v9149 = vpack.c.bf16 %v9127, %v9126
        %v9150 = vpack.c.bf16 %v9129, %v9128
        %v9151 = vpack.c.bf16 %v9131, %v9130
        %v9152 = vpack.c.bf16 %v9133, %v9132
        %v9153 = vpack.c.bf16 %v9135, %v9134
        %v9154 = vpack.c.bf16 %v9137, %v9136
        %v9155 = vpack.c.bf16 %v9139, %v9138
        %v9156 = vld [vmem:[%s19] sm:$0xf]
        %v9157 = vld [vmem:[%s19 + $0x4] sm:$0xf]
        %v9158 = vld [vmem:[%s19 + $0x8] sm:$0xf]
        %v9159 = vld [vmem:[%s19 + $0xc] sm:$0xf]
        %v9160 = vld [vmem:[%s19 + $0x10] sm:$0xf]
        %v9161 = vld [vmem:[%s19 + $0x14] sm:$0xf]
        %v9162 = vld [vmem:[%s19 + $0x18] sm:$0xf]
        %v9163 = vld [vmem:[%s19 + $0x1c] sm:$0xf]
        %v9164 = vld [vmem:[%s19 + $0x20] sm:$0xf]
        %v9165 = vld [vmem:[%s19 + $0x24] sm:$0xf]
        %v9166 = vld [vmem:[%s19 + $0x28] sm:$0xf]
        %v9167 = vld [vmem:[%s19 + $0x2c] sm:$0xf]
        %v9168 = vld [vmem:[%s19 + $0x30] sm:$0xf]
        %v9169 = vld [vmem:[%s19 + $0x34] sm:$0xf]
        %v9170 = vld [vmem:[%s19 + $0x38] sm:$0xf]
        %v9171 = vld [vmem:[%s19 + $0x3c] sm:$0xf]
        %v9172 = vld [vmem:[%s20] sm:$0x1]
        %v9174 = vlaneseq
        %v9175 = vshrl.u32 %v9174, 7
        %v9176 = vsub.s32 0, %v9175
        %v9177 = vrot.slane %v9172, %v9176
        %v9195 = vunpack.c.l.b16 %v9156
        %v9196 = vunpack.c.l.b16 %v9157
        %v9197 = vunpack.c.l.b16 %v9158
        %v9198 = vunpack.c.l.b16 %v9159
        %v9199 = vunpack.c.l.b16 %v9160
        %v9200 = vunpack.c.l.b16 %v9161
        %v9201 = vunpack.c.l.b16 %v9162
        %v9202 = vunpack.c.l.b16 %v9163
        %v9203 = vunpack.c.l.b16 %v9164
        %v9204 = vunpack.c.l.b16 %v9165
        %v9205 = vunpack.c.l.b16 %v9166
        %v9206 = vunpack.c.l.b16 %v9167
        %v9207 = vunpack.c.l.b16 %v9168
        %v9208 = vunpack.c.l.b16 %v9169
        %v9209 = vunpack.c.l.b16 %v9170
        %v9210 = vunpack.c.l.b16 %v9171
        %v9211 = vpack.c.b16 %v9196, %v9195
        %v9212 = vpack.c.b16 %v9198, %v9197
        %v9213 = vpack.c.b16 %v9200, %v9199
        %v9214 = vpack.c.b16 %v9202, %v9201
        %v9215 = vpack.c.b16 %v9204, %v9203
        %v9216 = vpack.c.b16 %v9206, %v9205
        %v9217 = vpack.c.b16 %v9208, %v9207
        %v9218 = vpack.c.b16 %v9210, %v9209
        %9227 = vmatprep.subr.bf16.mxu0 0
        %9228 = vmatpush1.bf16.msra.mxu0 %v9211
        %9229 = vmatprep.subr.bf16.mxu0 0
        %9230 = vmatpush1.bf16.msra.mxu0 %v9212
        %9231 = vmatprep.subr.bf16.mxu0 0
        %9232 = vmatpush1.bf16.msra.mxu0 %v9213
        %9233 = vmatprep.subr.bf16.mxu0 0
        %9234 = vmatpush1.bf16.msra.mxu0 %v9214
        %9235 = vmatprep.subr.bf16.mxu0 0
        %9236 = vmatpush1.bf16.msra.mxu0 %v9215
        %9237 = vmatprep.subr.bf16.mxu0 0
        %9238 = vmatpush1.bf16.msra.mxu0 %v9216
        %9239 = vmatprep.subr.bf16.mxu0 0
        %9240 = vmatpush1.bf16.msra.mxu0 %v9217
        %9241 = vmatprep.subr.bf16.mxu0 0
        %9242 = vmatpush1.bf16.msra.mxu0 %v9218
        %9243 = vmatprep.subr.bf16.mxu0 0
        %9244 = vmatpush1.bf16.msra.mxu0 0
        %9245 = vmatprep.subr.bf16.mxu0 0
        %9246 = vmatpush1.bf16.msra.mxu0 0
        %9247 = vmatprep.subr.bf16.mxu0 0
        %9248 = vmatpush1.bf16.msra.mxu0 0
        %9249 = vmatprep.subr.bf16.mxu0 0
        %9250 = vmatpush1.bf16.msra.mxu0 0
        %9251 = vmatprep.subr.bf16.mxu0 0
        %9252 = vmatpush1.bf16.msra.mxu0 0
        %9253 = vmatprep.subr.bf16.mxu0 0
        %9254 = vmatpush1.bf16.msra.mxu0 0
        %9255 = vmatprep.subr.bf16.mxu0 0
        %9256 = vmatpush1.bf16.msra.mxu0 0
        %9257 = vmatprep.subr.bf16.mxu0 0
        %9258 = vmatpush1.bf16.msra.mxu0 0
        %9259 = vmatprep.mubr.bf16.mxu0 0
        %9260 = vmatmul.mubr.bf16.gmra.mrb[0].mxu0 %v9140
        %v9261 = vpop.f32.mrb[0].mxu0
        %v9262 = vadd.f32 %v9177, %v9261
        %v9263 = vpop.f32.mrb[0].mxu0
        %v9264 = vpop.f32.mrb[0].mxu0
        %v9265 = vadd.f32 %v9177, %v9264
        %v9266 = vpop.f32.mrb[0].mxu0
        %9267 = vmatprep.mubr.bf16.mxu0 0
        %9268 = vmatmul.mubr.bf16.gmra.mrb[0].mxu0 %v9141
        %v9269 = vpop.f32.mrb[0].mxu0
        %v9270 = vadd.f32 %v9177, %v9269
        %v9271 = vpop.f32.mrb[0].mxu0
        %v9272 = vpop.f32.mrb[0].mxu0
        %v9273 = vadd.f32 %v9177, %v9272
        %v9274 = vpop.f32.mrb[0].mxu0
        %9275 = vmatprep.mubr.bf16.mxu0 0
        %9276 = vmatmul.mubr.bf16.gmra.mrb[0].mxu0 %v9142
        %v9277 = vpop.f32.mrb[0].mxu0
        %v9278 = vadd.f32 %v9177, %v9277
        %v9279 = vpop.f32.mrb[0].mxu0
        %v9280 = vpop.f32.mrb[0].mxu0
        %v9281 = vadd.f32 %v9177, %v9280
        %v9282 = vpop.f32.mrb[0].mxu0
        %9283 = vmatprep.mubr.bf16.mxu0 0
        %9284 = vmatmul.mubr.bf16.gmra.mrb[0].mxu0 %v9143
        %v9285 = vpop.f32.mrb[0].mxu0
        %v9286 = vadd.f32 %v9177, %v9285
        %v9287 = vpop.f32.mrb[0].mxu0
        %v9288 = vpop.f32.mrb[0].mxu0
        %v9289 = vadd.f32 %v9177, %v9288
        %v9290 = vpop.f32.mrb[0].mxu0
        %9291 = vmatprep.mubr.bf16.mxu0 0
        %9292 = vmatmul.mubr.bf16.gmra.mrb[0].mxu0 %v9144
        %v9293 = vpop.f32.mrb[0].mxu0
        %v9294 = vadd.f32 %v9177, %v9293
        %v9295 = vpop.f32.mrb[0].mxu0
        %v9296 = vpop.f32.mrb[0].mxu0
        %v9297 = vadd.f32 %v9177, %v9296
        %v9298 = vpop.f32.mrb[0].mxu0
        %9299 = vmatprep.mubr.bf16.mxu0 0
        %9300 = vmatmul.mubr.bf16.gmra.mrb[0].mxu0 %v9145
        %v9301 = vpop.f32.mrb[0].mxu0
        %v9302 = vadd.f32 %v9177, %v9301
        %v9303 = vpop.f32.mrb[0].mxu0
        %v9304 = vpop.f32.mrb[0].mxu0
        %v9305 = vadd.f32 %v9177, %v9304
        %v9306 = vpop.f32.mrb[0].mxu0
        %9307 = vmatprep.mubr.bf16.mxu0 0
        %9308 = vmatmul.mubr.bf16.gmra.mrb[0].mxu0 %v9146
        %v9309 = vpop.f32.mrb[0].mxu0
        %v9310 = vadd.f32 %v9177, %v9309
        %v9311 = vpop.f32.mrb[0].mxu0
        %v9312 = vpop.f32.mrb[0].mxu0
        %v9313 = vadd.f32 %v9177, %v9312
        %v9314 = vpop.f32.mrb[0].mxu0
        %9315 = vmatprep.mubr.bf16.mxu0 0
        %9316 = vmatmul.mubr.bf16.gmra.mrb[0].mxu0 %v9147
        %v9317 = vpop.f32.mrb[0].mxu0
        %v9318 = vadd.f32 %v9177, %v9317
        %v9319 = vpop.f32.mrb[0].mxu0
        %v9320 = vpop.f32.mrb[0].mxu0
        %v9321 = vadd.f32 %v9177, %v9320
        %v9322 = vpop.f32.mrb[0].mxu0
        %9323 = vmatprep.mubr.bf16.mxu0 0
        %9324 = vmatmul.mubr.bf16.gmra.mrb[0].mxu0 %v9148
        %v9325 = vpop.f32.mrb[0].mxu0
        %v9326 = vadd.f32 %v9177, %v9325
        %v9327 = vpop.f32.mrb[0].mxu0
        %v9328 = vpop.f32.mrb[0].mxu0
        %v9329 = vadd.f32 %v9177, %v9328
        %v9330 = vpop.f32.mrb[0].mxu0
        %9331 = vmatprep.mubr.bf16.mxu0 0
        %9332 = vmatmul.mubr.bf16.gmra.mrb[0].mxu0 %v9149
        %v9333 = vpop.f32.mrb[0].mxu0
        %v9334 = vadd.f32 %v9177, %v9333
        %v9335 = vpop.f32.mrb[0].mxu0
        %v9336 = vpop.f32.mrb[0].mxu0
        %v9337 = vadd.f32 %v9177, %v9336
        %v9338 = vpop.f32.mrb[0].mxu0
        %9339 = vmatprep.mubr.bf16.mxu0 0
        %9340 = vmatmul.mubr.bf16.gmra.mrb[0].mxu0 %v9150
        %v9341 = vpop.f32.mrb[0].mxu0
        %v9342 = vadd.f32 %v9177, %v9341
        %v9343 = vpop.f32.mrb[0].mxu0
        %v9344 = vpop.f32.mrb[0].mxu0
        %v9345 = vadd.f32 %v9177, %v9344
        %v9346 = vpop.f32.mrb[0].mxu0
        %9347 = vmatprep.mubr.bf16.mxu0 0
        %9348 = vmatmul.mubr.bf16.gmra.mrb[0].mxu0 %v9151
        %v9349 = vpop.f32.mrb[0].mxu0
        %v9350 = vadd.f32 %v9177, %v9349
        %v9351 = vpop.f32.mrb[0].mxu0
        %v9352 = vpop.f32.mrb[0].mxu0
        %v9353 = vadd.f32 %v9177, %v9352
        %v9354 = vpop.f32.mrb[0].mxu0
        %9355 = vmatprep.mubr.bf16.mxu0 0
        %9356 = vmatmul.mubr.bf16.gmra.mrb[0].mxu0 %v9152
        %v9357 = vpop.f32.mrb[0].mxu0
        %v9358 = vadd.f32 %v9177, %v9357
        %v9359 = vpop.f32.mrb[0].mxu0
        %v9360 = vpop.f32.mrb[0].mxu0
        %v9361 = vadd.f32 %v9177, %v9360
        %v9362 = vpop.f32.mrb[0].mxu0
        %9363 = vmatprep.mubr.bf16.mxu0 0
        %9364 = vmatmul.mubr.bf16.gmra.mrb[0].mxu0 %v9153
        %v9365 = vpop.f32.mrb[0].mxu0
        %v9366 = vadd.f32 %v9177, %v9365
        %v9367 = vpop.f32.mrb[0].mxu0
        %v9368 = vpop.f32.mrb[0].mxu0
        %v9369 = vadd.f32 %v9177, %v9368
        %v9370 = vpop.f32.mrb[0].mxu0
        %9371 = vmatprep.mubr.bf16.mxu0 0
        %9372 = vmatmul.mubr.bf16.gmra.mrb[0].mxu0 %v9154
        %v9373 = vpop.f32.mrb[0].mxu0
        %v9374 = vadd.f32 %v9177, %v9373
        %v9375 = vpop.f32.mrb[0].mxu0
        %v9376 = vpop.f32.mrb[0].mxu0
        %v9377 = vadd.f32 %v9177, %v9376
        %v9378 = vpop.f32.mrb[0].mxu0
        %9379 = vmatprep.mubr.bf16.mxu0 0
        %9380 = vmatmul.mubr.bf16.gmra.mrb[0].mxu0 %v9155
        %v9381 = vpop.f32.mrb[0].mxu0
        %v9382 = vadd.f32 %v9177, %v9381
        %v9383 = vpop.f32.mrb[0].mxu0
        %v9384 = vpop.f32.mrb[0].mxu0
        %v9385 = vadd.f32 %v9177, %v9384
        %v9386 = vpop.f32.mrb[0].mxu0
        %9387 = vdwg.mxu0
        %9388 = vst [vmem:[%s21] sm:$0xff] %v9262
        %9389 = vst [vmem:[%s21 + $0x8] sm:$0xff] %v9265
        %9390 = vst [vmem:[%s21 + $0x10] sm:$0xff] %v9270
        %9391 = vst [vmem:[%s21 + $0x18] sm:$0xff] %v9273
        %9392 = vst [vmem:[%s21 + $0x20] sm:$0xff] %v9278
        %9393 = vst [vmem:[%s21 + $0x28] sm:$0xff] %v9281
        %9394 = vst [vmem:[%s21 + $0x30] sm:$0xff] %v9286
        %9395 = vst [vmem:[%s21 + $0x38] sm:$0xff] %v9289
        %9396 = vst [vmem:[%s21 + $0x40] sm:$0xff] %v9294
        %9397 = vst [vmem:[%s21 + $0x48] sm:$0xff] %v9297
        %9398 = vst [vmem:[%s21 + $0x50] sm:$0xff] %v9302
        %9399 = vst [vmem:[%s21 + $0x58] sm:$0xff] %v9305
        %9400 = vst [vmem:[%s21 + $0x60] sm:$0xff] %v9310
        %9401 = vst [vmem:[%s21 + $0x68] sm:$0xff] %v9313
        %9402 = vst [vmem:[%s21 + $0x70] sm:$0xff] %v9318
        %9403 = vst [vmem:[%s21 + $0x78] sm:$0xff] %v9321
        %9404 = vst [vmem:[%s21 + $0x80] sm:$0xff] %v9326
        %9405 = vst [vmem:[%s21 + $0x88] sm:$0xff] %v9329
        %9406 = vst [vmem:[%s21 + $0x90] sm:$0xff] %v9334
        %9407 = vst [vmem:[%s21 + $0x98] sm:$0xff] %v9337
        %9408 = vst [vmem:[%s21 + $0xa0] sm:$0xff] %v9342
        %9409 = vst [vmem:[%s21 + $0xa8] sm:$0xff] %v9345
        %9410 = vst [vmem:[%s21 + $0xb0] sm:$0xff] %v9350
        %9411 = vst [vmem:[%s21 + $0xb8] sm:$0xff] %v9353
        %9412 = vst [vmem:[%s21 + $0xc0] sm:$0xff] %v9358
        %9413 = vst [vmem:[%s21 + $0xc8] sm:$0xff] %v9361
        %9414 = vst [vmem:[%s21 + $0xd0] sm:$0xff] %v9366
        %9415 = vst [vmem:[%s21 + $0xd8] sm:$0xff] %v9369
        %9416 = vst [vmem:[%s21 + $0xe0] sm:$0xff] %v9374
        %9417 = vst [vmem:[%s21 + $0xe8] sm:$0xff] %v9377
        %9418 = vst [vmem:[%s21 + $0xf0] sm:$0xff] %v9382
        %9419 = vst [vmem:[%s21 + $0xf8] sm:$0xff] %v9385
      $region108: #{deeper_gcn_forward.1} parent=99 // pred_fallthru
        _
      // Predicated region
      $region109: #{deeper_gcn_forward.1} parent=99 // pred_check
        %p9420 = pneg %p511
      $region110: #{deeper_gcn_forward.1} parent=99 // pred_check_branch
        %9422 = sbr.rel (%p9420) target = $region112
      $region111: #{deeper_gcn_forward.1} parent=99 // pred_region
        _
      $region112: #{deeper_gcn_forward.1} parent=99 // pred_fallthru
        _
      // Predicated region
      $region113: #{deeper_gcn_forward.1} parent=99 // pred_check
        %p9423 = pneg %p511
      $region114: #{deeper_gcn_forward.1} parent=99 // pred_check_branch
        %9425 = sbr.rel (%p9423) target = $region116
      $region115: #{deeper_gcn_forward.1} parent=99 // pred_region
        _
      $region116: #{deeper_gcn_forward.1} parent=99 // pred_fallthru
        _
    $region100: #{deeper_gcn_forward.1} parent=5 // pred_fallthru
      _
    %p9426 = scmp.le.s32.totalorder 2, %s33
    // Predicated region
    $region117: #{deeper_gcn_forward.1} parent=5 // pred_check
      %p9427 = pneg %p9426
    $region118: #{deeper_gcn_forward.1} parent=5 // pred_check_branch
      %9429 = sbr.rel (%p9427) target = $region120
    $region119: #{deeper_gcn_forward.1} parent=5 // pred_region
      %s9430 = ssub.s32 %s33, 2
    $region120: #{deeper_gcn_forward.1} parent=5 // pred_fallthru
      _
  $region6: #{deeper_gcn_forward.1} parent=0 // loop_footer
    %s37 = sadd.s32 1, %s33
  $region7: #{deeper_gcn_forward.1} parent=0 // loop_footer_branch
    %32 = sbr.rel target = $region3
  $region8: #{deeper_gcn_forward.1} parent=0 // loop_exit
    _

</llo_original>
